<compile_context>
chip_gen: v5e
topology: v5e:2x2
jax: 0.10.0
libtpu: 0.0.40
codegen_flags: <defaults>
</compile_context>

<pallas_src>
import functools

import jax
import jax.numpy as jnp
from jax import lax
from jax.experimental import pallas as pl
from jax.experimental.pallas import tpu as pltpu


_LANE = 128                      # lane width: Cout padded to a multiple of this
_W_ALIGN = 16                    # bf16 packs 16 rows/sublane tile -> W multiple of 16
_COUT_TILE = 256                 # fills the 256-wide MXU on v6e/v7x (use 128 on v5e)
_ROW_TILE_BUDGET = 2 << 20       # target bytes for the haloed activation block(s)
_VMEM_LIMIT = 48 * 1024 * 1024   # v5e scoped default is only 16 MiB


def _round_up(x, m):
    return (x + m - 1) // m * m


def _cout_tile(cp):
    return _COUT_TILE if cp % _COUT_TILE == 0 else min(cp, _LANE)


def _pick_row_tile(rows, row_bytes, halo):
    """Largest divisor of `rows` whose haloed input block fits the VMEM budget."""
    for t in range(rows, 1, -1):
        if rows % t == 0 and (t + halo) * row_bytes <= _ROW_TILE_BUDGET:
            return t
    return 1


# ----------------------------- Pallas kernels ------------------------------

def _taps_s1(x, Ho, Wo):
    """9 stride-1 taps of a haloed (Ho+2, Wo+2, Cin) block, dj-shift hoisted
    (3 sublane relayouts instead of 9; the di shift is a free leading-dim slice)."""
    xs = [x[:, dj:dj + Wo, :] for dj in range(3)]
    return [xs[dj][di:di + Ho] for di in range(3) for dj in range(3)]


def _taps_s2(ph, Ho, Wo):
    """9 stride-2 taps from the 4 even/odd phase grids ph[r][c] of shape
    (Ho+1, Wo+1, Cin); column shifts hoisted, row shifts are free."""
    cols = {}
    for dj in range(3):
        c, off = dj % 2, dj // 2
        for r in range(2):
            cols[(r, dj)] = ph[r][c][:, off:off + Wo, :]
    return [cols[(di % 2, dj)][di // 2:di // 2 + Ho]
            for di in range(3) for dj in range(3)]


def _matmul_taps(taps, w_ref, Ho, Wo, Cin, Ct, im2col):
    """MXU contraction of the 9 bf16 taps against the folded weights."""
    if im2col:
        # Small Cin: one dot with K = 9*Cin (weights pre-reshaped to (9*Cin, Cp)).
        patch = jnp.concatenate(taps, axis=-1).reshape(Ho * Wo, 9 * Cin)
        return jnp.dot(patch, w_ref[...], preferred_element_type=jnp.float32)
    acc = jnp.zeros((Ho * Wo, Ct), jnp.float32)
    for k, t in enumerate(taps):
        di, dj = divmod(k, 3)
        acc = acc + jnp.dot(t.reshape(Ho * Wo, Cin), w_ref[di, dj],
                            preferred_element_type=jnp.float32)
    return acc


def _bn_relu_store(acc, scale_ref, bias_ref, o_ref, Ho, Wo, Ct, w_valid):
    y = jnp.maximum(acc * scale_ref[...] + bias_ref[...], 0.0).reshape(Ho, Wo, Ct)
    if w_valid < Wo:
        # Zero the padded W columns so the output chains without slicing.
        col = lax.broadcasted_iota(jnp.int32, (Ho, Wo, Ct), 1)
        y = jnp.where(col < w_valid, y, 0.0)
    o_ref[...] = y[None].astype(o_ref.dtype)


def _conv_kernel_s1(a_ref, w_ref, scale_ref, bias_ref, o_ref,
                    *, Ho, Wo, Cin, Ct, w_valid, im2col):
    x = a_ref[0]                                     # (Ho+2, Wo+2, Cin) bf16
    acc = _matmul_taps(_taps_s1(x, Ho, Wo), w_ref, Ho, Wo, Cin, Ct, im2col)
    _bn_relu_store(acc, scale_ref, bias_ref, o_ref, Ho, Wo, Ct, w_valid)


def _mul_conv_kernel_s1(a_ref, m_ref, w_ref, scale_ref, bias_ref, o_ref,
                        *, Ho, Wo, Cin, Ct, w_valid, im2col):
    # Fused elementwise product: computed once, rounded to bf16 once.
    x = (a_ref[0].astype(jnp.float32) *
         m_ref[0].astype(jnp.float32)).astype(jnp.bfloat16)
    acc = _matmul_taps(_taps_s1(x, Ho, Wo), w_ref, Ho, Wo, Cin, Ct, im2col)
    _bn_relu_store(acc, scale_ref, bias_ref, o_ref, Ho, Wo, Ct, w_valid)


def _conv_kernel_s2(p00_ref, p01_ref, p10_ref, p11_ref,
                    w_ref, scale_ref, bias_ref, o_ref,
                    *, Ho, Wo, Cin, Ct, w_valid, im2col):
    ph = ((p00_ref[0], p01_ref[0]), (p10_ref[0], p11_ref[0]))
    acc = _matmul_taps(_taps_s2(ph, Ho, Wo), w_ref, Ho, Wo, Cin, Ct, im2col)
    _bn_relu_store(acc, scale_ref, bias_ref, o_ref, Ho, Wo, Ct, w_valid)


# ------------------------------ call wrappers -------------------------------

def _halo_pad(x, wt):
    """bf16 cast + 1-px halo + extend width so the padded block is wt+2 wide."""
    return jnp.pad(x.astype(jnp.bfloat16),
                   ((0, 0), (1, 1), (1, wt + 1 - x.shape[2]), (0, 0)))


def _stack_row_windows(x, n_tiles, tile, window):
    """(N, R, Wp, C) -> (N*n_tiles, window, Wp, C); tiles overlap by window-tile."""
    if n_tiles == 1:
        return x
    xs = jnp.stack([x[:, r * tile:r * tile + window] for r in range(n_tiles)],
                   axis=1)
    return xs.reshape((x.shape[0] * n_tiles, window) + x.shape[2:])


def _weight_specs(wk, ct):
    if wk.ndim == 2:                                   # im2col: (9*Cin, Cp)
        wspec = pl.BlockSpec((wk.shape[0], ct), lambda n, r, c: (0, c))
    else:                                              # per-tap: (3, 3, Cin, Cp)
        wspec = pl.BlockSpec((3, 3, wk.shape[2], ct),
                             lambda n, r, c: (0, 0, 0, c))
    vspec = pl.BlockSpec((1, ct), lambda n, r, c: (0, c))
    return [wspec, vspec, vspec]


def _compiler_params():
    return pltpu.CompilerParams(
        dimension_semantics=("parallel", "parallel", "parallel"),
        vmem_limit_bytes=_VMEM_LIMIT)


def _cost_estimate(n, ho, wo, cin, cp, act_bytes, folded, out_itemsize):
    wk, scale, bias = folded
    w_bytes = wk.size * 2 + (scale.size + bias.size) * 4
    return pl.CostEstimate(
        flops=2 * 9 * n * ho * wo * cin * cp,
        transcendentals=0,
        bytes_accessed=act_bytes + w_bytes + n * ho * wo * cp * out_itemsize)


def conv3x3_s1_bn_relu(a, folded, mul=None, *, w_valid, out_dtype=jnp.bfloat16):
    """relu(BN(conv3x3_s1_p1(a * mul))); `mul` optional (product fused in-kernel).

    `a` / `mul` are NHWC with width >= w_valid and zero columns beyond w_valid.
    Output is (N, H, Wt, Cp) with Wt = round_up(w_valid, 16); padded columns and
    padded output channels are zero, so it chains into the next conv unsliced.
    """
    wk, scale, bias = folded
    N, H, _, Cin = a.shape
    Cp = scale.shape[-1]
    Ct = _cout_tile(Cp)
    Wt = _round_up(w_valid, _W_ALIGN)
    im2col = wk.ndim == 2

    n_inputs = 1 if mul is None else 2
    Ht = _pick_row_tile(H, (Wt + 2) * Cin * 2 * n_inputs, halo=2)
    nH = H // Ht

    x_spec = pl.BlockSpec((1, Ht + 2, Wt + 2, Cin),
                          lambda n, r, c, nH=nH: (n * nH + r, 0, 0, 0))
    args = [_stack_row_windows(_halo_pad(a, Wt), nH, Ht, Ht + 2)]
    in_specs = [x_spec]
    if mul is not None:
        assert mul.shape[0] == N and mul.shape[1] == H and mul.shape[3] == Cin
        args.append(_stack_row_windows(_halo_pad(mul, Wt), nH, Ht, Ht + 2))
        in_specs.append(x_spec)
        kern = functools.partial(_mul_conv_kernel_s1, Ho=Ht, Wo=Wt, Cin=Cin,
                                 Ct=Ct, w_valid=w_valid, im2col=im2col)
    else:
        kern = functools.partial(_conv_kernel_s1, Ho=Ht, Wo=Wt, Cin=Cin,
                                 Ct=Ct, w_valid=w_valid, im2col=im2col)

    act_bytes = sum(int(x.size) for x in args) * 2
    args += [wk, scale, bias]
    in_specs += _weight_specs(wk, Ct)

    return pl.pallas_call(
        kern,
        out_shape=jax.ShapeDtypeStruct((N, H, Wt, Cp), out_dtype),
        grid=(N, nH, Cp // Ct),
        in_specs=in_specs,
        out_specs=pl.BlockSpec((1, Ht, Wt, Ct), lambda n, r, c: (n, r, 0, c)),
        compiler_params=_compiler_params(),
        cost_estimate=_cost_estimate(N, H, Wt, Cin, Cp, act_bytes, folded,
                                     jnp.dtype(out_dtype).itemsize),
    )(*args)


def conv3x3_s2_bn_relu(a, folded, *, out_dtype=jnp.bfloat16):
    """relu(BN(conv3x3_s2_p1(a))).  `a` is NHWC, fully valid, even H and W."""
    wk, scale, bias = folded
    N, H, W, Cin = a.shape
    assert H % 2 == 0 and W % 2 == 0, "stride-2 path assumes even H, W"
    h, w = H // 2, W // 2
    Cp = scale.shape[-1]
    Ct = _cout_tile(Cp)
    Wt = _round_up(w, _W_ALIGN)
    im2col = wk.ndim == 2

    # Single pad (halo + width to 2*Wt), then a reshape-based even/odd split
    # so XLA emits contiguous copies rather than strided HBM gathers.
    ap = jnp.pad(a.astype(jnp.bfloat16),
                 ((0, 0), (1, 1), (1, 2 * Wt + 1 - W), (0, 0)))
    ar = ap.reshape(N, h + 1, 2, Wt + 1, 2, Cin)
    phases = [ar[:, :, r, :, c, :] for r in range(2) for c in range(2)]

    Ht = _pick_row_tile(h, (Wt + 1) * Cin * 2 * 4, halo=1)
    nH = h // Ht
    phases = [_stack_row_windows(p, nH, Ht, Ht + 1) for p in phases]
    act_bytes = sum(int(p.size) for p in phases) * 2

    ph_spec = pl.BlockSpec((1, Ht + 1, Wt + 1, Cin),
                           lambda n, r, c, nH=nH: (n * nH + r, 0, 0, 0))
    kern = functools.partial(_conv_kernel_s2, Ho=Ht, Wo=Wt, Cin=Cin, Ct=Ct,
                             w_valid=w, im2col=im2col)

    return pl.pallas_call(
        kern,
        out_shape=jax.ShapeDtypeStruct((N, h, Wt, Cp), out_dtype),
        grid=(N, nH, Cp // Ct),
        in_specs=[ph_spec] * 4 + _weight_specs(wk, Ct),
        out_specs=pl.BlockSpec((1, Ht, Wt, Ct), lambda n, r, c: (n, r, 0, c)),
        compiler_params=_compiler_params(),
        cost_estimate=_cost_estimate(N, h, Wt, Cin, Cp, act_bytes, folded,
                                     jnp.dtype(out_dtype).itemsize),
    )(*phases, wk, scale, bias)


# ------------------------------- JAX glue ----------------------------------

def fold_conv_bn(p, cout_pad, *, cin_pad=None, im2col=False, eps=1e-3):
    """Fold Conv2d(OIHW, no bias) + eval-mode BatchNorm2d into bf16 weights plus
    f32 (1, cout_pad) scale/bias.  im2col=True -> weight reshaped to (9*Cin, Cp)
    for the single-dot small-Cin path; otherwise (3, 3, cin_pad, Cp)."""
    w = jnp.transpose(p["w"], (2, 3, 1, 0))               # (3, 3, Cin, Cout)
    scale = p["gamma"] / jnp.sqrt(p["var"] + eps)
    bias = p["beta"] - p["mean"] * scale
    kh, kw, ci, co = w.shape
    w = jnp.pad(w, ((0, 0), (0, 0), (0, 0), (0, cout_pad - co)))
    if im2col:
        w = w.reshape(kh * kw * ci, cout_pad)
    else:
        w = jnp.pad(w, ((0, 0), (0, 0), (0, cin_pad - ci), (0, 0)))
    scale = jnp.pad(scale, (0, cout_pad - co)).reshape(1, cout_pad)
    bias = jnp.pad(bias, (0, cout_pad - co)).reshape(1, cout_pad)
    return (w.astype(jnp.bfloat16), scale.astype(jnp.float32),
            bias.astype(jnp.float32))


def _interp_matrix(in_size, out_size):
    # PyTorch F.interpolate(mode="bilinear", align_corners=False) weights.
    dst = jnp.arange(out_size, dtype=jnp.float32)
    src = jnp.maximum((dst + 0.5) * (in_size / out_size) - 0.5, 0.0)
    i0 = jnp.minimum(jnp.floor(src).astype(jnp.int32), in_size - 1)
    i1 = jnp.minimum(i0 + 1, in_size - 1)
    w1 = src - i0.astype(jnp.float32)
    return (jax.nn.one_hot(i0, in_size, dtype=jnp.float32) * (1.0 - w1)[:, None]
            + jax.nn.one_hot(i1, in_size, dtype=jnp.float32) * w1[:, None])


def bilinear_upsample(x, out_h, out_w, out_w_pad, src_w=None):
    """bf16 bilinear upsample (f32 accumulate) of an NHWC tensor whose valid
    source columns are [0, src_w); output is (N, out_h, out_w_pad, C) with the
    padded columns zero, ready to chain into the conv kernels unsliced."""
    _, _, wp, _ = x.shape
    if src_w is None:
        src_w = wp
    mh = _interp_matrix(x.shape[1], out_h).astype(jnp.bfloat16)
    mw = _interp_matrix(src_w, out_w)
    mw = jnp.pad(mw, ((0, out_w_pad - out_w), (0, wp - src_w))).astype(jnp.bfloat16)
    t = jnp.einsum("oh,nhwc->nowc", mh, x.astype(jnp.bfloat16),
                   preferred_element_type=jnp.float32).astype(jnp.bfloat16)
    t = jnp.einsum("pw,nowc->nopc", mw, t,
                   preferred_element_type=jnp.float32)
    return t.astype(jnp.bfloat16)


def cam_forward(x1_nchw, x2_nchw, params):
    """CAM.forward (eval-mode BN) using the fused Pallas conv+BN+ReLU kernels.

    Internally NHWC; intermediates stay channel-padded (Cp) and width-padded
    (zeroed by the kernels) so nothing is sliced / re-padded between kernels
    except each conv's 1-px halo; one final slice produces the NCHW result."""
    N, C, h, w = x1_nchw.shape
    H, W = x2_nchw.shape[2], x2_nchw.shape[3]
    assert (h, w) == (H // 2, W // 2), "x1 must be the 2x-downsampled map of x2"
    Cp = _round_up(C, _LANE)
    Wt, wt = _round_up(W, _W_ALIGN), _round_up(w, _W_ALIGN)
    im2col_in = C < _LANE            # external inputs keep their real channel count

    f1 = fold_conv_bn(params["conv1"], Cp, cin_pad=C, im2col=im2col_in)
    f2 = fold_conv_bn(params["conv2"], Cp, cin_pad=C, im2col=im2col_in)
    f3 = fold_conv_bn(params["conv3"], Cp, cin_pad=Cp)
    f4 = fold_conv_bn(params["ffm1"], Cp, cin_pad=Cp)
    f5 = fold_conv_bn(params["ffm2"], Cp, cin_pad=Cp)

    x1 = jnp.transpose(x1_nchw, (0, 2, 3, 1)).astype(jnp.bfloat16)   # (N,h,w,C)
    x2 = jnp.transpose(x2_nchw, (0, 2, 3, 1)).astype(jnp.bfloat16)   # (N,H,W,C)

    # right_1 = up(x1); left = conv2(x2 * right_1)       (im2col path, Cin = C)
    right_1 = bilinear_upsample(x1, H, W, Wt)                         # (N,H,Wt,C)
    left = conv3x3_s1_bn_relu(x2, f2, mul=right_1, w_valid=W)         # (N,H,Wt,Cp)

    # left_2 = conv1(x2) (stride 2); right = conv3(left_2 * x1)
    left_2 = conv3x3_s2_bn_relu(x2, f1)                               # (N,h,wt,Cp)
    x1p = jnp.pad(x1, ((0, 0), (0, 0), (0, wt - w), (0, Cp - C)))     # (N,h,wt,Cp)
    right = conv3x3_s1_bn_relu(left_2, f3, mul=x1p, w_valid=w)        # (N,h,wt,Cp)
    right = bilinear_upsample(right, H, W, Wt, src_w=w)               # (N,H,Wt,Cp)

    # FFM: conv_b(conv_a(left * right))
    t = conv3x3_s1_bn_relu(left, f4, mul=right, w_valid=W)            # (N,H,Wt,Cp)
    out = conv3x3_s1_bn_relu(t, f5, w_valid=W, out_dtype=jnp.float32)
    return jnp.transpose(out[:, :, :W, :C], (0, 3, 1, 2))             # NCHW


# --------------------------- pure-JAX reference -----------------------------

def _conv_bn_relu_ref(x, p, stride, pad, eps=1e-3):
    y = lax.conv_general_dilated(
        x, p["w"], (stride, stride), ((pad, pad), (pad, pad)),
        dimension_numbers=("NCHW", "OIHW", "NCHW"))
    scale = (p["gamma"] / jnp.sqrt(p["var"] + eps))[None, :, None, None]
    shift = (p["beta"] - p["mean"] * p["gamma"]
             / jnp.sqrt(p["var"] + eps))[None, :, None, None]
    return jnp.maximum(y * scale + shift, 0.0)


def _upsample_ref(x_nchw, out_h, out_w):
    mh = _interp_matrix(x_nchw.shape[2], out_h)
    mw = _interp_matrix(x_nchw.shape[3], out_w)
    x = jnp.einsum("oh,nchw->ncow", mh, x_nchw)
    return jnp.einsum("pw,ncow->ncop", mw, x)


def cam_ref(x1, x2, params):
    H, W = x2.shape[2], x2.shape[3]
    left_1 = x2
    left_2 = _conv_bn_relu_ref(x2, params["conv1"], 2, 1)
    right_1 = _upsample_ref(x1, H, W)
    right_2 = x1
    left = _conv_bn_relu_ref(left_1 * right_1, params["conv2"], 1, 1)
    right = _conv_bn_relu_ref(left_2 * right_2, params["conv3"], 1, 1)
    right = _upsample_ref(right, H, W)
    out = left * right
    out = _conv_bn_relu_ref(out, params["ffm1"], 1, 1)
    out = _conv_bn_relu_ref(out, params["ffm2"], 1, 1)
    return out


# ---------------------------------- main ------------------------------------

def init_conv_bn(key, in_ch, out_ch, k=3):
    kw, kg, kb, km, kv = jax.random.split(key, 5)
    return dict(
        w=jax.random.normal(kw, (out_ch, in_ch, k, k), jnp.float32) * 0.1,
        gamma=jax.random.uniform(kg, (out_ch,), jnp.float32, 0.5, 1.5),
        beta=jax.random.normal(kb, (out_ch,), jnp.float32) * 0.1,
        mean=jax.random.normal(km, (out_ch,), jnp.float32) * 0.1,
        var=jax.random.uniform(kv, (out_ch,), jnp.float32, 0.5, 1.5),
    )


if __name__ == "__main__":
    key = jax.random.PRNGKey(0)
    k1, k2, kp = jax.random.split(key, 3)

    N, C, H, W = 2, 8, 16, 16          # x2 spatial; x1 is the downsampled map
    h, w = H // 2, W // 2
    x2 = jax.random.normal(k1, (N, C, H, W), jnp.float32)
    x1 = jax.random.normal(k2, (N, C, h, w), jnp.float32)

    ks = jax.random.split(kp, 5)
    params = {
        "conv1": init_conv_bn(ks[0], C, C),   # CAM.conv1 (3x3, s=2, p=1)
        "conv2": init_conv_bn(ks[1], C, C),   # CAM.conv2
        "conv3": init_conv_bn(ks[2], C, C),   # CAM.conv3
        "ffm1": init_conv_bn(ks[3], C, C),    # FFM.conv1
        "ffm2": init_conv_bn(ks[4], C, C),    # FFM.conv2
    }

    out = jax.block_until_ready(jax.jit(cam_forward)(x1, x2, params))
    ref = jax.block_until_ready(cam_ref(x1, x2, params))

    assert out.shape == ref.shape == (N, C, H, W), (out.shape, ref.shape)
    err = float(jnp.max(jnp.abs(out - ref)))
    scl = float(jnp.max(jnp.abs(ref))) + 1e-6
    # bf16 operands / f32 accumulation vs f32 reference -> loose tolerance.
    assert err / scl < 0.08, ("mismatch", err, scl)

    print("KERNEL_OK")
</pallas_src>

<mosaic_0001>
module attributes {stable_mosaic.version = 11 : i64} {
  func.func @_conv_kernel_s2(%arg0: i32, %arg1: i32, %arg2: i32, %arg3: memref<1x9x17x8xbf16, #tpu.memory_space<vmem>>, %arg4: memref<1x9x17x8xbf16, #tpu.memory_space<vmem>>, %arg5: memref<1x9x17x8xbf16, #tpu.memory_space<vmem>>, %arg6: memref<1x9x17x8xbf16, #tpu.memory_space<vmem>>, %arg7: memref<72x128xbf16, #tpu.memory_space<vmem>>, %arg8: memref<1x128xf32, #tpu.memory_space<vmem>>, %arg9: memref<1x128xf32, #tpu.memory_space<vmem>>, %arg10: memref<1x8x16x128xbf16, #tpu.memory_space<vmem>>) attributes {dimension_semantics = [#tpu.dimension_semantics<parallel>, #tpu.dimension_semantics<parallel>, #tpu.dimension_semantics<parallel>], iteration_bounds = array<i64: 2, 1, 1>, scalar_prefetch = 0 : i64, scratch_operands = 0 : i64, tpu.core_type = #tpu.core_type<tc>, window_params = [{transform_indices = @transform_0, window_bounds = array<i64: 1, 9, 17, 8>}, {transform_indices = @transform_1, window_bounds = array<i64: 1, 9, 17, 8>}, {transform_indices = @transform_2, window_bounds = array<i64: 1, 9, 17, 8>}, {transform_indices = @transform_3, window_bounds = array<i64: 1, 9, 17, 8>}, {transform_indices = @transform_4, window_bounds = array<i64: 72, 128>}, {transform_indices = @transform_5, window_bounds = array<i64: 1, 128>}, {transform_indices = @transform_6, window_bounds = array<i64: 1, 128>}, {transform_indices = @transform_7, window_bounds = array<i64: 1, 8, 16, 128>}]} {
    %c0 = arith.constant 0 : index
    %c0_0 = arith.constant 0 : index
    %c0_1 = arith.constant 0 : index
    %c0_2 = arith.constant 0 : index
    %0 = vector.load %arg3[%c0, %c0_0, %c0_1, %c0_2] : memref<1x9x17x8xbf16, #tpu.memory_space<vmem>>, vector<1x9x17x8xbf16>
    %1 = vector.shape_cast %0 : vector<1x9x17x8xbf16> to vector<9x17x8xbf16>
    %c0_3 = arith.constant 0 : index
    %c0_4 = arith.constant 0 : index
    %c0_5 = arith.constant 0 : index
    %c0_6 = arith.constant 0 : index
    %2 = vector.load %arg4[%c0_3, %c0_4, %c0_5, %c0_6] : memref<1x9x17x8xbf16, #tpu.memory_space<vmem>>, vector<1x9x17x8xbf16>
    %3 = vector.shape_cast %2 : vector<1x9x17x8xbf16> to vector<9x17x8xbf16>
    %c0_7 = arith.constant 0 : index
    %c0_8 = arith.constant 0 : index
    %c0_9 = arith.constant 0 : index
    %c0_10 = arith.constant 0 : index
    %4 = vector.load %arg5[%c0_7, %c0_8, %c0_9, %c0_10] : memref<1x9x17x8xbf16, #tpu.memory_space<vmem>>, vector<1x9x17x8xbf16>
    %5 = vector.shape_cast %4 : vector<1x9x17x8xbf16> to vector<9x17x8xbf16>
    %c0_11 = arith.constant 0 : index
    %c0_12 = arith.constant 0 : index
    %c0_13 = arith.constant 0 : index
    %c0_14 = arith.constant 0 : index
    %6 = vector.load %arg6[%c0_11, %c0_12, %c0_13, %c0_14] : memref<1x9x17x8xbf16, #tpu.memory_space<vmem>>, vector<1x9x17x8xbf16>
    %7 = vector.shape_cast %6 : vector<1x9x17x8xbf16> to vector<9x17x8xbf16>
    %8 = vector.extract_strided_slice %1 {offsets = [0, 0, 0], sizes = [9, 16, 8], strides = [1, 1, 1]} : vector<9x17x8xbf16> to vector<9x16x8xbf16>
    %9 = vector.extract_strided_slice %5 {offsets = [0, 0, 0], sizes = [9, 16, 8], strides = [1, 1, 1]} : vector<9x17x8xbf16> to vector<9x16x8xbf16>
    %10 = vector.extract_strided_slice %3 {offsets = [0, 0, 0], sizes = [9, 16, 8], strides = [1, 1, 1]} : vector<9x17x8xbf16> to vector<9x16x8xbf16>
    %11 = vector.extract_strided_slice %7 {offsets = [0, 0, 0], sizes = [9, 16, 8], strides = [1, 1, 1]} : vector<9x17x8xbf16> to vector<9x16x8xbf16>
    %12 = vector.extract_strided_slice %1 {offsets = [0, 1, 0], sizes = [9, 16, 8], strides = [1, 1, 1]} : vector<9x17x8xbf16> to vector<9x16x8xbf16>
    %13 = vector.extract_strided_slice %5 {offsets = [0, 1, 0], sizes = [9, 16, 8], strides = [1, 1, 1]} : vector<9x17x8xbf16> to vector<9x16x8xbf16>
    %14 = vector.extract_strided_slice %8 {offsets = [0, 0, 0], sizes = [8, 16, 8], strides = [1, 1, 1]} : vector<9x16x8xbf16> to vector<8x16x8xbf16>
    %15 = vector.extract_strided_slice %10 {offsets = [0, 0, 0], sizes = [8, 16, 8], strides = [1, 1, 1]} : vector<9x16x8xbf16> to vector<8x16x8xbf16>
    %16 = vector.extract_strided_slice %12 {offsets = [0, 0, 0], sizes = [8, 16, 8], strides = [1, 1, 1]} : vector<9x16x8xbf16> to vector<8x16x8xbf16>
    %17 = vector.extract_strided_slice %9 {offsets = [0, 0, 0], sizes = [8, 16, 8], strides = [1, 1, 1]} : vector<9x16x8xbf16> to vector<8x16x8xbf16>
    %18 = vector.extract_strided_slice %11 {offsets = [0, 0, 0], sizes = [8, 16, 8], strides = [1, 1, 1]} : vector<9x16x8xbf16> to vector<8x16x8xbf16>
    %19 = vector.extract_strided_slice %13 {offsets = [0, 0, 0], sizes = [8, 16, 8], strides = [1, 1, 1]} : vector<9x16x8xbf16> to vector<8x16x8xbf16>
    %20 = vector.extract_strided_slice %8 {offsets = [1, 0, 0], sizes = [8, 16, 8], strides = [1, 1, 1]} : vector<9x16x8xbf16> to vector<8x16x8xbf16>
    %21 = vector.extract_strided_slice %10 {offsets = [1, 0, 0], sizes = [8, 16, 8], strides = [1, 1, 1]} : vector<9x16x8xbf16> to vector<8x16x8xbf16>
    %22 = vector.extract_strided_slice %12 {offsets = [1, 0, 0], sizes = [8, 16, 8], strides = [1, 1, 1]} : vector<9x16x8xbf16> to vector<8x16x8xbf16>
    %23 = tpu.concatenate %14, %15, %16, %17, %18, %19, %20, %21, %22 in 2 : vector<8x16x8xbf16>, vector<8x16x8xbf16>, vector<8x16x8xbf16>, vector<8x16x8xbf16>, vector<8x16x8xbf16>, vector<8x16x8xbf16>, vector<8x16x8xbf16>, vector<8x16x8xbf16>, vector<8x16x8xbf16> -> vector<8x16x72xbf16>
    %24 = vector.shape_cast %23 : vector<8x16x72xbf16> to vector<128x72xbf16>
    %c0_15 = arith.constant 0 : index
    %c0_16 = arith.constant 0 : index
    %25 = vector.load %arg7[%c0_15, %c0_16] : memref<72x128xbf16, #tpu.memory_space<vmem>>, vector<72x128xbf16>
    %cst = arith.constant dense<0.000000e+00> : vector<128x128xf32>
    %26 = tpu.matmul %24, %25, %cst {dimension_numbers = #tpu.dot_dimension_numbers<[1], [0], [0], [1], [0, 0, 1, 1], [], []>} : vector<128x72xbf16>, vector<72x128xbf16>, vector<128x128xf32> -> vector<128x128xf32>
    %c0_17 = arith.constant 0 : index
    %c0_18 = arith.constant 0 : index
    %27 = vector.load %arg8[%c0_17, %c0_18] : memref<1x128xf32, #tpu.memory_space<vmem>>, vector<1x128xf32>
    %28 = vector.broadcast %27 : vector<1x128xf32> to vector<128x128xf32>
    %29 = arith.mulf %26, %28 : vector<128x128xf32>
    %c0_19 = arith.constant 0 : index
    %c0_20 = arith.constant 0 : index
    %30 = vector.load %arg9[%c0_19, %c0_20] : memref<1x128xf32, #tpu.memory_space<vmem>>, vector<1x128xf32>
    %31 = vector.broadcast %30 : vector<1x128xf32> to vector<128x128xf32>
    %32 = arith.addf %29, %31 : vector<128x128xf32>
    %cst_21 = arith.constant 0.000000e+00 : f32
    %33 = vector.broadcast %cst_21 : f32 to vector<128x128xf32>
    %34 = arith.maximumf %32, %33 : vector<128x128xf32>
    %35 = vector.shape_cast %34 : vector<128x128xf32> to vector<8x16x128xf32>
    %36 = tpu.iota {dimensions = array<i32: 1>} : vector<8x16x128xi32>
    %c8_i32 = arith.constant 8 : i32
    %37 = vector.broadcast %c8_i32 : i32 to vector<8x16x128xi32>
    %38 = arith.cmpi slt, %36, %37 : vector<8x16x128xi32>
    %cst_22 = arith.constant 0.000000e+00 : f32
    %39 = vector.broadcast %cst_22 : f32 to vector<8x16x128xf32>
    %40 = arith.select %38, %35, %39 : vector<8x16x128xi1>, vector<8x16x128xf32>
    %41 = vector.shape_cast %40 : vector<8x16x128xf32> to vector<1x8x16x128xf32>
    %42 = arith.truncf %41 : vector<1x8x16x128xf32> to vector<1x8x16x128xbf16>
    %c0_23 = arith.constant 0 : index
    %c0_24 = arith.constant 0 : index
    %c0_25 = arith.constant 0 : index
    %c0_26 = arith.constant 0 : index
    %43 = vector.load %arg10[%c0_23, %c0_24, %c0_25, %c0_26] : memref<1x8x16x128xbf16, #tpu.memory_space<vmem>>, vector<1x8x16x128xbf16>
    tpu.vector_store %arg10[%c0_23, %c0_24, %c0_25, %c0_26], %42 {strides = array<i32>} : memref<1x8x16x128xbf16, #tpu.memory_space<vmem>>, vector<1x8x16x128xbf16>,
    return
  }
  func.func @transform_0(%arg0: i32, %arg1: i32, %arg2: i32) -> (i32, i32, i32, i32) {
    %c1_i32 = arith.constant 1 : i32
    %0 = arith.muli %arg0, %c1_i32 : i32
    %1 = arith.addi %0, %arg1 : i32
    %c0_i32 = arith.constant 0 : i32
    %c0_i32_0 = arith.constant 0 : i32
    %c0_i32_1 = arith.constant 0 : i32
    %c0_i32_2 = arith.constant 0 : i32
    return %1, %c0_i32, %c0_i32_0, %c0_i32_1 : i32, i32, i32, i32
  }
  func.func @transform_1(%arg0: i32, %arg1: i32, %arg2: i32) -> (i32, i32, i32, i32) {
    %c1_i32 = arith.constant 1 : i32
    %0 = arith.muli %arg0, %c1_i32 : i32
    %1 = arith.addi %0, %arg1 : i32
    %c0_i32 = arith.constant 0 : i32
    %c0_i32_0 = arith.constant 0 : i32
    %c0_i32_1 = arith.constant 0 : i32
    %c0_i32_2 = arith.constant 0 : i32
    return %1, %c0_i32, %c0_i32_0, %c0_i32_1 : i32, i32, i32, i32
  }
  func.func @transform_2(%arg0: i32, %arg1: i32, %arg2: i32) -> (i32, i32, i32, i32) {
    %c1_i32 = arith.constant 1 : i32
    %0 = arith.muli %arg0, %c1_i32 : i32
    %1 = arith.addi %0, %arg1 : i32
    %c0_i32 = arith.constant 0 : i32
    %c0_i32_0 = arith.constant 0 : i32
    %c0_i32_1 = arith.constant 0 : i32
    %c0_i32_2 = arith.constant 0 : i32
    return %1, %c0_i32, %c0_i32_0, %c0_i32_1 : i32, i32, i32, i32
  }
  func.func @transform_3(%arg0: i32, %arg1: i32, %arg2: i32) -> (i32, i32, i32, i32) {
    %c1_i32 = arith.constant 1 : i32
    %0 = arith.muli %arg0, %c1_i32 : i32
    %1 = arith.addi %0, %arg1 : i32
    %c0_i32 = arith.constant 0 : i32
    %c0_i32_0 = arith.constant 0 : i32
    %c0_i32_1 = arith.constant 0 : i32
    %c0_i32_2 = arith.constant 0 : i32
    return %1, %c0_i32, %c0_i32_0, %c0_i32_1 : i32, i32, i32, i32
  }
  func.func @transform_4(%arg0: i32, %arg1: i32, %arg2: i32) -> (i32, i32) {
    %c0_i32 = arith.constant 0 : i32
    %c0_i32_0 = arith.constant 0 : i32
    return %c0_i32, %arg2 : i32, i32
  }
  func.func @transform_5(%arg0: i32, %arg1: i32, %arg2: i32) -> (i32, i32) {
    %c0_i32 = arith.constant 0 : i32
    %c0_i32_0 = arith.constant 0 : i32
    return %c0_i32, %arg2 : i32, i32
  }
  func.func @transform_6(%arg0: i32, %arg1: i32, %arg2: i32) -> (i32, i32) {
    %c0_i32 = arith.constant 0 : i32
    %c0_i32_0 = arith.constant 0 : i32
    return %c0_i32, %arg2 : i32, i32
  }
  func.func @transform_7(%arg0: i32, %arg1: i32, %arg2: i32) -> (i32, i32, i32, i32) {
    %c0_i32 = arith.constant 0 : i32
    %c0_i32_0 = arith.constant 0 : i32
    return %arg0, %arg1, %c0_i32, %arg2 : i32, i32, i32, i32
  }
}

module attributes {stable_mosaic.version = 11 : i64} {
  func.func @_mul_conv_kernel_s1(%arg0: i32, %arg1: i32, %arg2: i32, %arg3: memref<1x10x18x128xbf16, #tpu.memory_space<vmem>>, %arg4: memref<1x10x18x128xbf16, #tpu.memory_space<vmem>>, %arg5: memref<3x3x128x128xbf16, #tpu.memory_space<vmem>>, %arg6: memref<1x128xf32, #tpu.memory_space<vmem>>, %arg7: memref<1x128xf32, #tpu.memory_space<vmem>>, %arg8: memref<1x8x16x128xbf16, #tpu.memory_space<vmem>>) attributes {dimension_semantics = [#tpu.dimension_semantics<parallel>, #tpu.dimension_semantics<parallel>, #tpu.dimension_semantics<parallel>], iteration_bounds = array<i64: 2, 1, 1>, scalar_prefetch = 0 : i64, scratch_operands = 0 : i64, tpu.core_type = #tpu.core_type<tc>, window_params = [{transform_indices = @transform_0, window_bounds = array<i64: 1, 10, 18, 128>}, {transform_indices = @transform_1, window_bounds = array<i64: 1, 10, 18, 128>}, {transform_indices = @transform_2, window_bounds = array<i64: 3, 3, 128, 128>}, {transform_indices = @transform_3, window_bounds = array<i64: 1, 128>}, {transform_indices = @transform_4, window_bounds = array<i64: 1, 128>}, {transform_indices = @transform_5, window_bounds = array<i64: 1, 8, 16, 128>}]} {
    %c0 = arith.constant 0 : index
    %c0_0 = arith.constant 0 : index
    %c0_1 = arith.constant 0 : index
    %c0_2 = arith.constant 0 : index
    %0 = vector.load %arg3[%c0, %c0_0, %c0_1, %c0_2] : memref<1x10x18x128xbf16, #tpu.memory_space<vmem>>, vector<1x10x18x128xbf16>
    %1 = vector.shape_cast %0 : vector<1x10x18x128xbf16> to vector<10x18x128xbf16>
    %2 = arith.extf %1 : vector<10x18x128xbf16> to vector<10x18x128xf32>
    %c0_3 = arith.constant 0 : index
    %c0_4 = arith.constant 0 : index
    %c0_5 = arith.constant 0 : index
    %c0_6 = arith.constant 0 : index
    %3 = vector.load %arg4[%c0_3, %c0_4, %c0_5, %c0_6] : memref<1x10x18x128xbf16, #tpu.memory_space<vmem>>, vector<1x10x18x128xbf16>
    %4 = vector.shape_cast %3 : vector<1x10x18x128xbf16> to vector<10x18x128xbf16>
    %5 = arith.extf %4 : vector<10x18x128xbf16> to vector<10x18x128xf32>
    %6 = arith.mulf %2, %5 : vector<10x18x128xf32>
    %7 = arith.truncf %6 : vector<10x18x128xf32> to vector<10x18x128xbf16>
    %8 = vector.extract_strided_slice %7 {offsets = [0, 0, 0], sizes = [10, 16, 128], strides = [1, 1, 1]} : vector<10x18x128xbf16> to vector<10x16x128xbf16>
    %9 = vector.extract_strided_slice %7 {offsets = [0, 1, 0], sizes = [10, 16, 128], strides = [1, 1, 1]} : vector<10x18x128xbf16> to vector<10x16x128xbf16>
    %10 = vector.extract_strided_slice %7 {offsets = [0, 2, 0], sizes = [10, 16, 128], strides = [1, 1, 1]} : vector<10x18x128xbf16> to vector<10x16x128xbf16>
    %11 = vector.extract_strided_slice %8 {offsets = [0, 0, 0], sizes = [8, 16, 128], strides = [1, 1, 1]} : vector<10x16x128xbf16> to vector<8x16x128xbf16>
    %12 = vector.extract_strided_slice %9 {offsets = [0, 0, 0], sizes = [8, 16, 128], strides = [1, 1, 1]} : vector<10x16x128xbf16> to vector<8x16x128xbf16>
    %13 = vector.extract_strided_slice %10 {offsets = [0, 0, 0], sizes = [8, 16, 128], strides = [1, 1, 1]} : vector<10x16x128xbf16> to vector<8x16x128xbf16>
    %14 = vector.extract_strided_slice %8 {offsets = [1, 0, 0], sizes = [8, 16, 128], strides = [1, 1, 1]} : vector<10x16x128xbf16> to vector<8x16x128xbf16>
    %15 = vector.extract_strided_slice %9 {offsets = [1, 0, 0], sizes = [8, 16, 128], strides = [1, 1, 1]} : vector<10x16x128xbf16> to vector<8x16x128xbf16>
    %16 = vector.extract_strided_slice %10 {offsets = [1, 0, 0], sizes = [8, 16, 128], strides = [1, 1, 1]} : vector<10x16x128xbf16> to vector<8x16x128xbf16>
    %17 = vector.extract_strided_slice %8 {offsets = [2, 0, 0], sizes = [8, 16, 128], strides = [1, 1, 1]} : vector<10x16x128xbf16> to vector<8x16x128xbf16>
    %18 = vector.extract_strided_slice %9 {offsets = [2, 0, 0], sizes = [8, 16, 128], strides = [1, 1, 1]} : vector<10x16x128xbf16> to vector<8x16x128xbf16>
    %19 = vector.extract_strided_slice %10 {offsets = [2, 0, 0], sizes = [8, 16, 128], strides = [1, 1, 1]} : vector<10x16x128xbf16> to vector<8x16x128xbf16>
    %cst = arith.constant 0.000000e+00 : f32
    %20 = vector.broadcast %cst : f32 to vector<128x128xf32>
    %21 = vector.shape_cast %11 : vector<8x16x128xbf16> to vector<128x128xbf16>
    %c0_7 = arith.constant 0 : index
    %c0_8 = arith.constant 0 : index
    %c0_9 = arith.constant 0 : index
    %c0_10 = arith.constant 0 : index
    %22 = vector.load %arg5[%c0_7, %c0_8, %c0_9, %c0_10] : memref<3x3x128x128xbf16, #tpu.memory_space<vmem>>, vector<1x1x128x128xbf16>
    %23 = vector.shape_cast %22 : vector<1x1x128x128xbf16> to vector<128x128xbf16>
    %cst_11 = arith.constant dense<0.000000e+00> : vector<128x128xf32>
    %24 = tpu.matmul %21, %23, %cst_11 {dimension_numbers = #tpu.dot_dimension_numbers<[1], [0], [0], [1], [0, 0, 1, 1], [], []>} : vector<128x128xbf16>, vector<128x128xbf16>, vector<128x128xf32> -> vector<128x128xf32>
    %25 = arith.addf %20, %24 : vector<128x128xf32>
    %26 = vector.shape_cast %12 : vector<8x16x128xbf16> to vector<128x128xbf16>
    %c0_12 = arith.constant 0 : index
    %c1 = arith.constant 1 : index
    %c0_13 = arith.constant 0 : index
    %c0_14 = arith.constant 0 : index
    %27 = vector.load %arg5[%c0_12, %c1, %c0_13, %c0_14] : memref<3x3x128x128xbf16, #tpu.memory_space<vmem>>, vector<1x1x128x128xbf16>
    %28 = vector.shape_cast %27 : vector<1x1x128x128xbf16> to vector<128x128xbf16>
    %cst_15 = arith.constant dense<0.000000e+00> : vector<128x128xf32>
    %29 = tpu.matmul %26, %28, %cst_15 {dimension_numbers = #tpu.dot_dimension_numbers<[1], [0], [0], [1], [0, 0, 1, 1], [], []>} : vector<128x128xbf16>, vector<128x128xbf16>, vector<128x128xf32> -> vector<128x128xf32>
    %30 = arith.addf %25, %29 : vector<128x128xf32>
    %31 = vector.shape_cast %13 : vector<8x16x128xbf16> to vector<128x128xbf16>
    %c0_16 = arith.constant 0 : index
    %c2 = arith.constant 2 : index
    %c0_17 = arith.constant 0 : index
    %c0_18 = arith.constant 0 : index
    %32 = vector.load %arg5[%c0_16, %c2, %c0_17, %c0_18] : memref<3x3x128x128xbf16, #tpu.memory_space<vmem>>, vector<1x1x128x128xbf16>
    %33 = vector.shape_cast %32 : vector<1x1x128x128xbf16> to vector<128x128xbf16>
    %cst_19 = arith.constant dense<0.000000e+00> : vector<128x128xf32>
    %34 = tpu.matmul %31, %33, %cst_19 {dimension_numbers = #tpu.dot_dimension_numbers<[1], [0], [0], [1], [0, 0, 1, 1], [], []>} : vector<128x128xbf16>, vector<128x128xbf16>, vector<128x128xf32> -> vector<128x128xf32>
    %35 = arith.addf %30, %34 : vector<128x128xf32>
    %36 = vector.shape_cast %14 : vector<8x16x128xbf16> to vector<128x128xbf16>
    %c1_20 = arith.constant 1 : index
    %c0_21 = arith.constant 0 : index
    %c0_22 = arith.constant 0 : index
    %c0_23 = arith.constant 0 : index
    %37 = vector.load %arg5[%c1_20, %c0_21, %c0_22, %c0_23] : memref<3x3x128x128xbf16, #tpu.memory_space<vmem>>, vector<1x1x128x128xbf16>
    %38 = vector.shape_cast %37 : vector<1x1x128x128xbf16> to vector<128x128xbf16>
    %cst_24 = arith.constant dense<0.000000e+00> : vector<128x128xf32>
    %39 = tpu.matmul %36, %38, %cst_24 {dimension_numbers = #tpu.dot_dimension_numbers<[1], [0], [0], [1], [0, 0, 1, 1], [], []>} : vector<128x128xbf16>, vector<128x128xbf16>, vector<128x128xf32> -> vector<128x128xf32>
    %40 = arith.addf %35, %39 : vector<128x128xf32>
    %41 = vector.shape_cast %15 : vector<8x16x128xbf16> to vector<128x128xbf16>
    %c1_25 = arith.constant 1 : index
    %c1_26 = arith.constant 1 : index
    %c0_27 = arith.constant 0 : index
    %c0_28 = arith.constant 0 : index
    %42 = vector.load %arg5[%c1_25, %c1_26, %c0_27, %c0_28] : memref<3x3x128x128xbf16, #tpu.memory_space<vmem>>, vector<1x1x128x128xbf16>
    %43 = vector.shape_cast %42 : vector<1x1x128x128xbf16> to vector<128x128xbf16>
    %cst_29 = arith.constant dense<0.000000e+00> : vector<128x128xf32>
    %44 = tpu.matmul %41, %43, %cst_29 {dimension_numbers = #tpu.dot_dimension_numbers<[1], [0], [0], [1], [0, 0, 1, 1], [], []>} : vector<128x128xbf16>, vector<128x128xbf16>, vector<128x128xf32> -> vector<128x128xf32>
    %45 = arith.addf %40, %44 : vector<128x128xf32>
    %46 = vector.shape_cast %16 : vector<8x16x128xbf16> to vector<128x128xbf16>
    %c1_30 = arith.constant 1 : index
    %c2_31 = arith.constant 2 : index
    %c0_32 = arith.constant 0 : index
    %c0_33 = arith.constant 0 : index
    %47 = vector.load %arg5[%c1_30, %c2_31, %c0_32, %c0_33] : memref<3x3x128x128xbf16, #tpu.memory_space<vmem>>, vector<1x1x128x128xbf16>
    %48 = vector.shape_cast %47 : vector<1x1x128x128xbf16> to vector<128x128xbf16>
    %cst_34 = arith.constant dense<0.000000e+00> : vector<128x128xf32>
    %49 = tpu.matmul %46, %48, %cst_34 {dimension_numbers = #tpu.dot_dimension_numbers<[1], [0], [0], [1], [0, 0, 1, 1], [], []>} : vector<128x128xbf16>, vector<128x128xbf16>, vector<128x128xf32> -> vector<128x128xf32>
    %50 = arith.addf %45, %49 : vector<128x128xf32>
    %51 = vector.shape_cast %17 : vector<8x16x128xbf16> to vector<128x128xbf16>
    %c2_35 = arith.constant 2 : index
    %c0_36 = arith.constant 0 : index
    %c0_37 = arith.constant 0 : index
    %c0_38 = arith.constant 0 : index
    %52 = vector.load %arg5[%c2_35, %c0_36, %c0_37, %c0_38] : memref<3x3x128x128xbf16, #tpu.memory_space<vmem>>, vector<1x1x128x128xbf16>
    %53 = vector.shape_cast %52 : vector<1x1x128x128xbf16> to vector<128x128xbf16>
    %cst_39 = arith.constant dense<0.000000e+00> : vector<128x128xf32>
    %54 = tpu.matmul %51, %53, %cst_39 {dimension_numbers = #tpu.dot_dimension_numbers<[1], [0], [0], [1], [0, 0, 1, 1], [], []>} : vector<128x128xbf16>, vector<128x128xbf16>, vector<128x128xf32> -> vector<128x128xf32>
    %55 = arith.addf %50, %54 : vector<128x128xf32>
    %56 = vector.shape_cast %18 : vector<8x16x128xbf16> to vector<128x128xbf16>
    %c2_40 = arith.constant 2 : index
    %c1_41 = arith.constant 1 : index
    %c0_42 = arith.constant 0 : index
    %c0_43 = arith.constant 0 : index
    %57 = vector.load %arg5[%c2_40, %c1_41, %c0_42, %c0_43] : memref<3x3x128x128xbf16, #tpu.memory_space<vmem>>, vector<1x1x128x128xbf16>
    %58 = vector.shape_cast %57 : vector<1x1x128x128xbf16> to vector<128x128xbf16>
    %cst_44 = arith.constant dense<0.000000e+00> : vector<128x128xf32>
    %59 = tpu.matmul %56, %58, %cst_44 {dimension_numbers = #tpu.dot_dimension_numbers<[1], [0], [0], [1], [0, 0, 1, 1], [], []>} : vector<128x128xbf16>, vector<128x128xbf16>, vector<128x128xf32> -> vector<128x128xf32>
    %60 = arith.addf %55, %59 : vector<128x128xf32>
    %61 = vector.shape_cast %19 : vector<8x16x128xbf16> to vector<128x128xbf16>
    %c2_45 = arith.constant 2 : index
    %c2_46 = arith.constant 2 : index
    %c0_47 = arith.constant 0 : index
    %c0_48 = arith.constant 0 : index
    %62 = vector.load %arg5[%c2_45, %c2_46, %c0_47, %c0_48] : memref<3x3x128x128xbf16, #tpu.memory_space<vmem>>, vector<1x1x128x128xbf16>
    %63 = vector.shape_cast %62 : vector<1x1x128x128xbf16> to vector<128x128xbf16>
    %cst_49 = arith.constant dense<0.000000e+00> : vector<128x128xf32>
    %64 = tpu.matmul %61, %63, %cst_49 {dimension_numbers = #tpu.dot_dimension_numbers<[1], [0], [0], [1], [0, 0, 1, 1], [], []>} : vector<128x128xbf16>, vector<128x128xbf16>, vector<128x128xf32> -> vector<128x128xf32>
    %65 = arith.addf %60, %64 : vector<128x128xf32>
    %c0_50 = arith.constant 0 : index
    %c0_51 = arith.constant 0 : index
    %66 = vector.load %arg6[%c0_50, %c0_51] : memref<1x128xf32, #tpu.memory_space<vmem>>, vector<1x128xf32>
    %67 = vector.broadcast %66 : vector<1x128xf32> to vector<128x128xf32>
    %68 = arith.mulf %65, %67 : vector<128x128xf32>
    %c0_52 = arith.constant 0 : index
    %c0_53 = arith.constant 0 : index
    %69 = vector.load %arg7[%c0_52, %c0_53] : memref<1x128xf32, #tpu.memory_space<vmem>>, vector<1x128xf32>
    %70 = vector.broadcast %69 : vector<1x128xf32> to vector<128x128xf32>
    %71 = arith.addf %68, %70 : vector<128x128xf32>
    %cst_54 = arith.constant 0.000000e+00 : f32
    %72 = vector.broadcast %cst_54 : f32 to vector<128x128xf32>
    %73 = arith.maximumf %71, %72 : vector<128x128xf32>
    %74 = vector.shape_cast %73 : vector<128x128xf32> to vector<8x16x128xf32>
    %75 = tpu.iota {dimensions = array<i32: 1>} : vector<8x16x128xi32>
    %c8_i32 = arith.constant 8 : i32
    %76 = vector.broadcast %c8_i32 : i32 to vector<8x16x128xi32>
    %77 = arith.cmpi slt, %75, %76 : vector<8x16x128xi32>
    %cst_55 = arith.constant 0.000000e+00 : f32
    %78 = vector.broadcast %cst_55 : f32 to vector<8x16x128xf32>
    %79 = arith.select %77, %74, %78 : vector<8x16x128xi1>, vector<8x16x128xf32>
    %80 = vector.shape_cast %79 : vector<8x16x128xf32> to vector<1x8x16x128xf32>
    %81 = arith.truncf %80 : vector<1x8x16x128xf32> to vector<1x8x16x128xbf16>
    %c0_56 = arith.constant 0 : index
    %c0_57 = arith.constant 0 : index
    %c0_58 = arith.constant 0 : index
    %c0_59 = arith.constant 0 : index
    %82 = vector.load %arg8[%c0_56, %c0_57, %c0_58, %c0_59] : memref<1x8x16x128xbf16, #tpu.memory_space<vmem>>, vector<1x8x16x128xbf16>
    tpu.vector_store %arg8[%c0_56, %c0_57, %c0_58, %c0_59], %81 {strides = array<i32>} : memref<1x8x16x128xbf16, #tpu.memory_space<vmem>>, vector<1x8x16x128xbf16>,
    return
  }
  func.func @transform_0(%arg0: i32, %arg1: i32, %arg2: i32) -> (i32, i32, i32, i32) {
    %c1_i32 = arith.constant 1 : i32
    %0 = arith.muli %arg0, %c1_i32 : i32
    %1 = arith.addi %0, %arg1 : i32
    %c0_i32 = arith.constant 0 : i32
    %c0_i32_0 = arith.constant 0 : i32
    %c0_i32_1 = arith.constant 0 : i32
    %c0_i32_2 = arith.constant 0 : i32
    return %1, %c0_i32, %c0_i32_0, %c0_i32_1 : i32, i32, i32, i32
  }
  func.func @transform_1(%arg0: i32, %arg1: i32, %arg2: i32) -> (i32, i32, i32, i32) {
    %c1_i32 = arith.constant 1 : i32
    %0 = arith.muli %arg0, %c1_i32 : i32
    %1 = arith.addi %0, %arg1 : i32
    %c0_i32 = arith.constant 0 : i32
    %c0_i32_0 = arith.constant 0 : i32
    %c0_i32_1 = arith.constant 0 : i32
    %c0_i32_2 = arith.constant 0 : i32
    return %1, %c0_i32, %c0_i32_0, %c0_i32_1 : i32, i32, i32, i32
  }
  func.func @transform_2(%arg0: i32, %arg1: i32, %arg2: i32) -> (i32, i32, i32, i32) {
    %c0_i32 = arith.constant 0 : i32
    %c0_i32_0 = arith.constant 0 : i32
    %c0_i32_1 = arith.constant 0 : i32
    %c0_i32_2 = arith.constant 0 : i32
    return %c0_i32, %c0_i32_0, %c0_i32_1, %arg2 : i32, i32, i32, i32
  }
  func.func @transform_3(%arg0: i32, %arg1: i32, %arg2: i32) -> (i32, i32) {
    %c0_i32 = arith.constant 0 : i32
    %c0_i32_0 = arith.constant 0 : i32
    return %c0_i32, %arg2 : i32, i32
  }
  func.func @transform_4(%arg0: i32, %arg1: i32, %arg2: i32) -> (i32, i32) {
    %c0_i32 = arith.constant 0 : i32
    %c0_i32_0 = arith.constant 0 : i32
    return %c0_i32, %arg2 : i32, i32
  }
  func.func @transform_5(%arg0: i32, %arg1: i32, %arg2: i32) -> (i32, i32, i32, i32) {
    %c0_i32 = arith.constant 0 : i32
    %c0_i32_0 = arith.constant 0 : i32
    return %arg0, %arg1, %c0_i32, %arg2 : i32, i32, i32, i32
  }
}

module attributes {stable_mosaic.version = 11 : i64} {
  func.func @_mul_conv_kernel_s1(%arg0: i32, %arg1: i32, %arg2: i32, %arg3: memref<1x18x18x8xbf16, #tpu.memory_space<vmem>>, %arg4: memref<1x18x18x8xbf16, #tpu.memory_space<vmem>>, %arg5: memref<72x128xbf16, #tpu.memory_space<vmem>>, %arg6: memref<1x128xf32, #tpu.memory_space<vmem>>, %arg7: memref<1x128xf32, #tpu.memory_space<vmem>>, %arg8: memref<1x16x16x128xbf16, #tpu.memory_space<vmem>>) attributes {dimension_semantics = [#tpu.dimension_semantics<parallel>, #tpu.dimension_semantics<parallel>, #tpu.dimension_semantics<parallel>], iteration_bounds = array<i64: 2, 1, 1>, scalar_prefetch = 0 : i64, scratch_operands = 0 : i64, tpu.core_type = #tpu.core_type<tc>, window_params = [{transform_indices = @transform_0, window_bounds = array<i64: 1, 18, 18, 8>}, {transform_indices = @transform_1, window_bounds = array<i64: 1, 18, 18, 8>}, {transform_indices = @transform_2, window_bounds = array<i64: 72, 128>}, {transform_indices = @transform_3, window_bounds = array<i64: 1, 128>}, {transform_indices = @transform_4, window_bounds = array<i64: 1, 128>}, {transform_indices = @transform_5, window_bounds = array<i64: 1, 16, 16, 128>}]} {
    %c0 = arith.constant 0 : index
    %c0_0 = arith.constant 0 : index
    %c0_1 = arith.constant 0 : index
    %c0_2 = arith.constant 0 : index
    %0 = vector.load %arg3[%c0, %c0_0, %c0_1, %c0_2] : memref<1x18x18x8xbf16, #tpu.memory_space<vmem>>, vector<1x18x18x8xbf16>
    %1 = vector.shape_cast %0 : vector<1x18x18x8xbf16> to vector<18x18x8xbf16>
    %2 = arith.extf %1 : vector<18x18x8xbf16> to vector<18x18x8xf32>
    %c0_3 = arith.constant 0 : index
    %c0_4 = arith.constant 0 : index
    %c0_5 = arith.constant 0 : index
    %c0_6 = arith.constant 0 : index
    %3 = vector.load %arg4[%c0_3, %c0_4, %c0_5, %c0_6] : memref<1x18x18x8xbf16, #tpu.memory_space<vmem>>, vector<1x18x18x8xbf16>
    %4 = vector.shape_cast %3 : vector<1x18x18x8xbf16> to vector<18x18x8xbf16>
    %5 = arith.extf %4 : vector<18x18x8xbf16> to vector<18x18x8xf32>
    %6 = arith.mulf %2, %5 : vector<18x18x8xf32>
    %7 = arith.truncf %6 : vector<18x18x8xf32> to vector<18x18x8xbf16>
    %8 = vector.extract_strided_slice %7 {offsets = [0, 0, 0], sizes = [18, 16, 8], strides = [1, 1, 1]} : vector<18x18x8xbf16> to vector<18x16x8xbf16>
    %9 = vector.extract_strided_slice %7 {offsets = [0, 1, 0], sizes = [18, 16, 8], strides = [1, 1, 1]} : vector<18x18x8xbf16> to vector<18x16x8xbf16>
    %10 = vector.extract_strided_slice %7 {offsets = [0, 2, 0], sizes = [18, 16, 8], strides = [1, 1, 1]} : vector<18x18x8xbf16> to vector<18x16x8xbf16>
    %11 = vector.extract_strided_slice %8 {offsets = [0, 0, 0], sizes = [16, 16, 8], strides = [1, 1, 1]} : vector<18x16x8xbf16> to vector<16x16x8xbf16>
    %12 = vector.extract_strided_slice %9 {offsets = [0, 0, 0], sizes = [16, 16, 8], strides = [1, 1, 1]} : vector<18x16x8xbf16> to vector<16x16x8xbf16>
    %13 = vector.extract_strided_slice %10 {offsets = [0, 0, 0], sizes = [16, 16, 8], strides = [1, 1, 1]} : vector<18x16x8xbf16> to vector<16x16x8xbf16>
    %14 = vector.extract_strided_slice %8 {offsets = [1, 0, 0], sizes = [16, 16, 8], strides = [1, 1, 1]} : vector<18x16x8xbf16> to vector<16x16x8xbf16>
    %15 = vector.extract_strided_slice %9 {offsets = [1, 0, 0], sizes = [16, 16, 8], strides = [1, 1, 1]} : vector<18x16x8xbf16> to vector<16x16x8xbf16>
    %16 = vector.extract_strided_slice %10 {offsets = [1, 0, 0], sizes = [16, 16, 8], strides = [1, 1, 1]} : vector<18x16x8xbf16> to vector<16x16x8xbf16>
    %17 = vector.extract_strided_slice %8 {offsets = [2, 0, 0], sizes = [16, 16, 8], strides = [1, 1, 1]} : vector<18x16x8xbf16> to vector<16x16x8xbf16>
    %18 = vector.extract_strided_slice %9 {offsets = [2, 0, 0], sizes = [16, 16, 8], strides = [1, 1, 1]} : vector<18x16x8xbf16> to vector<16x16x8xbf16>
    %19 = vector.extract_strided_slice %10 {offsets = [2, 0, 0], sizes = [16, 16, 8], strides = [1, 1, 1]} : vector<18x16x8xbf16> to vector<16x16x8xbf16>
    %20 = tpu.concatenate %11, %12, %13, %14, %15, %16, %17, %18, %19 in 2 : vector<16x16x8xbf16>, vector<16x16x8xbf16>, vector<16x16x8xbf16>, vector<16x16x8xbf16>, vector<16x16x8xbf16>, vector<16x16x8xbf16>, vector<16x16x8xbf16>, vector<16x16x8xbf16>, vector<16x16x8xbf16> -> vector<16x16x72xbf16>
    %21 = vector.shape_cast %20 : vector<16x16x72xbf16> to vector<256x72xbf16>
    %c0_7 = arith.constant 0 : index
    %c0_8 = arith.constant 0 : index
    %22 = vector.load %arg5[%c0_7, %c0_8] : memref<72x128xbf16, #tpu.memory_space<vmem>>, vector<72x128xbf16>
    %cst = arith.constant dense<0.000000e+00> : vector<256x128xf32>
    %23 = tpu.matmul %21, %22, %cst {dimension_numbers = #tpu.dot_dimension_numbers<[1], [0], [0], [1], [0, 0, 1, 1], [], []>} : vector<256x72xbf16>, vector<72x128xbf16>, vector<256x128xf32> -> vector<256x128xf32>
    %c0_9 = arith.constant 0 : index
    %c0_10 = arith.constant 0 : index
    %24 = vector.load %arg6[%c0_9, %c0_10] : memref<1x128xf32, #tpu.memory_space<vmem>>, vector<1x128xf32>
    %25 = vector.broadcast %24 : vector<1x128xf32> to vector<256x128xf32>
    %26 = arith.mulf %23, %25 : vector<256x128xf32>
    %c0_11 = arith.constant 0 : index
    %c0_12 = arith.constant 0 : index
    %27 = vector.load %arg7[%c0_11, %c0_12] : memref<1x128xf32, #tpu.memory_space<vmem>>, vector<1x128xf32>
    %28 = vector.broadcast %27 : vector<1x128xf32> to vector<256x128xf32>
    %29 = arith.addf %26, %28 : vector<256x128xf32>
    %cst_13 = arith.constant 0.000000e+00 : f32
    %30 = vector.broadcast %cst_13 : f32 to vector<256x128xf32>
    %31 = arith.maximumf %29, %30 : vector<256x128xf32>
    %32 = vector.shape_cast %31 : vector<256x128xf32> to vector<16x16x128xf32>
    %33 = vector.shape_cast %32 : vector<16x16x128xf32> to vector<1x16x16x128xf32>
    %34 = arith.truncf %33 : vector<1x16x16x128xf32> to vector<1x16x16x128xbf16>
    %c0_14 = arith.constant 0 : index
    %c0_15 = arith.constant 0 : index
    %c0_16 = arith.constant 0 : index
    %c0_17 = arith.constant 0 : index
    %35 = vector.load %arg8[%c0_14, %c0_15, %c0_16, %c0_17] : memref<1x16x16x128xbf16, #tpu.memory_space<vmem>>, vector<1x16x16x128xbf16>
    tpu.vector_store %arg8[%c0_14, %c0_15, %c0_16, %c0_17], %34 {strides = array<i32>} : memref<1x16x16x128xbf16, #tpu.memory_space<vmem>>, vector<1x16x16x128xbf16>,
    return
  }
  func.func @transform_0(%arg0: i32, %arg1: i32, %arg2: i32) -> (i32, i32, i32, i32) {
    %c1_i32 = arith.constant 1 : i32
    %0 = arith.muli %arg0, %c1_i32 : i32
    %1 = arith.addi %0, %arg1 : i32
    %c0_i32 = arith.constant 0 : i32
    %c0_i32_0 = arith.constant 0 : i32
    %c0_i32_1 = arith.constant 0 : i32
    %c0_i32_2 = arith.constant 0 : i32
    return %1, %c0_i32, %c0_i32_0, %c0_i32_1 : i32, i32, i32, i32
  }
  func.func @transform_1(%arg0: i32, %arg1: i32, %arg2: i32) -> (i32, i32, i32, i32) {
    %c1_i32 = arith.constant 1 : i32
    %0 = arith.muli %arg0, %c1_i32 : i32
    %1 = arith.addi %0, %arg1 : i32
    %c0_i32 = arith.constant 0 : i32
    %c0_i32_0 = arith.constant 0 : i32
    %c0_i32_1 = arith.constant 0 : i32
    %c0_i32_2 = arith.constant 0 : i32
    return %1, %c0_i32, %c0_i32_0, %c0_i32_1 : i32, i32, i32, i32
  }
  func.func @transform_2(%arg0: i32, %arg1: i32, %arg2: i32) -> (i32, i32) {
    %c0_i32 = arith.constant 0 : i32
    %c0_i32_0 = arith.constant 0 : i32
    return %c0_i32, %arg2 : i32, i32
  }
  func.func @transform_3(%arg0: i32, %arg1: i32, %arg2: i32) -> (i32, i32) {
    %c0_i32 = arith.constant 0 : i32
    %c0_i32_0 = arith.constant 0 : i32
    return %c0_i32, %arg2 : i32, i32
  }
  func.func @transform_4(%arg0: i32, %arg1: i32, %arg2: i32) -> (i32, i32) {
    %c0_i32 = arith.constant 0 : i32
    %c0_i32_0 = arith.constant 0 : i32
    return %c0_i32, %arg2 : i32, i32
  }
  func.func @transform_5(%arg0: i32, %arg1: i32, %arg2: i32) -> (i32, i32, i32, i32) {
    %c0_i32 = arith.constant 0 : i32
    %c0_i32_0 = arith.constant 0 : i32
    return %arg0, %arg1, %c0_i32, %arg2 : i32, i32, i32, i32
  }
}

module attributes {stable_mosaic.version = 11 : i64} {
  func.func @_conv_kernel_s1(%arg0: i32, %arg1: i32, %arg2: i32, %arg3: memref<1x18x18x128xbf16, #tpu.memory_space<vmem>>, %arg4: memref<3x3x128x128xbf16, #tpu.memory_space<vmem>>, %arg5: memref<1x128xf32, #tpu.memory_space<vmem>>, %arg6: memref<1x128xf32, #tpu.memory_space<vmem>>, %arg7: memref<1x16x16x128xf32, #tpu.memory_space<vmem>>) attributes {dimension_semantics = [#tpu.dimension_semantics<parallel>, #tpu.dimension_semantics<parallel>, #tpu.dimension_semantics<parallel>], iteration_bounds = array<i64: 2, 1, 1>, scalar_prefetch = 0 : i64, scratch_operands = 0 : i64, tpu.core_type = #tpu.core_type<tc>, window_params = [{transform_indices = @transform_0, window_bounds = array<i64: 1, 18, 18, 128>}, {transform_indices = @transform_1, window_bounds = array<i64: 3, 3, 128, 128>}, {transform_indices = @transform_2, window_bounds = array<i64: 1, 128>}, {transform_indices = @transform_3, window_bounds = array<i64: 1, 128>}, {transform_indices = @transform_4, window_bounds = array<i64: 1, 16, 16, 128>}]} {
    %c0 = arith.constant 0 : index
    %c0_0 = arith.constant 0 : index
    %c0_1 = arith.constant 0 : index
    %c0_2 = arith.constant 0 : index
    %0 = vector.load %arg3[%c0, %c0_0, %c0_1, %c0_2] : memref<1x18x18x128xbf16, #tpu.memory_space<vmem>>, vector<1x18x18x128xbf16>
    %1 = vector.shape_cast %0 : vector<1x18x18x128xbf16> to vector<18x18x128xbf16>
    %2 = vector.extract_strided_slice %1 {offsets = [0, 0, 0], sizes = [18, 16, 128], strides = [1, 1, 1]} : vector<18x18x128xbf16> to vector<18x16x128xbf16>
    %3 = vector.extract_strided_slice %1 {offsets = [0, 1, 0], sizes = [18, 16, 128], strides = [1, 1, 1]} : vector<18x18x128xbf16> to vector<18x16x128xbf16>
    %4 = vector.extract_strided_slice %1 {offsets = [0, 2, 0], sizes = [18, 16, 128], strides = [1, 1, 1]} : vector<18x18x128xbf16> to vector<18x16x128xbf16>
    %5 = vector.extract_strided_slice %2 {offsets = [0, 0, 0], sizes = [16, 16, 128], strides = [1, 1, 1]} : vector<18x16x128xbf16> to vector<16x16x128xbf16>
    %6 = vector.extract_strided_slice %3 {offsets = [0, 0, 0], sizes = [16, 16, 128], strides = [1, 1, 1]} : vector<18x16x128xbf16> to vector<16x16x128xbf16>
    %7 = vector.extract_strided_slice %4 {offsets = [0, 0, 0], sizes = [16, 16, 128], strides = [1, 1, 1]} : vector<18x16x128xbf16> to vector<16x16x128xbf16>
    %8 = vector.extract_strided_slice %2 {offsets = [1, 0, 0], sizes = [16, 16, 128], strides = [1, 1, 1]} : vector<18x16x128xbf16> to vector<16x16x128xbf16>
    %9 = vector.extract_strided_slice %3 {offsets = [1, 0, 0], sizes = [16, 16, 128], strides = [1, 1, 1]} : vector<18x16x128xbf16> to vector<16x16x128xbf16>
    %10 = vector.extract_strided_slice %4 {offsets = [1, 0, 0], sizes = [16, 16, 128], strides = [1, 1, 1]} : vector<18x16x128xbf16> to vector<16x16x128xbf16>
    %11 = vector.extract_strided_slice %2 {offsets = [2, 0, 0], sizes = [16, 16, 128], strides = [1, 1, 1]} : vector<18x16x128xbf16> to vector<16x16x128xbf16>
    %12 = vector.extract_strided_slice %3 {offsets = [2, 0, 0], sizes = [16, 16, 128], strides = [1, 1, 1]} : vector<18x16x128xbf16> to vector<16x16x128xbf16>
    %13 = vector.extract_strided_slice %4 {offsets = [2, 0, 0], sizes = [16, 16, 128], strides = [1, 1, 1]} : vector<18x16x128xbf16> to vector<16x16x128xbf16>
    %cst = arith.constant 0.000000e+00 : f32
    %14 = vector.broadcast %cst : f32 to vector<256x128xf32>
    %15 = vector.shape_cast %5 : vector<16x16x128xbf16> to vector<256x128xbf16>
    %c0_3 = arith.constant 0 : index
    %c0_4 = arith.constant 0 : index
    %c0_5 = arith.constant 0 : index
    %c0_6 = arith.constant 0 : index
    %16 = vector.load %arg4[%c0_3, %c0_4, %c0_5, %c0_6] : memref<3x3x128x128xbf16, #tpu.memory_space<vmem>>, vector<1x1x128x128xbf16>
    %17 = vector.shape_cast %16 : vector<1x1x128x128xbf16> to vector<128x128xbf16>
    %cst_7 = arith.constant dense<0.000000e+00> : vector<256x128xf32>
    %18 = tpu.matmul %15, %17, %cst_7 {dimension_numbers = #tpu.dot_dimension_numbers<[1], [0], [0], [1], [0, 0, 1, 1], [], []>} : vector<256x128xbf16>, vector<128x128xbf16>, vector<256x128xf32> -> vector<256x128xf32>
    %19 = arith.addf %14, %18 : vector<256x128xf32>
    %20 = vector.shape_cast %6 : vector<16x16x128xbf16> to vector<256x128xbf16>
    %c0_8 = arith.constant 0 : index
    %c1 = arith.constant 1 : index
    %c0_9 = arith.constant 0 : index
    %c0_10 = arith.constant 0 : index
    %21 = vector.load %arg4[%c0_8, %c1, %c0_9, %c0_10] : memref<3x3x128x128xbf16, #tpu.memory_space<vmem>>, vector<1x1x128x128xbf16>
    %22 = vector.shape_cast %21 : vector<1x1x128x128xbf16> to vector<128x128xbf16>
    %cst_11 = arith.constant dense<0.000000e+00> : vector<256x128xf32>
    %23 = tpu.matmul %20, %22, %cst_11 {dimension_numbers = #tpu.dot_dimension_numbers<[1], [0], [0], [1], [0, 0, 1, 1], [], []>} : vector<256x128xbf16>, vector<128x128xbf16>, vector<256x128xf32> -> vector<256x128xf32>
    %24 = arith.addf %19, %23 : vector<256x128xf32>
    %25 = vector.shape_cast %7 : vector<16x16x128xbf16> to vector<256x128xbf16>
    %c0_12 = arith.constant 0 : index
    %c2 = arith.constant 2 : index
    %c0_13 = arith.constant 0 : index
    %c0_14 = arith.constant 0 : index
    %26 = vector.load %arg4[%c0_12, %c2, %c0_13, %c0_14] : memref<3x3x128x128xbf16, #tpu.memory_space<vmem>>, vector<1x1x128x128xbf16>
    %27 = vector.shape_cast %26 : vector<1x1x128x128xbf16> to vector<128x128xbf16>
    %cst_15 = arith.constant dense<0.000000e+00> : vector<256x128xf32>
    %28 = tpu.matmul %25, %27, %cst_15 {dimension_numbers = #tpu.dot_dimension_numbers<[1], [0], [0], [1], [0, 0, 1, 1], [], []>} : vector<256x128xbf16>, vector<128x128xbf16>, vector<256x128xf32> -> vector<256x128xf32>
    %29 = arith.addf %24, %28 : vector<256x128xf32>
    %30 = vector.shape_cast %8 : vector<16x16x128xbf16> to vector<256x128xbf16>
    %c1_16 = arith.constant 1 : index
    %c0_17 = arith.constant 0 : index
    %c0_18 = arith.constant 0 : index
    %c0_19 = arith.constant 0 : index
    %31 = vector.load %arg4[%c1_16, %c0_17, %c0_18, %c0_19] : memref<3x3x128x128xbf16, #tpu.memory_space<vmem>>, vector<1x1x128x128xbf16>
    %32 = vector.shape_cast %31 : vector<1x1x128x128xbf16> to vector<128x128xbf16>
    %cst_20 = arith.constant dense<0.000000e+00> : vector<256x128xf32>
    %33 = tpu.matmul %30, %32, %cst_20 {dimension_numbers = #tpu.dot_dimension_numbers<[1], [0], [0], [1], [0, 0, 1, 1], [], []>} : vector<256x128xbf16>, vector<128x128xbf16>, vector<256x128xf32> -> vector<256x128xf32>
    %34 = arith.addf %29, %33 : vector<256x128xf32>
    %35 = vector.shape_cast %9 : vector<16x16x128xbf16> to vector<256x128xbf16>
    %c1_21 = arith.constant 1 : index
    %c1_22 = arith.constant 1 : index
    %c0_23 = arith.constant 0 : index
    %c0_24 = arith.constant 0 : index
    %36 = vector.load %arg4[%c1_21, %c1_22, %c0_23, %c0_24] : memref<3x3x128x128xbf16, #tpu.memory_space<vmem>>, vector<1x1x128x128xbf16>
    %37 = vector.shape_cast %36 : vector<1x1x128x128xbf16> to vector<128x128xbf16>
    %cst_25 = arith.constant dense<0.000000e+00> : vector<256x128xf32>
    %38 = tpu.matmul %35, %37, %cst_25 {dimension_numbers = #tpu.dot_dimension_numbers<[1], [0], [0], [1], [0, 0, 1, 1], [], []>} : vector<256x128xbf16>, vector<128x128xbf16>, vector<256x128xf32> -> vector<256x128xf32>
    %39 = arith.addf %34, %38 : vector<256x128xf32>
    %40 = vector.shape_cast %10 : vector<16x16x128xbf16> to vector<256x128xbf16>
    %c1_26 = arith.constant 1 : index
    %c2_27 = arith.constant 2 : index
    %c0_28 = arith.constant 0 : index
    %c0_29 = arith.constant 0 : index
    %41 = vector.load %arg4[%c1_26, %c2_27, %c0_28, %c0_29] : memref<3x3x128x128xbf16, #tpu.memory_space<vmem>>, vector<1x1x128x128xbf16>
    %42 = vector.shape_cast %41 : vector<1x1x128x128xbf16> to vector<128x128xbf16>
    %cst_30 = arith.constant dense<0.000000e+00> : vector<256x128xf32>
    %43 = tpu.matmul %40, %42, %cst_30 {dimension_numbers = #tpu.dot_dimension_numbers<[1], [0], [0], [1], [0, 0, 1, 1], [], []>} : vector<256x128xbf16>, vector<128x128xbf16>, vector<256x128xf32> -> vector<256x128xf32>
    %44 = arith.addf %39, %43 : vector<256x128xf32>
    %45 = vector.shape_cast %11 : vector<16x16x128xbf16> to vector<256x128xbf16>
    %c2_31 = arith.constant 2 : index
    %c0_32 = arith.constant 0 : index
    %c0_33 = arith.constant 0 : index
    %c0_34 = arith.constant 0 : index
    %46 = vector.load %arg4[%c2_31, %c0_32, %c0_33, %c0_34] : memref<3x3x128x128xbf16, #tpu.memory_space<vmem>>, vector<1x1x128x128xbf16>
    %47 = vector.shape_cast %46 : vector<1x1x128x128xbf16> to vector<128x128xbf16>
    %cst_35 = arith.constant dense<0.000000e+00> : vector<256x128xf32>
    %48 = tpu.matmul %45, %47, %cst_35 {dimension_numbers = #tpu.dot_dimension_numbers<[1], [0], [0], [1], [0, 0, 1, 1], [], []>} : vector<256x128xbf16>, vector<128x128xbf16>, vector<256x128xf32> -> vector<256x128xf32>
    %49 = arith.addf %44, %48 : vector<256x128xf32>
    %50 = vector.shape_cast %12 : vector<16x16x128xbf16> to vector<256x128xbf16>
    %c2_36 = arith.constant 2 : index
    %c1_37 = arith.constant 1 : index
    %c0_38 = arith.constant 0 : index
    %c0_39 = arith.constant 0 : index
    %51 = vector.load %arg4[%c2_36, %c1_37, %c0_38, %c0_39] : memref<3x3x128x128xbf16, #tpu.memory_space<vmem>>, vector<1x1x128x128xbf16>
    %52 = vector.shape_cast %51 : vector<1x1x128x128xbf16> to vector<128x128xbf16>
    %cst_40 = arith.constant dense<0.000000e+00> : vector<256x128xf32>
    %53 = tpu.matmul %50, %52, %cst_40 {dimension_numbers = #tpu.dot_dimension_numbers<[1], [0], [0], [1], [0, 0, 1, 1], [], []>} : vector<256x128xbf16>, vector<128x128xbf16>, vector<256x128xf32> -> vector<256x128xf32>
    %54 = arith.addf %49, %53 : vector<256x128xf32>
    %55 = vector.shape_cast %13 : vector<16x16x128xbf16> to vector<256x128xbf16>
    %c2_41 = arith.constant 2 : index
    %c2_42 = arith.constant 2 : index
    %c0_43 = arith.constant 0 : index
    %c0_44 = arith.constant 0 : index
    %56 = vector.load %arg4[%c2_41, %c2_42, %c0_43, %c0_44] : memref<3x3x128x128xbf16, #tpu.memory_space<vmem>>, vector<1x1x128x128xbf16>
    %57 = vector.shape_cast %56 : vector<1x1x128x128xbf16> to vector<128x128xbf16>
    %cst_45 = arith.constant dense<0.000000e+00> : vector<256x128xf32>
    %58 = tpu.matmul %55, %57, %cst_45 {dimension_numbers = #tpu.dot_dimension_numbers<[1], [0], [0], [1], [0, 0, 1, 1], [], []>} : vector<256x128xbf16>, vector<128x128xbf16>, vector<256x128xf32> -> vector<256x128xf32>
    %59 = arith.addf %54, %58 : vector<256x128xf32>
    %c0_46 = arith.constant 0 : index
    %c0_47 = arith.constant 0 : index
    %60 = vector.load %arg5[%c0_46, %c0_47] : memref<1x128xf32, #tpu.memory_space<vmem>>, vector<1x128xf32>
    %61 = vector.broadcast %60 : vector<1x128xf32> to vector<256x128xf32>
    %62 = arith.mulf %59, %61 : vector<256x128xf32>
    %c0_48 = arith.constant 0 : index
    %c0_49 = arith.constant 0 : index
    %63 = vector.load %arg6[%c0_48, %c0_49] : memref<1x128xf32, #tpu.memory_space<vmem>>, vector<1x128xf32>
    %64 = vector.broadcast %63 : vector<1x128xf32> to vector<256x128xf32>
    %65 = arith.addf %62, %64 : vector<256x128xf32>
    %cst_50 = arith.constant 0.000000e+00 : f32
    %66 = vector.broadcast %cst_50 : f32 to vector<256x128xf32>
    %67 = arith.maximumf %65, %66 : vector<256x128xf32>
    %68 = vector.shape_cast %67 : vector<256x128xf32> to vector<16x16x128xf32>
    %69 = vector.shape_cast %68 : vector<16x16x128xf32> to vector<1x16x16x128xf32>
    %c0_51 = arith.constant 0 : index
    %c0_52 = arith.constant 0 : index
    %c0_53 = arith.constant 0 : index
    %c0_54 = arith.constant 0 : index
    %70 = vector.load %arg7[%c0_51, %c0_52, %c0_53, %c0_54] : memref<1x16x16x128xf32, #tpu.memory_space<vmem>>, vector<1x16x16x128xf32>
    tpu.vector_store %arg7[%c0_51, %c0_52, %c0_53, %c0_54], %69 {strides = array<i32>} : memref<1x16x16x128xf32, #tpu.memory_space<vmem>>, vector<1x16x16x128xf32>,
    return
  }
  func.func @transform_0(%arg0: i32, %arg1: i32, %arg2: i32) -> (i32, i32, i32, i32) {
    %c1_i32 = arith.constant 1 : i32
    %0 = arith.muli %arg0, %c1_i32 : i32
    %1 = arith.addi %0, %arg1 : i32
    %c0_i32 = arith.constant 0 : i32
    %c0_i32_0 = arith.constant 0 : i32
    %c0_i32_1 = arith.constant 0 : i32
    %c0_i32_2 = arith.constant 0 : i32
    return %1, %c0_i32, %c0_i32_0, %c0_i32_1 : i32, i32, i32, i32
  }
  func.func @transform_1(%arg0: i32, %arg1: i32, %arg2: i32) -> (i32, i32, i32, i32) {
    %c0_i32 = arith.constant 0 : i32
    %c0_i32_0 = arith.constant 0 : i32
    %c0_i32_1 = arith.constant 0 : i32
    %c0_i32_2 = arith.constant 0 : i32
    return %c0_i32, %c0_i32_0, %c0_i32_1, %arg2 : i32, i32, i32, i32
  }
  func.func @transform_2(%arg0: i32, %arg1: i32, %arg2: i32) -> (i32, i32) {
    %c0_i32 = arith.constant 0 : i32
    %c0_i32_0 = arith.constant 0 : i32
    return %c0_i32, %arg2 : i32, i32
  }
  func.func @transform_3(%arg0: i32, %arg1: i32, %arg2: i32) -> (i32, i32) {
    %c0_i32 = arith.constant 0 : i32
    %c0_i32_0 = arith.constant 0 : i32
    return %c0_i32, %arg2 : i32, i32
  }
  func.func @transform_4(%arg0: i32, %arg1: i32, %arg2: i32) -> (i32, i32, i32, i32) {
    %c0_i32 = arith.constant 0 : i32
    %c0_i32_0 = arith.constant 0 : i32
    return %arg0, %arg1, %c0_i32, %arg2 : i32, i32, i32, i32
  }
}

module attributes {stable_mosaic.version = 11 : i64} {
  func.func @_mul_conv_kernel_s1(%arg0: i32, %arg1: i32, %arg2: i32, %arg3: memref<1x18x18x128xbf16, #tpu.memory_space<vmem>>, %arg4: memref<1x18x18x128xbf16, #tpu.memory_space<vmem>>, %arg5: memref<3x3x128x128xbf16, #tpu.memory_space<vmem>>, %arg6: memref<1x128xf32, #tpu.memory_space<vmem>>, %arg7: memref<1x128xf32, #tpu.memory_space<vmem>>, %arg8: memref<1x16x16x128xbf16, #tpu.memory_space<vmem>>) attributes {dimension_semantics = [#tpu.dimension_semantics<parallel>, #tpu.dimension_semantics<parallel>, #tpu.dimension_semantics<parallel>], iteration_bounds = array<i64: 2, 1, 1>, scalar_prefetch = 0 : i64, scratch_operands = 0 : i64, tpu.core_type = #tpu.core_type<tc>, window_params = [{transform_indices = @transform_0, window_bounds = array<i64: 1, 18, 18, 128>}, {transform_indices = @transform_1, window_bounds = array<i64: 1, 18, 18, 128>}, {transform_indices = @transform_2, window_bounds = array<i64: 3, 3, 128, 128>}, {transform_indices = @transform_3, window_bounds = array<i64: 1, 128>}, {transform_indices = @transform_4, window_bounds = array<i64: 1, 128>}, {transform_indices = @transform_5, window_bounds = array<i64: 1, 16, 16, 128>}]} {
    %c0 = arith.constant 0 : index
    %c0_0 = arith.constant 0 : index
    %c0_1 = arith.constant 0 : index
    %c0_2 = arith.constant 0 : index
    %0 = vector.load %arg3[%c0, %c0_0, %c0_1, %c0_2] : memref<1x18x18x128xbf16, #tpu.memory_space<vmem>>, vector<1x18x18x128xbf16>
    %1 = vector.shape_cast %0 : vector<1x18x18x128xbf16> to vector<18x18x128xbf16>
    %2 = arith.extf %1 : vector<18x18x128xbf16> to vector<18x18x128xf32>
    %c0_3 = arith.constant 0 : index
    %c0_4 = arith.constant 0 : index
    %c0_5 = arith.constant 0 : index
    %c0_6 = arith.constant 0 : index
    %3 = vector.load %arg4[%c0_3, %c0_4, %c0_5, %c0_6] : memref<1x18x18x128xbf16, #tpu.memory_space<vmem>>, vector<1x18x18x128xbf16>
    %4 = vector.shape_cast %3 : vector<1x18x18x128xbf16> to vector<18x18x128xbf16>
    %5 = arith.extf %4 : vector<18x18x128xbf16> to vector<18x18x128xf32>
    %6 = arith.mulf %2, %5 : vector<18x18x128xf32>
    %7 = arith.truncf %6 : vector<18x18x128xf32> to vector<18x18x128xbf16>
    %8 = vector.extract_strided_slice %7 {offsets = [0, 0, 0], sizes = [18, 16, 128], strides = [1, 1, 1]} : vector<18x18x128xbf16> to vector<18x16x128xbf16>
    %9 = vector.extract_strided_slice %7 {offsets = [0, 1, 0], sizes = [18, 16, 128], strides = [1, 1, 1]} : vector<18x18x128xbf16> to vector<18x16x128xbf16>
    %10 = vector.extract_strided_slice %7 {offsets = [0, 2, 0], sizes = [18, 16, 128], strides = [1, 1, 1]} : vector<18x18x128xbf16> to vector<18x16x128xbf16>
    %11 = vector.extract_strided_slice %8 {offsets = [0, 0, 0], sizes = [16, 16, 128], strides = [1, 1, 1]} : vector<18x16x128xbf16> to vector<16x16x128xbf16>
    %12 = vector.extract_strided_slice %9 {offsets = [0, 0, 0], sizes = [16, 16, 128], strides = [1, 1, 1]} : vector<18x16x128xbf16> to vector<16x16x128xbf16>
    %13 = vector.extract_strided_slice %10 {offsets = [0, 0, 0], sizes = [16, 16, 128], strides = [1, 1, 1]} : vector<18x16x128xbf16> to vector<16x16x128xbf16>
    %14 = vector.extract_strided_slice %8 {offsets = [1, 0, 0], sizes = [16, 16, 128], strides = [1, 1, 1]} : vector<18x16x128xbf16> to vector<16x16x128xbf16>
    %15 = vector.extract_strided_slice %9 {offsets = [1, 0, 0], sizes = [16, 16, 128], strides = [1, 1, 1]} : vector<18x16x128xbf16> to vector<16x16x128xbf16>
    %16 = vector.extract_strided_slice %10 {offsets = [1, 0, 0], sizes = [16, 16, 128], strides = [1, 1, 1]} : vector<18x16x128xbf16> to vector<16x16x128xbf16>
    %17 = vector.extract_strided_slice %8 {offsets = [2, 0, 0], sizes = [16, 16, 128], strides = [1, 1, 1]} : vector<18x16x128xbf16> to vector<16x16x128xbf16>
    %18 = vector.extract_strided_slice %9 {offsets = [2, 0, 0], sizes = [16, 16, 128], strides = [1, 1, 1]} : vector<18x16x128xbf16> to vector<16x16x128xbf16>
    %19 = vector.extract_strided_slice %10 {offsets = [2, 0, 0], sizes = [16, 16, 128], strides = [1, 1, 1]} : vector<18x16x128xbf16> to vector<16x16x128xbf16>
    %cst = arith.constant 0.000000e+00 : f32
    %20 = vector.broadcast %cst : f32 to vector<256x128xf32>
    %21 = vector.shape_cast %11 : vector<16x16x128xbf16> to vector<256x128xbf16>
    %c0_7 = arith.constant 0 : index
    %c0_8 = arith.constant 0 : index
    %c0_9 = arith.constant 0 : index
    %c0_10 = arith.constant 0 : index
    %22 = vector.load %arg5[%c0_7, %c0_8, %c0_9, %c0_10] : memref<3x3x128x128xbf16, #tpu.memory_space<vmem>>, vector<1x1x128x128xbf16>
    %23 = vector.shape_cast %22 : vector<1x1x128x128xbf16> to vector<128x128xbf16>
    %cst_11 = arith.constant dense<0.000000e+00> : vector<256x128xf32>
    %24 = tpu.matmul %21, %23, %cst_11 {dimension_numbers = #tpu.dot_dimension_numbers<[1], [0], [0], [1], [0, 0, 1, 1], [], []>} : vector<256x128xbf16>, vector<128x128xbf16>, vector<256x128xf32> -> vector<256x128xf32>
    %25 = arith.addf %20, %24 : vector<256x128xf32>
    %26 = vector.shape_cast %12 : vector<16x16x128xbf16> to vector<256x128xbf16>
    %c0_12 = arith.constant 0 : index
    %c1 = arith.constant 1 : index
    %c0_13 = arith.constant 0 : index
    %c0_14 = arith.constant 0 : index
    %27 = vector.load %arg5[%c0_12, %c1, %c0_13, %c0_14] : memref<3x3x128x128xbf16, #tpu.memory_space<vmem>>, vector<1x1x128x128xbf16>
    %28 = vector.shape_cast %27 : vector<1x1x128x128xbf16> to vector<128x128xbf16>
    %cst_15 = arith.constant dense<0.000000e+00> : vector<256x128xf32>
    %29 = tpu.matmul %26, %28, %cst_15 {dimension_numbers = #tpu.dot_dimension_numbers<[1], [0], [0], [1], [0, 0, 1, 1], [], []>} : vector<256x128xbf16>, vector<128x128xbf16>, vector<256x128xf32> -> vector<256x128xf32>
    %30 = arith.addf %25, %29 : vector<256x128xf32>
    %31 = vector.shape_cast %13 : vector<16x16x128xbf16> to vector<256x128xbf16>
    %c0_16 = arith.constant 0 : index
    %c2 = arith.constant 2 : index
    %c0_17 = arith.constant 0 : index
    %c0_18 = arith.constant 0 : index
    %32 = vector.load %arg5[%c0_16, %c2, %c0_17, %c0_18] : memref<3x3x128x128xbf16, #tpu.memory_space<vmem>>, vector<1x1x128x128xbf16>
    %33 = vector.shape_cast %32 : vector<1x1x128x128xbf16> to vector<128x128xbf16>
    %cst_19 = arith.constant dense<0.000000e+00> : vector<256x128xf32>
    %34 = tpu.matmul %31, %33, %cst_19 {dimension_numbers = #tpu.dot_dimension_numbers<[1], [0], [0], [1], [0, 0, 1, 1], [], []>} : vector<256x128xbf16>, vector<128x128xbf16>, vector<256x128xf32> -> vector<256x128xf32>
    %35 = arith.addf %30, %34 : vector<256x128xf32>
    %36 = vector.shape_cast %14 : vector<16x16x128xbf16> to vector<256x128xbf16>
    %c1_20 = arith.constant 1 : index
    %c0_21 = arith.constant 0 : index
    %c0_22 = arith.constant 0 : index
    %c0_23 = arith.constant 0 : index
    %37 = vector.load %arg5[%c1_20, %c0_21, %c0_22, %c0_23] : memref<3x3x128x128xbf16, #tpu.memory_space<vmem>>, vector<1x1x128x128xbf16>
    %38 = vector.shape_cast %37 : vector<1x1x128x128xbf16> to vector<128x128xbf16>
    %cst_24 = arith.constant dense<0.000000e+00> : vector<256x128xf32>
    %39 = tpu.matmul %36, %38, %cst_24 {dimension_numbers = #tpu.dot_dimension_numbers<[1], [0], [0], [1], [0, 0, 1, 1], [], []>} : vector<256x128xbf16>, vector<128x128xbf16>, vector<256x128xf32> -> vector<256x128xf32>
    %40 = arith.addf %35, %39 : vector<256x128xf32>
    %41 = vector.shape_cast %15 : vector<16x16x128xbf16> to vector<256x128xbf16>
    %c1_25 = arith.constant 1 : index
    %c1_26 = arith.constant 1 : index
    %c0_27 = arith.constant 0 : index
    %c0_28 = arith.constant 0 : index
    %42 = vector.load %arg5[%c1_25, %c1_26, %c0_27, %c0_28] : memref<3x3x128x128xbf16, #tpu.memory_space<vmem>>, vector<1x1x128x128xbf16>
    %43 = vector.shape_cast %42 : vector<1x1x128x128xbf16> to vector<128x128xbf16>
    %cst_29 = arith.constant dense<0.000000e+00> : vector<256x128xf32>
    %44 = tpu.matmul %41, %43, %cst_29 {dimension_numbers = #tpu.dot_dimension_numbers<[1], [0], [0], [1], [0, 0, 1, 1], [], []>} : vector<256x128xbf16>, vector<128x128xbf16>, vector<256x128xf32> -> vector<256x128xf32>
    %45 = arith.addf %40, %44 : vector<256x128xf32>
    %46 = vector.shape_cast %16 : vector<16x16x128xbf16> to vector<256x128xbf16>
    %c1_30 = arith.constant 1 : index
    %c2_31 = arith.constant 2 : index
    %c0_32 = arith.constant 0 : index
    %c0_33 = arith.constant 0 : index
    %47 = vector.load %arg5[%c1_30, %c2_31, %c0_32, %c0_33] : memref<3x3x128x128xbf16, #tpu.memory_space<vmem>>, vector<1x1x128x128xbf16>
    %48 = vector.shape_cast %47 : vector<1x1x128x128xbf16> to vector<128x128xbf16>
    %cst_34 = arith.constant dense<0.000000e+00> : vector<256x128xf32>
    %49 = tpu.matmul %46, %48, %cst_34 {dimension_numbers = #tpu.dot_dimension_numbers<[1], [0], [0], [1], [0, 0, 1, 1], [], []>} : vector<256x128xbf16>, vector<128x128xbf16>, vector<256x128xf32> -> vector<256x128xf32>
    %50 = arith.addf %45, %49 : vector<256x128xf32>
    %51 = vector.shape_cast %17 : vector<16x16x128xbf16> to vector<256x128xbf16>
    %c2_35 = arith.constant 2 : index
    %c0_36 = arith.constant 0 : index
    %c0_37 = arith.constant 0 : index
    %c0_38 = arith.constant 0 : index
    %52 = vector.load %arg5[%c2_35, %c0_36, %c0_37, %c0_38] : memref<3x3x128x128xbf16, #tpu.memory_space<vmem>>, vector<1x1x128x128xbf16>
    %53 = vector.shape_cast %52 : vector<1x1x128x128xbf16> to vector<128x128xbf16>
    %cst_39 = arith.constant dense<0.000000e+00> : vector<256x128xf32>
    %54 = tpu.matmul %51, %53, %cst_39 {dimension_numbers = #tpu.dot_dimension_numbers<[1], [0], [0], [1], [0, 0, 1, 1], [], []>} : vector<256x128xbf16>, vector<128x128xbf16>, vector<256x128xf32> -> vector<256x128xf32>
    %55 = arith.addf %50, %54 : vector<256x128xf32>
    %56 = vector.shape_cast %18 : vector<16x16x128xbf16> to vector<256x128xbf16>
    %c2_40 = arith.constant 2 : index
    %c1_41 = arith.constant 1 : index
    %c0_42 = arith.constant 0 : index
    %c0_43 = arith.constant 0 : index
    %57 = vector.load %arg5[%c2_40, %c1_41, %c0_42, %c0_43] : memref<3x3x128x128xbf16, #tpu.memory_space<vmem>>, vector<1x1x128x128xbf16>
    %58 = vector.shape_cast %57 : vector<1x1x128x128xbf16> to vector<128x128xbf16>
    %cst_44 = arith.constant dense<0.000000e+00> : vector<256x128xf32>
    %59 = tpu.matmul %56, %58, %cst_44 {dimension_numbers = #tpu.dot_dimension_numbers<[1], [0], [0], [1], [0, 0, 1, 1], [], []>} : vector<256x128xbf16>, vector<128x128xbf16>, vector<256x128xf32> -> vector<256x128xf32>
    %60 = arith.addf %55, %59 : vector<256x128xf32>
    %61 = vector.shape_cast %19 : vector<16x16x128xbf16> to vector<256x128xbf16>
    %c2_45 = arith.constant 2 : index
    %c2_46 = arith.constant 2 : index
    %c0_47 = arith.constant 0 : index
    %c0_48 = arith.constant 0 : index
    %62 = vector.load %arg5[%c2_45, %c2_46, %c0_47, %c0_48] : memref<3x3x128x128xbf16, #tpu.memory_space<vmem>>, vector<1x1x128x128xbf16>
    %63 = vector.shape_cast %62 : vector<1x1x128x128xbf16> to vector<128x128xbf16>
    %cst_49 = arith.constant dense<0.000000e+00> : vector<256x128xf32>
    %64 = tpu.matmul %61, %63, %cst_49 {dimension_numbers = #tpu.dot_dimension_numbers<[1], [0], [0], [1], [0, 0, 1, 1], [], []>} : vector<256x128xbf16>, vector<128x128xbf16>, vector<256x128xf32> -> vector<256x128xf32>
    %65 = arith.addf %60, %64 : vector<256x128xf32>
    %c0_50 = arith.constant 0 : index
    %c0_51 = arith.constant 0 : index
    %66 = vector.load %arg6[%c0_50, %c0_51] : memref<1x128xf32, #tpu.memory_space<vmem>>, vector<1x128xf32>
    %67 = vector.broadcast %66 : vector<1x128xf32> to vector<256x128xf32>
    %68 = arith.mulf %65, %67 : vector<256x128xf32>
    %c0_52 = arith.constant 0 : index
    %c0_53 = arith.constant 0 : index
    %69 = vector.load %arg7[%c0_52, %c0_53] : memref<1x128xf32, #tpu.memory_space<vmem>>, vector<1x128xf32>
    %70 = vector.broadcast %69 : vector<1x128xf32> to vector<256x128xf32>
    %71 = arith.addf %68, %70 : vector<256x128xf32>
    %cst_54 = arith.constant 0.000000e+00 : f32
    %72 = vector.broadcast %cst_54 : f32 to vector<256x128xf32>
    %73 = arith.maximumf %71, %72 : vector<256x128xf32>
    %74 = vector.shape_cast %73 : vector<256x128xf32> to vector<16x16x128xf32>
    %75 = vector.shape_cast %74 : vector<16x16x128xf32> to vector<1x16x16x128xf32>
    %76 = arith.truncf %75 : vector<1x16x16x128xf32> to vector<1x16x16x128xbf16>
    %c0_55 = arith.constant 0 : index
    %c0_56 = arith.constant 0 : index
    %c0_57 = arith.constant 0 : index
    %c0_58 = arith.constant 0 : index
    %77 = vector.load %arg8[%c0_55, %c0_56, %c0_57, %c0_58] : memref<1x16x16x128xbf16, #tpu.memory_space<vmem>>, vector<1x16x16x128xbf16>
    tpu.vector_store %arg8[%c0_55, %c0_56, %c0_57, %c0_58], %76 {strides = array<i32>} : memref<1x16x16x128xbf16, #tpu.memory_space<vmem>>, vector<1x16x16x128xbf16>,
    return
  }
  func.func @transform_0(%arg0: i32, %arg1: i32, %arg2: i32) -> (i32, i32, i32, i32) {
    %c1_i32 = arith.constant 1 : i32
    %0 = arith.muli %arg0, %c1_i32 : i32
    %1 = arith.addi %0, %arg1 : i32
    %c0_i32 = arith.constant 0 : i32
    %c0_i32_0 = arith.constant 0 : i32
    %c0_i32_1 = arith.constant 0 : i32
    %c0_i32_2 = arith.constant 0 : i32
    return %1, %c0_i32, %c0_i32_0, %c0_i32_1 : i32, i32, i32, i32
  }
  func.func @transform_1(%arg0: i32, %arg1: i32, %arg2: i32) -> (i32, i32, i32, i32) {
    %c1_i32 = arith.constant 1 : i32
    %0 = arith.muli %arg0, %c1_i32 : i32
    %1 = arith.addi %0, %arg1 : i32
    %c0_i32 = arith.constant 0 : i32
    %c0_i32_0 = arith.constant 0 : i32
    %c0_i32_1 = arith.constant 0 : i32
    %c0_i32_2 = arith.constant 0 : i32
    return %1, %c0_i32, %c0_i32_0, %c0_i32_1 : i32, i32, i32, i32
  }
  func.func @transform_2(%arg0: i32, %arg1: i32, %arg2: i32) -> (i32, i32, i32, i32) {
    %c0_i32 = arith.constant 0 : i32
    %c0_i32_0 = arith.constant 0 : i32
    %c0_i32_1 = arith.constant 0 : i32
    %c0_i32_2 = arith.constant 0 : i32
    return %c0_i32, %c0_i32_0, %c0_i32_1, %arg2 : i32, i32, i32, i32
  }
  func.func @transform_3(%arg0: i32, %arg1: i32, %arg2: i32) -> (i32, i32) {
    %c0_i32 = arith.constant 0 : i32
    %c0_i32_0 = arith.constant 0 : i32
    return %c0_i32, %arg2 : i32, i32
  }
  func.func @transform_4(%arg0: i32, %arg1: i32, %arg2: i32) -> (i32, i32) {
    %c0_i32 = arith.constant 0 : i32
    %c0_i32_0 = arith.constant 0 : i32
    return %c0_i32, %arg2 : i32, i32
  }
  func.func @transform_5(%arg0: i32, %arg1: i32, %arg2: i32) -> (i32, i32, i32, i32) {
    %c0_i32 = arith.constant 0 : i32
    %c0_i32_0 = arith.constant 0 : i32
    return %arg0, %arg1, %c0_i32, %arg2 : i32, i32, i32, i32
  }
}

</mosaic_0001>

<llo_original>
// kernel: cam_forward.6
$region0: #{cam_forward.6}
  #allocation0 [shape = 'u32[]', space=smem, size = 0x4, offset = 0x4, fixed_abs, tag = 'smem constant byte address 0x4 - core index']
  #allocation1 [shape = 'u32[72,128]{1,0:T(1,128)}', space=vmem, size = 0x9000, scoped, tag = 'internal scratch']
  %s0 = inlined_call_operand.vmem [shape: bf16[2,9,17,8], index: 0, kind: input, shape index: {}]
  %s1 = inlined_call_operand.vmem [shape: bf16[2,9,17,8], index: 1, kind: input, shape index: {}]
  %s2 = inlined_call_operand.vmem [shape: bf16[2,9,17,8], index: 2, kind: input, shape index: {}]
  %s3 = inlined_call_operand.vmem [shape: bf16[2,9,17,8], index: 3, kind: input, shape index: {}]
  %s4 = inlined_call_operand.vmem [shape: bf16[72,128], index: 4, kind: input, shape index: {}]
  %s5 = inlined_call_operand.vmem [shape: f32[1,128], index: 5, kind: input, shape index: {}]
  %s6 = inlined_call_operand.vmem [shape: f32[1,128], index: 6, kind: input, shape index: {}]
  %s7 = inlined_call_operand.vmem [shape: bf16[2,8,16,128], index: 7, kind: output, shape index: {}]
  %s8 = sld [smem:[#allocation0]]
  $region61: #{cam_forward.6} parent=0
    _
  %s10 = ssub.s32 1, %s8
  %s11 = scalar_select 0, %s10, %s8
  loop: start=0, step=1, limit=4
  $region2: #{cam_forward.6} parent=0 // loop_pre_header
    _
  $region3: #{cam_forward.6} parent=0 // loop_header
    %s13 = sphi 0, %s17
    %p14 = scmp.ge.s32.totalorder %s13, 4
    %s20 = sphi 0, %s39
    %s21 = sphi 0, %s35
    %s22 = sphi 0, %s31
    %s23 = sphi 0, %s20
    %s24 = sphi 0, %s21
    %s25 = sphi 0, %s22
    %s26 = sphi 0, %s23
    %s27 = sphi 0, %s24
    %s28 = sphi 0, %s25
    %s44 = sphi 0, %s46
    %s47 = sphi 0, %s44
    %s48 = sphi 0, %s47
    %s64 = sphi 0, %s48
    %s72 = sphi 0, %s74
    %s75 = sphi 0, %s72
    %s76 = sphi 0, %s75
    %s92 = sphi 0, %s76
    %s100 = sphi 0, %s102
    %s103 = sphi 0, %s100
    %s104 = sphi 0, %s103
    %s120 = sphi 0, %s104
    %s128 = sphi 0, %s130
    %s131 = sphi 0, %s128
    %s132 = sphi 0, %s131
    %s148 = sphi 0, %s132
    %s154 = sphi 0, %s156
    %s157 = sphi 0, %s154
    %s158 = sphi 0, %s157
    %s174 = sphi 0, %s158
    %s180 = sphi 0, %s182
    %s183 = sphi 0, %s180
    %s184 = sphi 0, %s183
    %s200 = sphi 0, %s184
    %s206 = sphi 0, %s208
    %s209 = sphi 0, %s206
    %s210 = sphi 0, %s209
    %s226 = sphi 0, %s210
    %s236 = sphi 0, %s238
    %s239 = sphi 0, %s236
    %s240 = sphi 0, %s239
    %s256 = sphi 0, %s240
  $region4: #{cam_forward.6} parent=0 // loop_header_branch
    %16 = sbr.rel (%p14) target = $region8
  $region5: #{cam_forward.6} parent=0 // loop_body
    %s18 = ssub.s32 %s13, 1
    %s19 = ssub.s32 %s13, 2
    %s29 = sadd.s32 1, %s22
    %p30 = scmp.ge.s32.totalorder %s29, 1
    %s31 = scalar_select %p30, 0, %s29
    %s32 = sadd.s32 1, %s21
    %s33 = scalar_select %p30, %s32, %s21
    %p34 = scmp.ge.s32.totalorder %s33, 1
    %s35 = scalar_select %p34, 0, %s33
    %s36 = sadd.s32 1, %s20
    %s37 = scalar_select %p34, %s36, %s20
    %p38 = scmp.ge.s32.totalorder %s37, 2
    %s39 = scalar_select %p38, 0, %s37
    %s40 = sadd.s32 %s20, %s21
    %s41 = sadd.s32 %s39, %s35
    %s42 = ssub.s32 %s40, %s41
    %p43 = scmp.eq.s32.totalorder %s42, 0
    %s45 = sadd.s32 %s44, 1
    %s46 = scalar_select %p43, %s44, %s45
    %p49 = pneg %p43
    %p50 = scmp.eq.s32.totalorder %s13, 1
    %p51 = por %p49, %p50
    %p52 = scmp.ne.s32.totalorder %s44, %s47
    %p53 = scmp.eq.s32.totalorder %s13, 0
    %p54 = por %p52, %p53
    %p55 = scmp.ne.s32.totalorder %s44, %s47
    %p56 = scmp.eq.s32.totalorder %s18, 1
    %p57 = por %p55, %p56
    %p58 = scmp.ne.s32.totalorder %s47, %s48
    %p59 = scmp.eq.s32.totalorder %s18, 0
    %p60 = por %p58, %p59
    %p61 = scmp.ne.s32.totalorder %s47, %s48
    %p62 = scmp.eq.s32.totalorder %s19, 1
    %p63 = por %p61, %p62
    %p65 = scmp.ne.s32.totalorder %s48, %s64
    %p66 = scmp.eq.s32.totalorder %s19, 0
    %p67 = por %p65, %p66
    %s68 = sadd.s32 %s20, %s21
    %s69 = sadd.s32 %s39, %s35
    %s70 = ssub.s32 %s68, %s69
    %p71 = scmp.eq.s32.totalorder %s70, 0
    %s73 = sadd.s32 %s72, 1
    %s74 = scalar_select %p71, %s72, %s73
    %p77 = pneg %p71
    %p78 = scmp.eq.s32.totalorder %s13, 1
    %p79 = por %p77, %p78
    %p80 = scmp.ne.s32.totalorder %s72, %s75
    %p81 = scmp.eq.s32.totalorder %s13, 0
    %p82 = por %p80, %p81
    %p83 = scmp.ne.s32.totalorder %s72, %s75
    %p84 = scmp.eq.s32.totalorder %s18, 1
    %p85 = por %p83, %p84
    %p86 = scmp.ne.s32.totalorder %s75, %s76
    %p87 = scmp.eq.s32.totalorder %s18, 0
    %p88 = por %p86, %p87
    %p89 = scmp.ne.s32.totalorder %s75, %s76
    %p90 = scmp.eq.s32.totalorder %s19, 1
    %p91 = por %p89, %p90
    %p93 = scmp.ne.s32.totalorder %s76, %s92
    %p94 = scmp.eq.s32.totalorder %s19, 0
    %p95 = por %p93, %p94
    %s96 = sadd.s32 %s20, %s21
    %s97 = sadd.s32 %s39, %s35
    %s98 = ssub.s32 %s96, %s97
    %p99 = scmp.eq.s32.totalorder %s98, 0
    %s101 = sadd.s32 %s100, 1
    %s102 = scalar_select %p99, %s100, %s101
    %p105 = pneg %p99
    %p106 = scmp.eq.s32.totalorder %s13, 1
    %p107 = por %p105, %p106
    %p108 = scmp.ne.s32.totalorder %s100, %s103
    %p109 = scmp.eq.s32.totalorder %s13, 0
    %p110 = por %p108, %p109
    %p111 = scmp.ne.s32.totalorder %s100, %s103
    %p112 = scmp.eq.s32.totalorder %s18, 1
    %p113 = por %p111, %p112
    %p114 = scmp.ne.s32.totalorder %s103, %s104
    %p115 = scmp.eq.s32.totalorder %s18, 0
    %p116 = por %p114, %p115
    %p117 = scmp.ne.s32.totalorder %s103, %s104
    %p118 = scmp.eq.s32.totalorder %s19, 1
    %p119 = por %p117, %p118
    %p121 = scmp.ne.s32.totalorder %s104, %s120
    %p122 = scmp.eq.s32.totalorder %s19, 0
    %p123 = por %p121, %p122
    %s124 = sadd.s32 %s20, %s21
    %s125 = sadd.s32 %s39, %s35
    %s126 = ssub.s32 %s124, %s125
    %p127 = scmp.eq.s32.totalorder %s126, 0
    %s129 = sadd.s32 %s128, 1
    %s130 = scalar_select %p127, %s128, %s129
    %p133 = pneg %p127
    %p134 = scmp.eq.s32.totalorder %s13, 1
    %p135 = por %p133, %p134
    %p136 = scmp.ne.s32.totalorder %s128, %s131
    %p137 = scmp.eq.s32.totalorder %s13, 0
    %p138 = por %p136, %p137
    %p139 = scmp.ne.s32.totalorder %s128, %s131
    %p140 = scmp.eq.s32.totalorder %s18, 1
    %p141 = por %p139, %p140
    %p142 = scmp.ne.s32.totalorder %s131, %s132
    %p143 = scmp.eq.s32.totalorder %s18, 0
    %p144 = por %p142, %p143
    %p145 = scmp.ne.s32.totalorder %s131, %s132
    %p146 = scmp.eq.s32.totalorder %s19, 1
    %p147 = por %p145, %p146
    %p149 = scmp.ne.s32.totalorder %s132, %s148
    %p150 = scmp.eq.s32.totalorder %s19, 0
    %p151 = por %p149, %p150
    %s152 = ssub.s32 %s22, %s31
    %p153 = scmp.eq.s32.totalorder %s152, 0
    %s155 = sadd.s32 %s154, 1
    %s156 = scalar_select %p153, %s154, %s155
    %p159 = pneg %p153
    %p160 = scmp.eq.s32.totalorder %s13, 1
    %p161 = por %p159, %p160
    %p162 = scmp.ne.s32.totalorder %s154, %s157
    %p163 = scmp.eq.s32.totalorder %s13, 0
    %p164 = por %p162, %p163
    %p165 = scmp.ne.s32.totalorder %s154, %s157
    %p166 = scmp.eq.s32.totalorder %s18, 1
    %p167 = por %p165, %p166
    %p168 = scmp.ne.s32.totalorder %s157, %s158
    %p169 = scmp.eq.s32.totalorder %s18, 0
    %p170 = por %p168, %p169
    %p171 = scmp.ne.s32.totalorder %s157, %s158
    %p172 = scmp.eq.s32.totalorder %s19, 1
    %p173 = por %p171, %p172
    %p175 = scmp.ne.s32.totalorder %s158, %s174
    %p176 = scmp.eq.s32.totalorder %s19, 0
    %p177 = por %p175, %p176
    %s178 = ssub.s32 %s22, %s31
    %p179 = scmp.eq.s32.totalorder %s178, 0
    %s181 = sadd.s32 %s180, 1
    %s182 = scalar_select %p179, %s180, %s181
    %p185 = pneg %p179
    %p186 = scmp.eq.s32.totalorder %s13, 1
    %p187 = por %p185, %p186
    %p188 = scmp.ne.s32.totalorder %s180, %s183
    %p189 = scmp.eq.s32.totalorder %s13, 0
    %p190 = por %p188, %p189
    %p191 = scmp.ne.s32.totalorder %s180, %s183
    %p192 = scmp.eq.s32.totalorder %s18, 1
    %p193 = por %p191, %p192
    %p194 = scmp.ne.s32.totalorder %s183, %s184
    %p195 = scmp.eq.s32.totalorder %s18, 0
    %p196 = por %p194, %p195
    %p197 = scmp.ne.s32.totalorder %s183, %s184
    %p198 = scmp.eq.s32.totalorder %s19, 1
    %p199 = por %p197, %p198
    %p201 = scmp.ne.s32.totalorder %s184, %s200
    %p202 = scmp.eq.s32.totalorder %s19, 0
    %p203 = por %p201, %p202
    %s204 = ssub.s32 %s22, %s31
    %p205 = scmp.eq.s32.totalorder %s204, 0
    %s207 = sadd.s32 %s206, 1
    %s208 = scalar_select %p205, %s206, %s207
    %p211 = pneg %p205
    %p212 = scmp.eq.s32.totalorder %s13, 1
    %p213 = por %p211, %p212
    %p214 = scmp.ne.s32.totalorder %s206, %s209
    %p215 = scmp.eq.s32.totalorder %s13, 0
    %p216 = por %p214, %p215
    %p217 = scmp.ne.s32.totalorder %s206, %s209
    %p218 = scmp.eq.s32.totalorder %s18, 1
    %p219 = por %p217, %p218
    %p220 = scmp.ne.s32.totalorder %s209, %s210
    %p221 = scmp.eq.s32.totalorder %s18, 0
    %p222 = por %p220, %p221
    %p223 = scmp.ne.s32.totalorder %s209, %s210
    %p224 = scmp.eq.s32.totalorder %s19, 1
    %p225 = por %p223, %p224
    %p227 = scmp.ne.s32.totalorder %s210, %s226
    %p228 = scmp.eq.s32.totalorder %s19, 0
    %p229 = por %p227, %p228
    %s230 = ssub.s32 %s20, %s39
    %s231 = ssub.s32 %s21, %s35
    %s232 = sor.u32 %s230, %s231
    %s233 = ssub.s32 %s22, %s31
    %s234 = sor.u32 %s232, %s233
    %p235 = scmp.eq.s32.totalorder %s234, 0
    %s237 = sadd.s32 %s236, 1
    %s238 = scalar_select %p235, %s236, %s237
    %p241 = pneg %p235
    %p242 = scmp.eq.s32.totalorder %s13, 1
    %p243 = por %p241, %p242
    %p244 = scmp.ne.s32.totalorder %s236, %s239
    %p245 = scmp.eq.s32.totalorder %s13, 0
    %p246 = por %p244, %p245
    %p247 = scmp.ne.s32.totalorder %s236, %s239
    %p248 = scmp.eq.s32.totalorder %s18, 1
    %p249 = por %p247, %p248
    %p250 = scmp.ne.s32.totalorder %s239, %s240
    %p251 = scmp.eq.s32.totalorder %s18, 0
    %p252 = por %p250, %p251
    %p253 = scmp.ne.s32.totalorder %s239, %s240
    %p254 = scmp.eq.s32.totalorder %s19, 1
    %p255 = por %p253, %p254
    %p257 = scmp.ne.s32.totalorder %s240, %s256
    %p258 = scmp.eq.s32.totalorder %s19, 0
    %p259 = por %p257, %p258
    %p260 = scmp.le.s32.totalorder 1, %s13
    %p261 = scmp.lt.s32.totalorder %s13, 3
    %p262 = pnand %p260, %p261
    %p263 = pneg %p262
    // Predicated region
    $region9: #{cam_forward.6} parent=5 // pred_check
      _
    $region10: #{cam_forward.6} parent=5 // pred_check_branch
      %265 = sbr.rel (%p262) target = $region12
    $region11: #{cam_forward.6} parent=5 // pred_region
      %s266 = ssub.s32 %s13, 1
      // Predicated region
      $region13: #{cam_forward.6} parent=11 // pred_check
        %p267 = pneg %p170
      $region14: #{cam_forward.6} parent=11 // pred_check_branch
        %269 = sbr.rel (%p267) target = $region16
      $region15: #{cam_forward.6} parent=11 // pred_region
        %p270 = scmp.lt.s32.totalorder %s25, 0
        %s271 = scalar_select %p270, %s25, 0
        %s272 = smul.addr %s271, 4
        %s273 = scalar_lea.vmem %s4, %s272
      $region16: #{cam_forward.6} parent=11 // pred_fallthru
        _
      // Predicated region
      $region17: #{cam_forward.6} parent=11 // pred_check
        %p274 = pneg %p196
      $region18: #{cam_forward.6} parent=11 // pred_check_branch
        %276 = sbr.rel (%p274) target = $region20
      $region19: #{cam_forward.6} parent=11 // pred_region
        %p277 = scmp.lt.s32.totalorder %s25, 0
        %s278 = scalar_select %p277, %s25, 0
        %s279 = scalar_lea.vmem %s5, %s278
      $region20: #{cam_forward.6} parent=11 // pred_fallthru
        _
      // Predicated region
      $region21: #{cam_forward.6} parent=11 // pred_check
        %p280 = pneg %p222
      $region22: #{cam_forward.6} parent=11 // pred_check_branch
        %282 = sbr.rel (%p280) target = $region24
      $region23: #{cam_forward.6} parent=11 // pred_region
        %p283 = scmp.lt.s32.totalorder %s25, 0
        %s284 = scalar_select %p283, %s25, 0
        %s285 = scalar_lea.vmem %s6, %s284
      $region24: #{cam_forward.6} parent=11 // pred_fallthru
        _
    $region12: #{cam_forward.6} parent=5 // pred_fallthru
      _
    %p286 = scmp.lt.s32.totalorder %s13, 2
    // Predicated region
    $region25: #{cam_forward.6} parent=5 // pred_check
      %p287 = pneg %p286
    $region26: #{cam_forward.6} parent=5 // pred_check_branch
      %289 = sbr.rel (%p287) target = $region28
    $region27: #{cam_forward.6} parent=5 // pred_region
      // Predicated region
      $region29: #{cam_forward.6} parent=27 // pred_check
        %p290 = pneg %p54
      $region30: #{cam_forward.6} parent=27 // pred_check_branch
        %292 = sbr.rel (%p290) target = $region32
      $region31: #{cam_forward.6} parent=27 // pred_region
        %s293 = sadd.s32 %s20, %s21
        %p294 = scmp.lt.s32.totalorder %s293, 1
        %s295 = scalar_select %p294, %s293, 1
        %s296 = smul.addr %s295, 27
        %s297 = smul.addr %s296, 4
        %s298 = scalar_lea.vmem %s0, %s297
        %s299 = sadd.s32 %s20, %s21
      $region32: #{cam_forward.6} parent=27 // pred_fallthru
        _
      // Predicated region
      $region33: #{cam_forward.6} parent=27 // pred_check
        %p300 = pneg %p82
      $region34: #{cam_forward.6} parent=27 // pred_check_branch
        %302 = sbr.rel (%p300) target = $region36
      $region35: #{cam_forward.6} parent=27 // pred_region
        %s303 = sadd.s32 %s20, %s21
        %p304 = scmp.lt.s32.totalorder %s303, 1
        %s305 = scalar_select %p304, %s303, 1
        %s306 = smul.addr %s305, 27
        %s307 = smul.addr %s306, 4
        %s308 = scalar_lea.vmem %s1, %s307
        %s309 = sadd.s32 %s20, %s21
      $region36: #{cam_forward.6} parent=27 // pred_fallthru
        _
      // Predicated region
      $region37: #{cam_forward.6} parent=27 // pred_check
        %p310 = pneg %p110
      $region38: #{cam_forward.6} parent=27 // pred_check_branch
        %312 = sbr.rel (%p310) target = $region40
      $region39: #{cam_forward.6} parent=27 // pred_region
        %s313 = sadd.s32 %s20, %s21
        %p314 = scmp.lt.s32.totalorder %s313, 1
        %s315 = scalar_select %p314, %s313, 1
        %s316 = smul.addr %s315, 27
        %s317 = smul.addr %s316, 4
        %s318 = scalar_lea.vmem %s2, %s317
        %s319 = sadd.s32 %s20, %s21
      $region40: #{cam_forward.6} parent=27 // pred_fallthru
        _
      // Predicated region
      $region41: #{cam_forward.6} parent=27 // pred_check
        %p320 = pneg %p138
      $region42: #{cam_forward.6} parent=27 // pred_check_branch
        %322 = sbr.rel (%p320) target = $region44
      $region43: #{cam_forward.6} parent=27 // pred_region
        %s323 = sadd.s32 %s20, %s21
        %p324 = scmp.lt.s32.totalorder %s323, 1
        %s325 = scalar_select %p324, %s323, 1
        %s326 = smul.addr %s325, 27
        %s327 = smul.addr %s326, 4
        %s328 = scalar_lea.vmem %s3, %s327
        %s329 = sadd.s32 %s20, %s21
      $region44: #{cam_forward.6} parent=27 // pred_fallthru
        _
    $region28: #{cam_forward.6} parent=5 // pred_fallthru
      _
    %p330 = scmp.le.s32.totalorder 1, %s13
    %p331 = scmp.lt.s32.totalorder %s13, 3
    %p332 = pnand %p330, %p331
    %p333 = pneg %p332
    // Predicated region
    $region45: #{cam_forward.6} parent=5 // pred_check
      _
    $region46: #{cam_forward.6} parent=5 // pred_check_branch
      %335 = sbr.rel (%p332) target = $region48
    $region47: #{cam_forward.6} parent=5 // pred_region
      %s336 = ssub.s32 %s13, 1
      %s337 = sadd.s32 %s23, %s24
      %p338 = scmp.lt.s32.totalorder %s337, 1
      %s339 = scalar_select %p338, %s337, 1
      %s340 = smul.addr %s339, 27
      %s341 = smul.addr %s340, 4
      %s342 = scalar_lea.vmem %s0, %s341
      %p343 = pneg %p60
      %p344 = pneg %p57
      %s345 = sadd.s32 %s23, %s24
      %p346 = scmp.lt.s32.totalorder %s345, 1
      %s347 = scalar_select %p346, %s345, 1
      %s348 = smul.addr %s347, 27
      %s349 = smul.addr %s348, 4
      %s350 = scalar_lea.vmem %s1, %s349
      %p351 = pneg %p88
      %p352 = pneg %p85
      %s353 = sadd.s32 %s23, %s24
      %p354 = scmp.lt.s32.totalorder %s353, 1
      %s355 = scalar_select %p354, %s353, 1
      %s356 = smul.addr %s355, 27
      %s357 = smul.addr %s356, 4
      %s358 = scalar_lea.vmem %s2, %s357
      %p359 = pneg %p116
      %p360 = pneg %p113
      %s361 = sadd.s32 %s23, %s24
      %p362 = scmp.lt.s32.totalorder %s361, 1
      %s363 = scalar_select %p362, %s361, 1
      %s364 = smul.addr %s363, 27
      %s365 = smul.addr %s364, 4
      %s366 = scalar_lea.vmem %s3, %s365
      %p367 = pneg %p144
      %p368 = pneg %p141
      %p369 = scmp.lt.s32.totalorder %s25, 0
      %s370 = scalar_select %p369, %s25, 0
      %s371 = smul.addr %s370, 4
      %s372 = scalar_lea.vmem %s4, %s371
      %p373 = pneg %p170
      %p374 = pneg %p167
      %p375 = scmp.lt.s32.totalorder %s25, 0
      %s376 = scalar_select %p375, %s25, 0
      %s377 = scalar_lea.vmem %s5, %s376
      %p378 = pneg %p196
      %p379 = pneg %p193
      %p380 = scmp.lt.s32.totalorder %s25, 0
      %s381 = scalar_select %p380, %s25, 0
      %s382 = scalar_lea.vmem %s6, %s381
      %p383 = pneg %p222
      %p384 = pneg %p219
      %p385 = pneg %p252
      %p386 = pneg %p249
      %s387 = smul.u32 8, %s24
      %p388 = scmp.lt.s32.totalorder %s23, 1
      %s389 = scalar_select %p388, %s23, 1
      %p390 = scmp.lt.s32.totalorder %s387, 7
      %s391 = scalar_select %p390, %s387, 7
      %p392 = scmp.lt.s32.totalorder %s25, 0
      %s393 = scalar_select %p392, %s25, 0
      %s394 = smul.addr %s391, 2
      %s395 = sadd.s32 %s393, %s394
      %s396 = smul.addr %s389, 16
      %s397 = sadd.s32 %s395, %s396
      %s398 = smul.addr %s397, 4
      %s399 = scalar_lea.vmem %s7, %s398
      %s400 = sadd.s32 %s23, %s24
      %p401 = scmp.lt.s32.totalorder %s400, 1
      %s402 = scalar_select %p401, %s400, 1
      %s403 = smul.addr %s402, 27
      %s404 = smul.addr %s403, 4
      %s405 = scalar_lea.vmem %s0, %s404
      %s406 = sadd.s32 %s23, %s24
      %s407 = sadd.s32 %s23, %s24
      %p408 = scmp.lt.s32.totalorder %s407, 1
      %s409 = scalar_select %p408, %s407, 1
      %s410 = smul.addr %s409, 27
      %s411 = smul.addr %s410, 4
      %s412 = scalar_lea.vmem %s1, %s411
      %s413 = sadd.s32 %s23, %s24
      %s414 = sadd.s32 %s23, %s24
      %p415 = scmp.lt.s32.totalorder %s414, 1
      %s416 = scalar_select %p415, %s414, 1
      %s417 = smul.addr %s416, 27
      %s418 = smul.addr %s417, 4
      %s419 = scalar_lea.vmem %s2, %s418
      %s420 = sadd.s32 %s23, %s24
      %s421 = sadd.s32 %s23, %s24
      %p422 = scmp.lt.s32.totalorder %s421, 1
      %s423 = scalar_select %p422, %s421, 1
      %s424 = smul.addr %s423, 27
      %s425 = smul.addr %s424, 4
      %s426 = scalar_lea.vmem %s3, %s425
      %s427 = sadd.s32 %s23, %s24
      %p428 = scmp.lt.s32.totalorder %s25, 0
      %s429 = scalar_select %p428, %s25, 0
      %s430 = smul.addr %s429, 4
      %s431 = scalar_lea.vmem %s4, %s430
      %p432 = scmp.lt.s32.totalorder %s25, 0
      %s433 = scalar_select %p432, %s25, 0
      %s434 = scalar_lea.vmem %s5, %s433
      %p435 = scmp.lt.s32.totalorder %s25, 0
      %s436 = scalar_select %p435, %s25, 0
      %s437 = scalar_lea.vmem %s6, %s436
      %s438 = smul.u32 8, %s24
      %p439 = scmp.lt.s32.totalorder %s23, 1
      %s440 = scalar_select %p439, %s23, 1
      %p441 = scmp.lt.s32.totalorder %s438, 7
      %s442 = scalar_select %p441, %s438, 7
      %p443 = scmp.lt.s32.totalorder %s25, 0
      %s444 = scalar_select %p443, %s25, 0
      %s445 = smul.addr %s442, 2
      %s446 = sadd.s32 %s444, %s445
      %s447 = smul.addr %s440, 16
      %s448 = sadd.s32 %s446, %s447
      %s449 = smul.addr %s448, 4
      %s450 = scalar_lea.vmem %s7, %s449
      %s451 = smul.u32 8, %s24
      %v453 = vld [vmem:[%s405] sm:$0xf]
      %v454 = vld [vmem:[%s405 + $0x4] sm:$0xf]
      %v455 = vld [vmem:[%s405 + $0x8] sm:$0x1]
      %v456 = vld [vmem:[%s405 + $0xc] sm:$0xf]
      %v457 = vld [vmem:[%s405 + $0x10] sm:$0xf]
      %v458 = vld [vmem:[%s405 + $0x14] sm:$0x1]
      %v459 = vld [vmem:[%s405 + $0x18] sm:$0xf]
      %v460 = vld [vmem:[%s405 + $0x1c] sm:$0xf]
      %v461 = vld [vmem:[%s405 + $0x20] sm:$0x1]
      %v462 = vld [vmem:[%s405 + $0x24] sm:$0xf]
      %v463 = vld [vmem:[%s405 + $0x28] sm:$0xf]
      %v464 = vld [vmem:[%s405 + $0x2c] sm:$0x1]
      %v465 = vld [vmem:[%s405 + $0x30] sm:$0xf]
      %v466 = vld [vmem:[%s405 + $0x34] sm:$0xf]
      %v467 = vld [vmem:[%s405 + $0x38] sm:$0x1]
      %v468 = vld [vmem:[%s405 + $0x3c] sm:$0xf]
      %v469 = vld [vmem:[%s405 + $0x40] sm:$0xf]
      %v470 = vld [vmem:[%s405 + $0x44] sm:$0x1]
      %v471 = vld [vmem:[%s405 + $0x48] sm:$0xf]
      %v472 = vld [vmem:[%s405 + $0x4c] sm:$0xf]
      %v473 = vld [vmem:[%s405 + $0x50] sm:$0x1]
      %v474 = vld [vmem:[%s405 + $0x54] sm:$0xf]
      %v475 = vld [vmem:[%s405 + $0x58] sm:$0xf]
      %v476 = vld [vmem:[%s405 + $0x5c] sm:$0x1]
      %v477 = vld [vmem:[%s405 + $0x60] sm:$0xf]
      %v478 = vld [vmem:[%s405 + $0x64] sm:$0xf]
      %v479 = vld [vmem:[%s405 + $0x68] sm:$0x1]
      %v480 = vld [vmem:[%s412] sm:$0xf]
      %v481 = vld [vmem:[%s412 + $0x4] sm:$0xf]
      %v482 = vld [vmem:[%s412 + $0xc] sm:$0xf]
      %v483 = vld [vmem:[%s412 + $0x10] sm:$0xf]
      %v484 = vld [vmem:[%s412 + $0x18] sm:$0xf]
      %v485 = vld [vmem:[%s412 + $0x1c] sm:$0xf]
      %v486 = vld [vmem:[%s412 + $0x24] sm:$0xf]
      %v487 = vld [vmem:[%s412 + $0x28] sm:$0xf]
      %v488 = vld [vmem:[%s412 + $0x30] sm:$0xf]
      %v489 = vld [vmem:[%s412 + $0x34] sm:$0xf]
      %v490 = vld [vmem:[%s412 + $0x3c] sm:$0xf]
      %v491 = vld [vmem:[%s412 + $0x40] sm:$0xf]
      %v492 = vld [vmem:[%s412 + $0x48] sm:$0xf]
      %v493 = vld [vmem:[%s412 + $0x4c] sm:$0xf]
      %v494 = vld [vmem:[%s412 + $0x54] sm:$0xf]
      %v495 = vld [vmem:[%s412 + $0x58] sm:$0xf]
      %v496 = vld [vmem:[%s412 + $0x60] sm:$0xf]
      %v497 = vld [vmem:[%s412 + $0x64] sm:$0xf]
      %v498 = vld [vmem:[%s419] sm:$0xf]
      %v499 = vld [vmem:[%s419 + $0x4] sm:$0xf]
      %v500 = vld [vmem:[%s419 + $0x8] sm:$0x1]
      %v501 = vld [vmem:[%s419 + $0xc] sm:$0xf]
      %v502 = vld [vmem:[%s419 + $0x10] sm:$0xf]
      %v503 = vld [vmem:[%s419 + $0x14] sm:$0x1]
      %v504 = vld [vmem:[%s419 + $0x18] sm:$0xf]
      %v505 = vld [vmem:[%s419 + $0x1c] sm:$0xf]
      %v506 = vld [vmem:[%s419 + $0x20] sm:$0x1]
      %v507 = vld [vmem:[%s419 + $0x24] sm:$0xf]
      %v508 = vld [vmem:[%s419 + $0x28] sm:$0xf]
      %v509 = vld [vmem:[%s419 + $0x2c] sm:$0x1]
      %v510 = vld [vmem:[%s419 + $0x30] sm:$0xf]
      %v511 = vld [vmem:[%s419 + $0x34] sm:$0xf]
      %v512 = vld [vmem:[%s419 + $0x38] sm:$0x1]
      %v513 = vld [vmem:[%s419 + $0x3c] sm:$0xf]
      %v514 = vld [vmem:[%s419 + $0x40] sm:$0xf]
      %v515 = vld [vmem:[%s419 + $0x44] sm:$0x1]
      %v516 = vld [vmem:[%s419 + $0x48] sm:$0xf]
      %v517 = vld [vmem:[%s419 + $0x4c] sm:$0xf]
      %v518 = vld [vmem:[%s419 + $0x50] sm:$0x1]
      %v519 = vld [vmem:[%s419 + $0x54] sm:$0xf]
      %v520 = vld [vmem:[%s419 + $0x58] sm:$0xf]
      %v521 = vld [vmem:[%s419 + $0x5c] sm:$0x1]
      %v522 = vld [vmem:[%s426] sm:$0xf]
      %v523 = vld [vmem:[%s426 + $0x4] sm:$0xf]
      %v524 = vld [vmem:[%s426 + $0xc] sm:$0xf]
      %v525 = vld [vmem:[%s426 + $0x10] sm:$0xf]
      %v526 = vld [vmem:[%s426 + $0x18] sm:$0xf]
      %v527 = vld [vmem:[%s426 + $0x1c] sm:$0xf]
      %v528 = vld [vmem:[%s426 + $0x24] sm:$0xf]
      %v529 = vld [vmem:[%s426 + $0x28] sm:$0xf]
      %v530 = vld [vmem:[%s426 + $0x30] sm:$0xf]
      %v531 = vld [vmem:[%s426 + $0x34] sm:$0xf]
      %v532 = vld [vmem:[%s426 + $0x3c] sm:$0xf]
      %v533 = vld [vmem:[%s426 + $0x40] sm:$0xf]
      %v534 = vld [vmem:[%s426 + $0x48] sm:$0xf]
      %v535 = vld [vmem:[%s426 + $0x4c] sm:$0xf]
      %v536 = vld [vmem:[%s426 + $0x54] sm:$0xf]
      %v537 = vld [vmem:[%s426 + $0x58] sm:$0xf]
      %v554 = vunpack.c.l.b16 %v453
      %v555 = vunpack.c.l.b16 %v454
      %v556 = vunpack.c.l.b16 %v456
      %v557 = vunpack.c.l.b16 %v457
      %v558 = vunpack.c.l.b16 %v459
      %v559 = vunpack.c.l.b16 %v460
      %v560 = vunpack.c.l.b16 %v462
      %v561 = vunpack.c.l.b16 %v463
      %v562 = vunpack.c.l.b16 %v465
      %v563 = vunpack.c.l.b16 %v466
      %v564 = vunpack.c.l.b16 %v468
      %v565 = vunpack.c.l.b16 %v469
      %v566 = vunpack.c.l.b16 %v471
      %v567 = vunpack.c.l.b16 %v472
      %v568 = vunpack.c.l.b16 %v474
      %v569 = vunpack.c.l.b16 %v475
      %v570 = vpack.c.b16 %v555, %v554
      %v571 = vpack.c.b16 %v557, %v556
      %v572 = vpack.c.b16 %v559, %v558
      %v573 = vpack.c.b16 %v561, %v560
      %v574 = vpack.c.b16 %v563, %v562
      %v575 = vpack.c.b16 %v565, %v564
      %v576 = vpack.c.b16 %v567, %v566
      %v577 = vpack.c.b16 %v569, %v568
      %v594 = vunpack.c.l.b16 %v480
      %v595 = vunpack.c.l.b16 %v481
      %v596 = vunpack.c.l.b16 %v482
      %v597 = vunpack.c.l.b16 %v483
      %v598 = vunpack.c.l.b16 %v484
      %v599 = vunpack.c.l.b16 %v485
      %v600 = vunpack.c.l.b16 %v486
      %v601 = vunpack.c.l.b16 %v487
      %v602 = vunpack.c.l.b16 %v488
      %v603 = vunpack.c.l.b16 %v489
      %v604 = vunpack.c.l.b16 %v490
      %v605 = vunpack.c.l.b16 %v491
      %v606 = vunpack.c.l.b16 %v492
      %v607 = vunpack.c.l.b16 %v493
      %v608 = vunpack.c.l.b16 %v494
      %v609 = vunpack.c.l.b16 %v495
      %v610 = vpack.c.b16 %v595, %v594
      %v611 = vpack.c.b16 %v597, %v596
      %v612 = vpack.c.b16 %v599, %v598
      %v613 = vpack.c.b16 %v601, %v600
      %v614 = vpack.c.b16 %v603, %v602
      %v615 = vpack.c.b16 %v605, %v604
      %v616 = vpack.c.b16 %v607, %v606
      %v617 = vpack.c.b16 %v609, %v608
      %618 = vrot.lane.b32.xlu0 %v610, 8
      %v619 = vpop.permute.xlu0 %618
      %620 = vrot.lane.b32.xlu0 %v611, 8
      %v621 = vpop.permute.xlu0 %620
      %622 = vrot.lane.b32.xlu0 %v612, 8
      %v623 = vpop.permute.xlu0 %622
      %624 = vrot.lane.b32.xlu0 %v613, 8
      %v625 = vpop.permute.xlu0 %624
      %626 = vrot.lane.b32.xlu0 %v614, 8
      %v627 = vpop.permute.xlu0 %626
      %628 = vrot.lane.b32.xlu0 %v615, 8
      %v629 = vpop.permute.xlu0 %628
      %630 = vrot.lane.b32.xlu0 %v616, 8
      %v631 = vpop.permute.xlu0 %630
      %632 = vrot.lane.b32.xlu0 %v617, 8
      %v633 = vpop.permute.xlu0 %632
      %v642 = vunpack.c.l.b16 %v455
      %v643 = vunpack.c.l.b16 %v458
      %v644 = vunpack.c.l.b16 %v461
      %v645 = vunpack.c.l.b16 %v464
      %v646 = vunpack.c.l.b16 %v467
      %v647 = vunpack.c.l.b16 %v470
      %v648 = vunpack.c.l.b16 %v473
      %v649 = vunpack.c.l.b16 %v476
      %v650 = vpack.c.b16 %v642, %v642
      %v651 = vpack.c.b16 %v643, %v643
      %v652 = vpack.c.b16 %v644, %v644
      %v653 = vpack.c.b16 %v645, %v645
      %v654 = vpack.c.b16 %v646, %v646
      %v655 = vpack.c.b16 %v647, %v647
      %v656 = vpack.c.b16 %v648, %v648
      %v657 = vpack.c.b16 %v649, %v649
      %vm658 = vsmask.f32 7424
      %v660 = vshrl.u32 %v570, 16
      %v662 = vshll.u32 %v570, 16
      %v664 = vrot.slane %v662, 1
      %v665 = vor.u32 %v660, %v664
      %v667 = vshll.u32 %v650, 16
      %v669 = vrot.slane %v667, 1
      %v670 = vsel %vm658, %v665, %v669
      %v672 = vshrl.u32 %v571, 16
      %v674 = vshll.u32 %v571, 16
      %v676 = vrot.slane %v674, 1
      %v677 = vor.u32 %v672, %v676
      %v679 = vshll.u32 %v651, 16
      %v681 = vrot.slane %v679, 1
      %v682 = vsel %vm658, %v677, %v681
      %v684 = vshrl.u32 %v572, 16
      %v686 = vshll.u32 %v572, 16
      %v688 = vrot.slane %v686, 1
      %v689 = vor.u32 %v684, %v688
      %v691 = vshll.u32 %v652, 16
      %v693 = vrot.slane %v691, 1
      %v694 = vsel %vm658, %v689, %v693
      %v696 = vshrl.u32 %v573, 16
      %v698 = vshll.u32 %v573, 16
      %v700 = vrot.slane %v698, 1
      %v701 = vor.u32 %v696, %v700
      %v703 = vshll.u32 %v653, 16
      %v705 = vrot.slane %v703, 1
      %v706 = vsel %vm658, %v701, %v705
      %v708 = vshrl.u32 %v574, 16
      %v710 = vshll.u32 %v574, 16
      %v712 = vrot.slane %v710, 1
      %v713 = vor.u32 %v708, %v712
      %v715 = vshll.u32 %v654, 16
      %v717 = vrot.slane %v715, 1
      %v718 = vsel %vm658, %v713, %v717
      %v720 = vshrl.u32 %v575, 16
      %v722 = vshll.u32 %v575, 16
      %v724 = vrot.slane %v722, 1
      %v725 = vor.u32 %v720, %v724
      %v727 = vshll.u32 %v655, 16
      %v729 = vrot.slane %v727, 1
      %v730 = vsel %vm658, %v725, %v729
      %v732 = vshrl.u32 %v576, 16
      %v734 = vshll.u32 %v576, 16
      %v736 = vrot.slane %v734, 1
      %v737 = vor.u32 %v732, %v736
      %v739 = vshll.u32 %v656, 16
      %v741 = vrot.slane %v739, 1
      %v742 = vsel %vm658, %v737, %v741
      %v744 = vshrl.u32 %v577, 16
      %v746 = vshll.u32 %v577, 16
      %v748 = vrot.slane %v746, 1
      %v749 = vor.u32 %v744, %v748
      %v751 = vshll.u32 %v657, 16
      %v753 = vrot.slane %v751, 1
      %v754 = vsel %vm658, %v749, %v753
      %755 = vrot.lane.b32.xlu0 %v670, 16
      %v756 = vpop.permute.xlu0 %755
      %757 = vrot.lane.b32.xlu0 %v682, 16
      %v758 = vpop.permute.xlu0 %757
      %759 = vrot.lane.b32.xlu0 %v694, 16
      %v760 = vpop.permute.xlu0 %759
      %761 = vrot.lane.b32.xlu0 %v706, 16
      %v762 = vpop.permute.xlu0 %761
      %763 = vrot.lane.b32.xlu0 %v718, 16
      %v764 = vpop.permute.xlu0 %763
      %765 = vrot.lane.b32.xlu0 %v730, 16
      %v766 = vpop.permute.xlu0 %765
      %767 = vrot.lane.b32.xlu0 %v742, 16
      %v768 = vpop.permute.xlu0 %767
      %769 = vrot.lane.b32.xlu0 %v754, 16
      %v770 = vpop.permute.xlu0 %769
      %v787 = vunpack.c.l.b16 %v498
      %v788 = vunpack.c.l.b16 %v499
      %v789 = vunpack.c.l.b16 %v501
      %v790 = vunpack.c.l.b16 %v502
      %v791 = vunpack.c.l.b16 %v504
      %v792 = vunpack.c.l.b16 %v505
      %v793 = vunpack.c.l.b16 %v507
      %v794 = vunpack.c.l.b16 %v508
      %v795 = vunpack.c.l.b16 %v510
      %v796 = vunpack.c.l.b16 %v511
      %v797 = vunpack.c.l.b16 %v513
      %v798 = vunpack.c.l.b16 %v514
      %v799 = vunpack.c.l.b16 %v516
      %v800 = vunpack.c.l.b16 %v517
      %v801 = vunpack.c.l.b16 %v519
      %v802 = vunpack.c.l.b16 %v520
      %v803 = vpack.c.b16 %v788, %v787
      %v804 = vpack.c.b16 %v790, %v789
      %v805 = vpack.c.b16 %v792, %v791
      %v806 = vpack.c.b16 %v794, %v793
      %v807 = vpack.c.b16 %v796, %v795
      %v808 = vpack.c.b16 %v798, %v797
      %v809 = vpack.c.b16 %v800, %v799
      %v810 = vpack.c.b16 %v802, %v801
      %811 = vrot.lane.b32.xlu0 %v803, 24
      %v812 = vpop.permute.xlu0 %811
      %813 = vrot.lane.b32.xlu0 %v804, 24
      %v814 = vpop.permute.xlu0 %813
      %815 = vrot.lane.b32.xlu0 %v805, 24
      %v816 = vpop.permute.xlu0 %815
      %817 = vrot.lane.b32.xlu0 %v806, 24
      %v818 = vpop.permute.xlu0 %817
      %819 = vrot.lane.b32.xlu0 %v807, 24
      %v820 = vpop.permute.xlu0 %819
      %821 = vrot.lane.b32.xlu0 %v808, 24
      %v822 = vpop.permute.xlu0 %821
      %823 = vrot.lane.b32.xlu0 %v809, 24
      %v824 = vpop.permute.xlu0 %823
      %825 = vrot.lane.b32.xlu0 %v810, 24
      %v826 = vpop.permute.xlu0 %825
      %v843 = vunpack.c.l.b16 %v522
      %v844 = vunpack.c.l.b16 %v523
      %v845 = vunpack.c.l.b16 %v524
      %v846 = vunpack.c.l.b16 %v525
      %v847 = vunpack.c.l.b16 %v526
      %v848 = vunpack.c.l.b16 %v527
      %v849 = vunpack.c.l.b16 %v528
      %v850 = vunpack.c.l.b16 %v529
      %v851 = vunpack.c.l.b16 %v530
      %v852 = vunpack.c.l.b16 %v531
      %v853 = vunpack.c.l.b16 %v532
      %v854 = vunpack.c.l.b16 %v533
      %v855 = vunpack.c.l.b16 %v534
      %v856 = vunpack.c.l.b16 %v535
      %v857 = vunpack.c.l.b16 %v536
      %v858 = vunpack.c.l.b16 %v537
      %v859 = vpack.c.b16 %v844, %v843
      %v860 = vpack.c.b16 %v846, %v845
      %v861 = vpack.c.b16 %v848, %v847
      %v862 = vpack.c.b16 %v850, %v849
      %v863 = vpack.c.b16 %v852, %v851
      %v864 = vpack.c.b16 %v854, %v853
      %v865 = vpack.c.b16 %v856, %v855
      %v866 = vpack.c.b16 %v858, %v857
      %867 = vrot.lane.b32.xlu0 %v859, 32
      %v868 = vpop.permute.xlu0 %867
      %869 = vrot.lane.b32.xlu0 %v860, 32
      %v870 = vpop.permute.xlu0 %869
      %871 = vrot.lane.b32.xlu0 %v861, 32
      %v872 = vpop.permute.xlu0 %871
      %873 = vrot.lane.b32.xlu0 %v862, 32
      %v874 = vpop.permute.xlu0 %873
      %875 = vrot.lane.b32.xlu0 %v863, 32
      %v876 = vpop.permute.xlu0 %875
      %877 = vrot.lane.b32.xlu0 %v864, 32
      %v878 = vpop.permute.xlu0 %877
      %879 = vrot.lane.b32.xlu0 %v865, 32
      %v880 = vpop.permute.xlu0 %879
      %881 = vrot.lane.b32.xlu0 %v866, 32
      %v882 = vpop.permute.xlu0 %881
      %v891 = vunpack.c.l.b16 %v500
      %v892 = vunpack.c.l.b16 %v503
      %v893 = vunpack.c.l.b16 %v506
      %v894 = vunpack.c.l.b16 %v509
      %v895 = vunpack.c.l.b16 %v512
      %v896 = vunpack.c.l.b16 %v515
      %v897 = vunpack.c.l.b16 %v518
      %v898 = vunpack.c.l.b16 %v521
      %v899 = vpack.c.b16 %v891, %v891
      %v900 = vpack.c.b16 %v892, %v892
      %v901 = vpack.c.b16 %v893, %v893
      %v902 = vpack.c.b16 %v894, %v894
      %v903 = vpack.c.b16 %v895, %v895
      %v904 = vpack.c.b16 %v896, %v896
      %v905 = vpack.c.b16 %v897, %v897
      %v906 = vpack.c.b16 %v898, %v898
      %v908 = vshrl.u32 %v803, 16
      %v910 = vshll.u32 %v803, 16
      %v912 = vrot.slane %v910, 1
      %v913 = vor.u32 %v908, %v912
      %v915 = vshll.u32 %v899, 16
      %v917 = vrot.slane %v915, 1
      %v918 = vsel %vm658, %v913, %v917
      %v920 = vshrl.u32 %v804, 16
      %v922 = vshll.u32 %v804, 16
      %v924 = vrot.slane %v922, 1
      %v925 = vor.u32 %v920, %v924
      %v927 = vshll.u32 %v900, 16
      %v929 = vrot.slane %v927, 1
      %v930 = vsel %vm658, %v925, %v929
      %v932 = vshrl.u32 %v805, 16
      %v934 = vshll.u32 %v805, 16
      %v936 = vrot.slane %v934, 1
      %v937 = vor.u32 %v932, %v936
      %v939 = vshll.u32 %v901, 16
      %v941 = vrot.slane %v939, 1
      %v942 = vsel %vm658, %v937, %v941
      %v944 = vshrl.u32 %v806, 16
      %v946 = vshll.u32 %v806, 16
      %v948 = vrot.slane %v946, 1
      %v949 = vor.u32 %v944, %v948
      %v951 = vshll.u32 %v902, 16
      %v953 = vrot.slane %v951, 1
      %v954 = vsel %vm658, %v949, %v953
      %v956 = vshrl.u32 %v807, 16
      %v958 = vshll.u32 %v807, 16
      %v960 = vrot.slane %v958, 1
      %v961 = vor.u32 %v956, %v960
      %v963 = vshll.u32 %v903, 16
      %v965 = vrot.slane %v963, 1
      %v966 = vsel %vm658, %v961, %v965
      %v968 = vshrl.u32 %v808, 16
      %v970 = vshll.u32 %v808, 16
      %v972 = vrot.slane %v970, 1
      %v973 = vor.u32 %v968, %v972
      %v975 = vshll.u32 %v904, 16
      %v977 = vrot.slane %v975, 1
      %v978 = vsel %vm658, %v973, %v977
      %v980 = vshrl.u32 %v809, 16
      %v982 = vshll.u32 %v809, 16
      %v984 = vrot.slane %v982, 1
      %v985 = vor.u32 %v980, %v984
      %v987 = vshll.u32 %v905, 16
      %v989 = vrot.slane %v987, 1
      %v990 = vsel %vm658, %v985, %v989
      %v992 = vshrl.u32 %v810, 16
      %v994 = vshll.u32 %v810, 16
      %v996 = vrot.slane %v994, 1
      %v997 = vor.u32 %v992, %v996
      %v999 = vshll.u32 %v906, 16
      %v1001 = vrot.slane %v999, 1
      %v1002 = vsel %vm658, %v997, %v1001
      %1003 = vrot.lane.b32.xlu0 %v918, 40
      %v1004 = vpop.permute.xlu0 %1003
      %1005 = vrot.lane.b32.xlu0 %v930, 40
      %v1006 = vpop.permute.xlu0 %1005
      %1007 = vrot.lane.b32.xlu0 %v942, 40
      %v1008 = vpop.permute.xlu0 %1007
      %1009 = vrot.lane.b32.xlu0 %v954, 40
      %v1010 = vpop.permute.xlu0 %1009
      %1011 = vrot.lane.b32.xlu0 %v966, 40
      %v1012 = vpop.permute.xlu0 %1011
      %1013 = vrot.lane.b32.xlu0 %v978, 40
      %v1014 = vpop.permute.xlu0 %1013
      %1015 = vrot.lane.b32.xlu0 %v990, 40
      %v1016 = vpop.permute.xlu0 %1015
      %1017 = vrot.lane.b32.xlu0 %v1002, 40
      %v1018 = vpop.permute.xlu0 %1017
      %v1021 = vunpack.c.l.b16 %v477
      %v1022 = vunpack.c.l.b16 %v478
      %v1023 = vpack.c.b16 %v1022, %v1021
      %1024 = vrot.lane.b32.xlu0 %v571, 48
      %v1025 = vpop.permute.xlu0 %1024
      %1026 = vrot.lane.b32.xlu0 %v572, 48
      %v1027 = vpop.permute.xlu0 %1026
      %1028 = vrot.lane.b32.xlu0 %v573, 48
      %v1029 = vpop.permute.xlu0 %1028
      %1030 = vrot.lane.b32.xlu0 %v574, 48
      %v1031 = vpop.permute.xlu0 %1030
      %1032 = vrot.lane.b32.xlu0 %v575, 48
      %v1033 = vpop.permute.xlu0 %1032
      %1034 = vrot.lane.b32.xlu0 %v576, 48
      %v1035 = vpop.permute.xlu0 %1034
      %1036 = vrot.lane.b32.xlu0 %v577, 48
      %v1037 = vpop.permute.xlu0 %1036
      %1038 = vrot.lane.b32.xlu0 %v1023, 48
      %v1039 = vpop.permute.xlu0 %1038
      %v1042 = vunpack.c.l.b16 %v496
      %v1043 = vunpack.c.l.b16 %v497
      %v1044 = vpack.c.b16 %v1043, %v1042
      %1045 = vrot.lane.b32.xlu0 %v611, 56
      %v1046 = vpop.permute.xlu0 %1045
      %1047 = vrot.lane.b32.xlu0 %v612, 56
      %v1048 = vpop.permute.xlu0 %1047
      %1049 = vrot.lane.b32.xlu0 %v613, 56
      %v1050 = vpop.permute.xlu0 %1049
      %1051 = vrot.lane.b32.xlu0 %v614, 56
      %v1052 = vpop.permute.xlu0 %1051
      %1053 = vrot.lane.b32.xlu0 %v615, 56
      %v1054 = vpop.permute.xlu0 %1053
      %1055 = vrot.lane.b32.xlu0 %v616, 56
      %v1056 = vpop.permute.xlu0 %1055
      %1057 = vrot.lane.b32.xlu0 %v617, 56
      %v1058 = vpop.permute.xlu0 %1057
      %1059 = vrot.lane.b32.xlu0 %v1044, 56
      %v1060 = vpop.permute.xlu0 %1059
      %v1062 = vunpack.c.l.b16 %v479
      %v1063 = vpack.c.b16 %v1062, %v1062
      %v1065 = vshrl.u32 %v1023, 16
      %v1067 = vshll.u32 %v1023, 16
      %v1069 = vrot.slane %v1067, 1
      %v1070 = vor.u32 %v1065, %v1069
      %v1072 = vshll.u32 %v1063, 16
      %v1074 = vrot.slane %v1072, 1
      %v1075 = vsel %vm658, %v1070, %v1074
      %1076 = vrot.lane.b32.xlu0 %v682, 64
      %v1077 = vpop.permute.xlu0 %1076
      %1078 = vrot.lane.b32.xlu0 %v694, 64
      %v1079 = vpop.permute.xlu0 %1078
      %1080 = vrot.lane.b32.xlu0 %v706, 64
      %v1081 = vpop.permute.xlu0 %1080
      %1082 = vrot.lane.b32.xlu0 %v718, 64
      %v1083 = vpop.permute.xlu0 %1082
      %1084 = vrot.lane.b32.xlu0 %v730, 64
      %v1085 = vpop.permute.xlu0 %1084
      %1086 = vrot.lane.b32.xlu0 %v742, 64
      %v1087 = vpop.permute.xlu0 %1086
      %1088 = vrot.lane.b32.xlu0 %v754, 64
      %v1089 = vpop.permute.xlu0 %1088
      %1090 = vrot.lane.b32.xlu0 %v1075, 64
      %v1091 = vpop.permute.xlu0 %1090
      %vm1092 = vcmask 64512
      %v1094 = vsel %vm1092, %v570, %v619
      %v1096 = vsel %vm1092, %v571, %v621
      %v1098 = vsel %vm1092, %v572, %v623
      %v1100 = vsel %vm1092, %v573, %v625
      %v1102 = vsel %vm1092, %v574, %v627
      %v1104 = vsel %vm1092, %v575, %v629
      %v1106 = vsel %vm1092, %v576, %v631
      %v1108 = vsel %vm1092, %v577, %v633
      %vm1109 = vcmask 130048
      %v1111 = vsel %vm1109, %v1094, %v756
      %v1113 = vsel %vm1109, %v1096, %v758
      %v1115 = vsel %vm1109, %v1098, %v760
      %v1117 = vsel %vm1109, %v1100, %v762
      %v1119 = vsel %vm1109, %v1102, %v764
      %v1121 = vsel %vm1109, %v1104, %v766
      %v1123 = vsel %vm1109, %v1106, %v768
      %v1125 = vsel %vm1109, %v1108, %v770
      %vm1126 = vcmask 195584
      %v1128 = vsel %vm1126, %v1111, %v812
      %v1130 = vsel %vm1126, %v1113, %v814
      %v1132 = vsel %vm1126, %v1115, %v816
      %v1134 = vsel %vm1126, %v1117, %v818
      %v1136 = vsel %vm1126, %v1119, %v820
      %v1138 = vsel %vm1126, %v1121, %v822
      %v1140 = vsel %vm1126, %v1123, %v824
      %v1142 = vsel %vm1126, %v1125, %v826
      %vm1143 = vcmask 261120
      %v1145 = vsel %vm1143, %v1128, %v868
      %v1147 = vsel %vm1143, %v1130, %v870
      %v1149 = vsel %vm1143, %v1132, %v872
      %v1151 = vsel %vm1143, %v1134, %v874
      %v1153 = vsel %vm1143, %v1136, %v876
      %v1155 = vsel %vm1143, %v1138, %v878
      %v1157 = vsel %vm1143, %v1140, %v880
      %v1159 = vsel %vm1143, %v1142, %v882
      %vm1160 = vcmask 326656
      %v1162 = vsel %vm1160, %v1145, %v1004
      %v1164 = vsel %vm1160, %v1147, %v1006
      %v1166 = vsel %vm1160, %v1149, %v1008
      %v1168 = vsel %vm1160, %v1151, %v1010
      %v1170 = vsel %vm1160, %v1153, %v1012
      %v1172 = vsel %vm1160, %v1155, %v1014
      %v1174 = vsel %vm1160, %v1157, %v1016
      %v1176 = vsel %vm1160, %v1159, %v1018
      %vm1177 = vcmask 392192
      %v1179 = vsel %vm1177, %v1162, %v1025
      %v1181 = vsel %vm1177, %v1164, %v1027
      %v1183 = vsel %vm1177, %v1166, %v1029
      %v1185 = vsel %vm1177, %v1168, %v1031
      %v1187 = vsel %vm1177, %v1170, %v1033
      %v1189 = vsel %vm1177, %v1172, %v1035
      %v1191 = vsel %vm1177, %v1174, %v1037
      %v1193 = vsel %vm1177, %v1176, %v1039
      %vm1194 = vcmask 457728
      %v1196 = vsel %vm1194, %v1179, %v1046
      %v1198 = vsel %vm1194, %v1181, %v1048
      %v1200 = vsel %vm1194, %v1183, %v1050
      %v1202 = vsel %vm1194, %v1185, %v1052
      %v1204 = vsel %vm1194, %v1187, %v1054
      %v1206 = vsel %vm1194, %v1189, %v1056
      %v1208 = vsel %vm1194, %v1191, %v1058
      %v1210 = vsel %vm1194, %v1193, %v1060
      %vm1211 = vcmask 523264
      %v1213 = vsel %vm1211, %v1196, %v1077
      %v1215 = vsel %vm1211, %v1198, %v1079
      %v1217 = vsel %vm1211, %v1200, %v1081
      %v1219 = vsel %vm1211, %v1202, %v1083
      %v1221 = vsel %vm1211, %v1204, %v1085
      %v1223 = vsel %vm1211, %v1206, %v1087
      %v1225 = vsel %vm1211, %v1208, %v1089
      %v1227 = vsel %vm1211, %v1210, %v1091
      %v1228 = vld [vmem:[%s431] sm:$0xf]
      %v1229 = vld [vmem:[%s431 + $0x4] sm:$0xf]
      %v1230 = vld [vmem:[%s431 + $0x8] sm:$0xf]
      %v1231 = vld [vmem:[%s431 + $0xc] sm:$0xf]
      %v1232 = vld [vmem:[%s431 + $0x10] sm:$0xf]
      %v1233 = vld [vmem:[%s431 + $0x14] sm:$0xf]
      %v1234 = vld [vmem:[%s431 + $0x18] sm:$0xf]
      %v1235 = vld [vmem:[%s431 + $0x1c] sm:$0xf]
      %v1236 = vld [vmem:[%s431 + $0x20] sm:$0xf]
      %v1246 = vunpack.c.l.b16 %v1228
      %v1247 = vunpack.c.l.b16 %v1229
      %v1248 = vunpack.c.l.b16 %v1230
      %v1249 = vunpack.c.l.b16 %v1231
      %v1250 = vunpack.c.l.b16 %v1232
      %v1251 = vunpack.c.l.b16 %v1233
      %v1252 = vunpack.c.l.b16 %v1234
      %v1253 = vunpack.c.l.b16 %v1235
      %v1254 = vunpack.c.l.b16 %v1236
      %v1255 = vpack.c.b16 %v1247, %v1246
      %v1256 = vpack.c.b16 %v1249, %v1248
      %v1257 = vpack.c.b16 %v1251, %v1250
      %v1258 = vpack.c.b16 %v1253, %v1252
      %v1259 = vpack.c.b16 %v1254, %v1254
      %vm1264 = vcmask 588800
      %v1265 = vsel %vm1264, %v1213, 0
      %v1267 = vsel %vm1264, %v1215, 0
      %v1269 = vsel %vm1264, %v1217, 0
      %v1271 = vsel %vm1264, %v1219, 0
      %v1273 = vsel %vm1264, %v1221, 0
      %v1275 = vsel %vm1264, %v1223, 0
      %v1277 = vsel %vm1264, %v1225, 0
      %v1279 = vsel %vm1264, %v1227, 0
      %vm1281 = vcmask 1043456
      %v1283 = vsel %vm1281, %v1259, 0
      %1285 = vmatpush.bf16.msra.mxu0 0
      %1286 = vmatpush.bf16.msra.mxu0 0
      %1287 = vmatpush.bf16.msra.mxu0 0
      %1288 = vmatpush.bf16.msra.mxu0 %v1283
      %1289 = vmatpush.bf16.msra.mxu0 %v1258
      %1290 = vmatpush.bf16.msra.mxu0 %v1257
      %1291 = vmatpush.bf16.msra.mxu0 %v1256
      %1292 = vmatpush.bf16.msra.mxu0 %v1255
      %1293 = vmatmul.bf16.gmra.mxu0 %v1265
      %v1294 = vpop.f32.mrf.mxu0
      %v1295 = vadd.f32 0.0, %v1294
      %v1296 = vpop.f32.mrf.mxu0
      %v1297 = vadd.f32 0.0, %v1296
      %1298 = vmatmul.bf16.gmra.mxu0 %v1267
      %v1299 = vpop.f32.mrf.mxu0
      %v1300 = vadd.f32 0.0, %v1299
      %v1301 = vpop.f32.mrf.mxu0
      %v1302 = vadd.f32 0.0, %v1301
      %1303 = vmatmul.bf16.gmra.mxu0 %v1269
      %v1304 = vpop.f32.mrf.mxu0
      %v1305 = vadd.f32 0.0, %v1304
      %v1306 = vpop.f32.mrf.mxu0
      %v1307 = vadd.f32 0.0, %v1306
      %1308 = vmatmul.bf16.gmra.mxu0 %v1271
      %v1309 = vpop.f32.mrf.mxu0
      %v1310 = vadd.f32 0.0, %v1309
      %v1311 = vpop.f32.mrf.mxu0
      %v1312 = vadd.f32 0.0, %v1311
      %1313 = vmatmul.bf16.gmra.mxu0 %v1273
      %v1314 = vpop.f32.mrf.mxu0
      %v1315 = vadd.f32 0.0, %v1314
      %v1316 = vpop.f32.mrf.mxu0
      %v1317 = vadd.f32 0.0, %v1316
      %1318 = vmatmul.bf16.gmra.mxu0 %v1275
      %v1319 = vpop.f32.mrf.mxu0
      %v1320 = vadd.f32 0.0, %v1319
      %v1321 = vpop.f32.mrf.mxu0
      %v1322 = vadd.f32 0.0, %v1321
      %1323 = vmatmul.bf16.gmra.mxu0 %v1277
      %v1324 = vpop.f32.mrf.mxu0
      %v1325 = vadd.f32 0.0, %v1324
      %v1326 = vpop.f32.mrf.mxu0
      %v1327 = vadd.f32 0.0, %v1326
      %1328 = vmatmul.bf16.gmra.mxu0 %v1279
      %v1329 = vpop.f32.mrf.mxu0
      %v1330 = vadd.f32 0.0, %v1329
      %v1331 = vpop.f32.mrf.mxu0
      %v1332 = vadd.f32 0.0, %v1331
      %1333 = vdwg.mxu0
      %v1334 = vld [vmem:[%s434] sm:$0x1]
      %v1336 = vperm.slane %v1334, 0
      %v1338 = vmul.f32 %v1295, %v1336
      %v1339 = vmul.f32 %v1297, %v1336
      %v1340 = vmul.f32 %v1300, %v1336
      %v1341 = vmul.f32 %v1302, %v1336
      %v1342 = vmul.f32 %v1305, %v1336
      %v1343 = vmul.f32 %v1307, %v1336
      %v1344 = vmul.f32 %v1310, %v1336
      %v1345 = vmul.f32 %v1312, %v1336
      %v1346 = vmul.f32 %v1315, %v1336
      %v1347 = vmul.f32 %v1317, %v1336
      %v1348 = vmul.f32 %v1320, %v1336
      %v1349 = vmul.f32 %v1322, %v1336
      %v1350 = vmul.f32 %v1325, %v1336
      %v1351 = vmul.f32 %v1327, %v1336
      %v1352 = vmul.f32 %v1330, %v1336
      %v1353 = vmul.f32 %v1332, %v1336
      %v1354 = vld [vmem:[%s437] sm:$0x1]
      %v1356 = vperm.slane %v1354, 0
      %v1358 = vadd.f32 %v1338, %v1356
      %v1359 = vadd.f32 %v1339, %v1356
      %v1360 = vadd.f32 %v1340, %v1356
      %v1361 = vadd.f32 %v1341, %v1356
      %v1362 = vadd.f32 %v1342, %v1356
      %v1363 = vadd.f32 %v1343, %v1356
      %v1364 = vadd.f32 %v1344, %v1356
      %v1365 = vadd.f32 %v1345, %v1356
      %v1366 = vadd.f32 %v1346, %v1356
      %v1367 = vadd.f32 %v1347, %v1356
      %v1368 = vadd.f32 %v1348, %v1356
      %v1369 = vadd.f32 %v1349, %v1356
      %v1370 = vadd.f32 %v1350, %v1356
      %v1371 = vadd.f32 %v1351, %v1356
      %v1372 = vadd.f32 %v1352, %v1356
      %v1373 = vadd.f32 %v1353, %v1356
      %v1374 = vmax.f32 %v1358, 0.0
      %v1375 = vmax.f32 %v1359, 0.0
      %v1376 = vmax.f32 %v1360, 0.0
      %v1377 = vmax.f32 %v1361, 0.0
      %v1378 = vmax.f32 %v1362, 0.0
      %v1379 = vmax.f32 %v1363, 0.0
      %v1380 = vmax.f32 %v1364, 0.0
      %v1381 = vmax.f32 %v1365, 0.0
      %v1382 = vmax.f32 %v1366, 0.0
      %v1383 = vmax.f32 %v1367, 0.0
      %v1384 = vmax.f32 %v1368, 0.0
      %v1385 = vmax.f32 %v1369, 0.0
      %v1386 = vmax.f32 %v1370, 0.0
      %v1387 = vmax.f32 %v1371, 0.0
      %v1388 = vmax.f32 %v1372, 0.0
      %v1389 = vmax.f32 %v1373, 0.0
      %v1390 = vlaneseq
      %v1391 = vshrl.u32 %v1390, 7
      %v1392 = vadd.s32 %v1391, 8
      %vm1393 = vcmp.lt.s32.totalorder %v1391, 8
      %vm1394 = vcmp.lt.s32.totalorder %v1392, 8
      %v1395 = vsel %vm1393, %v1374, 0.0
      %v1396 = vsel %vm1394, %v1375, 0.0
      %v1397 = vsel %vm1393, %v1376, 0.0
      %v1398 = vsel %vm1394, %v1377, 0.0
      %v1399 = vsel %vm1393, %v1378, 0.0
      %v1400 = vsel %vm1394, %v1379, 0.0
      %v1401 = vsel %vm1393, %v1380, 0.0
      %v1402 = vsel %vm1394, %v1381, 0.0
      %v1403 = vsel %vm1393, %v1382, 0.0
      %v1404 = vsel %vm1394, %v1383, 0.0
      %v1405 = vsel %vm1393, %v1384, 0.0
      %v1406 = vsel %vm1394, %v1385, 0.0
      %v1407 = vsel %vm1393, %v1386, 0.0
      %v1408 = vsel %vm1394, %v1387, 0.0
      %v1409 = vsel %vm1393, %v1388, 0.0
      %v1410 = vsel %vm1394, %v1389, 0.0
      %v1411 = vpack.c.bf16 %v1395, %v1395
      %v1412 = vpack.c.bf16 %v1396, %v1396
      %v1413 = vpack.c.bf16 %v1397, %v1397
      %v1414 = vpack.c.bf16 %v1398, %v1398
      %v1415 = vpack.c.bf16 %v1399, %v1399
      %v1416 = vpack.c.bf16 %v1400, %v1400
      %v1417 = vpack.c.bf16 %v1401, %v1401
      %v1418 = vpack.c.bf16 %v1402, %v1402
      %v1419 = vpack.c.bf16 %v1403, %v1403
      %v1420 = vpack.c.bf16 %v1404, %v1404
      %v1421 = vpack.c.bf16 %v1405, %v1405
      %v1422 = vpack.c.bf16 %v1406, %v1406
      %v1423 = vpack.c.bf16 %v1407, %v1407
      %v1424 = vpack.c.bf16 %v1408, %v1408
      %v1425 = vpack.c.bf16 %v1409, %v1409
      %v1426 = vpack.c.bf16 %v1410, %v1410
      %1427 = vst [vmem:[%s450] sm:$0xf] %v1411
      %1428 = vst [vmem:[%s450 + $0x4] sm:$0xf] %v1412
      %1429 = vst [vmem:[%s450 + $0x8] sm:$0xf] %v1413
      %1430 = vst [vmem:[%s450 + $0xc] sm:$0xf] %v1414
      %1431 = vst [vmem:[%s450 + $0x10] sm:$0xf] %v1415
      %1432 = vst [vmem:[%s450 + $0x14] sm:$0xf] %v1416
      %1433 = vst [vmem:[%s450 + $0x18] sm:$0xf] %v1417
      %1434 = vst [vmem:[%s450 + $0x1c] sm:$0xf] %v1418
      %1435 = vst [vmem:[%s450 + $0x20] sm:$0xf] %v1419
      %1436 = vst [vmem:[%s450 + $0x24] sm:$0xf] %v1420
      %1437 = vst [vmem:[%s450 + $0x28] sm:$0xf] %v1421
      %1438 = vst [vmem:[%s450 + $0x2c] sm:$0xf] %v1422
      %1439 = vst [vmem:[%s450 + $0x30] sm:$0xf] %v1423
      %1440 = vst [vmem:[%s450 + $0x34] sm:$0xf] %v1424
      %1441 = vst [vmem:[%s450 + $0x38] sm:$0xf] %v1425
      %1442 = vst [vmem:[%s450 + $0x3c] sm:$0xf] %v1426
      %s1443 = smul.u32 8, %s24
      %p1444 = scmp.lt.s32.totalorder %s23, 1
      %s1445 = scalar_select %p1444, %s23, 1
      %p1446 = scmp.lt.s32.totalorder %s1443, 7
      %s1447 = scalar_select %p1446, %s1443, 7
      %p1448 = scmp.lt.s32.totalorder %s25, 0
      %s1449 = scalar_select %p1448, %s25, 0
      %s1450 = smul.addr %s1447, 2
      %s1451 = sadd.s32 %s1449, %s1450
      %s1452 = smul.addr %s1445, 16
      %s1453 = sadd.s32 %s1451, %s1452
      %s1454 = smul.addr %s1453, 4
      %s1455 = scalar_lea.vmem %s7, %s1454
      // Predicated region
      $region49: #{cam_forward.6} parent=47 // pred_check
        %p1456 = pneg %p249
      $region50: #{cam_forward.6} parent=47 // pred_check_branch
        %1458 = sbr.rel (%p1456) target = $region52
      $region51: #{cam_forward.6} parent=47 // pred_region
        %s1459 = smul.u32 8, %s24
      $region52: #{cam_forward.6} parent=47 // pred_fallthru
        _
    $region48: #{cam_forward.6} parent=5 // pred_fallthru
      _
    %p1460 = scmp.le.s32.totalorder 2, %s13
    // Predicated region
    $region53: #{cam_forward.6} parent=5 // pred_check
      %p1461 = pneg %p1460
    $region54: #{cam_forward.6} parent=5 // pred_check_branch
      %1463 = sbr.rel (%p1461) target = $region56
    $region55: #{cam_forward.6} parent=5 // pred_region
      %s1464 = ssub.s32 %s13, 2
      // Predicated region
      $region57: #{cam_forward.6} parent=55 // pred_check
        %p1465 = pneg %p255
      $region58: #{cam_forward.6} parent=55 // pred_check_branch
        %1467 = sbr.rel (%p1465) target = $region60
      $region59: #{cam_forward.6} parent=55 // pred_region
        %s1468 = smul.u32 8, %s27
        %p1469 = scmp.lt.s32.totalorder %s26, 1
        %s1470 = scalar_select %p1469, %s26, 1
        %p1471 = scmp.lt.s32.totalorder %s1468, 7
        %s1472 = scalar_select %p1471, %s1468, 7
        %p1473 = scmp.lt.s32.totalorder %s28, 0
        %s1474 = scalar_select %p1473, %s28, 0
        %s1475 = smul.addr %s1472, 2
        %s1476 = sadd.s32 %s1474, %s1475
        %s1477 = smul.addr %s1470, 16
        %s1478 = sadd.s32 %s1476, %s1477
        %s1479 = smul.addr %s1478, 4
        %s1480 = scalar_lea.vmem %s7, %s1479
      $region60: #{cam_forward.6} parent=55 // pred_fallthru
        _
    $region56: #{cam_forward.6} parent=5 // pred_fallthru
      _
  $region6: #{cam_forward.6} parent=0 // loop_footer
    %s17 = sadd.s32 1, %s13
  $region7: #{cam_forward.6} parent=0 // loop_footer_branch
    %12 = sbr.rel target = $region3
  $region8: #{cam_forward.6} parent=0 // loop_exit
    _

// kernel: cam_forward.7
$region0: #{cam_forward.7}
  #allocation0 [shape = 'u32[]', space=smem, size = 0x4, offset = 0x4, fixed_abs, tag = 'smem constant byte address 0x4 - core index']
  #allocation1 [shape = 'u32[72,128]{1,0:T(1,128)}', space=vmem, size = 0x9000, scoped, tag = 'internal scratch']
  %s0 = inlined_call_operand.vmem [shape: bf16[2,10,18,128], index: 0, kind: input, shape index: {}]
  %s1 = inlined_call_operand.vmem [shape: bf16[2,10,18,128], index: 1, kind: input, shape index: {}]
  %s2 = inlined_call_operand.vmem [shape: bf16[3,3,128,128], index: 2, kind: input, shape index: {}]
  %s3 = inlined_call_operand.vmem [shape: f32[1,128], index: 3, kind: input, shape index: {}]
  %s4 = inlined_call_operand.vmem [shape: f32[1,128], index: 4, kind: input, shape index: {}]
  %s5 = inlined_call_operand.vmem [shape: bf16[2,8,16,128], index: 5, kind: output, shape index: {}]
  %s6 = sld [smem:[#allocation0]]
  $region53: #{cam_forward.7} parent=0
    _
  %s8 = ssub.s32 1, %s6
  %s9 = scalar_select 0, %s8, %s6
  loop: start=0, step=1, limit=4
  $region2: #{cam_forward.7} parent=0 // loop_pre_header
    _
  $region3: #{cam_forward.7} parent=0 // loop_header
    %s11 = sphi 0, %s15
    %p12 = scmp.ge.s32.totalorder %s11, 4
    %s18 = sphi 0, %s37
    %s19 = sphi 0, %s33
    %s20 = sphi 0, %s29
    %s21 = sphi 0, %s18
    %s22 = sphi 0, %s19
    %s23 = sphi 0, %s20
    %s24 = sphi 0, %s21
    %s25 = sphi 0, %s22
    %s26 = sphi 0, %s23
    %s42 = sphi 0, %s44
    %s45 = sphi 0, %s42
    %s46 = sphi 0, %s45
    %s62 = sphi 0, %s46
    %s70 = sphi 0, %s72
    %s73 = sphi 0, %s70
    %s74 = sphi 0, %s73
    %s90 = sphi 0, %s74
    %s96 = sphi 0, %s98
    %s99 = sphi 0, %s96
    %s100 = sphi 0, %s99
    %s116 = sphi 0, %s100
    %s122 = sphi 0, %s124
    %s125 = sphi 0, %s122
    %s126 = sphi 0, %s125
    %s142 = sphi 0, %s126
    %s148 = sphi 0, %s150
    %s151 = sphi 0, %s148
    %s152 = sphi 0, %s151
    %s168 = sphi 0, %s152
    %s178 = sphi 0, %s180
    %s181 = sphi 0, %s178
    %s182 = sphi 0, %s181
    %s198 = sphi 0, %s182
  $region4: #{cam_forward.7} parent=0 // loop_header_branch
    %14 = sbr.rel (%p12) target = $region8
  $region5: #{cam_forward.7} parent=0 // loop_body
    %s16 = ssub.s32 %s11, 1
    %s17 = ssub.s32 %s11, 2
    %s27 = sadd.s32 1, %s20
    %p28 = scmp.ge.s32.totalorder %s27, 1
    %s29 = scalar_select %p28, 0, %s27
    %s30 = sadd.s32 1, %s19
    %s31 = scalar_select %p28, %s30, %s19
    %p32 = scmp.ge.s32.totalorder %s31, 1
    %s33 = scalar_select %p32, 0, %s31
    %s34 = sadd.s32 1, %s18
    %s35 = scalar_select %p32, %s34, %s18
    %p36 = scmp.ge.s32.totalorder %s35, 2
    %s37 = scalar_select %p36, 0, %s35
    %s38 = sadd.s32 %s18, %s19
    %s39 = sadd.s32 %s37, %s33
    %s40 = ssub.s32 %s38, %s39
    %p41 = scmp.eq.s32.totalorder %s40, 0
    %s43 = sadd.s32 %s42, 1
    %s44 = scalar_select %p41, %s42, %s43
    %p47 = pneg %p41
    %p48 = scmp.eq.s32.totalorder %s11, 1
    %p49 = por %p47, %p48
    %p50 = scmp.ne.s32.totalorder %s42, %s45
    %p51 = scmp.eq.s32.totalorder %s11, 0
    %p52 = por %p50, %p51
    %p53 = scmp.ne.s32.totalorder %s42, %s45
    %p54 = scmp.eq.s32.totalorder %s16, 1
    %p55 = por %p53, %p54
    %p56 = scmp.ne.s32.totalorder %s45, %s46
    %p57 = scmp.eq.s32.totalorder %s16, 0
    %p58 = por %p56, %p57
    %p59 = scmp.ne.s32.totalorder %s45, %s46
    %p60 = scmp.eq.s32.totalorder %s17, 1
    %p61 = por %p59, %p60
    %p63 = scmp.ne.s32.totalorder %s46, %s62
    %p64 = scmp.eq.s32.totalorder %s17, 0
    %p65 = por %p63, %p64
    %s66 = sadd.s32 %s18, %s19
    %s67 = sadd.s32 %s37, %s33
    %s68 = ssub.s32 %s66, %s67
    %p69 = scmp.eq.s32.totalorder %s68, 0
    %s71 = sadd.s32 %s70, 1
    %s72 = scalar_select %p69, %s70, %s71
    %p75 = pneg %p69
    %p76 = scmp.eq.s32.totalorder %s11, 1
    %p77 = por %p75, %p76
    %p78 = scmp.ne.s32.totalorder %s70, %s73
    %p79 = scmp.eq.s32.totalorder %s11, 0
    %p80 = por %p78, %p79
    %p81 = scmp.ne.s32.totalorder %s70, %s73
    %p82 = scmp.eq.s32.totalorder %s16, 1
    %p83 = por %p81, %p82
    %p84 = scmp.ne.s32.totalorder %s73, %s74
    %p85 = scmp.eq.s32.totalorder %s16, 0
    %p86 = por %p84, %p85
    %p87 = scmp.ne.s32.totalorder %s73, %s74
    %p88 = scmp.eq.s32.totalorder %s17, 1
    %p89 = por %p87, %p88
    %p91 = scmp.ne.s32.totalorder %s74, %s90
    %p92 = scmp.eq.s32.totalorder %s17, 0
    %p93 = por %p91, %p92
    %s94 = ssub.s32 %s20, %s29
    %p95 = scmp.eq.s32.totalorder %s94, 0
    %s97 = sadd.s32 %s96, 1
    %s98 = scalar_select %p95, %s96, %s97
    %p101 = pneg %p95
    %p102 = scmp.eq.s32.totalorder %s11, 1
    %p103 = por %p101, %p102
    %p104 = scmp.ne.s32.totalorder %s96, %s99
    %p105 = scmp.eq.s32.totalorder %s11, 0
    %p106 = por %p104, %p105
    %p107 = scmp.ne.s32.totalorder %s96, %s99
    %p108 = scmp.eq.s32.totalorder %s16, 1
    %p109 = por %p107, %p108
    %p110 = scmp.ne.s32.totalorder %s99, %s100
    %p111 = scmp.eq.s32.totalorder %s16, 0
    %p112 = por %p110, %p111
    %p113 = scmp.ne.s32.totalorder %s99, %s100
    %p114 = scmp.eq.s32.totalorder %s17, 1
    %p115 = por %p113, %p114
    %p117 = scmp.ne.s32.totalorder %s100, %s116
    %p118 = scmp.eq.s32.totalorder %s17, 0
    %p119 = por %p117, %p118
    %s120 = ssub.s32 %s20, %s29
    %p121 = scmp.eq.s32.totalorder %s120, 0
    %s123 = sadd.s32 %s122, 1
    %s124 = scalar_select %p121, %s122, %s123
    %p127 = pneg %p121
    %p128 = scmp.eq.s32.totalorder %s11, 1
    %p129 = por %p127, %p128
    %p130 = scmp.ne.s32.totalorder %s122, %s125
    %p131 = scmp.eq.s32.totalorder %s11, 0
    %p132 = por %p130, %p131
    %p133 = scmp.ne.s32.totalorder %s122, %s125
    %p134 = scmp.eq.s32.totalorder %s16, 1
    %p135 = por %p133, %p134
    %p136 = scmp.ne.s32.totalorder %s125, %s126
    %p137 = scmp.eq.s32.totalorder %s16, 0
    %p138 = por %p136, %p137
    %p139 = scmp.ne.s32.totalorder %s125, %s126
    %p140 = scmp.eq.s32.totalorder %s17, 1
    %p141 = por %p139, %p140
    %p143 = scmp.ne.s32.totalorder %s126, %s142
    %p144 = scmp.eq.s32.totalorder %s17, 0
    %p145 = por %p143, %p144
    %s146 = ssub.s32 %s20, %s29
    %p147 = scmp.eq.s32.totalorder %s146, 0
    %s149 = sadd.s32 %s148, 1
    %s150 = scalar_select %p147, %s148, %s149
    %p153 = pneg %p147
    %p154 = scmp.eq.s32.totalorder %s11, 1
    %p155 = por %p153, %p154
    %p156 = scmp.ne.s32.totalorder %s148, %s151
    %p157 = scmp.eq.s32.totalorder %s11, 0
    %p158 = por %p156, %p157
    %p159 = scmp.ne.s32.totalorder %s148, %s151
    %p160 = scmp.eq.s32.totalorder %s16, 1
    %p161 = por %p159, %p160
    %p162 = scmp.ne.s32.totalorder %s151, %s152
    %p163 = scmp.eq.s32.totalorder %s16, 0
    %p164 = por %p162, %p163
    %p165 = scmp.ne.s32.totalorder %s151, %s152
    %p166 = scmp.eq.s32.totalorder %s17, 1
    %p167 = por %p165, %p166
    %p169 = scmp.ne.s32.totalorder %s152, %s168
    %p170 = scmp.eq.s32.totalorder %s17, 0
    %p171 = por %p169, %p170
    %s172 = ssub.s32 %s18, %s37
    %s173 = ssub.s32 %s19, %s33
    %s174 = sor.u32 %s172, %s173
    %s175 = ssub.s32 %s20, %s29
    %s176 = sor.u32 %s174, %s175
    %p177 = scmp.eq.s32.totalorder %s176, 0
    %s179 = sadd.s32 %s178, 1
    %s180 = scalar_select %p177, %s178, %s179
    %p183 = pneg %p177
    %p184 = scmp.eq.s32.totalorder %s11, 1
    %p185 = por %p183, %p184
    %p186 = scmp.ne.s32.totalorder %s178, %s181
    %p187 = scmp.eq.s32.totalorder %s11, 0
    %p188 = por %p186, %p187
    %p189 = scmp.ne.s32.totalorder %s178, %s181
    %p190 = scmp.eq.s32.totalorder %s16, 1
    %p191 = por %p189, %p190
    %p192 = scmp.ne.s32.totalorder %s181, %s182
    %p193 = scmp.eq.s32.totalorder %s16, 0
    %p194 = por %p192, %p193
    %p195 = scmp.ne.s32.totalorder %s181, %s182
    %p196 = scmp.eq.s32.totalorder %s17, 1
    %p197 = por %p195, %p196
    %p199 = scmp.ne.s32.totalorder %s182, %s198
    %p200 = scmp.eq.s32.totalorder %s17, 0
    %p201 = por %p199, %p200
    %p202 = scmp.le.s32.totalorder 1, %s11
    %p203 = scmp.lt.s32.totalorder %s11, 3
    %p204 = pnand %p202, %p203
    %p205 = pneg %p204
    // Predicated region
    $region9: #{cam_forward.7} parent=5 // pred_check
      _
    $region10: #{cam_forward.7} parent=5 // pred_check_branch
      %207 = sbr.rel (%p204) target = $region12
    $region11: #{cam_forward.7} parent=5 // pred_region
      %s208 = ssub.s32 %s11, 1
      // Predicated region
      $region13: #{cam_forward.7} parent=11 // pred_check
        %p209 = pneg %p112
      $region14: #{cam_forward.7} parent=11 // pred_check_branch
        %211 = sbr.rel (%p209) target = $region16
      $region15: #{cam_forward.7} parent=11 // pred_region
        %p212 = scmp.lt.s32.totalorder %s23, 0
        %s213 = scalar_select %p212, %s23, 0
        %s214 = smul.addr %s213, 4
        %s215 = scalar_lea.vmem %s2, %s214
      $region16: #{cam_forward.7} parent=11 // pred_fallthru
        _
      // Predicated region
      $region17: #{cam_forward.7} parent=11 // pred_check
        %p216 = pneg %p138
      $region18: #{cam_forward.7} parent=11 // pred_check_branch
        %218 = sbr.rel (%p216) target = $region20
      $region19: #{cam_forward.7} parent=11 // pred_region
        %p219 = scmp.lt.s32.totalorder %s23, 0
        %s220 = scalar_select %p219, %s23, 0
        %s221 = scalar_lea.vmem %s3, %s220
      $region20: #{cam_forward.7} parent=11 // pred_fallthru
        _
      // Predicated region
      $region21: #{cam_forward.7} parent=11 // pred_check
        %p222 = pneg %p164
      $region22: #{cam_forward.7} parent=11 // pred_check_branch
        %224 = sbr.rel (%p222) target = $region24
      $region23: #{cam_forward.7} parent=11 // pred_region
        %p225 = scmp.lt.s32.totalorder %s23, 0
        %s226 = scalar_select %p225, %s23, 0
        %s227 = scalar_lea.vmem %s4, %s226
      $region24: #{cam_forward.7} parent=11 // pred_fallthru
        _
    $region12: #{cam_forward.7} parent=5 // pred_fallthru
      _
    %p228 = scmp.lt.s32.totalorder %s11, 2
    // Predicated region
    $region25: #{cam_forward.7} parent=5 // pred_check
      %p229 = pneg %p228
    $region26: #{cam_forward.7} parent=5 // pred_check_branch
      %231 = sbr.rel (%p229) target = $region28
    $region27: #{cam_forward.7} parent=5 // pred_region
      // Predicated region
      $region29: #{cam_forward.7} parent=27 // pred_check
        %p232 = pneg %p52
      $region30: #{cam_forward.7} parent=27 // pred_check_branch
        %234 = sbr.rel (%p232) target = $region32
      $region31: #{cam_forward.7} parent=27 // pred_region
        %s235 = sadd.s32 %s18, %s19
        %p236 = scmp.lt.s32.totalorder %s235, 1
        %s237 = scalar_select %p236, %s235, 1
        %s238 = smul.addr %s237, 30
        %s239 = smul.addr %s238, 4
        %s240 = scalar_lea.vmem %s0, %s239
        %s241 = sadd.s32 %s18, %s19
      $region32: #{cam_forward.7} parent=27 // pred_fallthru
        _
      // Predicated region
      $region33: #{cam_forward.7} parent=27 // pred_check
        %p242 = pneg %p80
      $region34: #{cam_forward.7} parent=27 // pred_check_branch
        %244 = sbr.rel (%p242) target = $region36
      $region35: #{cam_forward.7} parent=27 // pred_region
        %s245 = sadd.s32 %s18, %s19
        %p246 = scmp.lt.s32.totalorder %s245, 1
        %s247 = scalar_select %p246, %s245, 1
        %s248 = smul.addr %s247, 30
        %s249 = smul.addr %s248, 4
        %s250 = scalar_lea.vmem %s1, %s249
        %s251 = sadd.s32 %s18, %s19
      $region36: #{cam_forward.7} parent=27 // pred_fallthru
        _
    $region28: #{cam_forward.7} parent=5 // pred_fallthru
      _
    %p252 = scmp.le.s32.totalorder 1, %s11
    %p253 = scmp.lt.s32.totalorder %s11, 3
    %p254 = pnand %p252, %p253
    %p255 = pneg %p254
    // Predicated region
    $region37: #{cam_forward.7} parent=5 // pred_check
      _
    $region38: #{cam_forward.7} parent=5 // pred_check_branch
      %257 = sbr.rel (%p254) target = $region40
    $region39: #{cam_forward.7} parent=5 // pred_region
      %s258 = ssub.s32 %s11, 1
      %s259 = sadd.s32 %s21, %s22
      %p260 = scmp.lt.s32.totalorder %s259, 1
      %s261 = scalar_select %p260, %s259, 1
      %s262 = smul.addr %s261, 30
      %s263 = smul.addr %s262, 4
      %s264 = scalar_lea.vmem %s0, %s263
      %p265 = pneg %p58
      %p266 = pneg %p55
      %s267 = sadd.s32 %s21, %s22
      %p268 = scmp.lt.s32.totalorder %s267, 1
      %s269 = scalar_select %p268, %s267, 1
      %s270 = smul.addr %s269, 30
      %s271 = smul.addr %s270, 4
      %s272 = scalar_lea.vmem %s1, %s271
      %p273 = pneg %p86
      %p274 = pneg %p83
      %p275 = scmp.lt.s32.totalorder %s23, 0
      %s276 = scalar_select %p275, %s23, 0
      %s277 = smul.addr %s276, 4
      %s278 = scalar_lea.vmem %s2, %s277
      %p279 = pneg %p112
      %p280 = pneg %p109
      %p281 = scmp.lt.s32.totalorder %s23, 0
      %s282 = scalar_select %p281, %s23, 0
      %s283 = scalar_lea.vmem %s3, %s282
      %p284 = pneg %p138
      %p285 = pneg %p135
      %p286 = scmp.lt.s32.totalorder %s23, 0
      %s287 = scalar_select %p286, %s23, 0
      %s288 = scalar_lea.vmem %s4, %s287
      %p289 = pneg %p164
      %p290 = pneg %p161
      %p291 = pneg %p194
      %p292 = pneg %p191
      %s293 = smul.u32 8, %s22
      %p294 = scmp.lt.s32.totalorder %s21, 1
      %s295 = scalar_select %p294, %s21, 1
      %p296 = scmp.lt.s32.totalorder %s293, 7
      %s297 = scalar_select %p296, %s293, 7
      %p298 = scmp.lt.s32.totalorder %s23, 0
      %s299 = scalar_select %p298, %s23, 0
      %s300 = smul.addr %s297, 2
      %s301 = sadd.s32 %s299, %s300
      %s302 = smul.addr %s295, 16
      %s303 = sadd.s32 %s301, %s302
      %s304 = smul.addr %s303, 4
      %s305 = scalar_lea.vmem %s5, %s304
      %s306 = sadd.s32 %s21, %s22
      %p307 = scmp.lt.s32.totalorder %s306, 1
      %s308 = scalar_select %p307, %s306, 1
      %s309 = smul.addr %s308, 30
      %s310 = smul.addr %s309, 4
      %s311 = scalar_lea.vmem %s0, %s310
      %s312 = sadd.s32 %s21, %s22
      %s313 = sadd.s32 %s21, %s22
      %p314 = scmp.lt.s32.totalorder %s313, 1
      %s315 = scalar_select %p314, %s313, 1
      %s316 = smul.addr %s315, 30
      %s317 = smul.addr %s316, 4
      %s318 = scalar_lea.vmem %s1, %s317
      %s319 = sadd.s32 %s21, %s22
      %p320 = scmp.lt.s32.totalorder %s23, 0
      %s321 = scalar_select %p320, %s23, 0
      %s322 = smul.addr %s321, 4
      %s323 = scalar_lea.vmem %s2, %s322
      %p324 = scmp.lt.s32.totalorder %s23, 0
      %s325 = scalar_select %p324, %s23, 0
      %s326 = scalar_lea.vmem %s3, %s325
      %p327 = scmp.lt.s32.totalorder %s23, 0
      %s328 = scalar_select %p327, %s23, 0
      %s329 = scalar_lea.vmem %s4, %s328
      %s330 = smul.u32 8, %s22
      %p331 = scmp.lt.s32.totalorder %s21, 1
      %s332 = scalar_select %p331, %s21, 1
      %p333 = scmp.lt.s32.totalorder %s330, 7
      %s334 = scalar_select %p333, %s330, 7
      %p335 = scmp.lt.s32.totalorder %s23, 0
      %s336 = scalar_select %p335, %s23, 0
      %s337 = smul.addr %s334, 2
      %s338 = sadd.s32 %s336, %s337
      %s339 = smul.addr %s332, 16
      %s340 = sadd.s32 %s338, %s339
      %s341 = smul.addr %s340, 4
      %s342 = scalar_lea.vmem %s5, %s341
      %s343 = smul.u32 8, %s22
      %v344 = vld [vmem:[%s311] sm:$0xf]
      %v345 = vld [vmem:[%s311 + $0x4] sm:$0xf]
      %v346 = vld [vmem:[%s311 + $0x8] sm:$0x1]
      %v347 = vld [vmem:[%s311 + $0xc] sm:$0xf]
      %v348 = vld [vmem:[%s311 + $0x10] sm:$0xf]
      %v349 = vld [vmem:[%s311 + $0x14] sm:$0x1]
      %v350 = vld [vmem:[%s311 + $0x18] sm:$0xf]
      %v351 = vld [vmem:[%s311 + $0x1c] sm:$0xf]
      %v352 = vld [vmem:[%s311 + $0x20] sm:$0x1]
      %v353 = vld [vmem:[%s311 + $0x24] sm:$0xf]
      %v354 = vld [vmem:[%s311 + $0x28] sm:$0xf]
      %v355 = vld [vmem:[%s311 + $0x2c] sm:$0x1]
      %v356 = vld [vmem:[%s311 + $0x30] sm:$0xf]
      %v357 = vld [vmem:[%s311 + $0x34] sm:$0xf]
      %v358 = vld [vmem:[%s311 + $0x38] sm:$0x1]
      %v359 = vld [vmem:[%s311 + $0x3c] sm:$0xf]
      %v360 = vld [vmem:[%s311 + $0x40] sm:$0xf]
      %v361 = vld [vmem:[%s311 + $0x44] sm:$0x1]
      %v362 = vld [vmem:[%s311 + $0x48] sm:$0xf]
      %v363 = vld [vmem:[%s311 + $0x4c] sm:$0xf]
      %v364 = vld [vmem:[%s311 + $0x50] sm:$0x1]
      %v365 = vld [vmem:[%s311 + $0x54] sm:$0xf]
      %v366 = vld [vmem:[%s311 + $0x58] sm:$0xf]
      %v367 = vld [vmem:[%s311 + $0x5c] sm:$0x1]
      %v368 = vld [vmem:[%s311 + $0x60] sm:$0xf]
      %v369 = vld [vmem:[%s311 + $0x64] sm:$0xf]
      %v370 = vld [vmem:[%s311 + $0x68] sm:$0x1]
      %v371 = vld [vmem:[%s311 + $0x6c] sm:$0xf]
      %v372 = vld [vmem:[%s311 + $0x70] sm:$0xf]
      %v373 = vld [vmem:[%s311 + $0x74] sm:$0x1]
      %v374 = vunpack.c.l.bf16 %v344
      %v375 = vunpack.c.l.bf16 %v345
      %v376 = vunpack.c.l.bf16 %v346
      %v377 = vunpack.c.l.bf16 %v347
      %v378 = vunpack.c.l.bf16 %v348
      %v379 = vunpack.c.l.bf16 %v349
      %v380 = vunpack.c.l.bf16 %v350
      %v381 = vunpack.c.l.bf16 %v351
      %v382 = vunpack.c.l.bf16 %v352
      %v383 = vunpack.c.l.bf16 %v353
      %v384 = vunpack.c.l.bf16 %v354
      %v385 = vunpack.c.l.bf16 %v355
      %v386 = vunpack.c.l.bf16 %v356
      %v387 = vunpack.c.l.bf16 %v357
      %v388 = vunpack.c.l.bf16 %v358
      %v389 = vunpack.c.l.bf16 %v359
      %v390 = vunpack.c.l.bf16 %v360
      %v391 = vunpack.c.l.bf16 %v361
      %v392 = vunpack.c.l.bf16 %v362
      %v393 = vunpack.c.l.bf16 %v363
      %v394 = vunpack.c.l.bf16 %v364
      %v395 = vunpack.c.l.bf16 %v365
      %v396 = vunpack.c.l.bf16 %v366
      %v397 = vunpack.c.l.bf16 %v367
      %v398 = vunpack.c.l.bf16 %v368
      %v399 = vunpack.c.l.bf16 %v369
      %v400 = vunpack.c.l.bf16 %v370
      %v401 = vunpack.c.l.bf16 %v371
      %v402 = vunpack.c.l.bf16 %v372
      %v403 = vunpack.c.l.bf16 %v373
      %v404 = vld [vmem:[%s318] sm:$0xf]
      %v405 = vld [vmem:[%s318 + $0x4] sm:$0xf]
      %v406 = vld [vmem:[%s318 + $0x8] sm:$0x1]
      %v407 = vld [vmem:[%s318 + $0xc] sm:$0xf]
      %v408 = vld [vmem:[%s318 + $0x10] sm:$0xf]
      %v409 = vld [vmem:[%s318 + $0x14] sm:$0x1]
      %v410 = vld [vmem:[%s318 + $0x18] sm:$0xf]
      %v411 = vld [vmem:[%s318 + $0x1c] sm:$0xf]
      %v412 = vld [vmem:[%s318 + $0x20] sm:$0x1]
      %v413 = vld [vmem:[%s318 + $0x24] sm:$0xf]
      %v414 = vld [vmem:[%s318 + $0x28] sm:$0xf]
      %v415 = vld [vmem:[%s318 + $0x2c] sm:$0x1]
      %v416 = vld [vmem:[%s318 + $0x30] sm:$0xf]
      %v417 = vld [vmem:[%s318 + $0x34] sm:$0xf]
      %v418 = vld [vmem:[%s318 + $0x38] sm:$0x1]
      %v419 = vld [vmem:[%s318 + $0x3c] sm:$0xf]
      %v420 = vld [vmem:[%s318 + $0x40] sm:$0xf]
      %v421 = vld [vmem:[%s318 + $0x44] sm:$0x1]
      %v422 = vld [vmem:[%s318 + $0x48] sm:$0xf]
      %v423 = vld [vmem:[%s318 + $0x4c] sm:$0xf]
      %v424 = vld [vmem:[%s318 + $0x50] sm:$0x1]
      %v425 = vld [vmem:[%s318 + $0x54] sm:$0xf]
      %v426 = vld [vmem:[%s318 + $0x58] sm:$0xf]
      %v427 = vld [vmem:[%s318 + $0x5c] sm:$0x1]
      %v428 = vld [vmem:[%s318 + $0x60] sm:$0xf]
      %v429 = vld [vmem:[%s318 + $0x64] sm:$0xf]
      %v430 = vld [vmem:[%s318 + $0x68] sm:$0x1]
      %v431 = vld [vmem:[%s318 + $0x6c] sm:$0xf]
      %v432 = vld [vmem:[%s318 + $0x70] sm:$0xf]
      %v433 = vld [vmem:[%s318 + $0x74] sm:$0x1]
      %v434 = vunpack.c.l.bf16 %v404
      %v435 = vunpack.c.l.bf16 %v405
      %v436 = vunpack.c.l.bf16 %v406
      %v437 = vunpack.c.l.bf16 %v407
      %v438 = vunpack.c.l.bf16 %v408
      %v439 = vunpack.c.l.bf16 %v409
      %v440 = vunpack.c.l.bf16 %v410
      %v441 = vunpack.c.l.bf16 %v411
      %v442 = vunpack.c.l.bf16 %v412
      %v443 = vunpack.c.l.bf16 %v413
      %v444 = vunpack.c.l.bf16 %v414
      %v445 = vunpack.c.l.bf16 %v415
      %v446 = vunpack.c.l.bf16 %v416
      %v447 = vunpack.c.l.bf16 %v417
      %v448 = vunpack.c.l.bf16 %v418
      %v449 = vunpack.c.l.bf16 %v419
      %v450 = vunpack.c.l.bf16 %v420
      %v451 = vunpack.c.l.bf16 %v421
      %v452 = vunpack.c.l.bf16 %v422
      %v453 = vunpack.c.l.bf16 %v423
      %v454 = vunpack.c.l.bf16 %v424
      %v455 = vunpack.c.l.bf16 %v425
      %v456 = vunpack.c.l.bf16 %v426
      %v457 = vunpack.c.l.bf16 %v427
      %v458 = vunpack.c.l.bf16 %v428
      %v459 = vunpack.c.l.bf16 %v429
      %v460 = vunpack.c.l.bf16 %v430
      %v461 = vunpack.c.l.bf16 %v431
      %v462 = vunpack.c.l.bf16 %v432
      %v463 = vunpack.c.l.bf16 %v433
      %v464 = vmul.f32 %v374, %v434
      %v465 = vmul.f32 %v375, %v435
      %v466 = vmul.f32 %v376, %v436
      %v467 = vmul.f32 %v377, %v437
      %v468 = vmul.f32 %v378, %v438
      %v469 = vmul.f32 %v379, %v439
      %v470 = vmul.f32 %v380, %v440
      %v471 = vmul.f32 %v381, %v441
      %v472 = vmul.f32 %v382, %v442
      %v473 = vmul.f32 %v383, %v443
      %v474 = vmul.f32 %v384, %v444
      %v475 = vmul.f32 %v385, %v445
      %v476 = vmul.f32 %v386, %v446
      %v477 = vmul.f32 %v387, %v447
      %v478 = vmul.f32 %v388, %v448
      %v479 = vmul.f32 %v389, %v449
      %v480 = vmul.f32 %v390, %v450
      %v481 = vmul.f32 %v391, %v451
      %v482 = vmul.f32 %v392, %v452
      %v483 = vmul.f32 %v393, %v453
      %v484 = vmul.f32 %v394, %v454
      %v485 = vmul.f32 %v395, %v455
      %v486 = vmul.f32 %v396, %v456
      %v487 = vmul.f32 %v397, %v457
      %v488 = vmul.f32 %v398, %v458
      %v489 = vmul.f32 %v399, %v459
      %v490 = vmul.f32 %v400, %v460
      %v491 = vmul.f32 %v401, %v461
      %v492 = vmul.f32 %v402, %v462
      %v493 = vmul.f32 %v403, %v463
      %v494 = vpack.c.bf16 %v464, %v464
      %v495 = vpack.c.bf16 %v465, %v465
      %v496 = vpack.c.bf16 %v466, %v466
      %v497 = vpack.c.bf16 %v467, %v467
      %v498 = vpack.c.bf16 %v468, %v468
      %v499 = vpack.c.bf16 %v469, %v469
      %v500 = vpack.c.bf16 %v470, %v470
      %v501 = vpack.c.bf16 %v471, %v471
      %v502 = vpack.c.bf16 %v472, %v472
      %v503 = vpack.c.bf16 %v473, %v473
      %v504 = vpack.c.bf16 %v474, %v474
      %v505 = vpack.c.bf16 %v475, %v475
      %v506 = vpack.c.bf16 %v476, %v476
      %v507 = vpack.c.bf16 %v477, %v477
      %v508 = vpack.c.bf16 %v478, %v478
      %v509 = vpack.c.bf16 %v479, %v479
      %v510 = vpack.c.bf16 %v480, %v480
      %v511 = vpack.c.bf16 %v481, %v481
      %v512 = vpack.c.bf16 %v482, %v482
      %v513 = vpack.c.bf16 %v483, %v483
      %v514 = vpack.c.bf16 %v484, %v484
      %v515 = vpack.c.bf16 %v485, %v485
      %v516 = vpack.c.bf16 %v486, %v486
      %v517 = vpack.c.bf16 %v487, %v487
      %v518 = vpack.c.bf16 %v488, %v488
      %v519 = vpack.c.bf16 %v489, %v489
      %v520 = vpack.c.bf16 %v490, %v490
      %v521 = vpack.c.bf16 %v491, %v491
      %v522 = vpack.c.bf16 %v492, %v492
      %v523 = vpack.c.bf16 %v493, %v493
      %v524 = vld [vmem:[%s323] sm:$0xf]
      %v525 = vld [vmem:[%s323 + $0x4] sm:$0xf]
      %v526 = vld [vmem:[%s323 + $0x8] sm:$0xf]
      %v527 = vld [vmem:[%s323 + $0xc] sm:$0xf]
      %v528 = vld [vmem:[%s323 + $0x10] sm:$0xf]
      %v529 = vld [vmem:[%s323 + $0x14] sm:$0xf]
      %v530 = vld [vmem:[%s323 + $0x18] sm:$0xf]
      %v531 = vld [vmem:[%s323 + $0x1c] sm:$0xf]
      %v532 = vld [vmem:[%s323 + $0x20] sm:$0xf]
      %v533 = vld [vmem:[%s323 + $0x24] sm:$0xf]
      %v534 = vld [vmem:[%s323 + $0x28] sm:$0xf]
      %v535 = vld [vmem:[%s323 + $0x2c] sm:$0xf]
      %v536 = vld [vmem:[%s323 + $0x30] sm:$0xf]
      %v537 = vld [vmem:[%s323 + $0x34] sm:$0xf]
      %v538 = vld [vmem:[%s323 + $0x38] sm:$0xf]
      %v539 = vld [vmem:[%s323 + $0x3c] sm:$0xf]
      %vm540 = vsmask.f32 3328
      %vm541 = vsmask.f32 7440
      %vm542 = vmor %vm540, %vm541
      %v544 = vshrl.u32 %v494, 16
      %v546 = vrot.slane %v544, 4
      %v547 = vshll.u32 %v494, 16
      %v549 = vrot.slane %v547, 5
      %v550 = vor.u32 %v546, %v549
      %v551 = vrot.slane %v550, 4
      %v553 = vshll.u32 %v495, 16
      %v555 = vrot.slane %v553, 5
      %v556 = vsel %vm542, %v551, %v555
      %v557 = vshrl.u32 %v495, 16
      %v559 = vrot.slane %v557, 4
      %v560 = vor.u32 %v559, %v555
      %v561 = vrot.slane %v560, 4
      %v563 = vshll.u32 %v496, 16
      %v565 = vrot.slane %v563, 5
      %v566 = vsel %vm542, %v561, %v565
      %v568 = vshrl.u32 %v497, 16
      %v570 = vrot.slane %v568, 4
      %v571 = vshll.u32 %v497, 16
      %v573 = vrot.slane %v571, 5
      %v574 = vor.u32 %v570, %v573
      %v575 = vrot.slane %v574, 4
      %v577 = vshll.u32 %v498, 16
      %v579 = vrot.slane %v577, 5
      %v580 = vsel %vm542, %v575, %v579
      %v581 = vshrl.u32 %v498, 16
      %v583 = vrot.slane %v581, 4
      %v584 = vor.u32 %v583, %v579
      %v585 = vrot.slane %v584, 4
      %v587 = vshll.u32 %v499, 16
      %v589 = vrot.slane %v587, 5
      %v590 = vsel %vm542, %v585, %v589
      %v592 = vshrl.u32 %v500, 16
      %v594 = vrot.slane %v592, 4
      %v595 = vshll.u32 %v500, 16
      %v597 = vrot.slane %v595, 5
      %v598 = vor.u32 %v594, %v597
      %v599 = vrot.slane %v598, 4
      %v601 = vshll.u32 %v501, 16
      %v603 = vrot.slane %v601, 5
      %v604 = vsel %vm542, %v599, %v603
      %v605 = vshrl.u32 %v501, 16
      %v607 = vrot.slane %v605, 4
      %v608 = vor.u32 %v607, %v603
      %v609 = vrot.slane %v608, 4
      %v611 = vshll.u32 %v502, 16
      %v613 = vrot.slane %v611, 5
      %v614 = vsel %vm542, %v609, %v613
      %v616 = vshrl.u32 %v503, 16
      %v618 = vrot.slane %v616, 4
      %v619 = vshll.u32 %v503, 16
      %v621 = vrot.slane %v619, 5
      %v622 = vor.u32 %v618, %v621
      %v623 = vrot.slane %v622, 4
      %v625 = vshll.u32 %v504, 16
      %v627 = vrot.slane %v625, 5
      %v628 = vsel %vm542, %v623, %v627
      %v629 = vshrl.u32 %v504, 16
      %v631 = vrot.slane %v629, 4
      %v632 = vor.u32 %v631, %v627
      %v633 = vrot.slane %v632, 4
      %v635 = vshll.u32 %v505, 16
      %v637 = vrot.slane %v635, 5
      %v638 = vsel %vm542, %v633, %v637
      %v640 = vshrl.u32 %v506, 16
      %v642 = vrot.slane %v640, 4
      %v643 = vshll.u32 %v506, 16
      %v645 = vrot.slane %v643, 5
      %v646 = vor.u32 %v642, %v645
      %v647 = vrot.slane %v646, 4
      %v649 = vshll.u32 %v507, 16
      %v651 = vrot.slane %v649, 5
      %v652 = vsel %vm542, %v647, %v651
      %v653 = vshrl.u32 %v507, 16
      %v655 = vrot.slane %v653, 4
      %v656 = vor.u32 %v655, %v651
      %v657 = vrot.slane %v656, 4
      %v659 = vshll.u32 %v508, 16
      %v661 = vrot.slane %v659, 5
      %v662 = vsel %vm542, %v657, %v661
      %v664 = vshrl.u32 %v509, 16
      %v666 = vrot.slane %v664, 4
      %v667 = vshll.u32 %v509, 16
      %v669 = vrot.slane %v667, 5
      %v670 = vor.u32 %v666, %v669
      %v671 = vrot.slane %v670, 4
      %v673 = vshll.u32 %v510, 16
      %v675 = vrot.slane %v673, 5
      %v676 = vsel %vm542, %v671, %v675
      %v677 = vshrl.u32 %v510, 16
      %v679 = vrot.slane %v677, 4
      %v680 = vor.u32 %v679, %v675
      %v681 = vrot.slane %v680, 4
      %v683 = vshll.u32 %v511, 16
      %v685 = vrot.slane %v683, 5
      %v686 = vsel %vm542, %v681, %v685
      %v688 = vshrl.u32 %v512, 16
      %v690 = vrot.slane %v688, 4
      %v691 = vshll.u32 %v512, 16
      %v693 = vrot.slane %v691, 5
      %v694 = vor.u32 %v690, %v693
      %v695 = vrot.slane %v694, 4
      %v697 = vshll.u32 %v513, 16
      %v699 = vrot.slane %v697, 5
      %v700 = vsel %vm542, %v695, %v699
      %v701 = vshrl.u32 %v513, 16
      %v703 = vrot.slane %v701, 4
      %v704 = vor.u32 %v703, %v699
      %v705 = vrot.slane %v704, 4
      %v707 = vshll.u32 %v514, 16
      %v709 = vrot.slane %v707, 5
      %v710 = vsel %vm542, %v705, %v709
      %v712 = vshrl.u32 %v515, 16
      %v714 = vrot.slane %v712, 4
      %v715 = vshll.u32 %v515, 16
      %v717 = vrot.slane %v715, 5
      %v718 = vor.u32 %v714, %v717
      %v719 = vrot.slane %v718, 4
      %v721 = vshll.u32 %v516, 16
      %v723 = vrot.slane %v721, 5
      %v724 = vsel %vm542, %v719, %v723
      %v725 = vshrl.u32 %v516, 16
      %v727 = vrot.slane %v725, 4
      %v728 = vor.u32 %v727, %v723
      %v729 = vrot.slane %v728, 4
      %v731 = vshll.u32 %v517, 16
      %v733 = vrot.slane %v731, 5
      %v734 = vsel %vm542, %v729, %v733
      %s735 = scalar_lea.vmem %s323, 64
      %v736 = vld [vmem:[%s735] sm:$0xf]
      %v737 = vld [vmem:[%s735 + $0x4] sm:$0xf]
      %v738 = vld [vmem:[%s735 + $0x8] sm:$0xf]
      %v739 = vld [vmem:[%s735 + $0xc] sm:$0xf]
      %v740 = vld [vmem:[%s735 + $0x10] sm:$0xf]
      %v741 = vld [vmem:[%s735 + $0x14] sm:$0xf]
      %v742 = vld [vmem:[%s735 + $0x18] sm:$0xf]
      %v743 = vld [vmem:[%s735 + $0x1c] sm:$0xf]
      %v744 = vld [vmem:[%s735 + $0x20] sm:$0xf]
      %v745 = vld [vmem:[%s735 + $0x24] sm:$0xf]
      %v746 = vld [vmem:[%s735 + $0x28] sm:$0xf]
      %v747 = vld [vmem:[%s735 + $0x2c] sm:$0xf]
      %v748 = vld [vmem:[%s735 + $0x30] sm:$0xf]
      %v749 = vld [vmem:[%s735 + $0x34] sm:$0xf]
      %v750 = vld [vmem:[%s735 + $0x38] sm:$0xf]
      %v751 = vld [vmem:[%s735 + $0x3c] sm:$0xf]
      %v752 = vunpack.c.l.b16 %v556
      %v753 = vunpack.c.l.b16 %v566
      %v754 = vunpack.c.l.b16 %v580
      %v755 = vunpack.c.l.b16 %v590
      %v756 = vunpack.c.l.b16 %v604
      %v757 = vunpack.c.l.b16 %v614
      %v758 = vunpack.c.l.b16 %v628
      %v759 = vunpack.c.l.b16 %v638
      %v760 = vunpack.c.l.b16 %v652
      %v761 = vunpack.c.l.b16 %v662
      %v762 = vunpack.c.l.b16 %v676
      %v763 = vunpack.c.l.b16 %v686
      %v764 = vunpack.c.l.b16 %v700
      %v765 = vunpack.c.l.b16 %v710
      %v766 = vunpack.c.l.b16 %v724
      %v767 = vunpack.c.l.b16 %v734
      %v768 = vpack.c.b16 %v753, %v752
      %v769 = vpack.c.b16 %v755, %v754
      %v770 = vpack.c.b16 %v757, %v756
      %v771 = vpack.c.b16 %v759, %v758
      %v772 = vpack.c.b16 %v761, %v760
      %v773 = vpack.c.b16 %v763, %v762
      %v774 = vpack.c.b16 %v765, %v764
      %v775 = vpack.c.b16 %v767, %v766
      %v800 = vunpack.c.l.b16 %v736
      %v801 = vunpack.c.l.b16 %v737
      %v802 = vunpack.c.l.b16 %v738
      %v803 = vunpack.c.l.b16 %v739
      %v804 = vunpack.c.l.b16 %v740
      %v805 = vunpack.c.l.b16 %v741
      %v806 = vunpack.c.l.b16 %v742
      %v807 = vunpack.c.l.b16 %v743
      %v808 = vunpack.c.l.b16 %v744
      %v809 = vunpack.c.l.b16 %v745
      %v810 = vunpack.c.l.b16 %v746
      %v811 = vunpack.c.l.b16 %v747
      %v812 = vunpack.c.l.b16 %v748
      %v813 = vunpack.c.l.b16 %v749
      %v814 = vunpack.c.l.b16 %v750
      %v815 = vunpack.c.l.b16 %v751
      %v816 = vpack.c.b16 %v801, %v800
      %v817 = vpack.c.b16 %v803, %v802
      %v818 = vpack.c.b16 %v805, %v804
      %v819 = vpack.c.b16 %v807, %v806
      %v820 = vpack.c.b16 %v809, %v808
      %v821 = vpack.c.b16 %v811, %v810
      %v822 = vpack.c.b16 %v813, %v812
      %v823 = vpack.c.b16 %v815, %v814
      %832 = vmatpush.bf16.msra.mxu0 %v823
      %833 = vmatpush.bf16.msra.mxu0 %v822
      %834 = vmatpush.bf16.msra.mxu0 %v821
      %835 = vmatpush.bf16.msra.mxu0 %v820
      %836 = vmatpush.bf16.msra.mxu0 %v819
      %837 = vmatpush.bf16.msra.mxu0 %v818
      %838 = vmatpush.bf16.msra.mxu0 %v817
      %839 = vmatpush.bf16.msra.mxu0 %v816
      %840 = vmatmul.bf16.gmra.mxu0 %v768
      %v841 = vpop.f32.mrf.mxu0
      %v842 = vadd.f32 0.0, %v841
      %v843 = vpop.f32.mrf.mxu0
      %v844 = vadd.f32 0.0, %v843
      %845 = vmatmul.bf16.gmra.mxu0 %v769
      %v846 = vpop.f32.mrf.mxu0
      %v847 = vadd.f32 0.0, %v846
      %v848 = vpop.f32.mrf.mxu0
      %v849 = vadd.f32 0.0, %v848
      %850 = vmatmul.bf16.gmra.mxu0 %v770
      %v851 = vpop.f32.mrf.mxu0
      %v852 = vadd.f32 0.0, %v851
      %v853 = vpop.f32.mrf.mxu0
      %v854 = vadd.f32 0.0, %v853
      %855 = vmatmul.bf16.gmra.mxu0 %v771
      %v856 = vpop.f32.mrf.mxu0
      %v857 = vadd.f32 0.0, %v856
      %v858 = vpop.f32.mrf.mxu0
      %v859 = vadd.f32 0.0, %v858
      %860 = vmatmul.bf16.gmra.mxu0 %v772
      %v861 = vpop.f32.mrf.mxu0
      %v862 = vadd.f32 0.0, %v861
      %v863 = vpop.f32.mrf.mxu0
      %v864 = vadd.f32 0.0, %v863
      %865 = vmatmul.bf16.gmra.mxu0 %v773
      %v866 = vpop.f32.mrf.mxu0
      %v867 = vadd.f32 0.0, %v866
      %v868 = vpop.f32.mrf.mxu0
      %v869 = vadd.f32 0.0, %v868
      %870 = vmatmul.bf16.gmra.mxu0 %v774
      %v871 = vpop.f32.mrf.mxu0
      %v872 = vadd.f32 0.0, %v871
      %v873 = vpop.f32.mrf.mxu0
      %v874 = vadd.f32 0.0, %v873
      %875 = vmatmul.bf16.gmra.mxu0 %v775
      %v876 = vpop.f32.mrf.mxu0
      %v877 = vadd.f32 0.0, %v876
      %v878 = vpop.f32.mrf.mxu0
      %v879 = vadd.f32 0.0, %v878
      %880 = vdwg.mxu0
      %v897 = vunpack.c.l.b16 %v494
      %v898 = vunpack.c.l.b16 %v495
      %v899 = vunpack.c.l.b16 %v497
      %v900 = vunpack.c.l.b16 %v498
      %v901 = vunpack.c.l.b16 %v500
      %v902 = vunpack.c.l.b16 %v501
      %v903 = vunpack.c.l.b16 %v503
      %v904 = vunpack.c.l.b16 %v504
      %v905 = vunpack.c.l.b16 %v506
      %v906 = vunpack.c.l.b16 %v507
      %v907 = vunpack.c.l.b16 %v509
      %v908 = vunpack.c.l.b16 %v510
      %v909 = vunpack.c.l.b16 %v512
      %v910 = vunpack.c.l.b16 %v513
      %v911 = vunpack.c.l.b16 %v515
      %v912 = vunpack.c.l.b16 %v516
      %v913 = vpack.c.b16 %v898, %v897
      %v914 = vpack.c.b16 %v900, %v899
      %v915 = vpack.c.b16 %v902, %v901
      %v916 = vpack.c.b16 %v904, %v903
      %v917 = vpack.c.b16 %v906, %v905
      %v918 = vpack.c.b16 %v908, %v907
      %v919 = vpack.c.b16 %v910, %v909
      %v920 = vpack.c.b16 %v912, %v911
      %v945 = vunpack.c.l.b16 %v524
      %v946 = vunpack.c.l.b16 %v525
      %v947 = vunpack.c.l.b16 %v526
      %v948 = vunpack.c.l.b16 %v527
      %v949 = vunpack.c.l.b16 %v528
      %v950 = vunpack.c.l.b16 %v529
      %v951 = vunpack.c.l.b16 %v530
      %v952 = vunpack.c.l.b16 %v531
      %v953 = vunpack.c.l.b16 %v532
      %v954 = vunpack.c.l.b16 %v533
      %v955 = vunpack.c.l.b16 %v534
      %v956 = vunpack.c.l.b16 %v535
      %v957 = vunpack.c.l.b16 %v536
      %v958 = vunpack.c.l.b16 %v537
      %v959 = vunpack.c.l.b16 %v538
      %v960 = vunpack.c.l.b16 %v539
      %v961 = vpack.c.b16 %v946, %v945
      %v962 = vpack.c.b16 %v948, %v947
      %v963 = vpack.c.b16 %v950, %v949
      %v964 = vpack.c.b16 %v952, %v951
      %v965 = vpack.c.b16 %v954, %v953
      %v966 = vpack.c.b16 %v956, %v955
      %v967 = vpack.c.b16 %v958, %v957
      %v968 = vpack.c.b16 %v960, %v959
      %977 = vmatpush.bf16.msra.mxu0 %v968
      %978 = vmatpush.bf16.msra.mxu0 %v967
      %979 = vmatpush.bf16.msra.mxu0 %v966
      %980 = vmatpush.bf16.msra.mxu0 %v965
      %981 = vmatpush.bf16.msra.mxu0 %v964
      %982 = vmatpush.bf16.msra.mxu0 %v963
      %983 = vmatpush.bf16.msra.mxu0 %v962
      %984 = vmatpush.bf16.msra.mxu0 %v961
      %985 = vmatmul.bf16.gmra.mxu0 %v913
      %v986 = vpop.f32.mrf.mxu0
      %v987 = vadd.f32 %v842, %v986
      %v988 = vpop.f32.mrf.mxu0
      %v989 = vadd.f32 %v844, %v988
      %990 = vmatmul.bf16.gmra.mxu0 %v914
      %v991 = vpop.f32.mrf.mxu0
      %v992 = vadd.f32 %v847, %v991
      %v993 = vpop.f32.mrf.mxu0
      %v994 = vadd.f32 %v849, %v993
      %995 = vmatmul.bf16.gmra.mxu0 %v915
      %v996 = vpop.f32.mrf.mxu0
      %v997 = vadd.f32 %v852, %v996
      %v998 = vpop.f32.mrf.mxu0
      %v999 = vadd.f32 %v854, %v998
      %1000 = vmatmul.bf16.gmra.mxu0 %v916
      %v1001 = vpop.f32.mrf.mxu0
      %v1002 = vadd.f32 %v857, %v1001
      %v1003 = vpop.f32.mrf.mxu0
      %v1004 = vadd.f32 %v859, %v1003
      %1005 = vmatmul.bf16.gmra.mxu0 %v917
      %v1006 = vpop.f32.mrf.mxu0
      %v1007 = vadd.f32 %v862, %v1006
      %v1008 = vpop.f32.mrf.mxu0
      %v1009 = vadd.f32 %v864, %v1008
      %1010 = vmatmul.bf16.gmra.mxu0 %v918
      %v1011 = vpop.f32.mrf.mxu0
      %v1012 = vadd.f32 %v867, %v1011
      %v1013 = vpop.f32.mrf.mxu0
      %v1014 = vadd.f32 %v869, %v1013
      %1015 = vmatmul.bf16.gmra.mxu0 %v919
      %v1016 = vpop.f32.mrf.mxu0
      %v1017 = vadd.f32 %v872, %v1016
      %v1018 = vpop.f32.mrf.mxu0
      %v1019 = vadd.f32 %v874, %v1018
      %1020 = vmatmul.bf16.gmra.mxu0 %v920
      %v1021 = vpop.f32.mrf.mxu0
      %v1022 = vadd.f32 %v877, %v1021
      %v1023 = vpop.f32.mrf.mxu0
      %v1024 = vadd.f32 %v879, %v1023
      %1025 = vdwg.mxu0
      %vm1034 = vcmask 1042432
      %vm1035 = vcmask 1046532
      %vm1036 = vmor %vm1034, %vm1035
      %v1037 = vrot.slane %v494, 5
      %v1038 = vrot.slane %v1037, 4
      %v1039 = vrot.slane %v495, 5
      %v1040 = vsel %vm1036, %v1038, %v1039
      %v1041 = vrot.slane %v1039, 4
      %v1042 = vrot.slane %v496, 5
      %v1043 = vsel %vm1036, %v1041, %v1042
      %v1044 = vrot.slane %v497, 5
      %v1045 = vrot.slane %v1044, 4
      %v1046 = vrot.slane %v498, 5
      %v1047 = vsel %vm1036, %v1045, %v1046
      %v1048 = vrot.slane %v1046, 4
      %v1049 = vrot.slane %v499, 5
      %v1050 = vsel %vm1036, %v1048, %v1049
      %v1051 = vrot.slane %v500, 5
      %v1052 = vrot.slane %v1051, 4
      %v1053 = vrot.slane %v501, 5
      %v1054 = vsel %vm1036, %v1052, %v1053
      %v1055 = vrot.slane %v1053, 4
      %v1056 = vrot.slane %v502, 5
      %v1057 = vsel %vm1036, %v1055, %v1056
      %v1058 = vrot.slane %v503, 5
      %v1059 = vrot.slane %v1058, 4
      %v1060 = vrot.slane %v504, 5
      %v1061 = vsel %vm1036, %v1059, %v1060
      %v1062 = vrot.slane %v1060, 4
      %v1063 = vrot.slane %v505, 5
      %v1064 = vsel %vm1036, %v1062, %v1063
      %v1065 = vrot.slane %v506, 5
      %v1066 = vrot.slane %v1065, 4
      %v1067 = vrot.slane %v507, 5
      %v1068 = vsel %vm1036, %v1066, %v1067
      %v1069 = vrot.slane %v1067, 4
      %v1070 = vrot.slane %v508, 5
      %v1071 = vsel %vm1036, %v1069, %v1070
      %v1072 = vrot.slane %v509, 5
      %v1073 = vrot.slane %v1072, 4
      %v1074 = vrot.slane %v510, 5
      %v1075 = vsel %vm1036, %v1073, %v1074
      %v1076 = vrot.slane %v1074, 4
      %v1077 = vrot.slane %v511, 5
      %v1078 = vsel %vm1036, %v1076, %v1077
      %v1079 = vrot.slane %v512, 5
      %v1080 = vrot.slane %v1079, 4
      %v1081 = vrot.slane %v513, 5
      %v1082 = vsel %vm1036, %v1080, %v1081
      %v1083 = vrot.slane %v1081, 4
      %v1084 = vrot.slane %v514, 5
      %v1085 = vsel %vm1036, %v1083, %v1084
      %v1086 = vrot.slane %v515, 5
      %v1087 = vrot.slane %v1086, 4
      %v1088 = vrot.slane %v516, 5
      %v1089 = vsel %vm1036, %v1087, %v1088
      %v1090 = vrot.slane %v1088, 4
      %v1091 = vrot.slane %v517, 5
      %v1092 = vsel %vm1036, %v1090, %v1091
      %s1093 = scalar_lea.vmem %s323, 128
      %v1094 = vld [vmem:[%s1093] sm:$0xf]
      %v1095 = vld [vmem:[%s1093 + $0x4] sm:$0xf]
      %v1096 = vld [vmem:[%s1093 + $0x8] sm:$0xf]
      %v1097 = vld [vmem:[%s1093 + $0xc] sm:$0xf]
      %v1098 = vld [vmem:[%s1093 + $0x10] sm:$0xf]
      %v1099 = vld [vmem:[%s1093 + $0x14] sm:$0xf]
      %v1100 = vld [vmem:[%s1093 + $0x18] sm:$0xf]
      %v1101 = vld [vmem:[%s1093 + $0x1c] sm:$0xf]
      %v1102 = vld [vmem:[%s1093 + $0x20] sm:$0xf]
      %v1103 = vld [vmem:[%s1093 + $0x24] sm:$0xf]
      %v1104 = vld [vmem:[%s1093 + $0x28] sm:$0xf]
      %v1105 = vld [vmem:[%s1093 + $0x2c] sm:$0xf]
      %v1106 = vld [vmem:[%s1093 + $0x30] sm:$0xf]
      %v1107 = vld [vmem:[%s1093 + $0x34] sm:$0xf]
      %v1108 = vld [vmem:[%s1093 + $0x38] sm:$0xf]
      %v1109 = vld [vmem:[%s1093 + $0x3c] sm:$0xf]
      %v1110 = vunpack.c.l.b16 %v1040
      %v1111 = vunpack.c.l.b16 %v1043
      %v1112 = vunpack.c.l.b16 %v1047
      %v1113 = vunpack.c.l.b16 %v1050
      %v1114 = vunpack.c.l.b16 %v1054
      %v1115 = vunpack.c.l.b16 %v1057
      %v1116 = vunpack.c.l.b16 %v1061
      %v1117 = vunpack.c.l.b16 %v1064
      %v1118 = vunpack.c.l.b16 %v1068
      %v1119 = vunpack.c.l.b16 %v1071
      %v1120 = vunpack.c.l.b16 %v1075
      %v1121 = vunpack.c.l.b16 %v1078
      %v1122 = vunpack.c.l.b16 %v1082
      %v1123 = vunpack.c.l.b16 %v1085
      %v1124 = vunpack.c.l.b16 %v1089
      %v1125 = vunpack.c.l.b16 %v1092
      %v1126 = vpack.c.b16 %v1111, %v1110
      %v1127 = vpack.c.b16 %v1113, %v1112
      %v1128 = vpack.c.b16 %v1115, %v1114
      %v1129 = vpack.c.b16 %v1117, %v1116
      %v1130 = vpack.c.b16 %v1119, %v1118
      %v1131 = vpack.c.b16 %v1121, %v1120
      %v1132 = vpack.c.b16 %v1123, %v1122
      %v1133 = vpack.c.b16 %v1125, %v1124
      %v1158 = vunpack.c.l.b16 %v1094
      %v1159 = vunpack.c.l.b16 %v1095
      %v1160 = vunpack.c.l.b16 %v1096
      %v1161 = vunpack.c.l.b16 %v1097
      %v1162 = vunpack.c.l.b16 %v1098
      %v1163 = vunpack.c.l.b16 %v1099
      %v1164 = vunpack.c.l.b16 %v1100
      %v1165 = vunpack.c.l.b16 %v1101
      %v1166 = vunpack.c.l.b16 %v1102
      %v1167 = vunpack.c.l.b16 %v1103
      %v1168 = vunpack.c.l.b16 %v1104
      %v1169 = vunpack.c.l.b16 %v1105
      %v1170 = vunpack.c.l.b16 %v1106
      %v1171 = vunpack.c.l.b16 %v1107
      %v1172 = vunpack.c.l.b16 %v1108
      %v1173 = vunpack.c.l.b16 %v1109
      %v1174 = vpack.c.b16 %v1159, %v1158
      %v1175 = vpack.c.b16 %v1161, %v1160
      %v1176 = vpack.c.b16 %v1163, %v1162
      %v1177 = vpack.c.b16 %v1165, %v1164
      %v1178 = vpack.c.b16 %v1167, %v1166
      %v1179 = vpack.c.b16 %v1169, %v1168
      %v1180 = vpack.c.b16 %v1171, %v1170
      %v1181 = vpack.c.b16 %v1173, %v1172
      %1190 = vmatpush.bf16.msra.mxu0 %v1181
      %1191 = vmatpush.bf16.msra.mxu0 %v1180
      %1192 = vmatpush.bf16.msra.mxu0 %v1179
      %1193 = vmatpush.bf16.msra.mxu0 %v1178
      %1194 = vmatpush.bf16.msra.mxu0 %v1177
      %1195 = vmatpush.bf16.msra.mxu0 %v1176
      %1196 = vmatpush.bf16.msra.mxu0 %v1175
      %1197 = vmatpush.bf16.msra.mxu0 %v1174
      %1198 = vmatmul.bf16.gmra.mxu0 %v1126
      %v1199 = vpop.f32.mrf.mxu0
      %v1200 = vadd.f32 0.0, %v1199
      %v1201 = vpop.f32.mrf.mxu0
      %v1202 = vadd.f32 0.0, %v1201
      %1203 = vmatmul.bf16.gmra.mxu0 %v1127
      %v1204 = vpop.f32.mrf.mxu0
      %v1205 = vadd.f32 0.0, %v1204
      %v1206 = vpop.f32.mrf.mxu0
      %v1207 = vadd.f32 0.0, %v1206
      %1208 = vmatmul.bf16.gmra.mxu0 %v1128
      %v1209 = vpop.f32.mrf.mxu0
      %v1210 = vadd.f32 0.0, %v1209
      %v1211 = vpop.f32.mrf.mxu0
      %v1212 = vadd.f32 0.0, %v1211
      %1213 = vmatmul.bf16.gmra.mxu0 %v1129
      %v1214 = vpop.f32.mrf.mxu0
      %v1215 = vadd.f32 0.0, %v1214
      %v1216 = vpop.f32.mrf.mxu0
      %v1217 = vadd.f32 0.0, %v1216
      %1218 = vmatmul.bf16.gmra.mxu0 %v1130
      %v1219 = vpop.f32.mrf.mxu0
      %v1220 = vadd.f32 0.0, %v1219
      %v1221 = vpop.f32.mrf.mxu0
      %v1222 = vadd.f32 0.0, %v1221
      %1223 = vmatmul.bf16.gmra.mxu0 %v1131
      %v1224 = vpop.f32.mrf.mxu0
      %v1225 = vadd.f32 0.0, %v1224
      %v1226 = vpop.f32.mrf.mxu0
      %v1227 = vadd.f32 0.0, %v1226
      %1228 = vmatmul.bf16.gmra.mxu0 %v1132
      %v1229 = vpop.f32.mrf.mxu0
      %v1230 = vadd.f32 0.0, %v1229
      %v1231 = vpop.f32.mrf.mxu0
      %v1232 = vadd.f32 0.0, %v1231
      %1233 = vmatmul.bf16.gmra.mxu0 %v1133
      %v1234 = vpop.f32.mrf.mxu0
      %v1235 = vadd.f32 0.0, %v1234
      %v1236 = vpop.f32.mrf.mxu0
      %v1237 = vadd.f32 0.0, %v1236
      %1238 = vdwg.mxu0
      %v1239 = vadd.f32 %v987, %v1200
      %v1240 = vadd.f32 %v989, %v1202
      %v1241 = vadd.f32 %v992, %v1205
      %v1242 = vadd.f32 %v994, %v1207
      %v1243 = vadd.f32 %v997, %v1210
      %v1244 = vadd.f32 %v999, %v1212
      %v1245 = vadd.f32 %v1002, %v1215
      %v1246 = vadd.f32 %v1004, %v1217
      %v1247 = vadd.f32 %v1007, %v1220
      %v1248 = vadd.f32 %v1009, %v1222
      %v1249 = vadd.f32 %v1012, %v1225
      %v1250 = vadd.f32 %v1014, %v1227
      %v1251 = vadd.f32 %v1017, %v1230
      %v1252 = vadd.f32 %v1019, %v1232
      %v1253 = vadd.f32 %v1022, %v1235
      %v1254 = vadd.f32 %v1024, %v1237
      %s1255 = scalar_lea.vmem %s323, 192
      %v1256 = vld [vmem:[%s1255] sm:$0xf]
      %v1257 = vld [vmem:[%s1255 + $0x4] sm:$0xf]
      %v1258 = vld [vmem:[%s1255 + $0x8] sm:$0xf]
      %v1259 = vld [vmem:[%s1255 + $0xc] sm:$0xf]
      %v1260 = vld [vmem:[%s1255 + $0x10] sm:$0xf]
      %v1261 = vld [vmem:[%s1255 + $0x14] sm:$0xf]
      %v1262 = vld [vmem:[%s1255 + $0x18] sm:$0xf]
      %v1263 = vld [vmem:[%s1255 + $0x1c] sm:$0xf]
      %v1264 = vld [vmem:[%s1255 + $0x20] sm:$0xf]
      %v1265 = vld [vmem:[%s1255 + $0x24] sm:$0xf]
      %v1266 = vld [vmem:[%s1255 + $0x28] sm:$0xf]
      %v1267 = vld [vmem:[%s1255 + $0x2c] sm:$0xf]
      %v1268 = vld [vmem:[%s1255 + $0x30] sm:$0xf]
      %v1269 = vld [vmem:[%s1255 + $0x34] sm:$0xf]
      %v1270 = vld [vmem:[%s1255 + $0x38] sm:$0xf]
      %v1271 = vld [vmem:[%s1255 + $0x3c] sm:$0xf]
      %v1274 = vunpack.c.l.b16 %v518
      %v1275 = vunpack.c.l.b16 %v519
      %v1276 = vpack.c.b16 %v1275, %v1274
      %v1294 = vunpack.c.l.b16 %v1256
      %v1295 = vunpack.c.l.b16 %v1257
      %v1296 = vunpack.c.l.b16 %v1258
      %v1297 = vunpack.c.l.b16 %v1259
      %v1298 = vunpack.c.l.b16 %v1260
      %v1299 = vunpack.c.l.b16 %v1261
      %v1300 = vunpack.c.l.b16 %v1262
      %v1301 = vunpack.c.l.b16 %v1263
      %v1302 = vunpack.c.l.b16 %v1264
      %v1303 = vunpack.c.l.b16 %v1265
      %v1304 = vunpack.c.l.b16 %v1266
      %v1305 = vunpack.c.l.b16 %v1267
      %v1306 = vunpack.c.l.b16 %v1268
      %v1307 = vunpack.c.l.b16 %v1269
      %v1308 = vunpack.c.l.b16 %v1270
      %v1309 = vunpack.c.l.b16 %v1271
      %v1310 = vpack.c.b16 %v1295, %v1294
      %v1311 = vpack.c.b16 %v1297, %v1296
      %v1312 = vpack.c.b16 %v1299, %v1298
      %v1313 = vpack.c.b16 %v1301, %v1300
      %v1314 = vpack.c.b16 %v1303, %v1302
      %v1315 = vpack.c.b16 %v1305, %v1304
      %v1316 = vpack.c.b16 %v1307, %v1306
      %v1317 = vpack.c.b16 %v1309, %v1308
      %1326 = vmatpush.bf16.msra.mxu0 %v1317
      %1327 = vmatpush.bf16.msra.mxu0 %v1316
      %1328 = vmatpush.bf16.msra.mxu0 %v1315
      %1329 = vmatpush.bf16.msra.mxu0 %v1314
      %1330 = vmatpush.bf16.msra.mxu0 %v1313
      %1331 = vmatpush.bf16.msra.mxu0 %v1312
      %1332 = vmatpush.bf16.msra.mxu0 %v1311
      %1333 = vmatpush.bf16.msra.mxu0 %v1310
      %1334 = vmatmul.bf16.gmra.mxu0 %v914
      %v1335 = vpop.f32.mrf.mxu0
      %v1336 = vadd.f32 0.0, %v1335
      %v1337 = vpop.f32.mrf.mxu0
      %v1338 = vadd.f32 0.0, %v1337
      %1339 = vmatmul.bf16.gmra.mxu0 %v915
      %v1340 = vpop.f32.mrf.mxu0
      %v1341 = vadd.f32 0.0, %v1340
      %v1342 = vpop.f32.mrf.mxu0
      %v1343 = vadd.f32 0.0, %v1342
      %1344 = vmatmul.bf16.gmra.mxu0 %v916
      %v1345 = vpop.f32.mrf.mxu0
      %v1346 = vadd.f32 0.0, %v1345
      %v1347 = vpop.f32.mrf.mxu0
      %v1348 = vadd.f32 0.0, %v1347
      %1349 = vmatmul.bf16.gmra.mxu0 %v917
      %v1350 = vpop.f32.mrf.mxu0
      %v1351 = vadd.f32 0.0, %v1350
      %v1352 = vpop.f32.mrf.mxu0
      %v1353 = vadd.f32 0.0, %v1352
      %1354 = vmatmul.bf16.gmra.mxu0 %v918
      %v1355 = vpop.f32.mrf.mxu0
      %v1356 = vadd.f32 0.0, %v1355
      %v1357 = vpop.f32.mrf.mxu0
      %v1358 = vadd.f32 0.0, %v1357
      %1359 = vmatmul.bf16.gmra.mxu0 %v919
      %v1360 = vpop.f32.mrf.mxu0
      %v1361 = vadd.f32 0.0, %v1360
      %v1362 = vpop.f32.mrf.mxu0
      %v1363 = vadd.f32 0.0, %v1362
      %1364 = vmatmul.bf16.gmra.mxu0 %v920
      %v1365 = vpop.f32.mrf.mxu0
      %v1366 = vadd.f32 0.0, %v1365
      %v1367 = vpop.f32.mrf.mxu0
      %v1368 = vadd.f32 0.0, %v1367
      %1369 = vmatmul.bf16.gmra.mxu0 %v1276
      %v1370 = vpop.f32.mrf.mxu0
      %v1371 = vadd.f32 0.0, %v1370
      %v1372 = vpop.f32.mrf.mxu0
      %v1373 = vadd.f32 0.0, %v1372
      %1374 = vdwg.mxu0
      %v1375 = vadd.f32 %v1239, %v1336
      %v1376 = vadd.f32 %v1240, %v1338
      %v1377 = vadd.f32 %v1241, %v1341
      %v1378 = vadd.f32 %v1242, %v1343
      %v1379 = vadd.f32 %v1243, %v1346
      %v1380 = vadd.f32 %v1244, %v1348
      %v1381 = vadd.f32 %v1245, %v1351
      %v1382 = vadd.f32 %v1246, %v1353
      %v1383 = vadd.f32 %v1247, %v1356
      %v1384 = vadd.f32 %v1248, %v1358
      %v1385 = vadd.f32 %v1249, %v1361
      %v1386 = vadd.f32 %v1250, %v1363
      %v1387 = vadd.f32 %v1251, %v1366
      %v1388 = vadd.f32 %v1252, %v1368
      %v1389 = vadd.f32 %v1253, %v1371
      %v1390 = vadd.f32 %v1254, %v1373
      %v1392 = vshrl.u32 %v518, 16
      %v1394 = vrot.slane %v1392, 4
      %v1395 = vshll.u32 %v518, 16
      %v1397 = vrot.slane %v1395, 5
      %v1398 = vor.u32 %v1394, %v1397
      %v1399 = vrot.slane %v1398, 4
      %v1401 = vshll.u32 %v519, 16
      %v1403 = vrot.slane %v1401, 5
      %v1404 = vsel %vm542, %v1399, %v1403
      %v1405 = vshrl.u32 %v519, 16
      %v1407 = vrot.slane %v1405, 4
      %v1408 = vor.u32 %v1407, %v1403
      %v1409 = vrot.slane %v1408, 4
      %v1411 = vshll.u32 %v520, 16
      %v1413 = vrot.slane %v1411, 5
      %v1414 = vsel %vm542, %v1409, %v1413
      %s1415 = scalar_lea.vmem %s323, 256
      %v1416 = vld [vmem:[%s1415] sm:$0xf]
      %v1417 = vld [vmem:[%s1415 + $0x4] sm:$0xf]
      %v1418 = vld [vmem:[%s1415 + $0x8] sm:$0xf]
      %v1419 = vld [vmem:[%s1415 + $0xc] sm:$0xf]
      %v1420 = vld [vmem:[%s1415 + $0x10] sm:$0xf]
      %v1421 = vld [vmem:[%s1415 + $0x14] sm:$0xf]
      %v1422 = vld [vmem:[%s1415 + $0x18] sm:$0xf]
      %v1423 = vld [vmem:[%s1415 + $0x1c] sm:$0xf]
      %v1424 = vld [vmem:[%s1415 + $0x20] sm:$0xf]
      %v1425 = vld [vmem:[%s1415 + $0x24] sm:$0xf]
      %v1426 = vld [vmem:[%s1415 + $0x28] sm:$0xf]
      %v1427 = vld [vmem:[%s1415 + $0x2c] sm:$0xf]
      %v1428 = vld [vmem:[%s1415 + $0x30] sm:$0xf]
      %v1429 = vld [vmem:[%s1415 + $0x34] sm:$0xf]
      %v1430 = vld [vmem:[%s1415 + $0x38] sm:$0xf]
      %v1431 = vld [vmem:[%s1415 + $0x3c] sm:$0xf]
      %v1432 = vunpack.c.l.b16 %v1404
      %v1433 = vunpack.c.l.b16 %v1414
      %v1434 = vpack.c.b16 %v1433, %v1432
      %v1452 = vunpack.c.l.b16 %v1416
      %v1453 = vunpack.c.l.b16 %v1417
      %v1454 = vunpack.c.l.b16 %v1418
      %v1455 = vunpack.c.l.b16 %v1419
      %v1456 = vunpack.c.l.b16 %v1420
      %v1457 = vunpack.c.l.b16 %v1421
      %v1458 = vunpack.c.l.b16 %v1422
      %v1459 = vunpack.c.l.b16 %v1423
      %v1460 = vunpack.c.l.b16 %v1424
      %v1461 = vunpack.c.l.b16 %v1425
      %v1462 = vunpack.c.l.b16 %v1426
      %v1463 = vunpack.c.l.b16 %v1427
      %v1464 = vunpack.c.l.b16 %v1428
      %v1465 = vunpack.c.l.b16 %v1429
      %v1466 = vunpack.c.l.b16 %v1430
      %v1467 = vunpack.c.l.b16 %v1431
      %v1468 = vpack.c.b16 %v1453, %v1452
      %v1469 = vpack.c.b16 %v1455, %v1454
      %v1470 = vpack.c.b16 %v1457, %v1456
      %v1471 = vpack.c.b16 %v1459, %v1458
      %v1472 = vpack.c.b16 %v1461, %v1460
      %v1473 = vpack.c.b16 %v1463, %v1462
      %v1474 = vpack.c.b16 %v1465, %v1464
      %v1475 = vpack.c.b16 %v1467, %v1466
      %1484 = vmatpush.bf16.msra.mxu0 %v1475
      %1485 = vmatpush.bf16.msra.mxu0 %v1474
      %1486 = vmatpush.bf16.msra.mxu0 %v1473
      %1487 = vmatpush.bf16.msra.mxu0 %v1472
      %1488 = vmatpush.bf16.msra.mxu0 %v1471
      %1489 = vmatpush.bf16.msra.mxu0 %v1470
      %1490 = vmatpush.bf16.msra.mxu0 %v1469
      %1491 = vmatpush.bf16.msra.mxu0 %v1468
      %1492 = vmatmul.bf16.gmra.mxu0 %v769
      %v1493 = vpop.f32.mrf.mxu0
      %v1494 = vadd.f32 0.0, %v1493
      %v1495 = vpop.f32.mrf.mxu0
      %v1496 = vadd.f32 0.0, %v1495
      %1497 = vmatmul.bf16.gmra.mxu0 %v770
      %v1498 = vpop.f32.mrf.mxu0
      %v1499 = vadd.f32 0.0, %v1498
      %v1500 = vpop.f32.mrf.mxu0
      %v1501 = vadd.f32 0.0, %v1500
      %1502 = vmatmul.bf16.gmra.mxu0 %v771
      %v1503 = vpop.f32.mrf.mxu0
      %v1504 = vadd.f32 0.0, %v1503
      %v1505 = vpop.f32.mrf.mxu0
      %v1506 = vadd.f32 0.0, %v1505
      %1507 = vmatmul.bf16.gmra.mxu0 %v772
      %v1508 = vpop.f32.mrf.mxu0
      %v1509 = vadd.f32 0.0, %v1508
      %v1510 = vpop.f32.mrf.mxu0
      %v1511 = vadd.f32 0.0, %v1510
      %1512 = vmatmul.bf16.gmra.mxu0 %v773
      %v1513 = vpop.f32.mrf.mxu0
      %v1514 = vadd.f32 0.0, %v1513
      %v1515 = vpop.f32.mrf.mxu0
      %v1516 = vadd.f32 0.0, %v1515
      %1517 = vmatmul.bf16.gmra.mxu0 %v774
      %v1518 = vpop.f32.mrf.mxu0
      %v1519 = vadd.f32 0.0, %v1518
      %v1520 = vpop.f32.mrf.mxu0
      %v1521 = vadd.f32 0.0, %v1520
      %1522 = vmatmul.bf16.gmra.mxu0 %v775
      %v1523 = vpop.f32.mrf.mxu0
      %v1524 = vadd.f32 0.0, %v1523
      %v1525 = vpop.f32.mrf.mxu0
      %v1526 = vadd.f32 0.0, %v1525
      %1527 = vmatmul.bf16.gmra.mxu0 %v1434
      %v1528 = vpop.f32.mrf.mxu0
      %v1529 = vadd.f32 0.0, %v1528
      %v1530 = vpop.f32.mrf.mxu0
      %v1531 = vadd.f32 0.0, %v1530
      %1532 = vdwg.mxu0
      %v1533 = vadd.f32 %v1375, %v1494
      %v1534 = vadd.f32 %v1376, %v1496
      %v1535 = vadd.f32 %v1377, %v1499
      %v1536 = vadd.f32 %v1378, %v1501
      %v1537 = vadd.f32 %v1379, %v1504
      %v1538 = vadd.f32 %v1380, %v1506
      %v1539 = vadd.f32 %v1381, %v1509
      %v1540 = vadd.f32 %v1382, %v1511
      %v1541 = vadd.f32 %v1383, %v1514
      %v1542 = vadd.f32 %v1384, %v1516
      %v1543 = vadd.f32 %v1385, %v1519
      %v1544 = vadd.f32 %v1386, %v1521
      %v1545 = vadd.f32 %v1387, %v1524
      %v1546 = vadd.f32 %v1388, %v1526
      %v1547 = vadd.f32 %v1389, %v1529
      %v1548 = vadd.f32 %v1390, %v1531
      %v1550 = vrot.slane %v518, 5
      %v1551 = vrot.slane %v1550, 4
      %v1552 = vrot.slane %v519, 5
      %v1553 = vsel %vm1036, %v1551, %v1552
      %v1554 = vrot.slane %v1552, 4
      %v1555 = vrot.slane %v520, 5
      %v1556 = vsel %vm1036, %v1554, %v1555
      %s1557 = scalar_lea.vmem %s323, 320
      %v1558 = vld [vmem:[%s1557] sm:$0xf]
      %v1559 = vld [vmem:[%s1557 + $0x4] sm:$0xf]
      %v1560 = vld [vmem:[%s1557 + $0x8] sm:$0xf]
      %v1561 = vld [vmem:[%s1557 + $0xc] sm:$0xf]
      %v1562 = vld [vmem:[%s1557 + $0x10] sm:$0xf]
      %v1563 = vld [vmem:[%s1557 + $0x14] sm:$0xf]
      %v1564 = vld [vmem:[%s1557 + $0x18] sm:$0xf]
      %v1565 = vld [vmem:[%s1557 + $0x1c] sm:$0xf]
      %v1566 = vld [vmem:[%s1557 + $0x20] sm:$0xf]
      %v1567 = vld [vmem:[%s1557 + $0x24] sm:$0xf]
      %v1568 = vld [vmem:[%s1557 + $0x28] sm:$0xf]
      %v1569 = vld [vmem:[%s1557 + $0x2c] sm:$0xf]
      %v1570 = vld [vmem:[%s1557 + $0x30] sm:$0xf]
      %v1571 = vld [vmem:[%s1557 + $0x34] sm:$0xf]
      %v1572 = vld [vmem:[%s1557 + $0x38] sm:$0xf]
      %v1573 = vld [vmem:[%s1557 + $0x3c] sm:$0xf]
      %v1574 = vunpack.c.l.b16 %v1553
      %v1575 = vunpack.c.l.b16 %v1556
      %v1576 = vpack.c.b16 %v1575, %v1574
      %v1594 = vunpack.c.l.b16 %v1558
      %v1595 = vunpack.c.l.b16 %v1559
      %v1596 = vunpack.c.l.b16 %v1560
      %v1597 = vunpack.c.l.b16 %v1561
      %v1598 = vunpack.c.l.b16 %v1562
      %v1599 = vunpack.c.l.b16 %v1563
      %v1600 = vunpack.c.l.b16 %v1564
      %v1601 = vunpack.c.l.b16 %v1565
      %v1602 = vunpack.c.l.b16 %v1566
      %v1603 = vunpack.c.l.b16 %v1567
      %v1604 = vunpack.c.l.b16 %v1568
      %v1605 = vunpack.c.l.b16 %v1569
      %v1606 = vunpack.c.l.b16 %v1570
      %v1607 = vunpack.c.l.b16 %v1571
      %v1608 = vunpack.c.l.b16 %v1572
      %v1609 = vunpack.c.l.b16 %v1573
      %v1610 = vpack.c.b16 %v1595, %v1594
      %v1611 = vpack.c.b16 %v1597, %v1596
      %v1612 = vpack.c.b16 %v1599, %v1598
      %v1613 = vpack.c.b16 %v1601, %v1600
      %v1614 = vpack.c.b16 %v1603, %v1602
      %v1615 = vpack.c.b16 %v1605, %v1604
      %v1616 = vpack.c.b16 %v1607, %v1606
      %v1617 = vpack.c.b16 %v1609, %v1608
      %1626 = vmatpush.bf16.msra.mxu0 %v1617
      %1627 = vmatpush.bf16.msra.mxu0 %v1616
      %1628 = vmatpush.bf16.msra.mxu0 %v1615
      %1629 = vmatpush.bf16.msra.mxu0 %v1614
      %1630 = vmatpush.bf16.msra.mxu0 %v1613
      %1631 = vmatpush.bf16.msra.mxu0 %v1612
      %1632 = vmatpush.bf16.msra.mxu0 %v1611
      %1633 = vmatpush.bf16.msra.mxu0 %v1610
      %1634 = vmatmul.bf16.gmra.mxu0 %v1127
      %v1635 = vpop.f32.mrf.mxu0
      %v1636 = vadd.f32 0.0, %v1635
      %v1637 = vpop.f32.mrf.mxu0
      %v1638 = vadd.f32 0.0, %v1637
      %1639 = vmatmul.bf16.gmra.mxu0 %v1128
      %v1640 = vpop.f32.mrf.mxu0
      %v1641 = vadd.f32 0.0, %v1640
      %v1642 = vpop.f32.mrf.mxu0
      %v1643 = vadd.f32 0.0, %v1642
      %1644 = vmatmul.bf16.gmra.mxu0 %v1129
      %v1645 = vpop.f32.mrf.mxu0
      %v1646 = vadd.f32 0.0, %v1645
      %v1647 = vpop.f32.mrf.mxu0
      %v1648 = vadd.f32 0.0, %v1647
      %1649 = vmatmul.bf16.gmra.mxu0 %v1130
      %v1650 = vpop.f32.mrf.mxu0
      %v1651 = vadd.f32 0.0, %v1650
      %v1652 = vpop.f32.mrf.mxu0
      %v1653 = vadd.f32 0.0, %v1652
      %1654 = vmatmul.bf16.gmra.mxu0 %v1131
      %v1655 = vpop.f32.mrf.mxu0
      %v1656 = vadd.f32 0.0, %v1655
      %v1657 = vpop.f32.mrf.mxu0
      %v1658 = vadd.f32 0.0, %v1657
      %1659 = vmatmul.bf16.gmra.mxu0 %v1132
      %v1660 = vpop.f32.mrf.mxu0
      %v1661 = vadd.f32 0.0, %v1660
      %v1662 = vpop.f32.mrf.mxu0
      %v1663 = vadd.f32 0.0, %v1662
      %1664 = vmatmul.bf16.gmra.mxu0 %v1133
      %v1665 = vpop.f32.mrf.mxu0
      %v1666 = vadd.f32 0.0, %v1665
      %v1667 = vpop.f32.mrf.mxu0
      %v1668 = vadd.f32 0.0, %v1667
      %1669 = vmatmul.bf16.gmra.mxu0 %v1576
      %v1670 = vpop.f32.mrf.mxu0
      %v1671 = vadd.f32 0.0, %v1670
      %v1672 = vpop.f32.mrf.mxu0
      %v1673 = vadd.f32 0.0, %v1672
      %1674 = vdwg.mxu0
      %v1675 = vadd.f32 %v1533, %v1636
      %v1676 = vadd.f32 %v1534, %v1638
      %v1677 = vadd.f32 %v1535, %v1641
      %v1678 = vadd.f32 %v1536, %v1643
      %v1679 = vadd.f32 %v1537, %v1646
      %v1680 = vadd.f32 %v1538, %v1648
      %v1681 = vadd.f32 %v1539, %v1651
      %v1682 = vadd.f32 %v1540, %v1653
      %v1683 = vadd.f32 %v1541, %v1656
      %v1684 = vadd.f32 %v1542, %v1658
      %v1685 = vadd.f32 %v1543, %v1661
      %v1686 = vadd.f32 %v1544, %v1663
      %v1687 = vadd.f32 %v1545, %v1666
      %v1688 = vadd.f32 %v1546, %v1668
      %v1689 = vadd.f32 %v1547, %v1671
      %v1690 = vadd.f32 %v1548, %v1673
      %s1691 = scalar_lea.vmem %s323, 384
      %v1692 = vld [vmem:[%s1691] sm:$0xf]
      %v1693 = vld [vmem:[%s1691 + $0x4] sm:$0xf]
      %v1694 = vld [vmem:[%s1691 + $0x8] sm:$0xf]
      %v1695 = vld [vmem:[%s1691 + $0xc] sm:$0xf]
      %v1696 = vld [vmem:[%s1691 + $0x10] sm:$0xf]
      %v1697 = vld [vmem:[%s1691 + $0x14] sm:$0xf]
      %v1698 = vld [vmem:[%s1691 + $0x18] sm:$0xf]
      %v1699 = vld [vmem:[%s1691 + $0x1c] sm:$0xf]
      %v1700 = vld [vmem:[%s1691 + $0x20] sm:$0xf]
      %v1701 = vld [vmem:[%s1691 + $0x24] sm:$0xf]
      %v1702 = vld [vmem:[%s1691 + $0x28] sm:$0xf]
      %v1703 = vld [vmem:[%s1691 + $0x2c] sm:$0xf]
      %v1704 = vld [vmem:[%s1691 + $0x30] sm:$0xf]
      %v1705 = vld [vmem:[%s1691 + $0x34] sm:$0xf]
      %v1706 = vld [vmem:[%s1691 + $0x38] sm:$0xf]
      %v1707 = vld [vmem:[%s1691 + $0x3c] sm:$0xf]
      %v1710 = vunpack.c.l.b16 %v521
      %v1711 = vunpack.c.l.b16 %v522
      %v1712 = vpack.c.b16 %v1711, %v1710
      %v1730 = vunpack.c.l.b16 %v1692
      %v1731 = vunpack.c.l.b16 %v1693
      %v1732 = vunpack.c.l.b16 %v1694
      %v1733 = vunpack.c.l.b16 %v1695
      %v1734 = vunpack.c.l.b16 %v1696
      %v1735 = vunpack.c.l.b16 %v1697
      %v1736 = vunpack.c.l.b16 %v1698
      %v1737 = vunpack.c.l.b16 %v1699
      %v1738 = vunpack.c.l.b16 %v1700
      %v1739 = vunpack.c.l.b16 %v1701
      %v1740 = vunpack.c.l.b16 %v1702
      %v1741 = vunpack.c.l.b16 %v1703
      %v1742 = vunpack.c.l.b16 %v1704
      %v1743 = vunpack.c.l.b16 %v1705
      %v1744 = vunpack.c.l.b16 %v1706
      %v1745 = vunpack.c.l.b16 %v1707
      %v1746 = vpack.c.b16 %v1731, %v1730
      %v1747 = vpack.c.b16 %v1733, %v1732
      %v1748 = vpack.c.b16 %v1735, %v1734
      %v1749 = vpack.c.b16 %v1737, %v1736
      %v1750 = vpack.c.b16 %v1739, %v1738
      %v1751 = vpack.c.b16 %v1741, %v1740
      %v1752 = vpack.c.b16 %v1743, %v1742
      %v1753 = vpack.c.b16 %v1745, %v1744
      %1762 = vmatpush.bf16.msra.mxu0 %v1753
      %1763 = vmatpush.bf16.msra.mxu0 %v1752
      %1764 = vmatpush.bf16.msra.mxu0 %v1751
      %1765 = vmatpush.bf16.msra.mxu0 %v1750
      %1766 = vmatpush.bf16.msra.mxu0 %v1749
      %1767 = vmatpush.bf16.msra.mxu0 %v1748
      %1768 = vmatpush.bf16.msra.mxu0 %v1747
      %1769 = vmatpush.bf16.msra.mxu0 %v1746
      %1770 = vmatmul.bf16.gmra.mxu0 %v915
      %v1771 = vpop.f32.mrf.mxu0
      %v1772 = vadd.f32 0.0, %v1771
      %v1773 = vpop.f32.mrf.mxu0
      %v1774 = vadd.f32 0.0, %v1773
      %1775 = vmatmul.bf16.gmra.mxu0 %v916
      %v1776 = vpop.f32.mrf.mxu0
      %v1777 = vadd.f32 0.0, %v1776
      %v1778 = vpop.f32.mrf.mxu0
      %v1779 = vadd.f32 0.0, %v1778
      %1780 = vmatmul.bf16.gmra.mxu0 %v917
      %v1781 = vpop.f32.mrf.mxu0
      %v1782 = vadd.f32 0.0, %v1781
      %v1783 = vpop.f32.mrf.mxu0
      %v1784 = vadd.f32 0.0, %v1783
      %1785 = vmatmul.bf16.gmra.mxu0 %v918
      %v1786 = vpop.f32.mrf.mxu0
      %v1787 = vadd.f32 0.0, %v1786
      %v1788 = vpop.f32.mrf.mxu0
      %v1789 = vadd.f32 0.0, %v1788
      %1790 = vmatmul.bf16.gmra.mxu0 %v919
      %v1791 = vpop.f32.mrf.mxu0
      %v1792 = vadd.f32 0.0, %v1791
      %v1793 = vpop.f32.mrf.mxu0
      %v1794 = vadd.f32 0.0, %v1793
      %1795 = vmatmul.bf16.gmra.mxu0 %v920
      %v1796 = vpop.f32.mrf.mxu0
      %v1797 = vadd.f32 0.0, %v1796
      %v1798 = vpop.f32.mrf.mxu0
      %v1799 = vadd.f32 0.0, %v1798
      %1800 = vmatmul.bf16.gmra.mxu0 %v1276
      %v1801 = vpop.f32.mrf.mxu0
      %v1802 = vadd.f32 0.0, %v1801
      %v1803 = vpop.f32.mrf.mxu0
      %v1804 = vadd.f32 0.0, %v1803
      %1805 = vmatmul.bf16.gmra.mxu0 %v1712
      %v1806 = vpop.f32.mrf.mxu0
      %v1807 = vadd.f32 0.0, %v1806
      %v1808 = vpop.f32.mrf.mxu0
      %v1809 = vadd.f32 0.0, %v1808
      %1810 = vdwg.mxu0
      %v1811 = vadd.f32 %v1675, %v1772
      %v1812 = vadd.f32 %v1676, %v1774
      %v1813 = vadd.f32 %v1677, %v1777
      %v1814 = vadd.f32 %v1678, %v1779
      %v1815 = vadd.f32 %v1679, %v1782
      %v1816 = vadd.f32 %v1680, %v1784
      %v1817 = vadd.f32 %v1681, %v1787
      %v1818 = vadd.f32 %v1682, %v1789
      %v1819 = vadd.f32 %v1683, %v1792
      %v1820 = vadd.f32 %v1684, %v1794
      %v1821 = vadd.f32 %v1685, %v1797
      %v1822 = vadd.f32 %v1686, %v1799
      %v1823 = vadd.f32 %v1687, %v1802
      %v1824 = vadd.f32 %v1688, %v1804
      %v1825 = vadd.f32 %v1689, %v1807
      %v1826 = vadd.f32 %v1690, %v1809
      %v1828 = vshrl.u32 %v521, 16
      %v1830 = vrot.slane %v1828, 4
      %v1831 = vshll.u32 %v521, 16
      %v1833 = vrot.slane %v1831, 5
      %v1834 = vor.u32 %v1830, %v1833
      %v1835 = vrot.slane %v1834, 4
      %v1837 = vshll.u32 %v522, 16
      %v1839 = vrot.slane %v1837, 5
      %v1840 = vsel %vm542, %v1835, %v1839
      %v1841 = vshrl.u32 %v522, 16
      %v1843 = vrot.slane %v1841, 4
      %v1844 = vor.u32 %v1843, %v1839
      %v1845 = vrot.slane %v1844, 4
      %v1847 = vshll.u32 %v523, 16
      %v1849 = vrot.slane %v1847, 5
      %v1850 = vsel %vm542, %v1845, %v1849
      %s1851 = scalar_lea.vmem %s323, 448
      %v1852 = vld [vmem:[%s1851] sm:$0xf]
      %v1853 = vld [vmem:[%s1851 + $0x4] sm:$0xf]
      %v1854 = vld [vmem:[%s1851 + $0x8] sm:$0xf]
      %v1855 = vld [vmem:[%s1851 + $0xc] sm:$0xf]
      %v1856 = vld [vmem:[%s1851 + $0x10] sm:$0xf]
      %v1857 = vld [vmem:[%s1851 + $0x14] sm:$0xf]
      %v1858 = vld [vmem:[%s1851 + $0x18] sm:$0xf]
      %v1859 = vld [vmem:[%s1851 + $0x1c] sm:$0xf]
      %v1860 = vld [vmem:[%s1851 + $0x20] sm:$0xf]
      %v1861 = vld [vmem:[%s1851 + $0x24] sm:$0xf]
      %v1862 = vld [vmem:[%s1851 + $0x28] sm:$0xf]
      %v1863 = vld [vmem:[%s1851 + $0x2c] sm:$0xf]
      %v1864 = vld [vmem:[%s1851 + $0x30] sm:$0xf]
      %v1865 = vld [vmem:[%s1851 + $0x34] sm:$0xf]
      %v1866 = vld [vmem:[%s1851 + $0x38] sm:$0xf]
      %v1867 = vld [vmem:[%s1851 + $0x3c] sm:$0xf]
      %v1868 = vunpack.c.l.b16 %v1840
      %v1869 = vunpack.c.l.b16 %v1850
      %v1870 = vpack.c.b16 %v1869, %v1868
      %v1888 = vunpack.c.l.b16 %v1852
      %v1889 = vunpack.c.l.b16 %v1853
      %v1890 = vunpack.c.l.b16 %v1854
      %v1891 = vunpack.c.l.b16 %v1855
      %v1892 = vunpack.c.l.b16 %v1856
      %v1893 = vunpack.c.l.b16 %v1857
      %v1894 = vunpack.c.l.b16 %v1858
      %v1895 = vunpack.c.l.b16 %v1859
      %v1896 = vunpack.c.l.b16 %v1860
      %v1897 = vunpack.c.l.b16 %v1861
      %v1898 = vunpack.c.l.b16 %v1862
      %v1899 = vunpack.c.l.b16 %v1863
      %v1900 = vunpack.c.l.b16 %v1864
      %v1901 = vunpack.c.l.b16 %v1865
      %v1902 = vunpack.c.l.b16 %v1866
      %v1903 = vunpack.c.l.b16 %v1867
      %v1904 = vpack.c.b16 %v1889, %v1888
      %v1905 = vpack.c.b16 %v1891, %v1890
      %v1906 = vpack.c.b16 %v1893, %v1892
      %v1907 = vpack.c.b16 %v1895, %v1894
      %v1908 = vpack.c.b16 %v1897, %v1896
      %v1909 = vpack.c.b16 %v1899, %v1898
      %v1910 = vpack.c.b16 %v1901, %v1900
      %v1911 = vpack.c.b16 %v1903, %v1902
      %1920 = vmatpush.bf16.msra.mxu0 %v1911
      %1921 = vmatpush.bf16.msra.mxu0 %v1910
      %1922 = vmatpush.bf16.msra.mxu0 %v1909
      %1923 = vmatpush.bf16.msra.mxu0 %v1908
      %1924 = vmatpush.bf16.msra.mxu0 %v1907
      %1925 = vmatpush.bf16.msra.mxu0 %v1906
      %1926 = vmatpush.bf16.msra.mxu0 %v1905
      %1927 = vmatpush.bf16.msra.mxu0 %v1904
      %1928 = vmatmul.bf16.gmra.mxu0 %v770
      %v1929 = vpop.f32.mrf.mxu0
      %v1930 = vadd.f32 0.0, %v1929
      %v1931 = vpop.f32.mrf.mxu0
      %v1932 = vadd.f32 0.0, %v1931
      %1933 = vmatmul.bf16.gmra.mxu0 %v771
      %v1934 = vpop.f32.mrf.mxu0
      %v1935 = vadd.f32 0.0, %v1934
      %v1936 = vpop.f32.mrf.mxu0
      %v1937 = vadd.f32 0.0, %v1936
      %1938 = vmatmul.bf16.gmra.mxu0 %v772
      %v1939 = vpop.f32.mrf.mxu0
      %v1940 = vadd.f32 0.0, %v1939
      %v1941 = vpop.f32.mrf.mxu0
      %v1942 = vadd.f32 0.0, %v1941
      %1943 = vmatmul.bf16.gmra.mxu0 %v773
      %v1944 = vpop.f32.mrf.mxu0
      %v1945 = vadd.f32 0.0, %v1944
      %v1946 = vpop.f32.mrf.mxu0
      %v1947 = vadd.f32 0.0, %v1946
      %1948 = vmatmul.bf16.gmra.mxu0 %v774
      %v1949 = vpop.f32.mrf.mxu0
      %v1950 = vadd.f32 0.0, %v1949
      %v1951 = vpop.f32.mrf.mxu0
      %v1952 = vadd.f32 0.0, %v1951
      %1953 = vmatmul.bf16.gmra.mxu0 %v775
      %v1954 = vpop.f32.mrf.mxu0
      %v1955 = vadd.f32 0.0, %v1954
      %v1956 = vpop.f32.mrf.mxu0
      %v1957 = vadd.f32 0.0, %v1956
      %1958 = vmatmul.bf16.gmra.mxu0 %v1434
      %v1959 = vpop.f32.mrf.mxu0
      %v1960 = vadd.f32 0.0, %v1959
      %v1961 = vpop.f32.mrf.mxu0
      %v1962 = vadd.f32 0.0, %v1961
      %1963 = vmatmul.bf16.gmra.mxu0 %v1870
      %v1964 = vpop.f32.mrf.mxu0
      %v1965 = vadd.f32 0.0, %v1964
      %v1966 = vpop.f32.mrf.mxu0
      %v1967 = vadd.f32 0.0, %v1966
      %1968 = vdwg.mxu0
      %v1969 = vadd.f32 %v1811, %v1930
      %v1970 = vadd.f32 %v1812, %v1932
      %v1971 = vadd.f32 %v1813, %v1935
      %v1972 = vadd.f32 %v1814, %v1937
      %v1973 = vadd.f32 %v1815, %v1940
      %v1974 = vadd.f32 %v1816, %v1942
      %v1975 = vadd.f32 %v1817, %v1945
      %v1976 = vadd.f32 %v1818, %v1947
      %v1977 = vadd.f32 %v1819, %v1950
      %v1978 = vadd.f32 %v1820, %v1952
      %v1979 = vadd.f32 %v1821, %v1955
      %v1980 = vadd.f32 %v1822, %v1957
      %v1981 = vadd.f32 %v1823, %v1960
      %v1982 = vadd.f32 %v1824, %v1962
      %v1983 = vadd.f32 %v1825, %v1965
      %v1984 = vadd.f32 %v1826, %v1967
      %v1986 = vrot.slane %v521, 5
      %v1987 = vrot.slane %v1986, 4
      %v1988 = vrot.slane %v522, 5
      %v1989 = vsel %vm1036, %v1987, %v1988
      %v1990 = vrot.slane %v1988, 4
      %v1991 = vrot.slane %v523, 5
      %v1992 = vsel %vm1036, %v1990, %v1991
      %s1993 = scalar_lea.vmem %s323, 512
      %v1994 = vld [vmem:[%s1993] sm:$0xf]
      %v1995 = vld [vmem:[%s1993 + $0x4] sm:$0xf]
      %v1996 = vld [vmem:[%s1993 + $0x8] sm:$0xf]
      %v1997 = vld [vmem:[%s1993 + $0xc] sm:$0xf]
      %v1998 = vld [vmem:[%s1993 + $0x10] sm:$0xf]
      %v1999 = vld [vmem:[%s1993 + $0x14] sm:$0xf]
      %v2000 = vld [vmem:[%s1993 + $0x18] sm:$0xf]
      %v2001 = vld [vmem:[%s1993 + $0x1c] sm:$0xf]
      %v2002 = vld [vmem:[%s1993 + $0x20] sm:$0xf]
      %v2003 = vld [vmem:[%s1993 + $0x24] sm:$0xf]
      %v2004 = vld [vmem:[%s1993 + $0x28] sm:$0xf]
      %v2005 = vld [vmem:[%s1993 + $0x2c] sm:$0xf]
      %v2006 = vld [vmem:[%s1993 + $0x30] sm:$0xf]
      %v2007 = vld [vmem:[%s1993 + $0x34] sm:$0xf]
      %v2008 = vld [vmem:[%s1993 + $0x38] sm:$0xf]
      %v2009 = vld [vmem:[%s1993 + $0x3c] sm:$0xf]
      %v2010 = vunpack.c.l.b16 %v1989
      %v2011 = vunpack.c.l.b16 %v1992
      %v2012 = vpack.c.b16 %v2011, %v2010
      %v2030 = vunpack.c.l.b16 %v1994
      %v2031 = vunpack.c.l.b16 %v1995
      %v2032 = vunpack.c.l.b16 %v1996
      %v2033 = vunpack.c.l.b16 %v1997
      %v2034 = vunpack.c.l.b16 %v1998
      %v2035 = vunpack.c.l.b16 %v1999
      %v2036 = vunpack.c.l.b16 %v2000
      %v2037 = vunpack.c.l.b16 %v2001
      %v2038 = vunpack.c.l.b16 %v2002
      %v2039 = vunpack.c.l.b16 %v2003
      %v2040 = vunpack.c.l.b16 %v2004
      %v2041 = vunpack.c.l.b16 %v2005
      %v2042 = vunpack.c.l.b16 %v2006
      %v2043 = vunpack.c.l.b16 %v2007
      %v2044 = vunpack.c.l.b16 %v2008
      %v2045 = vunpack.c.l.b16 %v2009
      %v2046 = vpack.c.b16 %v2031, %v2030
      %v2047 = vpack.c.b16 %v2033, %v2032
      %v2048 = vpack.c.b16 %v2035, %v2034
      %v2049 = vpack.c.b16 %v2037, %v2036
      %v2050 = vpack.c.b16 %v2039, %v2038
      %v2051 = vpack.c.b16 %v2041, %v2040
      %v2052 = vpack.c.b16 %v2043, %v2042
      %v2053 = vpack.c.b16 %v2045, %v2044
      %2062 = vmatpush.bf16.msra.mxu0 %v2053
      %2063 = vmatpush.bf16.msra.mxu0 %v2052
      %2064 = vmatpush.bf16.msra.mxu0 %v2051
      %2065 = vmatpush.bf16.msra.mxu0 %v2050
      %2066 = vmatpush.bf16.msra.mxu0 %v2049
      %2067 = vmatpush.bf16.msra.mxu0 %v2048
      %2068 = vmatpush.bf16.msra.mxu0 %v2047
      %2069 = vmatpush.bf16.msra.mxu0 %v2046
      %2070 = vmatmul.bf16.gmra.mxu0 %v1128
      %v2071 = vpop.f32.mrf.mxu0
      %v2072 = vadd.f32 0.0, %v2071
      %v2073 = vpop.f32.mrf.mxu0
      %v2074 = vadd.f32 0.0, %v2073
      %2075 = vmatmul.bf16.gmra.mxu0 %v1129
      %v2076 = vpop.f32.mrf.mxu0
      %v2077 = vadd.f32 0.0, %v2076
      %v2078 = vpop.f32.mrf.mxu0
      %v2079 = vadd.f32 0.0, %v2078
      %2080 = vmatmul.bf16.gmra.mxu0 %v1130
      %v2081 = vpop.f32.mrf.mxu0
      %v2082 = vadd.f32 0.0, %v2081
      %v2083 = vpop.f32.mrf.mxu0
      %v2084 = vadd.f32 0.0, %v2083
      %2085 = vmatmul.bf16.gmra.mxu0 %v1131
      %v2086 = vpop.f32.mrf.mxu0
      %v2087 = vadd.f32 0.0, %v2086
      %v2088 = vpop.f32.mrf.mxu0
      %v2089 = vadd.f32 0.0, %v2088
      %2090 = vmatmul.bf16.gmra.mxu0 %v1132
      %v2091 = vpop.f32.mrf.mxu0
      %v2092 = vadd.f32 0.0, %v2091
      %v2093 = vpop.f32.mrf.mxu0
      %v2094 = vadd.f32 0.0, %v2093
      %2095 = vmatmul.bf16.gmra.mxu0 %v1133
      %v2096 = vpop.f32.mrf.mxu0
      %v2097 = vadd.f32 0.0, %v2096
      %v2098 = vpop.f32.mrf.mxu0
      %v2099 = vadd.f32 0.0, %v2098
      %2100 = vmatmul.bf16.gmra.mxu0 %v1576
      %v2101 = vpop.f32.mrf.mxu0
      %v2102 = vadd.f32 0.0, %v2101
      %v2103 = vpop.f32.mrf.mxu0
      %v2104 = vadd.f32 0.0, %v2103
      %2105 = vmatmul.bf16.gmra.mxu0 %v2012
      %v2106 = vpop.f32.mrf.mxu0
      %v2107 = vadd.f32 0.0, %v2106
      %v2108 = vpop.f32.mrf.mxu0
      %v2109 = vadd.f32 0.0, %v2108
      %2110 = vdwg.mxu0
      %v2111 = vadd.f32 %v1969, %v2072
      %v2112 = vadd.f32 %v1970, %v2074
      %v2113 = vadd.f32 %v1971, %v2077
      %v2114 = vadd.f32 %v1972, %v2079
      %v2115 = vadd.f32 %v1973, %v2082
      %v2116 = vadd.f32 %v1974, %v2084
      %v2117 = vadd.f32 %v1975, %v2087
      %v2118 = vadd.f32 %v1976, %v2089
      %v2119 = vadd.f32 %v1977, %v2092
      %v2120 = vadd.f32 %v1978, %v2094
      %v2121 = vadd.f32 %v1979, %v2097
      %v2122 = vadd.f32 %v1980, %v2099
      %v2123 = vadd.f32 %v1981, %v2102
      %v2124 = vadd.f32 %v1982, %v2104
      %v2125 = vadd.f32 %v1983, %v2107
      %v2126 = vadd.f32 %v1984, %v2109
      %v2127 = vld [vmem:[%s326] sm:$0x1]
      %v2129 = vperm.slane %v2127, 0
      %v2131 = vmul.f32 %v2111, %v2129
      %v2132 = vmul.f32 %v2112, %v2129
      %v2133 = vmul.f32 %v2113, %v2129
      %v2134 = vmul.f32 %v2114, %v2129
      %v2135 = vmul.f32 %v2115, %v2129
      %v2136 = vmul.f32 %v2116, %v2129
      %v2137 = vmul.f32 %v2117, %v2129
      %v2138 = vmul.f32 %v2118, %v2129
      %v2139 = vmul.f32 %v2119, %v2129
      %v2140 = vmul.f32 %v2120, %v2129
      %v2141 = vmul.f32 %v2121, %v2129
      %v2142 = vmul.f32 %v2122, %v2129
      %v2143 = vmul.f32 %v2123, %v2129
      %v2144 = vmul.f32 %v2124, %v2129
      %v2145 = vmul.f32 %v2125, %v2129
      %v2146 = vmul.f32 %v2126, %v2129
      %v2147 = vld [vmem:[%s329] sm:$0x1]
      %v2149 = vperm.slane %v2147, 0
      %v2151 = vadd.f32 %v2131, %v2149
      %v2152 = vadd.f32 %v2132, %v2149
      %v2153 = vadd.f32 %v2133, %v2149
      %v2154 = vadd.f32 %v2134, %v2149
      %v2155 = vadd.f32 %v2135, %v2149
      %v2156 = vadd.f32 %v2136, %v2149
      %v2157 = vadd.f32 %v2137, %v2149
      %v2158 = vadd.f32 %v2138, %v2149
      %v2159 = vadd.f32 %v2139, %v2149
      %v2160 = vadd.f32 %v2140, %v2149
      %v2161 = vadd.f32 %v2141, %v2149
      %v2162 = vadd.f32 %v2142, %v2149
      %v2163 = vadd.f32 %v2143, %v2149
      %v2164 = vadd.f32 %v2144, %v2149
      %v2165 = vadd.f32 %v2145, %v2149
      %v2166 = vadd.f32 %v2146, %v2149
      %v2167 = vmax.f32 %v2151, 0.0
      %v2168 = vmax.f32 %v2152, 0.0
      %v2169 = vmax.f32 %v2153, 0.0
      %v2170 = vmax.f32 %v2154, 0.0
      %v2171 = vmax.f32 %v2155, 0.0
      %v2172 = vmax.f32 %v2156, 0.0
      %v2173 = vmax.f32 %v2157, 0.0
      %v2174 = vmax.f32 %v2158, 0.0
      %v2175 = vmax.f32 %v2159, 0.0
      %v2176 = vmax.f32 %v2160, 0.0
      %v2177 = vmax.f32 %v2161, 0.0
      %v2178 = vmax.f32 %v2162, 0.0
      %v2179 = vmax.f32 %v2163, 0.0
      %v2180 = vmax.f32 %v2164, 0.0
      %v2181 = vmax.f32 %v2165, 0.0
      %v2182 = vmax.f32 %v2166, 0.0
      %v2183 = vlaneseq
      %v2184 = vshrl.u32 %v2183, 7
      %v2185 = vadd.s32 %v2184, 8
      %vm2186 = vcmp.lt.s32.totalorder %v2184, 8
      %vm2187 = vcmp.lt.s32.totalorder %v2185, 8
      %v2188 = vsel %vm2186, %v2167, 0.0
      %v2189 = vsel %vm2187, %v2168, 0.0
      %v2190 = vsel %vm2186, %v2169, 0.0
      %v2191 = vsel %vm2187, %v2170, 0.0
      %v2192 = vsel %vm2186, %v2171, 0.0
      %v2193 = vsel %vm2187, %v2172, 0.0
      %v2194 = vsel %vm2186, %v2173, 0.0
      %v2195 = vsel %vm2187, %v2174, 0.0
      %v2196 = vsel %vm2186, %v2175, 0.0
      %v2197 = vsel %vm2187, %v2176, 0.0
      %v2198 = vsel %vm2186, %v2177, 0.0
      %v2199 = vsel %vm2187, %v2178, 0.0
      %v2200 = vsel %vm2186, %v2179, 0.0
      %v2201 = vsel %vm2187, %v2180, 0.0
      %v2202 = vsel %vm2186, %v2181, 0.0
      %v2203 = vsel %vm2187, %v2182, 0.0
      %v2204 = vpack.c.bf16 %v2188, %v2188
      %v2205 = vpack.c.bf16 %v2189, %v2189
      %v2206 = vpack.c.bf16 %v2190, %v2190
      %v2207 = vpack.c.bf16 %v2191, %v2191
      %v2208 = vpack.c.bf16 %v2192, %v2192
      %v2209 = vpack.c.bf16 %v2193, %v2193
      %v2210 = vpack.c.bf16 %v2194, %v2194
      %v2211 = vpack.c.bf16 %v2195, %v2195
      %v2212 = vpack.c.bf16 %v2196, %v2196
      %v2213 = vpack.c.bf16 %v2197, %v2197
      %v2214 = vpack.c.bf16 %v2198, %v2198
      %v2215 = vpack.c.bf16 %v2199, %v2199
      %v2216 = vpack.c.bf16 %v2200, %v2200
      %v2217 = vpack.c.bf16 %v2201, %v2201
      %v2218 = vpack.c.bf16 %v2202, %v2202
      %v2219 = vpack.c.bf16 %v2203, %v2203
      %2220 = vst [vmem:[%s342] sm:$0xf] %v2204
      %2221 = vst [vmem:[%s342 + $0x4] sm:$0xf] %v2205
      %2222 = vst [vmem:[%s342 + $0x8] sm:$0xf] %v2206
      %2223 = vst [vmem:[%s342 + $0xc] sm:$0xf] %v2207
      %2224 = vst [vmem:[%s342 + $0x10] sm:$0xf] %v2208
      %2225 = vst [vmem:[%s342 + $0x14] sm:$0xf] %v2209
      %2226 = vst [vmem:[%s342 + $0x18] sm:$0xf] %v2210
      %2227 = vst [vmem:[%s342 + $0x1c] sm:$0xf] %v2211
      %2228 = vst [vmem:[%s342 + $0x20] sm:$0xf] %v2212
      %2229 = vst [vmem:[%s342 + $0x24] sm:$0xf] %v2213
      %2230 = vst [vmem:[%s342 + $0x28] sm:$0xf] %v2214
      %2231 = vst [vmem:[%s342 + $0x2c] sm:$0xf] %v2215
      %2232 = vst [vmem:[%s342 + $0x30] sm:$0xf] %v2216
      %2233 = vst [vmem:[%s342 + $0x34] sm:$0xf] %v2217
      %2234 = vst [vmem:[%s342 + $0x38] sm:$0xf] %v2218
      %2235 = vst [vmem:[%s342 + $0x3c] sm:$0xf] %v2219
      %s2236 = smul.u32 8, %s22
      %p2237 = scmp.lt.s32.totalorder %s21, 1
      %s2238 = scalar_select %p2237, %s21, 1
      %p2239 = scmp.lt.s32.totalorder %s2236, 7
      %s2240 = scalar_select %p2239, %s2236, 7
      %p2241 = scmp.lt.s32.totalorder %s23, 0
      %s2242 = scalar_select %p2241, %s23, 0
      %s2243 = smul.addr %s2240, 2
      %s2244 = sadd.s32 %s2242, %s2243
      %s2245 = smul.addr %s2238, 16
      %s2246 = sadd.s32 %s2244, %s2245
      %s2247 = smul.addr %s2246, 4
      %s2248 = scalar_lea.vmem %s5, %s2247
      // Predicated region
      $region41: #{cam_forward.7} parent=39 // pred_check
        %p2249 = pneg %p191
      $region42: #{cam_forward.7} parent=39 // pred_check_branch
        %2251 = sbr.rel (%p2249) target = $region44
      $region43: #{cam_forward.7} parent=39 // pred_region
        %s2252 = smul.u32 8, %s22
      $region44: #{cam_forward.7} parent=39 // pred_fallthru
        _
    $region40: #{cam_forward.7} parent=5 // pred_fallthru
      _
    %p2253 = scmp.le.s32.totalorder 2, %s11
    // Predicated region
    $region45: #{cam_forward.7} parent=5 // pred_check
      %p2254 = pneg %p2253
    $region46: #{cam_forward.7} parent=5 // pred_check_branch
      %2256 = sbr.rel (%p2254) target = $region48
    $region47: #{cam_forward.7} parent=5 // pred_region
      %s2257 = ssub.s32 %s11, 2
      // Predicated region
      $region49: #{cam_forward.7} parent=47 // pred_check
        %p2258 = pneg %p197
      $region50: #{cam_forward.7} parent=47 // pred_check_branch
        %2260 = sbr.rel (%p2258) target = $region52
      $region51: #{cam_forward.7} parent=47 // pred_region
        %s2261 = smul.u32 8, %s25
        %p2262 = scmp.lt.s32.totalorder %s24, 1
        %s2263 = scalar_select %p2262, %s24, 1
        %p2264 = scmp.lt.s32.totalorder %s2261, 7
        %s2265 = scalar_select %p2264, %s2261, 7
        %p2266 = scmp.lt.s32.totalorder %s26, 0
        %s2267 = scalar_select %p2266, %s26, 0
        %s2268 = smul.addr %s2265, 2
        %s2269 = sadd.s32 %s2267, %s2268
        %s2270 = smul.addr %s2263, 16
        %s2271 = sadd.s32 %s2269, %s2270
        %s2272 = smul.addr %s2271, 4
        %s2273 = scalar_lea.vmem %s5, %s2272
      $region52: #{cam_forward.7} parent=47 // pred_fallthru
        _
    $region48: #{cam_forward.7} parent=5 // pred_fallthru
      _
  $region6: #{cam_forward.7} parent=0 // loop_footer
    %s15 = sadd.s32 1, %s11
  $region7: #{cam_forward.7} parent=0 // loop_footer_branch
    %10 = sbr.rel target = $region3
  $region8: #{cam_forward.7} parent=0 // loop_exit
    _

// kernel: cam_forward.5
$region0: #{cam_forward.5}
  #allocation0 [shape = 'u32[]', space=smem, size = 0x4, offset = 0x4, fixed_abs, tag = 'smem constant byte address 0x4 - core index']
  #allocation1 [shape = 'u32[72,128]{1,0:T(1,128)}', space=vmem, size = 0x9000, scoped, tag = 'internal scratch']
  %s0 = inlined_call_operand.vmem [shape: bf16[2,18,18,8], index: 0, kind: input, shape index: {}]
  %s1 = inlined_call_operand.vmem [shape: bf16[2,18,18,8], index: 1, kind: input, shape index: {}]
  %s2 = inlined_call_operand.vmem [shape: bf16[72,128], index: 2, kind: input, shape index: {}]
  %s3 = inlined_call_operand.vmem [shape: f32[1,128], index: 3, kind: input, shape index: {}]
  %s4 = inlined_call_operand.vmem [shape: f32[1,128], index: 4, kind: input, shape index: {}]
  %s5 = inlined_call_operand.vmem [shape: bf16[2,16,16,128], index: 5, kind: output, shape index: {}]
  %s6 = sld [smem:[#allocation0]]
  $region53: #{cam_forward.5} parent=0
    _
  %s8 = ssub.s32 1, %s6
  %s9 = scalar_select 0, %s8, %s6
  loop: start=0, step=1, limit=4
  $region2: #{cam_forward.5} parent=0 // loop_pre_header
    _
  $region3: #{cam_forward.5} parent=0 // loop_header
    %s11 = sphi 0, %s15
    %p12 = scmp.ge.s32.totalorder %s11, 4
    %s18 = sphi 0, %s37
    %s19 = sphi 0, %s33
    %s20 = sphi 0, %s29
    %s21 = sphi 0, %s18
    %s22 = sphi 0, %s19
    %s23 = sphi 0, %s20
    %s24 = sphi 0, %s21
    %s25 = sphi 0, %s22
    %s26 = sphi 0, %s23
    %s42 = sphi 0, %s44
    %s45 = sphi 0, %s42
    %s46 = sphi 0, %s45
    %s62 = sphi 0, %s46
    %s70 = sphi 0, %s72
    %s73 = sphi 0, %s70
    %s74 = sphi 0, %s73
    %s90 = sphi 0, %s74
    %s96 = sphi 0, %s98
    %s99 = sphi 0, %s96
    %s100 = sphi 0, %s99
    %s116 = sphi 0, %s100
    %s122 = sphi 0, %s124
    %s125 = sphi 0, %s122
    %s126 = sphi 0, %s125
    %s142 = sphi 0, %s126
    %s148 = sphi 0, %s150
    %s151 = sphi 0, %s148
    %s152 = sphi 0, %s151
    %s168 = sphi 0, %s152
    %s178 = sphi 0, %s180
    %s181 = sphi 0, %s178
    %s182 = sphi 0, %s181
    %s198 = sphi 0, %s182
  $region4: #{cam_forward.5} parent=0 // loop_header_branch
    %14 = sbr.rel (%p12) target = $region8
  $region5: #{cam_forward.5} parent=0 // loop_body
    %s16 = ssub.s32 %s11, 1
    %s17 = ssub.s32 %s11, 2
    %s27 = sadd.s32 1, %s20
    %p28 = scmp.ge.s32.totalorder %s27, 1
    %s29 = scalar_select %p28, 0, %s27
    %s30 = sadd.s32 1, %s19
    %s31 = scalar_select %p28, %s30, %s19
    %p32 = scmp.ge.s32.totalorder %s31, 1
    %s33 = scalar_select %p32, 0, %s31
    %s34 = sadd.s32 1, %s18
    %s35 = scalar_select %p32, %s34, %s18
    %p36 = scmp.ge.s32.totalorder %s35, 2
    %s37 = scalar_select %p36, 0, %s35
    %s38 = sadd.s32 %s18, %s19
    %s39 = sadd.s32 %s37, %s33
    %s40 = ssub.s32 %s38, %s39
    %p41 = scmp.eq.s32.totalorder %s40, 0
    %s43 = sadd.s32 %s42, 1
    %s44 = scalar_select %p41, %s42, %s43
    %p47 = pneg %p41
    %p48 = scmp.eq.s32.totalorder %s11, 1
    %p49 = por %p47, %p48
    %p50 = scmp.ne.s32.totalorder %s42, %s45
    %p51 = scmp.eq.s32.totalorder %s11, 0
    %p52 = por %p50, %p51
    %p53 = scmp.ne.s32.totalorder %s42, %s45
    %p54 = scmp.eq.s32.totalorder %s16, 1
    %p55 = por %p53, %p54
    %p56 = scmp.ne.s32.totalorder %s45, %s46
    %p57 = scmp.eq.s32.totalorder %s16, 0
    %p58 = por %p56, %p57
    %p59 = scmp.ne.s32.totalorder %s45, %s46
    %p60 = scmp.eq.s32.totalorder %s17, 1
    %p61 = por %p59, %p60
    %p63 = scmp.ne.s32.totalorder %s46, %s62
    %p64 = scmp.eq.s32.totalorder %s17, 0
    %p65 = por %p63, %p64
    %s66 = sadd.s32 %s18, %s19
    %s67 = sadd.s32 %s37, %s33
    %s68 = ssub.s32 %s66, %s67
    %p69 = scmp.eq.s32.totalorder %s68, 0
    %s71 = sadd.s32 %s70, 1
    %s72 = scalar_select %p69, %s70, %s71
    %p75 = pneg %p69
    %p76 = scmp.eq.s32.totalorder %s11, 1
    %p77 = por %p75, %p76
    %p78 = scmp.ne.s32.totalorder %s70, %s73
    %p79 = scmp.eq.s32.totalorder %s11, 0
    %p80 = por %p78, %p79
    %p81 = scmp.ne.s32.totalorder %s70, %s73
    %p82 = scmp.eq.s32.totalorder %s16, 1
    %p83 = por %p81, %p82
    %p84 = scmp.ne.s32.totalorder %s73, %s74
    %p85 = scmp.eq.s32.totalorder %s16, 0
    %p86 = por %p84, %p85
    %p87 = scmp.ne.s32.totalorder %s73, %s74
    %p88 = scmp.eq.s32.totalorder %s17, 1
    %p89 = por %p87, %p88
    %p91 = scmp.ne.s32.totalorder %s74, %s90
    %p92 = scmp.eq.s32.totalorder %s17, 0
    %p93 = por %p91, %p92
    %s94 = ssub.s32 %s20, %s29
    %p95 = scmp.eq.s32.totalorder %s94, 0
    %s97 = sadd.s32 %s96, 1
    %s98 = scalar_select %p95, %s96, %s97
    %p101 = pneg %p95
    %p102 = scmp.eq.s32.totalorder %s11, 1
    %p103 = por %p101, %p102
    %p104 = scmp.ne.s32.totalorder %s96, %s99
    %p105 = scmp.eq.s32.totalorder %s11, 0
    %p106 = por %p104, %p105
    %p107 = scmp.ne.s32.totalorder %s96, %s99
    %p108 = scmp.eq.s32.totalorder %s16, 1
    %p109 = por %p107, %p108
    %p110 = scmp.ne.s32.totalorder %s99, %s100
    %p111 = scmp.eq.s32.totalorder %s16, 0
    %p112 = por %p110, %p111
    %p113 = scmp.ne.s32.totalorder %s99, %s100
    %p114 = scmp.eq.s32.totalorder %s17, 1
    %p115 = por %p113, %p114
    %p117 = scmp.ne.s32.totalorder %s100, %s116
    %p118 = scmp.eq.s32.totalorder %s17, 0
    %p119 = por %p117, %p118
    %s120 = ssub.s32 %s20, %s29
    %p121 = scmp.eq.s32.totalorder %s120, 0
    %s123 = sadd.s32 %s122, 1
    %s124 = scalar_select %p121, %s122, %s123
    %p127 = pneg %p121
    %p128 = scmp.eq.s32.totalorder %s11, 1
    %p129 = por %p127, %p128
    %p130 = scmp.ne.s32.totalorder %s122, %s125
    %p131 = scmp.eq.s32.totalorder %s11, 0
    %p132 = por %p130, %p131
    %p133 = scmp.ne.s32.totalorder %s122, %s125
    %p134 = scmp.eq.s32.totalorder %s16, 1
    %p135 = por %p133, %p134
    %p136 = scmp.ne.s32.totalorder %s125, %s126
    %p137 = scmp.eq.s32.totalorder %s16, 0
    %p138 = por %p136, %p137
    %p139 = scmp.ne.s32.totalorder %s125, %s126
    %p140 = scmp.eq.s32.totalorder %s17, 1
    %p141 = por %p139, %p140
    %p143 = scmp.ne.s32.totalorder %s126, %s142
    %p144 = scmp.eq.s32.totalorder %s17, 0
    %p145 = por %p143, %p144
    %s146 = ssub.s32 %s20, %s29
    %p147 = scmp.eq.s32.totalorder %s146, 0
    %s149 = sadd.s32 %s148, 1
    %s150 = scalar_select %p147, %s148, %s149
    %p153 = pneg %p147
    %p154 = scmp.eq.s32.totalorder %s11, 1
    %p155 = por %p153, %p154
    %p156 = scmp.ne.s32.totalorder %s148, %s151
    %p157 = scmp.eq.s32.totalorder %s11, 0
    %p158 = por %p156, %p157
    %p159 = scmp.ne.s32.totalorder %s148, %s151
    %p160 = scmp.eq.s32.totalorder %s16, 1
    %p161 = por %p159, %p160
    %p162 = scmp.ne.s32.totalorder %s151, %s152
    %p163 = scmp.eq.s32.totalorder %s16, 0
    %p164 = por %p162, %p163
    %p165 = scmp.ne.s32.totalorder %s151, %s152
    %p166 = scmp.eq.s32.totalorder %s17, 1
    %p167 = por %p165, %p166
    %p169 = scmp.ne.s32.totalorder %s152, %s168
    %p170 = scmp.eq.s32.totalorder %s17, 0
    %p171 = por %p169, %p170
    %s172 = ssub.s32 %s18, %s37
    %s173 = ssub.s32 %s19, %s33
    %s174 = sor.u32 %s172, %s173
    %s175 = ssub.s32 %s20, %s29
    %s176 = sor.u32 %s174, %s175
    %p177 = scmp.eq.s32.totalorder %s176, 0
    %s179 = sadd.s32 %s178, 1
    %s180 = scalar_select %p177, %s178, %s179
    %p183 = pneg %p177
    %p184 = scmp.eq.s32.totalorder %s11, 1
    %p185 = por %p183, %p184
    %p186 = scmp.ne.s32.totalorder %s178, %s181
    %p187 = scmp.eq.s32.totalorder %s11, 0
    %p188 = por %p186, %p187
    %p189 = scmp.ne.s32.totalorder %s178, %s181
    %p190 = scmp.eq.s32.totalorder %s16, 1
    %p191 = por %p189, %p190
    %p192 = scmp.ne.s32.totalorder %s181, %s182
    %p193 = scmp.eq.s32.totalorder %s16, 0
    %p194 = por %p192, %p193
    %p195 = scmp.ne.s32.totalorder %s181, %s182
    %p196 = scmp.eq.s32.totalorder %s17, 1
    %p197 = por %p195, %p196
    %p199 = scmp.ne.s32.totalorder %s182, %s198
    %p200 = scmp.eq.s32.totalorder %s17, 0
    %p201 = por %p199, %p200
    %p202 = scmp.le.s32.totalorder 1, %s11
    %p203 = scmp.lt.s32.totalorder %s11, 3
    %p204 = pnand %p202, %p203
    %p205 = pneg %p204
    // Predicated region
    $region9: #{cam_forward.5} parent=5 // pred_check
      _
    $region10: #{cam_forward.5} parent=5 // pred_check_branch
      %207 = sbr.rel (%p204) target = $region12
    $region11: #{cam_forward.5} parent=5 // pred_region
      %s208 = ssub.s32 %s11, 1
      // Predicated region
      $region13: #{cam_forward.5} parent=11 // pred_check
        %p209 = pneg %p112
      $region14: #{cam_forward.5} parent=11 // pred_check_branch
        %211 = sbr.rel (%p209) target = $region16
      $region15: #{cam_forward.5} parent=11 // pred_region
        %p212 = scmp.lt.s32.totalorder %s23, 0
        %s213 = scalar_select %p212, %s23, 0
        %s214 = smul.addr %s213, 4
        %s215 = scalar_lea.vmem %s2, %s214
      $region16: #{cam_forward.5} parent=11 // pred_fallthru
        _
      // Predicated region
      $region17: #{cam_forward.5} parent=11 // pred_check
        %p216 = pneg %p138
      $region18: #{cam_forward.5} parent=11 // pred_check_branch
        %218 = sbr.rel (%p216) target = $region20
      $region19: #{cam_forward.5} parent=11 // pred_region
        %p219 = scmp.lt.s32.totalorder %s23, 0
        %s220 = scalar_select %p219, %s23, 0
        %s221 = scalar_lea.vmem %s3, %s220
      $region20: #{cam_forward.5} parent=11 // pred_fallthru
        _
      // Predicated region
      $region21: #{cam_forward.5} parent=11 // pred_check
        %p222 = pneg %p164
      $region22: #{cam_forward.5} parent=11 // pred_check_branch
        %224 = sbr.rel (%p222) target = $region24
      $region23: #{cam_forward.5} parent=11 // pred_region
        %p225 = scmp.lt.s32.totalorder %s23, 0
        %s226 = scalar_select %p225, %s23, 0
        %s227 = scalar_lea.vmem %s4, %s226
      $region24: #{cam_forward.5} parent=11 // pred_fallthru
        _
    $region12: #{cam_forward.5} parent=5 // pred_fallthru
      _
    %p228 = scmp.lt.s32.totalorder %s11, 2
    // Predicated region
    $region25: #{cam_forward.5} parent=5 // pred_check
      %p229 = pneg %p228
    $region26: #{cam_forward.5} parent=5 // pred_check_branch
      %231 = sbr.rel (%p229) target = $region28
    $region27: #{cam_forward.5} parent=5 // pred_region
      // Predicated region
      $region29: #{cam_forward.5} parent=27 // pred_check
        %p232 = pneg %p52
      $region30: #{cam_forward.5} parent=27 // pred_check_branch
        %234 = sbr.rel (%p232) target = $region32
      $region31: #{cam_forward.5} parent=27 // pred_region
        %s235 = sadd.s32 %s18, %s19
        %p236 = scmp.lt.s32.totalorder %s235, 1
        %s237 = scalar_select %p236, %s235, 1
        %s238 = smul.addr %s237, 54
        %s239 = smul.addr %s238, 4
        %s240 = scalar_lea.vmem %s0, %s239
        %s241 = sadd.s32 %s18, %s19
      $region32: #{cam_forward.5} parent=27 // pred_fallthru
        _
      // Predicated region
      $region33: #{cam_forward.5} parent=27 // pred_check
        %p242 = pneg %p80
      $region34: #{cam_forward.5} parent=27 // pred_check_branch
        %244 = sbr.rel (%p242) target = $region36
      $region35: #{cam_forward.5} parent=27 // pred_region
        %s245 = sadd.s32 %s18, %s19
        %p246 = scmp.lt.s32.totalorder %s245, 1
        %s247 = scalar_select %p246, %s245, 1
        %s248 = smul.addr %s247, 54
        %s249 = smul.addr %s248, 4
        %s250 = scalar_lea.vmem %s1, %s249
        %s251 = sadd.s32 %s18, %s19
      $region36: #{cam_forward.5} parent=27 // pred_fallthru
        _
    $region28: #{cam_forward.5} parent=5 // pred_fallthru
      _
    %p252 = scmp.le.s32.totalorder 1, %s11
    %p253 = scmp.lt.s32.totalorder %s11, 3
    %p254 = pnand %p252, %p253
    %p255 = pneg %p254
    // Predicated region
    $region37: #{cam_forward.5} parent=5 // pred_check
      _
    $region38: #{cam_forward.5} parent=5 // pred_check_branch
      %257 = sbr.rel (%p254) target = $region40
    $region39: #{cam_forward.5} parent=5 // pred_region
      %s258 = ssub.s32 %s11, 1
      %s259 = sadd.s32 %s21, %s22
      %p260 = scmp.lt.s32.totalorder %s259, 1
      %s261 = scalar_select %p260, %s259, 1
      %s262 = smul.addr %s261, 54
      %s263 = smul.addr %s262, 4
      %s264 = scalar_lea.vmem %s0, %s263
      %p265 = pneg %p58
      %p266 = pneg %p55
      %s267 = sadd.s32 %s21, %s22
      %p268 = scmp.lt.s32.totalorder %s267, 1
      %s269 = scalar_select %p268, %s267, 1
      %s270 = smul.addr %s269, 54
      %s271 = smul.addr %s270, 4
      %s272 = scalar_lea.vmem %s1, %s271
      %p273 = pneg %p86
      %p274 = pneg %p83
      %p275 = scmp.lt.s32.totalorder %s23, 0
      %s276 = scalar_select %p275, %s23, 0
      %s277 = smul.addr %s276, 4
      %s278 = scalar_lea.vmem %s2, %s277
      %p279 = pneg %p112
      %p280 = pneg %p109
      %p281 = scmp.lt.s32.totalorder %s23, 0
      %s282 = scalar_select %p281, %s23, 0
      %s283 = scalar_lea.vmem %s3, %s282
      %p284 = pneg %p138
      %p285 = pneg %p135
      %p286 = scmp.lt.s32.totalorder %s23, 0
      %s287 = scalar_select %p286, %s23, 0
      %s288 = scalar_lea.vmem %s4, %s287
      %p289 = pneg %p164
      %p290 = pneg %p161
      %p291 = pneg %p194
      %p292 = pneg %p191
      %s293 = smul.u32 16, %s22
      %p294 = scmp.lt.s32.totalorder %s21, 1
      %s295 = scalar_select %p294, %s21, 1
      %p296 = scmp.lt.s32.totalorder %s293, 15
      %s297 = scalar_select %p296, %s293, 15
      %p298 = scmp.lt.s32.totalorder %s23, 0
      %s299 = scalar_select %p298, %s23, 0
      %s300 = smul.addr %s297, 2
      %s301 = sadd.s32 %s299, %s300
      %s302 = smul.addr %s295, 32
      %s303 = sadd.s32 %s301, %s302
      %s304 = smul.addr %s303, 4
      %s305 = scalar_lea.vmem %s5, %s304
      %s306 = sadd.s32 %s21, %s22
      %p307 = scmp.lt.s32.totalorder %s306, 1
      %s308 = scalar_select %p307, %s306, 1
      %s309 = smul.addr %s308, 54
      %s310 = smul.addr %s309, 4
      %s311 = scalar_lea.vmem %s0, %s310
      %s312 = sadd.s32 %s21, %s22
      %s313 = sadd.s32 %s21, %s22
      %p314 = scmp.lt.s32.totalorder %s313, 1
      %s315 = scalar_select %p314, %s313, 1
      %s316 = smul.addr %s315, 54
      %s317 = smul.addr %s316, 4
      %s318 = scalar_lea.vmem %s1, %s317
      %s319 = sadd.s32 %s21, %s22
      %p320 = scmp.lt.s32.totalorder %s23, 0
      %s321 = scalar_select %p320, %s23, 0
      %s322 = smul.addr %s321, 4
      %s323 = scalar_lea.vmem %s2, %s322
      %p324 = scmp.lt.s32.totalorder %s23, 0
      %s325 = scalar_select %p324, %s23, 0
      %s326 = scalar_lea.vmem %s3, %s325
      %p327 = scmp.lt.s32.totalorder %s23, 0
      %s328 = scalar_select %p327, %s23, 0
      %s329 = scalar_lea.vmem %s4, %s328
      %s330 = smul.u32 16, %s22
      %p331 = scmp.lt.s32.totalorder %s21, 1
      %s332 = scalar_select %p331, %s21, 1
      %p333 = scmp.lt.s32.totalorder %s330, 15
      %s334 = scalar_select %p333, %s330, 15
      %p335 = scmp.lt.s32.totalorder %s23, 0
      %s336 = scalar_select %p335, %s23, 0
      %s337 = smul.addr %s334, 2
      %s338 = sadd.s32 %s336, %s337
      %s339 = smul.addr %s332, 32
      %s340 = sadd.s32 %s338, %s339
      %s341 = smul.addr %s340, 4
      %s342 = scalar_lea.vmem %s5, %s341
      %s343 = smul.u32 16, %s22
      %v345 = vld [vmem:[%s311] sm:$0xf]
      %v346 = vld [vmem:[%s311 + $0x4] sm:$0xf]
      %v347 = vld [vmem:[%s311 + $0x8] sm:$0x1]
      %v348 = vld [vmem:[%s311 + $0xc] sm:$0xf]
      %v349 = vld [vmem:[%s311 + $0x10] sm:$0xf]
      %v350 = vld [vmem:[%s311 + $0x14] sm:$0x1]
      %v351 = vld [vmem:[%s311 + $0x18] sm:$0xf]
      %v352 = vld [vmem:[%s311 + $0x1c] sm:$0xf]
      %v353 = vld [vmem:[%s311 + $0x20] sm:$0x1]
      %v354 = vld [vmem:[%s311 + $0x24] sm:$0xf]
      %v355 = vld [vmem:[%s311 + $0x28] sm:$0xf]
      %v356 = vld [vmem:[%s311 + $0x2c] sm:$0x1]
      %v357 = vld [vmem:[%s311 + $0x30] sm:$0xf]
      %v358 = vld [vmem:[%s311 + $0x34] sm:$0xf]
      %v359 = vld [vmem:[%s311 + $0x38] sm:$0x1]
      %v360 = vld [vmem:[%s311 + $0x3c] sm:$0xf]
      %v361 = vld [vmem:[%s311 + $0x40] sm:$0xf]
      %v362 = vld [vmem:[%s311 + $0x44] sm:$0x1]
      %v363 = vld [vmem:[%s311 + $0x48] sm:$0xf]
      %v364 = vld [vmem:[%s311 + $0x4c] sm:$0xf]
      %v365 = vld [vmem:[%s311 + $0x50] sm:$0x1]
      %v366 = vld [vmem:[%s311 + $0x54] sm:$0xf]
      %v367 = vld [vmem:[%s311 + $0x58] sm:$0xf]
      %v368 = vld [vmem:[%s311 + $0x5c] sm:$0x1]
      %v369 = vld [vmem:[%s311 + $0x60] sm:$0xf]
      %v370 = vld [vmem:[%s311 + $0x64] sm:$0xf]
      %v371 = vld [vmem:[%s311 + $0x68] sm:$0x1]
      %v372 = vld [vmem:[%s311 + $0x6c] sm:$0xf]
      %v373 = vld [vmem:[%s311 + $0x70] sm:$0xf]
      %v374 = vld [vmem:[%s311 + $0x74] sm:$0x1]
      %v375 = vld [vmem:[%s311 + $0x78] sm:$0xf]
      %v376 = vld [vmem:[%s311 + $0x7c] sm:$0xf]
      %v377 = vld [vmem:[%s311 + $0x80] sm:$0x1]
      %v378 = vld [vmem:[%s311 + $0x84] sm:$0xf]
      %v379 = vld [vmem:[%s311 + $0x88] sm:$0xf]
      %v380 = vld [vmem:[%s311 + $0x8c] sm:$0x1]
      %v381 = vld [vmem:[%s311 + $0x90] sm:$0xf]
      %v382 = vld [vmem:[%s311 + $0x94] sm:$0xf]
      %v383 = vld [vmem:[%s311 + $0x98] sm:$0x1]
      %v384 = vld [vmem:[%s311 + $0x9c] sm:$0xf]
      %v385 = vld [vmem:[%s311 + $0xa0] sm:$0xf]
      %v386 = vld [vmem:[%s311 + $0xa4] sm:$0x1]
      %v387 = vld [vmem:[%s311 + $0xa8] sm:$0xf]
      %v388 = vld [vmem:[%s311 + $0xac] sm:$0xf]
      %v389 = vld [vmem:[%s311 + $0xb0] sm:$0x1]
      %v390 = vld [vmem:[%s311 + $0xb4] sm:$0xf]
      %v391 = vld [vmem:[%s311 + $0xb8] sm:$0xf]
      %v392 = vld [vmem:[%s311 + $0xbc] sm:$0x1]
      %v393 = vld [vmem:[%s311 + $0xc0] sm:$0xf]
      %v394 = vld [vmem:[%s311 + $0xc4] sm:$0xf]
      %v395 = vld [vmem:[%s311 + $0xc8] sm:$0x1]
      %v396 = vld [vmem:[%s311 + $0xcc] sm:$0xf]
      %v397 = vld [vmem:[%s311 + $0xd0] sm:$0xf]
      %v398 = vld [vmem:[%s311 + $0xd4] sm:$0x1]
      %v399 = vunpack.c.l.bf16 %v345
      %v400 = vunpack.c.l.bf16 %v346
      %v401 = vunpack.c.l.bf16 %v347
      %v402 = vunpack.c.l.bf16 %v348
      %v403 = vunpack.c.l.bf16 %v349
      %v404 = vunpack.c.l.bf16 %v350
      %v405 = vunpack.c.l.bf16 %v351
      %v406 = vunpack.c.l.bf16 %v352
      %v407 = vunpack.c.l.bf16 %v353
      %v408 = vunpack.c.l.bf16 %v354
      %v409 = vunpack.c.l.bf16 %v355
      %v410 = vunpack.c.l.bf16 %v356
      %v411 = vunpack.c.l.bf16 %v357
      %v412 = vunpack.c.l.bf16 %v358
      %v413 = vunpack.c.l.bf16 %v359
      %v414 = vunpack.c.l.bf16 %v360
      %v415 = vunpack.c.l.bf16 %v361
      %v416 = vunpack.c.l.bf16 %v362
      %v417 = vunpack.c.l.bf16 %v363
      %v418 = vunpack.c.l.bf16 %v364
      %v419 = vunpack.c.l.bf16 %v365
      %v420 = vunpack.c.l.bf16 %v366
      %v421 = vunpack.c.l.bf16 %v367
      %v422 = vunpack.c.l.bf16 %v368
      %v423 = vunpack.c.l.bf16 %v369
      %v424 = vunpack.c.l.bf16 %v370
      %v425 = vunpack.c.l.bf16 %v371
      %v426 = vunpack.c.l.bf16 %v372
      %v427 = vunpack.c.l.bf16 %v373
      %v428 = vunpack.c.l.bf16 %v374
      %v429 = vunpack.c.l.bf16 %v375
      %v430 = vunpack.c.l.bf16 %v376
      %v431 = vunpack.c.l.bf16 %v377
      %v432 = vunpack.c.l.bf16 %v378
      %v433 = vunpack.c.l.bf16 %v379
      %v434 = vunpack.c.l.bf16 %v380
      %v435 = vunpack.c.l.bf16 %v381
      %v436 = vunpack.c.l.bf16 %v382
      %v437 = vunpack.c.l.bf16 %v383
      %v438 = vunpack.c.l.bf16 %v384
      %v439 = vunpack.c.l.bf16 %v385
      %v440 = vunpack.c.l.bf16 %v386
      %v441 = vunpack.c.l.bf16 %v387
      %v442 = vunpack.c.l.bf16 %v388
      %v443 = vunpack.c.l.bf16 %v389
      %v444 = vunpack.c.l.bf16 %v390
      %v445 = vunpack.c.l.bf16 %v391
      %v446 = vunpack.c.l.bf16 %v392
      %v447 = vunpack.c.l.bf16 %v393
      %v448 = vunpack.c.l.bf16 %v394
      %v449 = vunpack.c.l.bf16 %v395
      %v450 = vunpack.c.l.bf16 %v396
      %v451 = vunpack.c.l.bf16 %v397
      %v452 = vunpack.c.l.bf16 %v398
      %v453 = vld [vmem:[%s318] sm:$0xf]
      %v454 = vld [vmem:[%s318 + $0x4] sm:$0xf]
      %v455 = vld [vmem:[%s318 + $0x8] sm:$0x1]
      %v456 = vld [vmem:[%s318 + $0xc] sm:$0xf]
      %v457 = vld [vmem:[%s318 + $0x10] sm:$0xf]
      %v458 = vld [vmem:[%s318 + $0x14] sm:$0x1]
      %v459 = vld [vmem:[%s318 + $0x18] sm:$0xf]
      %v460 = vld [vmem:[%s318 + $0x1c] sm:$0xf]
      %v461 = vld [vmem:[%s318 + $0x20] sm:$0x1]
      %v462 = vld [vmem:[%s318 + $0x24] sm:$0xf]
      %v463 = vld [vmem:[%s318 + $0x28] sm:$0xf]
      %v464 = vld [vmem:[%s318 + $0x2c] sm:$0x1]
      %v465 = vld [vmem:[%s318 + $0x30] sm:$0xf]
      %v466 = vld [vmem:[%s318 + $0x34] sm:$0xf]
      %v467 = vld [vmem:[%s318 + $0x38] sm:$0x1]
      %v468 = vld [vmem:[%s318 + $0x3c] sm:$0xf]
      %v469 = vld [vmem:[%s318 + $0x40] sm:$0xf]
      %v470 = vld [vmem:[%s318 + $0x44] sm:$0x1]
      %v471 = vld [vmem:[%s318 + $0x48] sm:$0xf]
      %v472 = vld [vmem:[%s318 + $0x4c] sm:$0xf]
      %v473 = vld [vmem:[%s318 + $0x50] sm:$0x1]
      %v474 = vld [vmem:[%s318 + $0x54] sm:$0xf]
      %v475 = vld [vmem:[%s318 + $0x58] sm:$0xf]
      %v476 = vld [vmem:[%s318 + $0x5c] sm:$0x1]
      %v477 = vld [vmem:[%s318 + $0x60] sm:$0xf]
      %v478 = vld [vmem:[%s318 + $0x64] sm:$0xf]
      %v479 = vld [vmem:[%s318 + $0x68] sm:$0x1]
      %v480 = vld [vmem:[%s318 + $0x6c] sm:$0xf]
      %v481 = vld [vmem:[%s318 + $0x70] sm:$0xf]
      %v482 = vld [vmem:[%s318 + $0x74] sm:$0x1]
      %v483 = vld [vmem:[%s318 + $0x78] sm:$0xf]
      %v484 = vld [vmem:[%s318 + $0x7c] sm:$0xf]
      %v485 = vld [vmem:[%s318 + $0x80] sm:$0x1]
      %v486 = vld [vmem:[%s318 + $0x84] sm:$0xf]
      %v487 = vld [vmem:[%s318 + $0x88] sm:$0xf]
      %v488 = vld [vmem:[%s318 + $0x8c] sm:$0x1]
      %v489 = vld [vmem:[%s318 + $0x90] sm:$0xf]
      %v490 = vld [vmem:[%s318 + $0x94] sm:$0xf]
      %v491 = vld [vmem:[%s318 + $0x98] sm:$0x1]
      %v492 = vld [vmem:[%s318 + $0x9c] sm:$0xf]
      %v493 = vld [vmem:[%s318 + $0xa0] sm:$0xf]
      %v494 = vld [vmem:[%s318 + $0xa4] sm:$0x1]
      %v495 = vld [vmem:[%s318 + $0xa8] sm:$0xf]
      %v496 = vld [vmem:[%s318 + $0xac] sm:$0xf]
      %v497 = vld [vmem:[%s318 + $0xb0] sm:$0x1]
      %v498 = vld [vmem:[%s318 + $0xb4] sm:$0xf]
      %v499 = vld [vmem:[%s318 + $0xb8] sm:$0xf]
      %v500 = vld [vmem:[%s318 + $0xbc] sm:$0x1]
      %v501 = vld [vmem:[%s318 + $0xc0] sm:$0xf]
      %v502 = vld [vmem:[%s318 + $0xc4] sm:$0xf]
      %v503 = vld [vmem:[%s318 + $0xc8] sm:$0x1]
      %v504 = vld [vmem:[%s318 + $0xcc] sm:$0xf]
      %v505 = vld [vmem:[%s318 + $0xd0] sm:$0xf]
      %v506 = vld [vmem:[%s318 + $0xd4] sm:$0x1]
      %v507 = vunpack.c.l.bf16 %v453
      %v508 = vunpack.c.l.bf16 %v454
      %v509 = vunpack.c.l.bf16 %v455
      %v510 = vunpack.c.l.bf16 %v456
      %v511 = vunpack.c.l.bf16 %v457
      %v512 = vunpack.c.l.bf16 %v458
      %v513 = vunpack.c.l.bf16 %v459
      %v514 = vunpack.c.l.bf16 %v460
      %v515 = vunpack.c.l.bf16 %v461
      %v516 = vunpack.c.l.bf16 %v462
      %v517 = vunpack.c.l.bf16 %v463
      %v518 = vunpack.c.l.bf16 %v464
      %v519 = vunpack.c.l.bf16 %v465
      %v520 = vunpack.c.l.bf16 %v466
      %v521 = vunpack.c.l.bf16 %v467
      %v522 = vunpack.c.l.bf16 %v468
      %v523 = vunpack.c.l.bf16 %v469
      %v524 = vunpack.c.l.bf16 %v470
      %v525 = vunpack.c.l.bf16 %v471
      %v526 = vunpack.c.l.bf16 %v472
      %v527 = vunpack.c.l.bf16 %v473
      %v528 = vunpack.c.l.bf16 %v474
      %v529 = vunpack.c.l.bf16 %v475
      %v530 = vunpack.c.l.bf16 %v476
      %v531 = vunpack.c.l.bf16 %v477
      %v532 = vunpack.c.l.bf16 %v478
      %v533 = vunpack.c.l.bf16 %v479
      %v534 = vunpack.c.l.bf16 %v480
      %v535 = vunpack.c.l.bf16 %v481
      %v536 = vunpack.c.l.bf16 %v482
      %v537 = vunpack.c.l.bf16 %v483
      %v538 = vunpack.c.l.bf16 %v484
      %v539 = vunpack.c.l.bf16 %v485
      %v540 = vunpack.c.l.bf16 %v486
      %v541 = vunpack.c.l.bf16 %v487
      %v542 = vunpack.c.l.bf16 %v488
      %v543 = vunpack.c.l.bf16 %v489
      %v544 = vunpack.c.l.bf16 %v490
      %v545 = vunpack.c.l.bf16 %v491
      %v546 = vunpack.c.l.bf16 %v492
      %v547 = vunpack.c.l.bf16 %v493
      %v548 = vunpack.c.l.bf16 %v494
      %v549 = vunpack.c.l.bf16 %v495
      %v550 = vunpack.c.l.bf16 %v496
      %v551 = vunpack.c.l.bf16 %v497
      %v552 = vunpack.c.l.bf16 %v498
      %v553 = vunpack.c.l.bf16 %v499
      %v554 = vunpack.c.l.bf16 %v500
      %v555 = vunpack.c.l.bf16 %v501
      %v556 = vunpack.c.l.bf16 %v502
      %v557 = vunpack.c.l.bf16 %v503
      %v558 = vunpack.c.l.bf16 %v504
      %v559 = vunpack.c.l.bf16 %v505
      %v560 = vunpack.c.l.bf16 %v506
      %v561 = vmul.f32 %v399, %v507
      %v562 = vmul.f32 %v400, %v508
      %v563 = vmul.f32 %v401, %v509
      %v564 = vmul.f32 %v402, %v510
      %v565 = vmul.f32 %v403, %v511
      %v566 = vmul.f32 %v404, %v512
      %v567 = vmul.f32 %v405, %v513
      %v568 = vmul.f32 %v406, %v514
      %v569 = vmul.f32 %v407, %v515
      %v570 = vmul.f32 %v408, %v516
      %v571 = vmul.f32 %v409, %v517
      %v572 = vmul.f32 %v410, %v518
      %v573 = vmul.f32 %v411, %v519
      %v574 = vmul.f32 %v412, %v520
      %v575 = vmul.f32 %v413, %v521
      %v576 = vmul.f32 %v414, %v522
      %v577 = vmul.f32 %v415, %v523
      %v578 = vmul.f32 %v416, %v524
      %v579 = vmul.f32 %v417, %v525
      %v580 = vmul.f32 %v418, %v526
      %v581 = vmul.f32 %v419, %v527
      %v582 = vmul.f32 %v420, %v528
      %v583 = vmul.f32 %v421, %v529
      %v584 = vmul.f32 %v422, %v530
      %v585 = vmul.f32 %v423, %v531
      %v586 = vmul.f32 %v424, %v532
      %v587 = vmul.f32 %v425, %v533
      %v588 = vmul.f32 %v426, %v534
      %v589 = vmul.f32 %v427, %v535
      %v590 = vmul.f32 %v428, %v536
      %v591 = vmul.f32 %v429, %v537
      %v592 = vmul.f32 %v430, %v538
      %v593 = vmul.f32 %v431, %v539
      %v594 = vmul.f32 %v432, %v540
      %v595 = vmul.f32 %v433, %v541
      %v596 = vmul.f32 %v434, %v542
      %v597 = vmul.f32 %v435, %v543
      %v598 = vmul.f32 %v436, %v544
      %v599 = vmul.f32 %v437, %v545
      %v600 = vmul.f32 %v438, %v546
      %v601 = vmul.f32 %v439, %v547
      %v602 = vmul.f32 %v440, %v548
      %v603 = vmul.f32 %v441, %v549
      %v604 = vmul.f32 %v442, %v550
      %v605 = vmul.f32 %v443, %v551
      %v606 = vmul.f32 %v444, %v552
      %v607 = vmul.f32 %v445, %v553
      %v608 = vmul.f32 %v446, %v554
      %v609 = vmul.f32 %v447, %v555
      %v610 = vmul.f32 %v448, %v556
      %v611 = vmul.f32 %v449, %v557
      %v612 = vmul.f32 %v450, %v558
      %v613 = vmul.f32 %v451, %v559
      %v614 = vmul.f32 %v452, %v560
      %v615 = vpack.c.bf16 %v561, %v561
      %v616 = vpack.c.bf16 %v562, %v562
      %v617 = vpack.c.bf16 %v563, %v563
      %v618 = vpack.c.bf16 %v564, %v564
      %v619 = vpack.c.bf16 %v565, %v565
      %v620 = vpack.c.bf16 %v566, %v566
      %v621 = vpack.c.bf16 %v567, %v567
      %v622 = vpack.c.bf16 %v568, %v568
      %v623 = vpack.c.bf16 %v569, %v569
      %v624 = vpack.c.bf16 %v570, %v570
      %v625 = vpack.c.bf16 %v571, %v571
      %v626 = vpack.c.bf16 %v572, %v572
      %v627 = vpack.c.bf16 %v573, %v573
      %v628 = vpack.c.bf16 %v574, %v574
      %v629 = vpack.c.bf16 %v575, %v575
      %v630 = vpack.c.bf16 %v576, %v576
      %v631 = vpack.c.bf16 %v577, %v577
      %v632 = vpack.c.bf16 %v578, %v578
      %v633 = vpack.c.bf16 %v579, %v579
      %v634 = vpack.c.bf16 %v580, %v580
      %v635 = vpack.c.bf16 %v581, %v581
      %v636 = vpack.c.bf16 %v582, %v582
      %v637 = vpack.c.bf16 %v583, %v583
      %v638 = vpack.c.bf16 %v584, %v584
      %v639 = vpack.c.bf16 %v585, %v585
      %v640 = vpack.c.bf16 %v586, %v586
      %v641 = vpack.c.bf16 %v587, %v587
      %v642 = vpack.c.bf16 %v588, %v588
      %v643 = vpack.c.bf16 %v589, %v589
      %v644 = vpack.c.bf16 %v590, %v590
      %v645 = vpack.c.bf16 %v591, %v591
      %v646 = vpack.c.bf16 %v592, %v592
      %v647 = vpack.c.bf16 %v593, %v593
      %v648 = vpack.c.bf16 %v594, %v594
      %v649 = vpack.c.bf16 %v595, %v595
      %v650 = vpack.c.bf16 %v596, %v596
      %v651 = vpack.c.bf16 %v597, %v597
      %v652 = vpack.c.bf16 %v598, %v598
      %v653 = vpack.c.bf16 %v599, %v599
      %v654 = vpack.c.bf16 %v600, %v600
      %v655 = vpack.c.bf16 %v601, %v601
      %v656 = vpack.c.bf16 %v602, %v602
      %v657 = vpack.c.bf16 %v603, %v603
      %v658 = vpack.c.bf16 %v604, %v604
      %v659 = vpack.c.bf16 %v605, %v605
      %v660 = vpack.c.bf16 %v606, %v606
      %v661 = vpack.c.bf16 %v607, %v607
      %v662 = vpack.c.bf16 %v608, %v608
      %v663 = vpack.c.bf16 %v609, %v609
      %v664 = vpack.c.bf16 %v610, %v610
      %v665 = vpack.c.bf16 %v611, %v611
      %v666 = vpack.c.bf16 %v612, %v612
      %v667 = vpack.c.bf16 %v613, %v613
      %v668 = vpack.c.bf16 %v614, %v614
      %v701 = vunpack.c.l.b16 %v615
      %v702 = vunpack.c.l.b16 %v616
      %v703 = vunpack.c.l.b16 %v618
      %v704 = vunpack.c.l.b16 %v619
      %v705 = vunpack.c.l.b16 %v621
      %v706 = vunpack.c.l.b16 %v622
      %v707 = vunpack.c.l.b16 %v624
      %v708 = vunpack.c.l.b16 %v625
      %v709 = vunpack.c.l.b16 %v627
      %v710 = vunpack.c.l.b16 %v628
      %v711 = vunpack.c.l.b16 %v630
      %v712 = vunpack.c.l.b16 %v631
      %v713 = vunpack.c.l.b16 %v633
      %v714 = vunpack.c.l.b16 %v634
      %v715 = vunpack.c.l.b16 %v636
      %v716 = vunpack.c.l.b16 %v637
      %v717 = vunpack.c.l.b16 %v639
      %v718 = vunpack.c.l.b16 %v640
      %v719 = vunpack.c.l.b16 %v642
      %v720 = vunpack.c.l.b16 %v643
      %v721 = vunpack.c.l.b16 %v645
      %v722 = vunpack.c.l.b16 %v646
      %v723 = vunpack.c.l.b16 %v648
      %v724 = vunpack.c.l.b16 %v649
      %v725 = vunpack.c.l.b16 %v651
      %v726 = vunpack.c.l.b16 %v652
      %v727 = vunpack.c.l.b16 %v654
      %v728 = vunpack.c.l.b16 %v655
      %v729 = vunpack.c.l.b16 %v657
      %v730 = vunpack.c.l.b16 %v658
      %v731 = vunpack.c.l.b16 %v660
      %v732 = vunpack.c.l.b16 %v661
      %v733 = vpack.c.b16 %v702, %v701
      %v734 = vpack.c.b16 %v704, %v703
      %v735 = vpack.c.b16 %v706, %v705
      %v736 = vpack.c.b16 %v708, %v707
      %v737 = vpack.c.b16 %v710, %v709
      %v738 = vpack.c.b16 %v712, %v711
      %v739 = vpack.c.b16 %v714, %v713
      %v740 = vpack.c.b16 %v716, %v715
      %v741 = vpack.c.b16 %v718, %v717
      %v742 = vpack.c.b16 %v720, %v719
      %v743 = vpack.c.b16 %v722, %v721
      %v744 = vpack.c.b16 %v724, %v723
      %v745 = vpack.c.b16 %v726, %v725
      %v746 = vpack.c.b16 %v728, %v727
      %v747 = vpack.c.b16 %v730, %v729
      %v748 = vpack.c.b16 %v732, %v731
      %v765 = vunpack.c.l.b16 %v617
      %v766 = vunpack.c.l.b16 %v620
      %v767 = vunpack.c.l.b16 %v623
      %v768 = vunpack.c.l.b16 %v626
      %v769 = vunpack.c.l.b16 %v629
      %v770 = vunpack.c.l.b16 %v632
      %v771 = vunpack.c.l.b16 %v635
      %v772 = vunpack.c.l.b16 %v638
      %v773 = vunpack.c.l.b16 %v641
      %v774 = vunpack.c.l.b16 %v644
      %v775 = vunpack.c.l.b16 %v647
      %v776 = vunpack.c.l.b16 %v650
      %v777 = vunpack.c.l.b16 %v653
      %v778 = vunpack.c.l.b16 %v656
      %v779 = vunpack.c.l.b16 %v659
      %v780 = vunpack.c.l.b16 %v662
      %v781 = vpack.c.b16 %v765, %v765
      %v782 = vpack.c.b16 %v766, %v766
      %v783 = vpack.c.b16 %v767, %v767
      %v784 = vpack.c.b16 %v768, %v768
      %v785 = vpack.c.b16 %v769, %v769
      %v786 = vpack.c.b16 %v770, %v770
      %v787 = vpack.c.b16 %v771, %v771
      %v788 = vpack.c.b16 %v772, %v772
      %v789 = vpack.c.b16 %v773, %v773
      %v790 = vpack.c.b16 %v774, %v774
      %v791 = vpack.c.b16 %v775, %v775
      %v792 = vpack.c.b16 %v776, %v776
      %v793 = vpack.c.b16 %v777, %v777
      %v794 = vpack.c.b16 %v778, %v778
      %v795 = vpack.c.b16 %v779, %v779
      %v796 = vpack.c.b16 %v780, %v780
      %vm797 = vsmask.f32 7424
      %v799 = vshrl.u32 %v733, 16
      %v801 = vshll.u32 %v733, 16
      %v803 = vrot.slane %v801, 1
      %v804 = vor.u32 %v799, %v803
      %v806 = vshll.u32 %v781, 16
      %v808 = vrot.slane %v806, 1
      %v809 = vsel %vm797, %v804, %v808
      %v811 = vshrl.u32 %v734, 16
      %v813 = vshll.u32 %v734, 16
      %v815 = vrot.slane %v813, 1
      %v816 = vor.u32 %v811, %v815
      %v818 = vshll.u32 %v782, 16
      %v820 = vrot.slane %v818, 1
      %v821 = vsel %vm797, %v816, %v820
      %v823 = vshrl.u32 %v735, 16
      %v825 = vshll.u32 %v735, 16
      %v827 = vrot.slane %v825, 1
      %v828 = vor.u32 %v823, %v827
      %v830 = vshll.u32 %v783, 16
      %v832 = vrot.slane %v830, 1
      %v833 = vsel %vm797, %v828, %v832
      %v835 = vshrl.u32 %v736, 16
      %v837 = vshll.u32 %v736, 16
      %v839 = vrot.slane %v837, 1
      %v840 = vor.u32 %v835, %v839
      %v842 = vshll.u32 %v784, 16
      %v844 = vrot.slane %v842, 1
      %v845 = vsel %vm797, %v840, %v844
      %v847 = vshrl.u32 %v737, 16
      %v849 = vshll.u32 %v737, 16
      %v851 = vrot.slane %v849, 1
      %v852 = vor.u32 %v847, %v851
      %v854 = vshll.u32 %v785, 16
      %v856 = vrot.slane %v854, 1
      %v857 = vsel %vm797, %v852, %v856
      %v859 = vshrl.u32 %v738, 16
      %v861 = vshll.u32 %v738, 16
      %v863 = vrot.slane %v861, 1
      %v864 = vor.u32 %v859, %v863
      %v866 = vshll.u32 %v786, 16
      %v868 = vrot.slane %v866, 1
      %v869 = vsel %vm797, %v864, %v868
      %v871 = vshrl.u32 %v739, 16
      %v873 = vshll.u32 %v739, 16
      %v875 = vrot.slane %v873, 1
      %v876 = vor.u32 %v871, %v875
      %v878 = vshll.u32 %v787, 16
      %v880 = vrot.slane %v878, 1
      %v881 = vsel %vm797, %v876, %v880
      %v883 = vshrl.u32 %v740, 16
      %v885 = vshll.u32 %v740, 16
      %v887 = vrot.slane %v885, 1
      %v888 = vor.u32 %v883, %v887
      %v890 = vshll.u32 %v788, 16
      %v892 = vrot.slane %v890, 1
      %v893 = vsel %vm797, %v888, %v892
      %v895 = vshrl.u32 %v741, 16
      %v897 = vshll.u32 %v741, 16
      %v899 = vrot.slane %v897, 1
      %v900 = vor.u32 %v895, %v899
      %v902 = vshll.u32 %v789, 16
      %v904 = vrot.slane %v902, 1
      %v905 = vsel %vm797, %v900, %v904
      %v907 = vshrl.u32 %v742, 16
      %v909 = vshll.u32 %v742, 16
      %v911 = vrot.slane %v909, 1
      %v912 = vor.u32 %v907, %v911
      %v914 = vshll.u32 %v790, 16
      %v916 = vrot.slane %v914, 1
      %v917 = vsel %vm797, %v912, %v916
      %v919 = vshrl.u32 %v743, 16
      %v921 = vshll.u32 %v743, 16
      %v923 = vrot.slane %v921, 1
      %v924 = vor.u32 %v919, %v923
      %v926 = vshll.u32 %v791, 16
      %v928 = vrot.slane %v926, 1
      %v929 = vsel %vm797, %v924, %v928
      %v931 = vshrl.u32 %v744, 16
      %v933 = vshll.u32 %v744, 16
      %v935 = vrot.slane %v933, 1
      %v936 = vor.u32 %v931, %v935
      %v938 = vshll.u32 %v792, 16
      %v940 = vrot.slane %v938, 1
      %v941 = vsel %vm797, %v936, %v940
      %v943 = vshrl.u32 %v745, 16
      %v945 = vshll.u32 %v745, 16
      %v947 = vrot.slane %v945, 1
      %v948 = vor.u32 %v943, %v947
      %v950 = vshll.u32 %v793, 16
      %v952 = vrot.slane %v950, 1
      %v953 = vsel %vm797, %v948, %v952
      %v955 = vshrl.u32 %v746, 16
      %v957 = vshll.u32 %v746, 16
      %v959 = vrot.slane %v957, 1
      %v960 = vor.u32 %v955, %v959
      %v962 = vshll.u32 %v794, 16
      %v964 = vrot.slane %v962, 1
      %v965 = vsel %vm797, %v960, %v964
      %v967 = vshrl.u32 %v747, 16
      %v969 = vshll.u32 %v747, 16
      %v971 = vrot.slane %v969, 1
      %v972 = vor.u32 %v967, %v971
      %v974 = vshll.u32 %v795, 16
      %v976 = vrot.slane %v974, 1
      %v977 = vsel %vm797, %v972, %v976
      %v979 = vshrl.u32 %v748, 16
      %v981 = vshll.u32 %v748, 16
      %v983 = vrot.slane %v981, 1
      %v984 = vor.u32 %v979, %v983
      %v986 = vshll.u32 %v796, 16
      %v988 = vrot.slane %v986, 1
      %v989 = vsel %vm797, %v984, %v988
      %990 = vrot.lane.b32.xlu0 %v809, 8
      %v991 = vpop.permute.xlu0 %990
      %992 = vrot.lane.b32.xlu0 %v821, 8
      %v993 = vpop.permute.xlu0 %992
      %994 = vrot.lane.b32.xlu0 %v833, 8
      %v995 = vpop.permute.xlu0 %994
      %996 = vrot.lane.b32.xlu0 %v845, 8
      %v997 = vpop.permute.xlu0 %996
      %998 = vrot.lane.b32.xlu0 %v857, 8
      %v999 = vpop.permute.xlu0 %998
      %1000 = vrot.lane.b32.xlu0 %v869, 8
      %v1001 = vpop.permute.xlu0 %1000
      %1002 = vrot.lane.b32.xlu0 %v881, 8
      %v1003 = vpop.permute.xlu0 %1002
      %1004 = vrot.lane.b32.xlu0 %v893, 8
      %v1005 = vpop.permute.xlu0 %1004
      %1006 = vrot.lane.b32.xlu0 %v905, 8
      %v1007 = vpop.permute.xlu0 %1006
      %1008 = vrot.lane.b32.xlu0 %v917, 8
      %v1009 = vpop.permute.xlu0 %1008
      %1010 = vrot.lane.b32.xlu0 %v929, 8
      %v1011 = vpop.permute.xlu0 %1010
      %1012 = vrot.lane.b32.xlu0 %v941, 8
      %v1013 = vpop.permute.xlu0 %1012
      %1014 = vrot.lane.b32.xlu0 %v953, 8
      %v1015 = vpop.permute.xlu0 %1014
      %1016 = vrot.lane.b32.xlu0 %v965, 8
      %v1017 = vpop.permute.xlu0 %1016
      %1018 = vrot.lane.b32.xlu0 %v977, 8
      %v1019 = vpop.permute.xlu0 %1018
      %1020 = vrot.lane.b32.xlu0 %v989, 8
      %v1021 = vpop.permute.xlu0 %1020
      %vm1022 = vcmask 1046528
      %v1023 = vrot.slane %v733, 1
      %v1024 = vrot.slane %v781, 1
      %v1025 = vsel %vm1022, %v1023, %v1024
      %v1026 = vrot.slane %v734, 1
      %v1027 = vrot.slane %v782, 1
      %v1028 = vsel %vm1022, %v1026, %v1027
      %v1029 = vrot.slane %v735, 1
      %v1030 = vrot.slane %v783, 1
      %v1031 = vsel %vm1022, %v1029, %v1030
      %v1032 = vrot.slane %v736, 1
      %v1033 = vrot.slane %v784, 1
      %v1034 = vsel %vm1022, %v1032, %v1033
      %v1035 = vrot.slane %v737, 1
      %v1036 = vrot.slane %v785, 1
      %v1037 = vsel %vm1022, %v1035, %v1036
      %v1038 = vrot.slane %v738, 1
      %v1039 = vrot.slane %v786, 1
      %v1040 = vsel %vm1022, %v1038, %v1039
      %v1041 = vrot.slane %v739, 1
      %v1042 = vrot.slane %v787, 1
      %v1043 = vsel %vm1022, %v1041, %v1042
      %v1044 = vrot.slane %v740, 1
      %v1045 = vrot.slane %v788, 1
      %v1046 = vsel %vm1022, %v1044, %v1045
      %v1047 = vrot.slane %v741, 1
      %v1048 = vrot.slane %v789, 1
      %v1049 = vsel %vm1022, %v1047, %v1048
      %v1050 = vrot.slane %v742, 1
      %v1051 = vrot.slane %v790, 1
      %v1052 = vsel %vm1022, %v1050, %v1051
      %v1053 = vrot.slane %v743, 1
      %v1054 = vrot.slane %v791, 1
      %v1055 = vsel %vm1022, %v1053, %v1054
      %v1056 = vrot.slane %v744, 1
      %v1057 = vrot.slane %v792, 1
      %v1058 = vsel %vm1022, %v1056, %v1057
      %v1059 = vrot.slane %v745, 1
      %v1060 = vrot.slane %v793, 1
      %v1061 = vsel %vm1022, %v1059, %v1060
      %v1062 = vrot.slane %v746, 1
      %v1063 = vrot.slane %v794, 1
      %v1064 = vsel %vm1022, %v1062, %v1063
      %v1065 = vrot.slane %v747, 1
      %v1066 = vrot.slane %v795, 1
      %v1067 = vsel %vm1022, %v1065, %v1066
      %v1068 = vrot.slane %v748, 1
      %v1069 = vrot.slane %v796, 1
      %v1070 = vsel %vm1022, %v1068, %v1069
      %1071 = vrot.lane.b32.xlu0 %v1025, 16
      %v1072 = vpop.permute.xlu0 %1071
      %1073 = vrot.lane.b32.xlu0 %v1028, 16
      %v1074 = vpop.permute.xlu0 %1073
      %1075 = vrot.lane.b32.xlu0 %v1031, 16
      %v1076 = vpop.permute.xlu0 %1075
      %1077 = vrot.lane.b32.xlu0 %v1034, 16
      %v1078 = vpop.permute.xlu0 %1077
      %1079 = vrot.lane.b32.xlu0 %v1037, 16
      %v1080 = vpop.permute.xlu0 %1079
      %1081 = vrot.lane.b32.xlu0 %v1040, 16
      %v1082 = vpop.permute.xlu0 %1081
      %1083 = vrot.lane.b32.xlu0 %v1043, 16
      %v1084 = vpop.permute.xlu0 %1083
      %1085 = vrot.lane.b32.xlu0 %v1046, 16
      %v1086 = vpop.permute.xlu0 %1085
      %1087 = vrot.lane.b32.xlu0 %v1049, 16
      %v1088 = vpop.permute.xlu0 %1087
      %1089 = vrot.lane.b32.xlu0 %v1052, 16
      %v1090 = vpop.permute.xlu0 %1089
      %1091 = vrot.lane.b32.xlu0 %v1055, 16
      %v1092 = vpop.permute.xlu0 %1091
      %1093 = vrot.lane.b32.xlu0 %v1058, 16
      %v1094 = vpop.permute.xlu0 %1093
      %1095 = vrot.lane.b32.xlu0 %v1061, 16
      %v1096 = vpop.permute.xlu0 %1095
      %1097 = vrot.lane.b32.xlu0 %v1064, 16
      %v1098 = vpop.permute.xlu0 %1097
      %1099 = vrot.lane.b32.xlu0 %v1067, 16
      %v1100 = vpop.permute.xlu0 %1099
      %1101 = vrot.lane.b32.xlu0 %v1070, 16
      %v1102 = vpop.permute.xlu0 %1101
      %v1105 = vunpack.c.l.b16 %v663
      %v1106 = vunpack.c.l.b16 %v664
      %v1107 = vpack.c.b16 %v1106, %v1105
      %1108 = vrot.lane.b32.xlu0 %v734, 24
      %v1109 = vpop.permute.xlu0 %1108
      %1110 = vrot.lane.b32.xlu0 %v735, 24
      %v1111 = vpop.permute.xlu0 %1110
      %1112 = vrot.lane.b32.xlu0 %v736, 24
      %v1113 = vpop.permute.xlu0 %1112
      %1114 = vrot.lane.b32.xlu0 %v737, 24
      %v1115 = vpop.permute.xlu0 %1114
      %1116 = vrot.lane.b32.xlu0 %v738, 24
      %v1117 = vpop.permute.xlu0 %1116
      %1118 = vrot.lane.b32.xlu0 %v739, 24
      %v1119 = vpop.permute.xlu0 %1118
      %1120 = vrot.lane.b32.xlu0 %v740, 24
      %v1121 = vpop.permute.xlu0 %1120
      %1122 = vrot.lane.b32.xlu0 %v741, 24
      %v1123 = vpop.permute.xlu0 %1122
      %1124 = vrot.lane.b32.xlu0 %v742, 24
      %v1125 = vpop.permute.xlu0 %1124
      %1126 = vrot.lane.b32.xlu0 %v743, 24
      %v1127 = vpop.permute.xlu0 %1126
      %1128 = vrot.lane.b32.xlu0 %v744, 24
      %v1129 = vpop.permute.xlu0 %1128
      %1130 = vrot.lane.b32.xlu0 %v745, 24
      %v1131 = vpop.permute.xlu0 %1130
      %1132 = vrot.lane.b32.xlu0 %v746, 24
      %v1133 = vpop.permute.xlu0 %1132
      %1134 = vrot.lane.b32.xlu0 %v747, 24
      %v1135 = vpop.permute.xlu0 %1134
      %1136 = vrot.lane.b32.xlu0 %v748, 24
      %v1137 = vpop.permute.xlu0 %1136
      %1138 = vrot.lane.b32.xlu0 %v1107, 24
      %v1139 = vpop.permute.xlu0 %1138
      %v1141 = vunpack.c.l.b16 %v665
      %v1142 = vpack.c.b16 %v1141, %v1141
      %v1144 = vshrl.u32 %v1107, 16
      %v1146 = vshll.u32 %v1107, 16
      %v1148 = vrot.slane %v1146, 1
      %v1149 = vor.u32 %v1144, %v1148
      %v1151 = vshll.u32 %v1142, 16
      %v1153 = vrot.slane %v1151, 1
      %v1154 = vsel %vm797, %v1149, %v1153
      %1155 = vrot.lane.b32.xlu0 %v821, 32
      %v1156 = vpop.permute.xlu0 %1155
      %1157 = vrot.lane.b32.xlu0 %v833, 32
      %v1158 = vpop.permute.xlu0 %1157
      %1159 = vrot.lane.b32.xlu0 %v845, 32
      %v1160 = vpop.permute.xlu0 %1159
      %1161 = vrot.lane.b32.xlu0 %v857, 32
      %v1162 = vpop.permute.xlu0 %1161
      %1163 = vrot.lane.b32.xlu0 %v869, 32
      %v1164 = vpop.permute.xlu0 %1163
      %1165 = vrot.lane.b32.xlu0 %v881, 32
      %v1166 = vpop.permute.xlu0 %1165
      %1167 = vrot.lane.b32.xlu0 %v893, 32
      %v1168 = vpop.permute.xlu0 %1167
      %1169 = vrot.lane.b32.xlu0 %v905, 32
      %v1170 = vpop.permute.xlu0 %1169
      %1171 = vrot.lane.b32.xlu0 %v917, 32
      %v1172 = vpop.permute.xlu0 %1171
      %1173 = vrot.lane.b32.xlu0 %v929, 32
      %v1174 = vpop.permute.xlu0 %1173
      %1175 = vrot.lane.b32.xlu0 %v941, 32
      %v1176 = vpop.permute.xlu0 %1175
      %1177 = vrot.lane.b32.xlu0 %v953, 32
      %v1178 = vpop.permute.xlu0 %1177
      %1179 = vrot.lane.b32.xlu0 %v965, 32
      %v1180 = vpop.permute.xlu0 %1179
      %1181 = vrot.lane.b32.xlu0 %v977, 32
      %v1182 = vpop.permute.xlu0 %1181
      %1183 = vrot.lane.b32.xlu0 %v989, 32
      %v1184 = vpop.permute.xlu0 %1183
      %1185 = vrot.lane.b32.xlu0 %v1154, 32
      %v1186 = vpop.permute.xlu0 %1185
      %v1187 = vrot.slane %v1107, 1
      %v1188 = vrot.slane %v1142, 1
      %v1189 = vsel %vm1022, %v1187, %v1188
      %1190 = vrot.lane.b32.xlu0 %v1028, 40
      %v1191 = vpop.permute.xlu0 %1190
      %1192 = vrot.lane.b32.xlu0 %v1031, 40
      %v1193 = vpop.permute.xlu0 %1192
      %1194 = vrot.lane.b32.xlu0 %v1034, 40
      %v1195 = vpop.permute.xlu0 %1194
      %1196 = vrot.lane.b32.xlu0 %v1037, 40
      %v1197 = vpop.permute.xlu0 %1196
      %1198 = vrot.lane.b32.xlu0 %v1040, 40
      %v1199 = vpop.permute.xlu0 %1198
      %1200 = vrot.lane.b32.xlu0 %v1043, 40
      %v1201 = vpop.permute.xlu0 %1200
      %1202 = vrot.lane.b32.xlu0 %v1046, 40
      %v1203 = vpop.permute.xlu0 %1202
      %1204 = vrot.lane.b32.xlu0 %v1049, 40
      %v1205 = vpop.permute.xlu0 %1204
      %1206 = vrot.lane.b32.xlu0 %v1052, 40
      %v1207 = vpop.permute.xlu0 %1206
      %1208 = vrot.lane.b32.xlu0 %v1055, 40
      %v1209 = vpop.permute.xlu0 %1208
      %1210 = vrot.lane.b32.xlu0 %v1058, 40
      %v1211 = vpop.permute.xlu0 %1210
      %1212 = vrot.lane.b32.xlu0 %v1061, 40
      %v1213 = vpop.permute.xlu0 %1212
      %1214 = vrot.lane.b32.xlu0 %v1064, 40
      %v1215 = vpop.permute.xlu0 %1214
      %1216 = vrot.lane.b32.xlu0 %v1067, 40
      %v1217 = vpop.permute.xlu0 %1216
      %1218 = vrot.lane.b32.xlu0 %v1070, 40
      %v1219 = vpop.permute.xlu0 %1218
      %1220 = vrot.lane.b32.xlu0 %v1189, 40
      %v1221 = vpop.permute.xlu0 %1220
      %v1224 = vunpack.c.l.b16 %v666
      %v1225 = vunpack.c.l.b16 %v667
      %v1226 = vpack.c.b16 %v1225, %v1224
      %1227 = vrot.lane.b32.xlu0 %v735, 48
      %v1228 = vpop.permute.xlu0 %1227
      %1229 = vrot.lane.b32.xlu0 %v736, 48
      %v1230 = vpop.permute.xlu0 %1229
      %1231 = vrot.lane.b32.xlu0 %v737, 48
      %v1232 = vpop.permute.xlu0 %1231
      %1233 = vrot.lane.b32.xlu0 %v738, 48
      %v1234 = vpop.permute.xlu0 %1233
      %1235 = vrot.lane.b32.xlu0 %v739, 48
      %v1236 = vpop.permute.xlu0 %1235
      %1237 = vrot.lane.b32.xlu0 %v740, 48
      %v1238 = vpop.permute.xlu0 %1237
      %1239 = vrot.lane.b32.xlu0 %v741, 48
      %v1240 = vpop.permute.xlu0 %1239
      %1241 = vrot.lane.b32.xlu0 %v742, 48
      %v1242 = vpop.permute.xlu0 %1241
      %1243 = vrot.lane.b32.xlu0 %v743, 48
      %v1244 = vpop.permute.xlu0 %1243
      %1245 = vrot.lane.b32.xlu0 %v744, 48
      %v1246 = vpop.permute.xlu0 %1245
      %1247 = vrot.lane.b32.xlu0 %v745, 48
      %v1248 = vpop.permute.xlu0 %1247
      %1249 = vrot.lane.b32.xlu0 %v746, 48
      %v1250 = vpop.permute.xlu0 %1249
      %1251 = vrot.lane.b32.xlu0 %v747, 48
      %v1252 = vpop.permute.xlu0 %1251
      %1253 = vrot.lane.b32.xlu0 %v748, 48
      %v1254 = vpop.permute.xlu0 %1253
      %1255 = vrot.lane.b32.xlu0 %v1107, 48
      %v1256 = vpop.permute.xlu0 %1255
      %1257 = vrot.lane.b32.xlu0 %v1226, 48
      %v1258 = vpop.permute.xlu0 %1257
      %v1260 = vunpack.c.l.b16 %v668
      %v1261 = vpack.c.b16 %v1260, %v1260
      %v1263 = vshrl.u32 %v1226, 16
      %v1265 = vshll.u32 %v1226, 16
      %v1267 = vrot.slane %v1265, 1
      %v1268 = vor.u32 %v1263, %v1267
      %v1270 = vshll.u32 %v1261, 16
      %v1272 = vrot.slane %v1270, 1
      %v1273 = vsel %vm797, %v1268, %v1272
      %1274 = vrot.lane.b32.xlu0 %v833, 56
      %v1275 = vpop.permute.xlu0 %1274
      %1276 = vrot.lane.b32.xlu0 %v845, 56
      %v1277 = vpop.permute.xlu0 %1276
      %1278 = vrot.lane.b32.xlu0 %v857, 56
      %v1279 = vpop.permute.xlu0 %1278
      %1280 = vrot.lane.b32.xlu0 %v869, 56
      %v1281 = vpop.permute.xlu0 %1280
      %1282 = vrot.lane.b32.xlu0 %v881, 56
      %v1283 = vpop.permute.xlu0 %1282
      %1284 = vrot.lane.b32.xlu0 %v893, 56
      %v1285 = vpop.permute.xlu0 %1284
      %1286 = vrot.lane.b32.xlu0 %v905, 56
      %v1287 = vpop.permute.xlu0 %1286
      %1288 = vrot.lane.b32.xlu0 %v917, 56
      %v1289 = vpop.permute.xlu0 %1288
      %1290 = vrot.lane.b32.xlu0 %v929, 56
      %v1291 = vpop.permute.xlu0 %1290
      %1292 = vrot.lane.b32.xlu0 %v941, 56
      %v1293 = vpop.permute.xlu0 %1292
      %1294 = vrot.lane.b32.xlu0 %v953, 56
      %v1295 = vpop.permute.xlu0 %1294
      %1296 = vrot.lane.b32.xlu0 %v965, 56
      %v1297 = vpop.permute.xlu0 %1296
      %1298 = vrot.lane.b32.xlu0 %v977, 56
      %v1299 = vpop.permute.xlu0 %1298
      %1300 = vrot.lane.b32.xlu0 %v989, 56
      %v1301 = vpop.permute.xlu0 %1300
      %1302 = vrot.lane.b32.xlu0 %v1154, 56
      %v1303 = vpop.permute.xlu0 %1302
      %1304 = vrot.lane.b32.xlu0 %v1273, 56
      %v1305 = vpop.permute.xlu0 %1304
      %v1306 = vrot.slane %v1226, 1
      %v1307 = vrot.slane %v1261, 1
      %v1308 = vsel %vm1022, %v1306, %v1307
      %1309 = vrot.lane.b32.xlu0 %v1031, 64
      %v1310 = vpop.permute.xlu0 %1309
      %1311 = vrot.lane.b32.xlu0 %v1034, 64
      %v1312 = vpop.permute.xlu0 %1311
      %1313 = vrot.lane.b32.xlu0 %v1037, 64
      %v1314 = vpop.permute.xlu0 %1313
      %1315 = vrot.lane.b32.xlu0 %v1040, 64
      %v1316 = vpop.permute.xlu0 %1315
      %1317 = vrot.lane.b32.xlu0 %v1043, 64
      %v1318 = vpop.permute.xlu0 %1317
      %1319 = vrot.lane.b32.xlu0 %v1046, 64
      %v1320 = vpop.permute.xlu0 %1319
      %1321 = vrot.lane.b32.xlu0 %v1049, 64
      %v1322 = vpop.permute.xlu0 %1321
      %1323 = vrot.lane.b32.xlu0 %v1052, 64
      %v1324 = vpop.permute.xlu0 %1323
      %1325 = vrot.lane.b32.xlu0 %v1055, 64
      %v1326 = vpop.permute.xlu0 %1325
      %1327 = vrot.lane.b32.xlu0 %v1058, 64
      %v1328 = vpop.permute.xlu0 %1327
      %1329 = vrot.lane.b32.xlu0 %v1061, 64
      %v1330 = vpop.permute.xlu0 %1329
      %1331 = vrot.lane.b32.xlu0 %v1064, 64
      %v1332 = vpop.permute.xlu0 %1331
      %1333 = vrot.lane.b32.xlu0 %v1067, 64
      %v1334 = vpop.permute.xlu0 %1333
      %1335 = vrot.lane.b32.xlu0 %v1070, 64
      %v1336 = vpop.permute.xlu0 %1335
      %1337 = vrot.lane.b32.xlu0 %v1189, 64
      %v1338 = vpop.permute.xlu0 %1337
      %1339 = vrot.lane.b32.xlu0 %v1308, 64
      %v1340 = vpop.permute.xlu0 %1339
      %vm1341 = vcmask 64512
      %v1343 = vsel %vm1341, %v733, %v991
      %v1345 = vsel %vm1341, %v734, %v993
      %v1347 = vsel %vm1341, %v735, %v995
      %v1349 = vsel %vm1341, %v736, %v997
      %v1351 = vsel %vm1341, %v737, %v999
      %v1353 = vsel %vm1341, %v738, %v1001
      %v1355 = vsel %vm1341, %v739, %v1003
      %v1357 = vsel %vm1341, %v740, %v1005
      %v1359 = vsel %vm1341, %v741, %v1007
      %v1361 = vsel %vm1341, %v742, %v1009
      %v1363 = vsel %vm1341, %v743, %v1011
      %v1365 = vsel %vm1341, %v744, %v1013
      %v1367 = vsel %vm1341, %v745, %v1015
      %v1369 = vsel %vm1341, %v746, %v1017
      %v1371 = vsel %vm1341, %v747, %v1019
      %v1373 = vsel %vm1341, %v748, %v1021
      %vm1374 = vcmask 130048
      %v1376 = vsel %vm1374, %v1343, %v1072
      %v1378 = vsel %vm1374, %v1345, %v1074
      %v1380 = vsel %vm1374, %v1347, %v1076
      %v1382 = vsel %vm1374, %v1349, %v1078
      %v1384 = vsel %vm1374, %v1351, %v1080
      %v1386 = vsel %vm1374, %v1353, %v1082
      %v1388 = vsel %vm1374, %v1355, %v1084
      %v1390 = vsel %vm1374, %v1357, %v1086
      %v1392 = vsel %vm1374, %v1359, %v1088
      %v1394 = vsel %vm1374, %v1361, %v1090
      %v1396 = vsel %vm1374, %v1363, %v1092
      %v1398 = vsel %vm1374, %v1365, %v1094
      %v1400 = vsel %vm1374, %v1367, %v1096
      %v1402 = vsel %vm1374, %v1369, %v1098
      %v1404 = vsel %vm1374, %v1371, %v1100
      %v1406 = vsel %vm1374, %v1373, %v1102
      %vm1407 = vcmask 195584
      %v1409 = vsel %vm1407, %v1376, %v1109
      %v1411 = vsel %vm1407, %v1378, %v1111
      %v1413 = vsel %vm1407, %v1380, %v1113
      %v1415 = vsel %vm1407, %v1382, %v1115
      %v1417 = vsel %vm1407, %v1384, %v1117
      %v1419 = vsel %vm1407, %v1386, %v1119
      %v1421 = vsel %vm1407, %v1388, %v1121
      %v1423 = vsel %vm1407, %v1390, %v1123
      %v1425 = vsel %vm1407, %v1392, %v1125
      %v1427 = vsel %vm1407, %v1394, %v1127
      %v1429 = vsel %vm1407, %v1396, %v1129
      %v1431 = vsel %vm1407, %v1398, %v1131
      %v1433 = vsel %vm1407, %v1400, %v1133
      %v1435 = vsel %vm1407, %v1402, %v1135
      %v1437 = vsel %vm1407, %v1404, %v1137
      %v1439 = vsel %vm1407, %v1406, %v1139
      %vm1440 = vcmask 261120
      %v1442 = vsel %vm1440, %v1409, %v1156
      %v1444 = vsel %vm1440, %v1411, %v1158
      %v1446 = vsel %vm1440, %v1413, %v1160
      %v1448 = vsel %vm1440, %v1415, %v1162
      %v1450 = vsel %vm1440, %v1417, %v1164
      %v1452 = vsel %vm1440, %v1419, %v1166
      %v1454 = vsel %vm1440, %v1421, %v1168
      %v1456 = vsel %vm1440, %v1423, %v1170
      %v1458 = vsel %vm1440, %v1425, %v1172
      %v1460 = vsel %vm1440, %v1427, %v1174
      %v1462 = vsel %vm1440, %v1429, %v1176
      %v1464 = vsel %vm1440, %v1431, %v1178
      %v1466 = vsel %vm1440, %v1433, %v1180
      %v1468 = vsel %vm1440, %v1435, %v1182
      %v1470 = vsel %vm1440, %v1437, %v1184
      %v1472 = vsel %vm1440, %v1439, %v1186
      %vm1473 = vcmask 326656
      %v1475 = vsel %vm1473, %v1442, %v1191
      %v1477 = vsel %vm1473, %v1444, %v1193
      %v1479 = vsel %vm1473, %v1446, %v1195
      %v1481 = vsel %vm1473, %v1448, %v1197
      %v1483 = vsel %vm1473, %v1450, %v1199
      %v1485 = vsel %vm1473, %v1452, %v1201
      %v1487 = vsel %vm1473, %v1454, %v1203
      %v1489 = vsel %vm1473, %v1456, %v1205
      %v1491 = vsel %vm1473, %v1458, %v1207
      %v1493 = vsel %vm1473, %v1460, %v1209
      %v1495 = vsel %vm1473, %v1462, %v1211
      %v1497 = vsel %vm1473, %v1464, %v1213
      %v1499 = vsel %vm1473, %v1466, %v1215
      %v1501 = vsel %vm1473, %v1468, %v1217
      %v1503 = vsel %vm1473, %v1470, %v1219
      %v1505 = vsel %vm1473, %v1472, %v1221
      %vm1506 = vcmask 392192
      %v1508 = vsel %vm1506, %v1475, %v1228
      %v1510 = vsel %vm1506, %v1477, %v1230
      %v1512 = vsel %vm1506, %v1479, %v1232
      %v1514 = vsel %vm1506, %v1481, %v1234
      %v1516 = vsel %vm1506, %v1483, %v1236
      %v1518 = vsel %vm1506, %v1485, %v1238
      %v1520 = vsel %vm1506, %v1487, %v1240
      %v1522 = vsel %vm1506, %v1489, %v1242
      %v1524 = vsel %vm1506, %v1491, %v1244
      %v1526 = vsel %vm1506, %v1493, %v1246
      %v1528 = vsel %vm1506, %v1495, %v1248
      %v1530 = vsel %vm1506, %v1497, %v1250
      %v1532 = vsel %vm1506, %v1499, %v1252
      %v1534 = vsel %vm1506, %v1501, %v1254
      %v1536 = vsel %vm1506, %v1503, %v1256
      %v1538 = vsel %vm1506, %v1505, %v1258
      %vm1539 = vcmask 457728
      %v1541 = vsel %vm1539, %v1508, %v1275
      %v1543 = vsel %vm1539, %v1510, %v1277
      %v1545 = vsel %vm1539, %v1512, %v1279
      %v1547 = vsel %vm1539, %v1514, %v1281
      %v1549 = vsel %vm1539, %v1516, %v1283
      %v1551 = vsel %vm1539, %v1518, %v1285
      %v1553 = vsel %vm1539, %v1520, %v1287
      %v1555 = vsel %vm1539, %v1522, %v1289
      %v1557 = vsel %vm1539, %v1524, %v1291
      %v1559 = vsel %vm1539, %v1526, %v1293
      %v1561 = vsel %vm1539, %v1528, %v1295
      %v1563 = vsel %vm1539, %v1530, %v1297
      %v1565 = vsel %vm1539, %v1532, %v1299
      %v1567 = vsel %vm1539, %v1534, %v1301
      %v1569 = vsel %vm1539, %v1536, %v1303
      %v1571 = vsel %vm1539, %v1538, %v1305
      %vm1572 = vcmask 523264
      %v1574 = vsel %vm1572, %v1541, %v1310
      %v1576 = vsel %vm1572, %v1543, %v1312
      %v1578 = vsel %vm1572, %v1545, %v1314
      %v1580 = vsel %vm1572, %v1547, %v1316
      %v1582 = vsel %vm1572, %v1549, %v1318
      %v1584 = vsel %vm1572, %v1551, %v1320
      %v1586 = vsel %vm1572, %v1553, %v1322
      %v1588 = vsel %vm1572, %v1555, %v1324
      %v1590 = vsel %vm1572, %v1557, %v1326
      %v1592 = vsel %vm1572, %v1559, %v1328
      %v1594 = vsel %vm1572, %v1561, %v1330
      %v1596 = vsel %vm1572, %v1563, %v1332
      %v1598 = vsel %vm1572, %v1565, %v1334
      %v1600 = vsel %vm1572, %v1567, %v1336
      %v1602 = vsel %vm1572, %v1569, %v1338
      %v1604 = vsel %vm1572, %v1571, %v1340
      %v1605 = vld [vmem:[%s323] sm:$0xf]
      %v1606 = vld [vmem:[%s323 + $0x4] sm:$0xf]
      %v1607 = vld [vmem:[%s323 + $0x8] sm:$0xf]
      %v1608 = vld [vmem:[%s323 + $0xc] sm:$0xf]
      %v1609 = vld [vmem:[%s323 + $0x10] sm:$0xf]
      %v1610 = vld [vmem:[%s323 + $0x14] sm:$0xf]
      %v1611 = vld [vmem:[%s323 + $0x18] sm:$0xf]
      %v1612 = vld [vmem:[%s323 + $0x1c] sm:$0xf]
      %v1613 = vld [vmem:[%s323 + $0x20] sm:$0xf]
      %v1623 = vunpack.c.l.b16 %v1605
      %v1624 = vunpack.c.l.b16 %v1606
      %v1625 = vunpack.c.l.b16 %v1607
      %v1626 = vunpack.c.l.b16 %v1608
      %v1627 = vunpack.c.l.b16 %v1609
      %v1628 = vunpack.c.l.b16 %v1610
      %v1629 = vunpack.c.l.b16 %v1611
      %v1630 = vunpack.c.l.b16 %v1612
      %v1631 = vunpack.c.l.b16 %v1613
      %v1632 = vpack.c.b16 %v1624, %v1623
      %v1633 = vpack.c.b16 %v1626, %v1625
      %v1634 = vpack.c.b16 %v1628, %v1627
      %v1635 = vpack.c.b16 %v1630, %v1629
      %v1636 = vpack.c.b16 %v1631, %v1631
      %vm1641 = vcmask 588800
      %v1642 = vsel %vm1641, %v1574, 0
      %v1644 = vsel %vm1641, %v1576, 0
      %v1646 = vsel %vm1641, %v1578, 0
      %v1648 = vsel %vm1641, %v1580, 0
      %v1650 = vsel %vm1641, %v1582, 0
      %v1652 = vsel %vm1641, %v1584, 0
      %v1654 = vsel %vm1641, %v1586, 0
      %v1656 = vsel %vm1641, %v1588, 0
      %v1658 = vsel %vm1641, %v1590, 0
      %v1660 = vsel %vm1641, %v1592, 0
      %v1662 = vsel %vm1641, %v1594, 0
      %v1664 = vsel %vm1641, %v1596, 0
      %v1666 = vsel %vm1641, %v1598, 0
      %v1668 = vsel %vm1641, %v1600, 0
      %v1670 = vsel %vm1641, %v1602, 0
      %v1672 = vsel %vm1641, %v1604, 0
      %vm1674 = vcmask 1043456
      %v1676 = vsel %vm1674, %v1636, 0
      %1678 = vmatpush.bf16.msra.mxu0 0
      %1679 = vmatpush.bf16.msra.mxu0 0
      %1680 = vmatpush.bf16.msra.mxu0 0
      %1681 = vmatpush.bf16.msra.mxu0 %v1676
      %1682 = vmatpush.bf16.msra.mxu0 %v1635
      %1683 = vmatpush.bf16.msra.mxu0 %v1634
      %1684 = vmatpush.bf16.msra.mxu0 %v1633
      %1685 = vmatpush.bf16.msra.mxu0 %v1632
      %1686 = vmatmul.bf16.gmra.mxu0 %v1642
      %v1687 = vpop.f32.mrf.mxu0
      %v1688 = vadd.f32 0.0, %v1687
      %v1689 = vpop.f32.mrf.mxu0
      %v1690 = vadd.f32 0.0, %v1689
      %1691 = vmatmul.bf16.gmra.mxu0 %v1644
      %v1692 = vpop.f32.mrf.mxu0
      %v1693 = vadd.f32 0.0, %v1692
      %v1694 = vpop.f32.mrf.mxu0
      %v1695 = vadd.f32 0.0, %v1694
      %1696 = vmatmul.bf16.gmra.mxu0 %v1646
      %v1697 = vpop.f32.mrf.mxu0
      %v1698 = vadd.f32 0.0, %v1697
      %v1699 = vpop.f32.mrf.mxu0
      %v1700 = vadd.f32 0.0, %v1699
      %1701 = vmatmul.bf16.gmra.mxu0 %v1648
      %v1702 = vpop.f32.mrf.mxu0
      %v1703 = vadd.f32 0.0, %v1702
      %v1704 = vpop.f32.mrf.mxu0
      %v1705 = vadd.f32 0.0, %v1704
      %1706 = vmatmul.bf16.gmra.mxu0 %v1650
      %v1707 = vpop.f32.mrf.mxu0
      %v1708 = vadd.f32 0.0, %v1707
      %v1709 = vpop.f32.mrf.mxu0
      %v1710 = vadd.f32 0.0, %v1709
      %1711 = vmatmul.bf16.gmra.mxu0 %v1652
      %v1712 = vpop.f32.mrf.mxu0
      %v1713 = vadd.f32 0.0, %v1712
      %v1714 = vpop.f32.mrf.mxu0
      %v1715 = vadd.f32 0.0, %v1714
      %1716 = vmatmul.bf16.gmra.mxu0 %v1654
      %v1717 = vpop.f32.mrf.mxu0
      %v1718 = vadd.f32 0.0, %v1717
      %v1719 = vpop.f32.mrf.mxu0
      %v1720 = vadd.f32 0.0, %v1719
      %1721 = vmatmul.bf16.gmra.mxu0 %v1656
      %v1722 = vpop.f32.mrf.mxu0
      %v1723 = vadd.f32 0.0, %v1722
      %v1724 = vpop.f32.mrf.mxu0
      %v1725 = vadd.f32 0.0, %v1724
      %1726 = vmatmul.bf16.gmra.mxu0 %v1658
      %v1727 = vpop.f32.mrf.mxu0
      %v1728 = vadd.f32 0.0, %v1727
      %v1729 = vpop.f32.mrf.mxu0
      %v1730 = vadd.f32 0.0, %v1729
      %1731 = vmatmul.bf16.gmra.mxu0 %v1660
      %v1732 = vpop.f32.mrf.mxu0
      %v1733 = vadd.f32 0.0, %v1732
      %v1734 = vpop.f32.mrf.mxu0
      %v1735 = vadd.f32 0.0, %v1734
      %1736 = vmatmul.bf16.gmra.mxu0 %v1662
      %v1737 = vpop.f32.mrf.mxu0
      %v1738 = vadd.f32 0.0, %v1737
      %v1739 = vpop.f32.mrf.mxu0
      %v1740 = vadd.f32 0.0, %v1739
      %1741 = vmatmul.bf16.gmra.mxu0 %v1664
      %v1742 = vpop.f32.mrf.mxu0
      %v1743 = vadd.f32 0.0, %v1742
      %v1744 = vpop.f32.mrf.mxu0
      %v1745 = vadd.f32 0.0, %v1744
      %1746 = vmatmul.bf16.gmra.mxu0 %v1666
      %v1747 = vpop.f32.mrf.mxu0
      %v1748 = vadd.f32 0.0, %v1747
      %v1749 = vpop.f32.mrf.mxu0
      %v1750 = vadd.f32 0.0, %v1749
      %1751 = vmatmul.bf16.gmra.mxu0 %v1668
      %v1752 = vpop.f32.mrf.mxu0
      %v1753 = vadd.f32 0.0, %v1752
      %v1754 = vpop.f32.mrf.mxu0
      %v1755 = vadd.f32 0.0, %v1754
      %1756 = vmatmul.bf16.gmra.mxu0 %v1670
      %v1757 = vpop.f32.mrf.mxu0
      %v1758 = vadd.f32 0.0, %v1757
      %v1759 = vpop.f32.mrf.mxu0
      %v1760 = vadd.f32 0.0, %v1759
      %1761 = vmatmul.bf16.gmra.mxu0 %v1672
      %v1762 = vpop.f32.mrf.mxu0
      %v1763 = vadd.f32 0.0, %v1762
      %v1764 = vpop.f32.mrf.mxu0
      %v1765 = vadd.f32 0.0, %v1764
      %1766 = vdwg.mxu0
      %v1767 = vld [vmem:[%s326] sm:$0x1]
      %v1769 = vperm.slane %v1767, 0
      %v1771 = vmul.f32 %v1688, %v1769
      %v1772 = vmul.f32 %v1690, %v1769
      %v1773 = vmul.f32 %v1693, %v1769
      %v1774 = vmul.f32 %v1695, %v1769
      %v1775 = vmul.f32 %v1698, %v1769
      %v1776 = vmul.f32 %v1700, %v1769
      %v1777 = vmul.f32 %v1703, %v1769
      %v1778 = vmul.f32 %v1705, %v1769
      %v1779 = vmul.f32 %v1708, %v1769
      %v1780 = vmul.f32 %v1710, %v1769
      %v1781 = vmul.f32 %v1713, %v1769
      %v1782 = vmul.f32 %v1715, %v1769
      %v1783 = vmul.f32 %v1718, %v1769
      %v1784 = vmul.f32 %v1720, %v1769
      %v1785 = vmul.f32 %v1723, %v1769
      %v1786 = vmul.f32 %v1725, %v1769
      %v1787 = vmul.f32 %v1728, %v1769
      %v1788 = vmul.f32 %v1730, %v1769
      %v1789 = vmul.f32 %v1733, %v1769
      %v1790 = vmul.f32 %v1735, %v1769
      %v1791 = vmul.f32 %v1738, %v1769
      %v1792 = vmul.f32 %v1740, %v1769
      %v1793 = vmul.f32 %v1743, %v1769
      %v1794 = vmul.f32 %v1745, %v1769
      %v1795 = vmul.f32 %v1748, %v1769
      %v1796 = vmul.f32 %v1750, %v1769
      %v1797 = vmul.f32 %v1753, %v1769
      %v1798 = vmul.f32 %v1755, %v1769
      %v1799 = vmul.f32 %v1758, %v1769
      %v1800 = vmul.f32 %v1760, %v1769
      %v1801 = vmul.f32 %v1763, %v1769
      %v1802 = vmul.f32 %v1765, %v1769
      %v1803 = vld [vmem:[%s329] sm:$0x1]
      %v1805 = vperm.slane %v1803, 0
      %v1807 = vadd.f32 %v1771, %v1805
      %v1808 = vadd.f32 %v1772, %v1805
      %v1809 = vadd.f32 %v1773, %v1805
      %v1810 = vadd.f32 %v1774, %v1805
      %v1811 = vadd.f32 %v1775, %v1805
      %v1812 = vadd.f32 %v1776, %v1805
      %v1813 = vadd.f32 %v1777, %v1805
      %v1814 = vadd.f32 %v1778, %v1805
      %v1815 = vadd.f32 %v1779, %v1805
      %v1816 = vadd.f32 %v1780, %v1805
      %v1817 = vadd.f32 %v1781, %v1805
      %v1818 = vadd.f32 %v1782, %v1805
      %v1819 = vadd.f32 %v1783, %v1805
      %v1820 = vadd.f32 %v1784, %v1805
      %v1821 = vadd.f32 %v1785, %v1805
      %v1822 = vadd.f32 %v1786, %v1805
      %v1823 = vadd.f32 %v1787, %v1805
      %v1824 = vadd.f32 %v1788, %v1805
      %v1825 = vadd.f32 %v1789, %v1805
      %v1826 = vadd.f32 %v1790, %v1805
      %v1827 = vadd.f32 %v1791, %v1805
      %v1828 = vadd.f32 %v1792, %v1805
      %v1829 = vadd.f32 %v1793, %v1805
      %v1830 = vadd.f32 %v1794, %v1805
      %v1831 = vadd.f32 %v1795, %v1805
      %v1832 = vadd.f32 %v1796, %v1805
      %v1833 = vadd.f32 %v1797, %v1805
      %v1834 = vadd.f32 %v1798, %v1805
      %v1835 = vadd.f32 %v1799, %v1805
      %v1836 = vadd.f32 %v1800, %v1805
      %v1837 = vadd.f32 %v1801, %v1805
      %v1838 = vadd.f32 %v1802, %v1805
      %v1839 = vmax.f32 %v1807, 0.0
      %v1840 = vmax.f32 %v1808, 0.0
      %v1841 = vmax.f32 %v1809, 0.0
      %v1842 = vmax.f32 %v1810, 0.0
      %v1843 = vmax.f32 %v1811, 0.0
      %v1844 = vmax.f32 %v1812, 0.0
      %v1845 = vmax.f32 %v1813, 0.0
      %v1846 = vmax.f32 %v1814, 0.0
      %v1847 = vmax.f32 %v1815, 0.0
      %v1848 = vmax.f32 %v1816, 0.0
      %v1849 = vmax.f32 %v1817, 0.0
      %v1850 = vmax.f32 %v1818, 0.0
      %v1851 = vmax.f32 %v1819, 0.0
      %v1852 = vmax.f32 %v1820, 0.0
      %v1853 = vmax.f32 %v1821, 0.0
      %v1854 = vmax.f32 %v1822, 0.0
      %v1855 = vmax.f32 %v1823, 0.0
      %v1856 = vmax.f32 %v1824, 0.0
      %v1857 = vmax.f32 %v1825, 0.0
      %v1858 = vmax.f32 %v1826, 0.0
      %v1859 = vmax.f32 %v1827, 0.0
      %v1860 = vmax.f32 %v1828, 0.0
      %v1861 = vmax.f32 %v1829, 0.0
      %v1862 = vmax.f32 %v1830, 0.0
      %v1863 = vmax.f32 %v1831, 0.0
      %v1864 = vmax.f32 %v1832, 0.0
      %v1865 = vmax.f32 %v1833, 0.0
      %v1866 = vmax.f32 %v1834, 0.0
      %v1867 = vmax.f32 %v1835, 0.0
      %v1868 = vmax.f32 %v1836, 0.0
      %v1869 = vmax.f32 %v1837, 0.0
      %v1870 = vmax.f32 %v1838, 0.0
      %v1871 = vpack.c.bf16 %v1839, %v1839
      %v1872 = vpack.c.bf16 %v1840, %v1840
      %v1873 = vpack.c.bf16 %v1841, %v1841
      %v1874 = vpack.c.bf16 %v1842, %v1842
      %v1875 = vpack.c.bf16 %v1843, %v1843
      %v1876 = vpack.c.bf16 %v1844, %v1844
      %v1877 = vpack.c.bf16 %v1845, %v1845
      %v1878 = vpack.c.bf16 %v1846, %v1846
      %v1879 = vpack.c.bf16 %v1847, %v1847
      %v1880 = vpack.c.bf16 %v1848, %v1848
      %v1881 = vpack.c.bf16 %v1849, %v1849
      %v1882 = vpack.c.bf16 %v1850, %v1850
      %v1883 = vpack.c.bf16 %v1851, %v1851
      %v1884 = vpack.c.bf16 %v1852, %v1852
      %v1885 = vpack.c.bf16 %v1853, %v1853
      %v1886 = vpack.c.bf16 %v1854, %v1854
      %v1887 = vpack.c.bf16 %v1855, %v1855
      %v1888 = vpack.c.bf16 %v1856, %v1856
      %v1889 = vpack.c.bf16 %v1857, %v1857
      %v1890 = vpack.c.bf16 %v1858, %v1858
      %v1891 = vpack.c.bf16 %v1859, %v1859
      %v1892 = vpack.c.bf16 %v1860, %v1860
      %v1893 = vpack.c.bf16 %v1861, %v1861
      %v1894 = vpack.c.bf16 %v1862, %v1862
      %v1895 = vpack.c.bf16 %v1863, %v1863
      %v1896 = vpack.c.bf16 %v1864, %v1864
      %v1897 = vpack.c.bf16 %v1865, %v1865
      %v1898 = vpack.c.bf16 %v1866, %v1866
      %v1899 = vpack.c.bf16 %v1867, %v1867
      %v1900 = vpack.c.bf16 %v1868, %v1868
      %v1901 = vpack.c.bf16 %v1869, %v1869
      %v1902 = vpack.c.bf16 %v1870, %v1870
      %1903 = vst [vmem:[%s342] sm:$0xf] %v1871
      %1904 = vst [vmem:[%s342 + $0x4] sm:$0xf] %v1872
      %1905 = vst [vmem:[%s342 + $0x8] sm:$0xf] %v1873
      %1906 = vst [vmem:[%s342 + $0xc] sm:$0xf] %v1874
      %1907 = vst [vmem:[%s342 + $0x10] sm:$0xf] %v1875
      %1908 = vst [vmem:[%s342 + $0x14] sm:$0xf] %v1876
      %1909 = vst [vmem:[%s342 + $0x18] sm:$0xf] %v1877
      %1910 = vst [vmem:[%s342 + $0x1c] sm:$0xf] %v1878
      %1911 = vst [vmem:[%s342 + $0x20] sm:$0xf] %v1879
      %1912 = vst [vmem:[%s342 + $0x24] sm:$0xf] %v1880
      %1913 = vst [vmem:[%s342 + $0x28] sm:$0xf] %v1881
      %1914 = vst [vmem:[%s342 + $0x2c] sm:$0xf] %v1882
      %1915 = vst [vmem:[%s342 + $0x30] sm:$0xf] %v1883
      %1916 = vst [vmem:[%s342 + $0x34] sm:$0xf] %v1884
      %1917 = vst [vmem:[%s342 + $0x38] sm:$0xf] %v1885
      %1918 = vst [vmem:[%s342 + $0x3c] sm:$0xf] %v1886
      %1919 = vst [vmem:[%s342 + $0x40] sm:$0xf] %v1887
      %1920 = vst [vmem:[%s342 + $0x44] sm:$0xf] %v1888
      %1921 = vst [vmem:[%s342 + $0x48] sm:$0xf] %v1889
      %1922 = vst [vmem:[%s342 + $0x4c] sm:$0xf] %v1890
      %1923 = vst [vmem:[%s342 + $0x50] sm:$0xf] %v1891
      %1924 = vst [vmem:[%s342 + $0x54] sm:$0xf] %v1892
      %1925 = vst [vmem:[%s342 + $0x58] sm:$0xf] %v1893
      %1926 = vst [vmem:[%s342 + $0x5c] sm:$0xf] %v1894
      %1927 = vst [vmem:[%s342 + $0x60] sm:$0xf] %v1895
      %1928 = vst [vmem:[%s342 + $0x64] sm:$0xf] %v1896
      %1929 = vst [vmem:[%s342 + $0x68] sm:$0xf] %v1897
      %1930 = vst [vmem:[%s342 + $0x6c] sm:$0xf] %v1898
      %1931 = vst [vmem:[%s342 + $0x70] sm:$0xf] %v1899
      %1932 = vst [vmem:[%s342 + $0x74] sm:$0xf] %v1900
      %1933 = vst [vmem:[%s342 + $0x78] sm:$0xf] %v1901
      %1934 = vst [vmem:[%s342 + $0x7c] sm:$0xf] %v1902
      %s1935 = smul.u32 16, %s22
      %p1936 = scmp.lt.s32.totalorder %s21, 1
      %s1937 = scalar_select %p1936, %s21, 1
      %p1938 = scmp.lt.s32.totalorder %s1935, 15
      %s1939 = scalar_select %p1938, %s1935, 15
      %p1940 = scmp.lt.s32.totalorder %s23, 0
      %s1941 = scalar_select %p1940, %s23, 0
      %s1942 = smul.addr %s1939, 2
      %s1943 = sadd.s32 %s1941, %s1942
      %s1944 = smul.addr %s1937, 32
      %s1945 = sadd.s32 %s1943, %s1944
      %s1946 = smul.addr %s1945, 4
      %s1947 = scalar_lea.vmem %s5, %s1946
      // Predicated region
      $region41: #{cam_forward.5} parent=39 // pred_check
        %p1948 = pneg %p191
      $region42: #{cam_forward.5} parent=39 // pred_check_branch
        %1950 = sbr.rel (%p1948) target = $region44
      $region43: #{cam_forward.5} parent=39 // pred_region
        %s1951 = smul.u32 16, %s22
      $region44: #{cam_forward.5} parent=39 // pred_fallthru
        _
    $region40: #{cam_forward.5} parent=5 // pred_fallthru
      _
    %p1952 = scmp.le.s32.totalorder 2, %s11
    // Predicated region
    $region45: #{cam_forward.5} parent=5 // pred_check
      %p1953 = pneg %p1952
    $region46: #{cam_forward.5} parent=5 // pred_check_branch
      %1955 = sbr.rel (%p1953) target = $region48
    $region47: #{cam_forward.5} parent=5 // pred_region
      %s1956 = ssub.s32 %s11, 2
      // Predicated region
      $region49: #{cam_forward.5} parent=47 // pred_check
        %p1957 = pneg %p197
      $region50: #{cam_forward.5} parent=47 // pred_check_branch
        %1959 = sbr.rel (%p1957) target = $region52
      $region51: #{cam_forward.5} parent=47 // pred_region
        %s1960 = smul.u32 16, %s25
        %p1961 = scmp.lt.s32.totalorder %s24, 1
        %s1962 = scalar_select %p1961, %s24, 1
        %p1963 = scmp.lt.s32.totalorder %s1960, 15
        %s1964 = scalar_select %p1963, %s1960, 15
        %p1965 = scmp.lt.s32.totalorder %s26, 0
        %s1966 = scalar_select %p1965, %s26, 0
        %s1967 = smul.addr %s1964, 2
        %s1968 = sadd.s32 %s1966, %s1967
        %s1969 = smul.addr %s1962, 32
        %s1970 = sadd.s32 %s1968, %s1969
        %s1971 = smul.addr %s1970, 4
        %s1972 = scalar_lea.vmem %s5, %s1971
      $region52: #{cam_forward.5} parent=47 // pred_fallthru
        _
    $region48: #{cam_forward.5} parent=5 // pred_fallthru
      _
  $region6: #{cam_forward.5} parent=0 // loop_footer
    %s15 = sadd.s32 1, %s11
  $region7: #{cam_forward.5} parent=0 // loop_footer_branch
    %10 = sbr.rel target = $region3
  $region8: #{cam_forward.5} parent=0 // loop_exit
    _

// kernel: cam_forward.9
$region0: #{cam_forward.9}
  #allocation0 [shape = 'u32[]', space=smem, size = 0x4, offset = 0x4, fixed_abs, tag = 'smem constant byte address 0x4 - core index']
  #allocation1 [shape = 'u32[72,128]{1,0:T(1,128)}', space=vmem, size = 0x9000, scoped, tag = 'internal scratch']
  %s0 = inlined_call_operand.vmem [shape: bf16[2,18,18,128], index: 0, kind: input, shape index: {}]
  %s1 = inlined_call_operand.vmem [shape: bf16[3,3,128,128], index: 1, kind: input, shape index: {}]
  %s2 = inlined_call_operand.vmem [shape: f32[1,128], index: 2, kind: input, shape index: {}]
  %s3 = inlined_call_operand.vmem [shape: f32[1,128], index: 3, kind: input, shape index: {}]
  %s4 = inlined_call_operand.vmem [shape: f32[2,16,16,128], index: 4, kind: output, shape index: {}]
  %s5 = sld [smem:[#allocation0]]
  $region49: #{cam_forward.9} parent=0
    _
  %s7 = ssub.s32 1, %s5
  %s8 = scalar_select 0, %s7, %s5
  loop: start=0, step=1, limit=4
  $region2: #{cam_forward.9} parent=0 // loop_pre_header
    _
  $region3: #{cam_forward.9} parent=0 // loop_header
    %s10 = sphi 0, %s14
    %p11 = scmp.ge.s32.totalorder %s10, 4
    %s17 = sphi 0, %s36
    %s18 = sphi 0, %s32
    %s19 = sphi 0, %s28
    %s20 = sphi 0, %s17
    %s21 = sphi 0, %s18
    %s22 = sphi 0, %s19
    %s23 = sphi 0, %s20
    %s24 = sphi 0, %s21
    %s25 = sphi 0, %s22
    %s41 = sphi 0, %s43
    %s44 = sphi 0, %s41
    %s45 = sphi 0, %s44
    %s61 = sphi 0, %s45
    %s67 = sphi 0, %s69
    %s70 = sphi 0, %s67
    %s71 = sphi 0, %s70
    %s87 = sphi 0, %s71
    %s93 = sphi 0, %s95
    %s96 = sphi 0, %s93
    %s97 = sphi 0, %s96
    %s113 = sphi 0, %s97
    %s119 = sphi 0, %s121
    %s122 = sphi 0, %s119
    %s123 = sphi 0, %s122
    %s139 = sphi 0, %s123
    %s149 = sphi 0, %s151
    %s152 = sphi 0, %s149
    %s153 = sphi 0, %s152
    %s169 = sphi 0, %s153
  $region4: #{cam_forward.9} parent=0 // loop_header_branch
    %13 = sbr.rel (%p11) target = $region8
  $region5: #{cam_forward.9} parent=0 // loop_body
    %s15 = ssub.s32 %s10, 1
    %s16 = ssub.s32 %s10, 2
    %s26 = sadd.s32 1, %s19
    %p27 = scmp.ge.s32.totalorder %s26, 1
    %s28 = scalar_select %p27, 0, %s26
    %s29 = sadd.s32 1, %s18
    %s30 = scalar_select %p27, %s29, %s18
    %p31 = scmp.ge.s32.totalorder %s30, 1
    %s32 = scalar_select %p31, 0, %s30
    %s33 = sadd.s32 1, %s17
    %s34 = scalar_select %p31, %s33, %s17
    %p35 = scmp.ge.s32.totalorder %s34, 2
    %s36 = scalar_select %p35, 0, %s34
    %s37 = sadd.s32 %s17, %s18
    %s38 = sadd.s32 %s36, %s32
    %s39 = ssub.s32 %s37, %s38
    %p40 = scmp.eq.s32.totalorder %s39, 0
    %s42 = sadd.s32 %s41, 1
    %s43 = scalar_select %p40, %s41, %s42
    %p46 = pneg %p40
    %p47 = scmp.eq.s32.totalorder %s10, 1
    %p48 = por %p46, %p47
    %p49 = scmp.ne.s32.totalorder %s41, %s44
    %p50 = scmp.eq.s32.totalorder %s10, 0
    %p51 = por %p49, %p50
    %p52 = scmp.ne.s32.totalorder %s41, %s44
    %p53 = scmp.eq.s32.totalorder %s15, 1
    %p54 = por %p52, %p53
    %p55 = scmp.ne.s32.totalorder %s44, %s45
    %p56 = scmp.eq.s32.totalorder %s15, 0
    %p57 = por %p55, %p56
    %p58 = scmp.ne.s32.totalorder %s44, %s45
    %p59 = scmp.eq.s32.totalorder %s16, 1
    %p60 = por %p58, %p59
    %p62 = scmp.ne.s32.totalorder %s45, %s61
    %p63 = scmp.eq.s32.totalorder %s16, 0
    %p64 = por %p62, %p63
    %s65 = ssub.s32 %s19, %s28
    %p66 = scmp.eq.s32.totalorder %s65, 0
    %s68 = sadd.s32 %s67, 1
    %s69 = scalar_select %p66, %s67, %s68
    %p72 = pneg %p66
    %p73 = scmp.eq.s32.totalorder %s10, 1
    %p74 = por %p72, %p73
    %p75 = scmp.ne.s32.totalorder %s67, %s70
    %p76 = scmp.eq.s32.totalorder %s10, 0
    %p77 = por %p75, %p76
    %p78 = scmp.ne.s32.totalorder %s67, %s70
    %p79 = scmp.eq.s32.totalorder %s15, 1
    %p80 = por %p78, %p79
    %p81 = scmp.ne.s32.totalorder %s70, %s71
    %p82 = scmp.eq.s32.totalorder %s15, 0
    %p83 = por %p81, %p82
    %p84 = scmp.ne.s32.totalorder %s70, %s71
    %p85 = scmp.eq.s32.totalorder %s16, 1
    %p86 = por %p84, %p85
    %p88 = scmp.ne.s32.totalorder %s71, %s87
    %p89 = scmp.eq.s32.totalorder %s16, 0
    %p90 = por %p88, %p89
    %s91 = ssub.s32 %s19, %s28
    %p92 = scmp.eq.s32.totalorder %s91, 0
    %s94 = sadd.s32 %s93, 1
    %s95 = scalar_select %p92, %s93, %s94
    %p98 = pneg %p92
    %p99 = scmp.eq.s32.totalorder %s10, 1
    %p100 = por %p98, %p99
    %p101 = scmp.ne.s32.totalorder %s93, %s96
    %p102 = scmp.eq.s32.totalorder %s10, 0
    %p103 = por %p101, %p102
    %p104 = scmp.ne.s32.totalorder %s93, %s96
    %p105 = scmp.eq.s32.totalorder %s15, 1
    %p106 = por %p104, %p105
    %p107 = scmp.ne.s32.totalorder %s96, %s97
    %p108 = scmp.eq.s32.totalorder %s15, 0
    %p109 = por %p107, %p108
    %p110 = scmp.ne.s32.totalorder %s96, %s97
    %p111 = scmp.eq.s32.totalorder %s16, 1
    %p112 = por %p110, %p111
    %p114 = scmp.ne.s32.totalorder %s97, %s113
    %p115 = scmp.eq.s32.totalorder %s16, 0
    %p116 = por %p114, %p115
    %s117 = ssub.s32 %s19, %s28
    %p118 = scmp.eq.s32.totalorder %s117, 0
    %s120 = sadd.s32 %s119, 1
    %s121 = scalar_select %p118, %s119, %s120
    %p124 = pneg %p118
    %p125 = scmp.eq.s32.totalorder %s10, 1
    %p126 = por %p124, %p125
    %p127 = scmp.ne.s32.totalorder %s119, %s122
    %p128 = scmp.eq.s32.totalorder %s10, 0
    %p129 = por %p127, %p128
    %p130 = scmp.ne.s32.totalorder %s119, %s122
    %p131 = scmp.eq.s32.totalorder %s15, 1
    %p132 = por %p130, %p131
    %p133 = scmp.ne.s32.totalorder %s122, %s123
    %p134 = scmp.eq.s32.totalorder %s15, 0
    %p135 = por %p133, %p134
    %p136 = scmp.ne.s32.totalorder %s122, %s123
    %p137 = scmp.eq.s32.totalorder %s16, 1
    %p138 = por %p136, %p137
    %p140 = scmp.ne.s32.totalorder %s123, %s139
    %p141 = scmp.eq.s32.totalorder %s16, 0
    %p142 = por %p140, %p141
    %s143 = ssub.s32 %s17, %s36
    %s144 = ssub.s32 %s18, %s32
    %s145 = sor.u32 %s143, %s144
    %s146 = ssub.s32 %s19, %s28
    %s147 = sor.u32 %s145, %s146
    %p148 = scmp.eq.s32.totalorder %s147, 0
    %s150 = sadd.s32 %s149, 1
    %s151 = scalar_select %p148, %s149, %s150
    %p154 = pneg %p148
    %p155 = scmp.eq.s32.totalorder %s10, 1
    %p156 = por %p154, %p155
    %p157 = scmp.ne.s32.totalorder %s149, %s152
    %p158 = scmp.eq.s32.totalorder %s10, 0
    %p159 = por %p157, %p158
    %p160 = scmp.ne.s32.totalorder %s149, %s152
    %p161 = scmp.eq.s32.totalorder %s15, 1
    %p162 = por %p160, %p161
    %p163 = scmp.ne.s32.totalorder %s152, %s153
    %p164 = scmp.eq.s32.totalorder %s15, 0
    %p165 = por %p163, %p164
    %p166 = scmp.ne.s32.totalorder %s152, %s153
    %p167 = scmp.eq.s32.totalorder %s16, 1
    %p168 = por %p166, %p167
    %p170 = scmp.ne.s32.totalorder %s153, %s169
    %p171 = scmp.eq.s32.totalorder %s16, 0
    %p172 = por %p170, %p171
    %p173 = scmp.le.s32.totalorder 1, %s10
    %p174 = scmp.lt.s32.totalorder %s10, 3
    %p175 = pnand %p173, %p174
    %p176 = pneg %p175
    // Predicated region
    $region9: #{cam_forward.9} parent=5 // pred_check
      _
    $region10: #{cam_forward.9} parent=5 // pred_check_branch
      %178 = sbr.rel (%p175) target = $region12
    $region11: #{cam_forward.9} parent=5 // pred_region
      %s179 = ssub.s32 %s10, 1
      // Predicated region
      $region13: #{cam_forward.9} parent=11 // pred_check
        %p180 = pneg %p83
      $region14: #{cam_forward.9} parent=11 // pred_check_branch
        %182 = sbr.rel (%p180) target = $region16
      $region15: #{cam_forward.9} parent=11 // pred_region
        %p183 = scmp.lt.s32.totalorder %s22, 0
        %s184 = scalar_select %p183, %s22, 0
        %s185 = smul.addr %s184, 4
        %s186 = scalar_lea.vmem %s1, %s185
      $region16: #{cam_forward.9} parent=11 // pred_fallthru
        _
      // Predicated region
      $region17: #{cam_forward.9} parent=11 // pred_check
        %p187 = pneg %p109
      $region18: #{cam_forward.9} parent=11 // pred_check_branch
        %189 = sbr.rel (%p187) target = $region20
      $region19: #{cam_forward.9} parent=11 // pred_region
        %p190 = scmp.lt.s32.totalorder %s22, 0
        %s191 = scalar_select %p190, %s22, 0
        %s192 = scalar_lea.vmem %s2, %s191
      $region20: #{cam_forward.9} parent=11 // pred_fallthru
        _
      // Predicated region
      $region21: #{cam_forward.9} parent=11 // pred_check
        %p193 = pneg %p135
      $region22: #{cam_forward.9} parent=11 // pred_check_branch
        %195 = sbr.rel (%p193) target = $region24
      $region23: #{cam_forward.9} parent=11 // pred_region
        %p196 = scmp.lt.s32.totalorder %s22, 0
        %s197 = scalar_select %p196, %s22, 0
        %s198 = scalar_lea.vmem %s3, %s197
      $region24: #{cam_forward.9} parent=11 // pred_fallthru
        _
    $region12: #{cam_forward.9} parent=5 // pred_fallthru
      _
    %p199 = scmp.lt.s32.totalorder %s10, 2
    // Predicated region
    $region25: #{cam_forward.9} parent=5 // pred_check
      %p200 = pneg %p199
    $region26: #{cam_forward.9} parent=5 // pred_check_branch
      %202 = sbr.rel (%p200) target = $region28
    $region27: #{cam_forward.9} parent=5 // pred_region
      // Predicated region
      $region29: #{cam_forward.9} parent=27 // pred_check
        %p203 = pneg %p51
      $region30: #{cam_forward.9} parent=27 // pred_check_branch
        %205 = sbr.rel (%p203) target = $region32
      $region31: #{cam_forward.9} parent=27 // pred_region
        %s206 = sadd.s32 %s17, %s18
        %p207 = scmp.lt.s32.totalorder %s206, 1
        %s208 = scalar_select %p207, %s206, 1
        %s209 = smul.addr %s208, 54
        %s210 = smul.addr %s209, 4
        %s211 = scalar_lea.vmem %s0, %s210
        %s212 = sadd.s32 %s17, %s18
      $region32: #{cam_forward.9} parent=27 // pred_fallthru
        _
    $region28: #{cam_forward.9} parent=5 // pred_fallthru
      _
    %p213 = scmp.le.s32.totalorder 1, %s10
    %p214 = scmp.lt.s32.totalorder %s10, 3
    %p215 = pnand %p213, %p214
    %p216 = pneg %p215
    // Predicated region
    $region33: #{cam_forward.9} parent=5 // pred_check
      _
    $region34: #{cam_forward.9} parent=5 // pred_check_branch
      %218 = sbr.rel (%p215) target = $region36
    $region35: #{cam_forward.9} parent=5 // pred_region
      %s219 = ssub.s32 %s10, 1
      %s220 = sadd.s32 %s20, %s21
      %p221 = scmp.lt.s32.totalorder %s220, 1
      %s222 = scalar_select %p221, %s220, 1
      %s223 = smul.addr %s222, 54
      %s224 = smul.addr %s223, 4
      %s225 = scalar_lea.vmem %s0, %s224
      %p226 = pneg %p57
      %p227 = pneg %p54
      %p228 = scmp.lt.s32.totalorder %s22, 0
      %s229 = scalar_select %p228, %s22, 0
      %s230 = smul.addr %s229, 4
      %s231 = scalar_lea.vmem %s1, %s230
      %p232 = pneg %p83
      %p233 = pneg %p80
      %p234 = scmp.lt.s32.totalorder %s22, 0
      %s235 = scalar_select %p234, %s22, 0
      %s236 = scalar_lea.vmem %s2, %s235
      %p237 = pneg %p109
      %p238 = pneg %p106
      %p239 = scmp.lt.s32.totalorder %s22, 0
      %s240 = scalar_select %p239, %s22, 0
      %s241 = scalar_lea.vmem %s3, %s240
      %p242 = pneg %p135
      %p243 = pneg %p132
      %p244 = pneg %p165
      %p245 = pneg %p162
      %s246 = smul.u32 16, %s21
      %p247 = scmp.lt.s32.totalorder %s20, 1
      %s248 = scalar_select %p247, %s20, 1
      %p249 = scmp.lt.s32.totalorder %s246, 15
      %s250 = scalar_select %p249, %s246, 15
      %p251 = scmp.lt.s32.totalorder %s22, 0
      %s252 = scalar_select %p251, %s22, 0
      %s253 = smul.addr %s250, 2
      %s254 = sadd.s32 %s252, %s253
      %s255 = smul.addr %s248, 32
      %s256 = sadd.s32 %s254, %s255
      %s257 = smul.addr %s256, 8
      %s258 = scalar_lea.vmem %s4, %s257
      %s259 = sadd.s32 %s20, %s21
      %p260 = scmp.lt.s32.totalorder %s259, 1
      %s261 = scalar_select %p260, %s259, 1
      %s262 = smul.addr %s261, 54
      %s263 = smul.addr %s262, 4
      %s264 = scalar_lea.vmem %s0, %s263
      %s265 = sadd.s32 %s20, %s21
      %p266 = scmp.lt.s32.totalorder %s22, 0
      %s267 = scalar_select %p266, %s22, 0
      %s268 = smul.addr %s267, 4
      %s269 = scalar_lea.vmem %s1, %s268
      %p270 = scmp.lt.s32.totalorder %s22, 0
      %s271 = scalar_select %p270, %s22, 0
      %s272 = scalar_lea.vmem %s2, %s271
      %p273 = scmp.lt.s32.totalorder %s22, 0
      %s274 = scalar_select %p273, %s22, 0
      %s275 = scalar_lea.vmem %s3, %s274
      %s276 = smul.u32 16, %s21
      %p277 = scmp.lt.s32.totalorder %s20, 1
      %s278 = scalar_select %p277, %s20, 1
      %p279 = scmp.lt.s32.totalorder %s276, 15
      %s280 = scalar_select %p279, %s276, 15
      %p281 = scmp.lt.s32.totalorder %s22, 0
      %s282 = scalar_select %p281, %s22, 0
      %s283 = smul.addr %s280, 2
      %s284 = sadd.s32 %s282, %s283
      %s285 = smul.addr %s278, 32
      %s286 = sadd.s32 %s284, %s285
      %s287 = smul.addr %s286, 8
      %s288 = scalar_lea.vmem %s4, %s287
      %s289 = smul.u32 16, %s21
      %v290 = vld [vmem:[%s264] sm:$0xf]
      %v291 = vld [vmem:[%s264 + $0x4] sm:$0xf]
      %v292 = vld [vmem:[%s264 + $0x8] sm:$0x1]
      %v293 = vld [vmem:[%s264 + $0xc] sm:$0xf]
      %v294 = vld [vmem:[%s264 + $0x10] sm:$0xf]
      %v295 = vld [vmem:[%s264 + $0x14] sm:$0x1]
      %v296 = vld [vmem:[%s264 + $0x18] sm:$0xf]
      %v297 = vld [vmem:[%s264 + $0x1c] sm:$0xf]
      %v298 = vld [vmem:[%s264 + $0x20] sm:$0x1]
      %v299 = vld [vmem:[%s264 + $0x24] sm:$0xf]
      %v300 = vld [vmem:[%s264 + $0x28] sm:$0xf]
      %v301 = vld [vmem:[%s264 + $0x2c] sm:$0x1]
      %v302 = vld [vmem:[%s264 + $0x30] sm:$0xf]
      %v303 = vld [vmem:[%s264 + $0x34] sm:$0xf]
      %v304 = vld [vmem:[%s264 + $0x38] sm:$0x1]
      %v305 = vld [vmem:[%s264 + $0x3c] sm:$0xf]
      %v306 = vld [vmem:[%s264 + $0x40] sm:$0xf]
      %v307 = vld [vmem:[%s264 + $0x44] sm:$0x1]
      %v308 = vld [vmem:[%s264 + $0x48] sm:$0xf]
      %v309 = vld [vmem:[%s264 + $0x4c] sm:$0xf]
      %v310 = vld [vmem:[%s264 + $0x50] sm:$0x1]
      %v311 = vld [vmem:[%s264 + $0x54] sm:$0xf]
      %v312 = vld [vmem:[%s264 + $0x58] sm:$0xf]
      %v313 = vld [vmem:[%s264 + $0x5c] sm:$0x1]
      %v314 = vld [vmem:[%s264 + $0x60] sm:$0xf]
      %v315 = vld [vmem:[%s264 + $0x64] sm:$0xf]
      %v316 = vld [vmem:[%s264 + $0x68] sm:$0x1]
      %v317 = vld [vmem:[%s264 + $0x6c] sm:$0xf]
      %v318 = vld [vmem:[%s264 + $0x70] sm:$0xf]
      %v319 = vld [vmem:[%s264 + $0x74] sm:$0x1]
      %v320 = vld [vmem:[%s264 + $0x78] sm:$0xf]
      %v321 = vld [vmem:[%s264 + $0x7c] sm:$0xf]
      %v322 = vld [vmem:[%s264 + $0x80] sm:$0x1]
      %v323 = vld [vmem:[%s264 + $0x84] sm:$0xf]
      %v324 = vld [vmem:[%s264 + $0x88] sm:$0xf]
      %v325 = vld [vmem:[%s264 + $0x8c] sm:$0x1]
      %v326 = vld [vmem:[%s264 + $0x90] sm:$0xf]
      %v327 = vld [vmem:[%s264 + $0x94] sm:$0xf]
      %v328 = vld [vmem:[%s264 + $0x98] sm:$0x1]
      %v329 = vld [vmem:[%s264 + $0x9c] sm:$0xf]
      %v330 = vld [vmem:[%s264 + $0xa0] sm:$0xf]
      %v331 = vld [vmem:[%s264 + $0xa4] sm:$0x1]
      %v332 = vld [vmem:[%s264 + $0xa8] sm:$0xf]
      %v333 = vld [vmem:[%s264 + $0xac] sm:$0xf]
      %v334 = vld [vmem:[%s264 + $0xb0] sm:$0x1]
      %v335 = vld [vmem:[%s264 + $0xb4] sm:$0xf]
      %v336 = vld [vmem:[%s264 + $0xb8] sm:$0xf]
      %v337 = vld [vmem:[%s264 + $0xbc] sm:$0x1]
      %v338 = vld [vmem:[%s264 + $0xc0] sm:$0xf]
      %v339 = vld [vmem:[%s264 + $0xc4] sm:$0xf]
      %v340 = vld [vmem:[%s264 + $0xc8] sm:$0x1]
      %v341 = vld [vmem:[%s264 + $0xcc] sm:$0xf]
      %v342 = vld [vmem:[%s264 + $0xd0] sm:$0xf]
      %v343 = vld [vmem:[%s264 + $0xd4] sm:$0x1]
      %v344 = vld [vmem:[%s269] sm:$0xf]
      %v345 = vld [vmem:[%s269 + $0x4] sm:$0xf]
      %v346 = vld [vmem:[%s269 + $0x8] sm:$0xf]
      %v347 = vld [vmem:[%s269 + $0xc] sm:$0xf]
      %v348 = vld [vmem:[%s269 + $0x10] sm:$0xf]
      %v349 = vld [vmem:[%s269 + $0x14] sm:$0xf]
      %v350 = vld [vmem:[%s269 + $0x18] sm:$0xf]
      %v351 = vld [vmem:[%s269 + $0x1c] sm:$0xf]
      %v352 = vld [vmem:[%s269 + $0x20] sm:$0xf]
      %v353 = vld [vmem:[%s269 + $0x24] sm:$0xf]
      %v354 = vld [vmem:[%s269 + $0x28] sm:$0xf]
      %v355 = vld [vmem:[%s269 + $0x2c] sm:$0xf]
      %v356 = vld [vmem:[%s269 + $0x30] sm:$0xf]
      %v357 = vld [vmem:[%s269 + $0x34] sm:$0xf]
      %v358 = vld [vmem:[%s269 + $0x38] sm:$0xf]
      %v359 = vld [vmem:[%s269 + $0x3c] sm:$0xf]
      %vm360 = vsmask.f32 3328
      %vm361 = vsmask.f32 7440
      %vm362 = vmor %vm360, %vm361
      %v364 = vshrl.u32 %v290, 16
      %v366 = vrot.slane %v364, 4
      %v367 = vshll.u32 %v290, 16
      %v369 = vrot.slane %v367, 5
      %v370 = vor.u32 %v366, %v369
      %v371 = vrot.slane %v370, 4
      %v373 = vshll.u32 %v291, 16
      %v375 = vrot.slane %v373, 5
      %v376 = vsel %vm362, %v371, %v375
      %v377 = vshrl.u32 %v291, 16
      %v379 = vrot.slane %v377, 4
      %v380 = vor.u32 %v379, %v375
      %v381 = vrot.slane %v380, 4
      %v383 = vshll.u32 %v292, 16
      %v385 = vrot.slane %v383, 5
      %v386 = vsel %vm362, %v381, %v385
      %v388 = vshrl.u32 %v293, 16
      %v390 = vrot.slane %v388, 4
      %v391 = vshll.u32 %v293, 16
      %v393 = vrot.slane %v391, 5
      %v394 = vor.u32 %v390, %v393
      %v395 = vrot.slane %v394, 4
      %v397 = vshll.u32 %v294, 16
      %v399 = vrot.slane %v397, 5
      %v400 = vsel %vm362, %v395, %v399
      %v401 = vshrl.u32 %v294, 16
      %v403 = vrot.slane %v401, 4
      %v404 = vor.u32 %v403, %v399
      %v405 = vrot.slane %v404, 4
      %v407 = vshll.u32 %v295, 16
      %v409 = vrot.slane %v407, 5
      %v410 = vsel %vm362, %v405, %v409
      %v412 = vshrl.u32 %v296, 16
      %v414 = vrot.slane %v412, 4
      %v415 = vshll.u32 %v296, 16
      %v417 = vrot.slane %v415, 5
      %v418 = vor.u32 %v414, %v417
      %v419 = vrot.slane %v418, 4
      %v421 = vshll.u32 %v297, 16
      %v423 = vrot.slane %v421, 5
      %v424 = vsel %vm362, %v419, %v423
      %v425 = vshrl.u32 %v297, 16
      %v427 = vrot.slane %v425, 4
      %v428 = vor.u32 %v427, %v423
      %v429 = vrot.slane %v428, 4
      %v431 = vshll.u32 %v298, 16
      %v433 = vrot.slane %v431, 5
      %v434 = vsel %vm362, %v429, %v433
      %v436 = vshrl.u32 %v299, 16
      %v438 = vrot.slane %v436, 4
      %v439 = vshll.u32 %v299, 16
      %v441 = vrot.slane %v439, 5
      %v442 = vor.u32 %v438, %v441
      %v443 = vrot.slane %v442, 4
      %v445 = vshll.u32 %v300, 16
      %v447 = vrot.slane %v445, 5
      %v448 = vsel %vm362, %v443, %v447
      %v449 = vshrl.u32 %v300, 16
      %v451 = vrot.slane %v449, 4
      %v452 = vor.u32 %v451, %v447
      %v453 = vrot.slane %v452, 4
      %v455 = vshll.u32 %v301, 16
      %v457 = vrot.slane %v455, 5
      %v458 = vsel %vm362, %v453, %v457
      %v460 = vshrl.u32 %v302, 16
      %v462 = vrot.slane %v460, 4
      %v463 = vshll.u32 %v302, 16
      %v465 = vrot.slane %v463, 5
      %v466 = vor.u32 %v462, %v465
      %v467 = vrot.slane %v466, 4
      %v469 = vshll.u32 %v303, 16
      %v471 = vrot.slane %v469, 5
      %v472 = vsel %vm362, %v467, %v471
      %v473 = vshrl.u32 %v303, 16
      %v475 = vrot.slane %v473, 4
      %v476 = vor.u32 %v475, %v471
      %v477 = vrot.slane %v476, 4
      %v479 = vshll.u32 %v304, 16
      %v481 = vrot.slane %v479, 5
      %v482 = vsel %vm362, %v477, %v481
      %v484 = vshrl.u32 %v305, 16
      %v486 = vrot.slane %v484, 4
      %v487 = vshll.u32 %v305, 16
      %v489 = vrot.slane %v487, 5
      %v490 = vor.u32 %v486, %v489
      %v491 = vrot.slane %v490, 4
      %v493 = vshll.u32 %v306, 16
      %v495 = vrot.slane %v493, 5
      %v496 = vsel %vm362, %v491, %v495
      %v497 = vshrl.u32 %v306, 16
      %v499 = vrot.slane %v497, 4
      %v500 = vor.u32 %v499, %v495
      %v501 = vrot.slane %v500, 4
      %v503 = vshll.u32 %v307, 16
      %v505 = vrot.slane %v503, 5
      %v506 = vsel %vm362, %v501, %v505
      %v508 = vshrl.u32 %v308, 16
      %v510 = vrot.slane %v508, 4
      %v511 = vshll.u32 %v308, 16
      %v513 = vrot.slane %v511, 5
      %v514 = vor.u32 %v510, %v513
      %v515 = vrot.slane %v514, 4
      %v517 = vshll.u32 %v309, 16
      %v519 = vrot.slane %v517, 5
      %v520 = vsel %vm362, %v515, %v519
      %v521 = vshrl.u32 %v309, 16
      %v523 = vrot.slane %v521, 4
      %v524 = vor.u32 %v523, %v519
      %v525 = vrot.slane %v524, 4
      %v527 = vshll.u32 %v310, 16
      %v529 = vrot.slane %v527, 5
      %v530 = vsel %vm362, %v525, %v529
      %v532 = vshrl.u32 %v311, 16
      %v534 = vrot.slane %v532, 4
      %v535 = vshll.u32 %v311, 16
      %v537 = vrot.slane %v535, 5
      %v538 = vor.u32 %v534, %v537
      %v539 = vrot.slane %v538, 4
      %v541 = vshll.u32 %v312, 16
      %v543 = vrot.slane %v541, 5
      %v544 = vsel %vm362, %v539, %v543
      %v545 = vshrl.u32 %v312, 16
      %v547 = vrot.slane %v545, 4
      %v548 = vor.u32 %v547, %v543
      %v549 = vrot.slane %v548, 4
      %v551 = vshll.u32 %v313, 16
      %v553 = vrot.slane %v551, 5
      %v554 = vsel %vm362, %v549, %v553
      %v556 = vshrl.u32 %v314, 16
      %v558 = vrot.slane %v556, 4
      %v559 = vshll.u32 %v314, 16
      %v561 = vrot.slane %v559, 5
      %v562 = vor.u32 %v558, %v561
      %v563 = vrot.slane %v562, 4
      %v565 = vshll.u32 %v315, 16
      %v567 = vrot.slane %v565, 5
      %v568 = vsel %vm362, %v563, %v567
      %v569 = vshrl.u32 %v315, 16
      %v571 = vrot.slane %v569, 4
      %v572 = vor.u32 %v571, %v567
      %v573 = vrot.slane %v572, 4
      %v575 = vshll.u32 %v316, 16
      %v577 = vrot.slane %v575, 5
      %v578 = vsel %vm362, %v573, %v577
      %v580 = vshrl.u32 %v317, 16
      %v582 = vrot.slane %v580, 4
      %v583 = vshll.u32 %v317, 16
      %v585 = vrot.slane %v583, 5
      %v586 = vor.u32 %v582, %v585
      %v587 = vrot.slane %v586, 4
      %v589 = vshll.u32 %v318, 16
      %v591 = vrot.slane %v589, 5
      %v592 = vsel %vm362, %v587, %v591
      %v593 = vshrl.u32 %v318, 16
      %v595 = vrot.slane %v593, 4
      %v596 = vor.u32 %v595, %v591
      %v597 = vrot.slane %v596, 4
      %v599 = vshll.u32 %v319, 16
      %v601 = vrot.slane %v599, 5
      %v602 = vsel %vm362, %v597, %v601
      %v604 = vshrl.u32 %v320, 16
      %v606 = vrot.slane %v604, 4
      %v607 = vshll.u32 %v320, 16
      %v609 = vrot.slane %v607, 5
      %v610 = vor.u32 %v606, %v609
      %v611 = vrot.slane %v610, 4
      %v613 = vshll.u32 %v321, 16
      %v615 = vrot.slane %v613, 5
      %v616 = vsel %vm362, %v611, %v615
      %v617 = vshrl.u32 %v321, 16
      %v619 = vrot.slane %v617, 4
      %v620 = vor.u32 %v619, %v615
      %v621 = vrot.slane %v620, 4
      %v623 = vshll.u32 %v322, 16
      %v625 = vrot.slane %v623, 5
      %v626 = vsel %vm362, %v621, %v625
      %v628 = vshrl.u32 %v323, 16
      %v630 = vrot.slane %v628, 4
      %v631 = vshll.u32 %v323, 16
      %v633 = vrot.slane %v631, 5
      %v634 = vor.u32 %v630, %v633
      %v635 = vrot.slane %v634, 4
      %v637 = vshll.u32 %v324, 16
      %v639 = vrot.slane %v637, 5
      %v640 = vsel %vm362, %v635, %v639
      %v641 = vshrl.u32 %v324, 16
      %v643 = vrot.slane %v641, 4
      %v644 = vor.u32 %v643, %v639
      %v645 = vrot.slane %v644, 4
      %v647 = vshll.u32 %v325, 16
      %v649 = vrot.slane %v647, 5
      %v650 = vsel %vm362, %v645, %v649
      %v652 = vshrl.u32 %v326, 16
      %v654 = vrot.slane %v652, 4
      %v655 = vshll.u32 %v326, 16
      %v657 = vrot.slane %v655, 5
      %v658 = vor.u32 %v654, %v657
      %v659 = vrot.slane %v658, 4
      %v661 = vshll.u32 %v327, 16
      %v663 = vrot.slane %v661, 5
      %v664 = vsel %vm362, %v659, %v663
      %v665 = vshrl.u32 %v327, 16
      %v667 = vrot.slane %v665, 4
      %v668 = vor.u32 %v667, %v663
      %v669 = vrot.slane %v668, 4
      %v671 = vshll.u32 %v328, 16
      %v673 = vrot.slane %v671, 5
      %v674 = vsel %vm362, %v669, %v673
      %v676 = vshrl.u32 %v329, 16
      %v678 = vrot.slane %v676, 4
      %v679 = vshll.u32 %v329, 16
      %v681 = vrot.slane %v679, 5
      %v682 = vor.u32 %v678, %v681
      %v683 = vrot.slane %v682, 4
      %v685 = vshll.u32 %v330, 16
      %v687 = vrot.slane %v685, 5
      %v688 = vsel %vm362, %v683, %v687
      %v689 = vshrl.u32 %v330, 16
      %v691 = vrot.slane %v689, 4
      %v692 = vor.u32 %v691, %v687
      %v693 = vrot.slane %v692, 4
      %v695 = vshll.u32 %v331, 16
      %v697 = vrot.slane %v695, 5
      %v698 = vsel %vm362, %v693, %v697
      %v700 = vshrl.u32 %v332, 16
      %v702 = vrot.slane %v700, 4
      %v703 = vshll.u32 %v332, 16
      %v705 = vrot.slane %v703, 5
      %v706 = vor.u32 %v702, %v705
      %v707 = vrot.slane %v706, 4
      %v709 = vshll.u32 %v333, 16
      %v711 = vrot.slane %v709, 5
      %v712 = vsel %vm362, %v707, %v711
      %v713 = vshrl.u32 %v333, 16
      %v715 = vrot.slane %v713, 4
      %v716 = vor.u32 %v715, %v711
      %v717 = vrot.slane %v716, 4
      %v719 = vshll.u32 %v334, 16
      %v721 = vrot.slane %v719, 5
      %v722 = vsel %vm362, %v717, %v721
      %v724 = vshrl.u32 %v335, 16
      %v726 = vrot.slane %v724, 4
      %v727 = vshll.u32 %v335, 16
      %v729 = vrot.slane %v727, 5
      %v730 = vor.u32 %v726, %v729
      %v731 = vrot.slane %v730, 4
      %v733 = vshll.u32 %v336, 16
      %v735 = vrot.slane %v733, 5
      %v736 = vsel %vm362, %v731, %v735
      %v737 = vshrl.u32 %v336, 16
      %v739 = vrot.slane %v737, 4
      %v740 = vor.u32 %v739, %v735
      %v741 = vrot.slane %v740, 4
      %v743 = vshll.u32 %v337, 16
      %v745 = vrot.slane %v743, 5
      %v746 = vsel %vm362, %v741, %v745
      %s747 = scalar_lea.vmem %s269, 64
      %v748 = vld [vmem:[%s747] sm:$0xf]
      %v749 = vld [vmem:[%s747 + $0x4] sm:$0xf]
      %v750 = vld [vmem:[%s747 + $0x8] sm:$0xf]
      %v751 = vld [vmem:[%s747 + $0xc] sm:$0xf]
      %v752 = vld [vmem:[%s747 + $0x10] sm:$0xf]
      %v753 = vld [vmem:[%s747 + $0x14] sm:$0xf]
      %v754 = vld [vmem:[%s747 + $0x18] sm:$0xf]
      %v755 = vld [vmem:[%s747 + $0x1c] sm:$0xf]
      %v756 = vld [vmem:[%s747 + $0x20] sm:$0xf]
      %v757 = vld [vmem:[%s747 + $0x24] sm:$0xf]
      %v758 = vld [vmem:[%s747 + $0x28] sm:$0xf]
      %v759 = vld [vmem:[%s747 + $0x2c] sm:$0xf]
      %v760 = vld [vmem:[%s747 + $0x30] sm:$0xf]
      %v761 = vld [vmem:[%s747 + $0x34] sm:$0xf]
      %v762 = vld [vmem:[%s747 + $0x38] sm:$0xf]
      %v763 = vld [vmem:[%s747 + $0x3c] sm:$0xf]
      %v764 = vunpack.c.l.b16 %v376
      %v765 = vunpack.c.l.b16 %v386
      %v766 = vunpack.c.l.b16 %v400
      %v767 = vunpack.c.l.b16 %v410
      %v768 = vunpack.c.l.b16 %v424
      %v769 = vunpack.c.l.b16 %v434
      %v770 = vunpack.c.l.b16 %v448
      %v771 = vunpack.c.l.b16 %v458
      %v772 = vunpack.c.l.b16 %v472
      %v773 = vunpack.c.l.b16 %v482
      %v774 = vunpack.c.l.b16 %v496
      %v775 = vunpack.c.l.b16 %v506
      %v776 = vunpack.c.l.b16 %v520
      %v777 = vunpack.c.l.b16 %v530
      %v778 = vunpack.c.l.b16 %v544
      %v779 = vunpack.c.l.b16 %v554
      %v780 = vunpack.c.l.b16 %v568
      %v781 = vunpack.c.l.b16 %v578
      %v782 = vunpack.c.l.b16 %v592
      %v783 = vunpack.c.l.b16 %v602
      %v784 = vunpack.c.l.b16 %v616
      %v785 = vunpack.c.l.b16 %v626
      %v786 = vunpack.c.l.b16 %v640
      %v787 = vunpack.c.l.b16 %v650
      %v788 = vunpack.c.l.b16 %v664
      %v789 = vunpack.c.l.b16 %v674
      %v790 = vunpack.c.l.b16 %v688
      %v791 = vunpack.c.l.b16 %v698
      %v792 = vunpack.c.l.b16 %v712
      %v793 = vunpack.c.l.b16 %v722
      %v794 = vunpack.c.l.b16 %v736
      %v795 = vunpack.c.l.b16 %v746
      %v796 = vpack.c.b16 %v765, %v764
      %v797 = vpack.c.b16 %v767, %v766
      %v798 = vpack.c.b16 %v769, %v768
      %v799 = vpack.c.b16 %v771, %v770
      %v800 = vpack.c.b16 %v773, %v772
      %v801 = vpack.c.b16 %v775, %v774
      %v802 = vpack.c.b16 %v777, %v776
      %v803 = vpack.c.b16 %v779, %v778
      %v804 = vpack.c.b16 %v781, %v780
      %v805 = vpack.c.b16 %v783, %v782
      %v806 = vpack.c.b16 %v785, %v784
      %v807 = vpack.c.b16 %v787, %v786
      %v808 = vpack.c.b16 %v789, %v788
      %v809 = vpack.c.b16 %v791, %v790
      %v810 = vpack.c.b16 %v793, %v792
      %v811 = vpack.c.b16 %v795, %v794
      %v844 = vunpack.c.l.b16 %v748
      %v845 = vunpack.c.l.b16 %v749
      %v846 = vunpack.c.l.b16 %v750
      %v847 = vunpack.c.l.b16 %v751
      %v848 = vunpack.c.l.b16 %v752
      %v849 = vunpack.c.l.b16 %v753
      %v850 = vunpack.c.l.b16 %v754
      %v851 = vunpack.c.l.b16 %v755
      %v852 = vunpack.c.l.b16 %v756
      %v853 = vunpack.c.l.b16 %v757
      %v854 = vunpack.c.l.b16 %v758
      %v855 = vunpack.c.l.b16 %v759
      %v856 = vunpack.c.l.b16 %v760
      %v857 = vunpack.c.l.b16 %v761
      %v858 = vunpack.c.l.b16 %v762
      %v859 = vunpack.c.l.b16 %v763
      %v860 = vpack.c.b16 %v845, %v844
      %v861 = vpack.c.b16 %v847, %v846
      %v862 = vpack.c.b16 %v849, %v848
      %v863 = vpack.c.b16 %v851, %v850
      %v864 = vpack.c.b16 %v853, %v852
      %v865 = vpack.c.b16 %v855, %v854
      %v866 = vpack.c.b16 %v857, %v856
      %v867 = vpack.c.b16 %v859, %v858
      %876 = vmatpush.bf16.msra.mxu0 %v867
      %877 = vmatpush.bf16.msra.mxu0 %v866
      %878 = vmatpush.bf16.msra.mxu0 %v865
      %879 = vmatpush.bf16.msra.mxu0 %v864
      %880 = vmatpush.bf16.msra.mxu0 %v863
      %881 = vmatpush.bf16.msra.mxu0 %v862
      %882 = vmatpush.bf16.msra.mxu0 %v861
      %883 = vmatpush.bf16.msra.mxu0 %v860
      %884 = vmatmul.bf16.gmra.mxu0 %v796
      %v885 = vpop.f32.mrf.mxu0
      %v886 = vadd.f32 0.0, %v885
      %v887 = vpop.f32.mrf.mxu0
      %v888 = vadd.f32 0.0, %v887
      %889 = vmatmul.bf16.gmra.mxu0 %v797
      %v890 = vpop.f32.mrf.mxu0
      %v891 = vadd.f32 0.0, %v890
      %v892 = vpop.f32.mrf.mxu0
      %v893 = vadd.f32 0.0, %v892
      %894 = vmatmul.bf16.gmra.mxu0 %v798
      %v895 = vpop.f32.mrf.mxu0
      %v896 = vadd.f32 0.0, %v895
      %v897 = vpop.f32.mrf.mxu0
      %v898 = vadd.f32 0.0, %v897
      %899 = vmatmul.bf16.gmra.mxu0 %v799
      %v900 = vpop.f32.mrf.mxu0
      %v901 = vadd.f32 0.0, %v900
      %v902 = vpop.f32.mrf.mxu0
      %v903 = vadd.f32 0.0, %v902
      %904 = vmatmul.bf16.gmra.mxu0 %v800
      %v905 = vpop.f32.mrf.mxu0
      %v906 = vadd.f32 0.0, %v905
      %v907 = vpop.f32.mrf.mxu0
      %v908 = vadd.f32 0.0, %v907
      %909 = vmatmul.bf16.gmra.mxu0 %v801
      %v910 = vpop.f32.mrf.mxu0
      %v911 = vadd.f32 0.0, %v910
      %v912 = vpop.f32.mrf.mxu0
      %v913 = vadd.f32 0.0, %v912
      %914 = vmatmul.bf16.gmra.mxu0 %v802
      %v915 = vpop.f32.mrf.mxu0
      %v916 = vadd.f32 0.0, %v915
      %v917 = vpop.f32.mrf.mxu0
      %v918 = vadd.f32 0.0, %v917
      %919 = vmatmul.bf16.gmra.mxu0 %v803
      %v920 = vpop.f32.mrf.mxu0
      %v921 = vadd.f32 0.0, %v920
      %v922 = vpop.f32.mrf.mxu0
      %v923 = vadd.f32 0.0, %v922
      %924 = vmatmul.bf16.gmra.mxu0 %v804
      %v925 = vpop.f32.mrf.mxu0
      %v926 = vadd.f32 0.0, %v925
      %v927 = vpop.f32.mrf.mxu0
      %v928 = vadd.f32 0.0, %v927
      %929 = vmatmul.bf16.gmra.mxu0 %v805
      %v930 = vpop.f32.mrf.mxu0
      %v931 = vadd.f32 0.0, %v930
      %v932 = vpop.f32.mrf.mxu0
      %v933 = vadd.f32 0.0, %v932
      %934 = vmatmul.bf16.gmra.mxu0 %v806
      %v935 = vpop.f32.mrf.mxu0
      %v936 = vadd.f32 0.0, %v935
      %v937 = vpop.f32.mrf.mxu0
      %v938 = vadd.f32 0.0, %v937
      %939 = vmatmul.bf16.gmra.mxu0 %v807
      %v940 = vpop.f32.mrf.mxu0
      %v941 = vadd.f32 0.0, %v940
      %v942 = vpop.f32.mrf.mxu0
      %v943 = vadd.f32 0.0, %v942
      %944 = vmatmul.bf16.gmra.mxu0 %v808
      %v945 = vpop.f32.mrf.mxu0
      %v946 = vadd.f32 0.0, %v945
      %v947 = vpop.f32.mrf.mxu0
      %v948 = vadd.f32 0.0, %v947
      %949 = vmatmul.bf16.gmra.mxu0 %v809
      %v950 = vpop.f32.mrf.mxu0
      %v951 = vadd.f32 0.0, %v950
      %v952 = vpop.f32.mrf.mxu0
      %v953 = vadd.f32 0.0, %v952
      %954 = vmatmul.bf16.gmra.mxu0 %v810
      %v955 = vpop.f32.mrf.mxu0
      %v956 = vadd.f32 0.0, %v955
      %v957 = vpop.f32.mrf.mxu0
      %v958 = vadd.f32 0.0, %v957
      %959 = vmatmul.bf16.gmra.mxu0 %v811
      %v960 = vpop.f32.mrf.mxu0
      %v961 = vadd.f32 0.0, %v960
      %v962 = vpop.f32.mrf.mxu0
      %v963 = vadd.f32 0.0, %v962
      %964 = vdwg.mxu0
      %v997 = vunpack.c.l.b16 %v290
      %v998 = vunpack.c.l.b16 %v291
      %v999 = vunpack.c.l.b16 %v293
      %v1000 = vunpack.c.l.b16 %v294
      %v1001 = vunpack.c.l.b16 %v296
      %v1002 = vunpack.c.l.b16 %v297
      %v1003 = vunpack.c.l.b16 %v299
      %v1004 = vunpack.c.l.b16 %v300
      %v1005 = vunpack.c.l.b16 %v302
      %v1006 = vunpack.c.l.b16 %v303
      %v1007 = vunpack.c.l.b16 %v305
      %v1008 = vunpack.c.l.b16 %v306
      %v1009 = vunpack.c.l.b16 %v308
      %v1010 = vunpack.c.l.b16 %v309
      %v1011 = vunpack.c.l.b16 %v311
      %v1012 = vunpack.c.l.b16 %v312
      %v1013 = vunpack.c.l.b16 %v314
      %v1014 = vunpack.c.l.b16 %v315
      %v1015 = vunpack.c.l.b16 %v317
      %v1016 = vunpack.c.l.b16 %v318
      %v1017 = vunpack.c.l.b16 %v320
      %v1018 = vunpack.c.l.b16 %v321
      %v1019 = vunpack.c.l.b16 %v323
      %v1020 = vunpack.c.l.b16 %v324
      %v1021 = vunpack.c.l.b16 %v326
      %v1022 = vunpack.c.l.b16 %v327
      %v1023 = vunpack.c.l.b16 %v329
      %v1024 = vunpack.c.l.b16 %v330
      %v1025 = vunpack.c.l.b16 %v332
      %v1026 = vunpack.c.l.b16 %v333
      %v1027 = vunpack.c.l.b16 %v335
      %v1028 = vunpack.c.l.b16 %v336
      %v1029 = vpack.c.b16 %v998, %v997
      %v1030 = vpack.c.b16 %v1000, %v999
      %v1031 = vpack.c.b16 %v1002, %v1001
      %v1032 = vpack.c.b16 %v1004, %v1003
      %v1033 = vpack.c.b16 %v1006, %v1005
      %v1034 = vpack.c.b16 %v1008, %v1007
      %v1035 = vpack.c.b16 %v1010, %v1009
      %v1036 = vpack.c.b16 %v1012, %v1011
      %v1037 = vpack.c.b16 %v1014, %v1013
      %v1038 = vpack.c.b16 %v1016, %v1015
      %v1039 = vpack.c.b16 %v1018, %v1017
      %v1040 = vpack.c.b16 %v1020, %v1019
      %v1041 = vpack.c.b16 %v1022, %v1021
      %v1042 = vpack.c.b16 %v1024, %v1023
      %v1043 = vpack.c.b16 %v1026, %v1025
      %v1044 = vpack.c.b16 %v1028, %v1027
      %v1077 = vunpack.c.l.b16 %v344
      %v1078 = vunpack.c.l.b16 %v345
      %v1079 = vunpack.c.l.b16 %v346
      %v1080 = vunpack.c.l.b16 %v347
      %v1081 = vunpack.c.l.b16 %v348
      %v1082 = vunpack.c.l.b16 %v349
      %v1083 = vunpack.c.l.b16 %v350
      %v1084 = vunpack.c.l.b16 %v351
      %v1085 = vunpack.c.l.b16 %v352
      %v1086 = vunpack.c.l.b16 %v353
      %v1087 = vunpack.c.l.b16 %v354
      %v1088 = vunpack.c.l.b16 %v355
      %v1089 = vunpack.c.l.b16 %v356
      %v1090 = vunpack.c.l.b16 %v357
      %v1091 = vunpack.c.l.b16 %v358
      %v1092 = vunpack.c.l.b16 %v359
      %v1093 = vpack.c.b16 %v1078, %v1077
      %v1094 = vpack.c.b16 %v1080, %v1079
      %v1095 = vpack.c.b16 %v1082, %v1081
      %v1096 = vpack.c.b16 %v1084, %v1083
      %v1097 = vpack.c.b16 %v1086, %v1085
      %v1098 = vpack.c.b16 %v1088, %v1087
      %v1099 = vpack.c.b16 %v1090, %v1089
      %v1100 = vpack.c.b16 %v1092, %v1091
      %1109 = vmatpush.bf16.msra.mxu0 %v1100
      %1110 = vmatpush.bf16.msra.mxu0 %v1099
      %1111 = vmatpush.bf16.msra.mxu0 %v1098
      %1112 = vmatpush.bf16.msra.mxu0 %v1097
      %1113 = vmatpush.bf16.msra.mxu0 %v1096
      %1114 = vmatpush.bf16.msra.mxu0 %v1095
      %1115 = vmatpush.bf16.msra.mxu0 %v1094
      %1116 = vmatpush.bf16.msra.mxu0 %v1093
      %1117 = vmatmul.bf16.gmra.mxu0 %v1029
      %v1118 = vpop.f32.mrf.mxu0
      %v1119 = vadd.f32 %v886, %v1118
      %v1120 = vpop.f32.mrf.mxu0
      %v1121 = vadd.f32 %v888, %v1120
      %1122 = vmatmul.bf16.gmra.mxu0 %v1030
      %v1123 = vpop.f32.mrf.mxu0
      %v1124 = vadd.f32 %v891, %v1123
      %v1125 = vpop.f32.mrf.mxu0
      %v1126 = vadd.f32 %v893, %v1125
      %1127 = vmatmul.bf16.gmra.mxu0 %v1031
      %v1128 = vpop.f32.mrf.mxu0
      %v1129 = vadd.f32 %v896, %v1128
      %v1130 = vpop.f32.mrf.mxu0
      %v1131 = vadd.f32 %v898, %v1130
      %1132 = vmatmul.bf16.gmra.mxu0 %v1032
      %v1133 = vpop.f32.mrf.mxu0
      %v1134 = vadd.f32 %v901, %v1133
      %v1135 = vpop.f32.mrf.mxu0
      %v1136 = vadd.f32 %v903, %v1135
      %1137 = vmatmul.bf16.gmra.mxu0 %v1033
      %v1138 = vpop.f32.mrf.mxu0
      %v1139 = vadd.f32 %v906, %v1138
      %v1140 = vpop.f32.mrf.mxu0
      %v1141 = vadd.f32 %v908, %v1140
      %1142 = vmatmul.bf16.gmra.mxu0 %v1034
      %v1143 = vpop.f32.mrf.mxu0
      %v1144 = vadd.f32 %v911, %v1143
      %v1145 = vpop.f32.mrf.mxu0
      %v1146 = vadd.f32 %v913, %v1145
      %1147 = vmatmul.bf16.gmra.mxu0 %v1035
      %v1148 = vpop.f32.mrf.mxu0
      %v1149 = vadd.f32 %v916, %v1148
      %v1150 = vpop.f32.mrf.mxu0
      %v1151 = vadd.f32 %v918, %v1150
      %1152 = vmatmul.bf16.gmra.mxu0 %v1036
      %v1153 = vpop.f32.mrf.mxu0
      %v1154 = vadd.f32 %v921, %v1153
      %v1155 = vpop.f32.mrf.mxu0
      %v1156 = vadd.f32 %v923, %v1155
      %1157 = vmatmul.bf16.gmra.mxu0 %v1037
      %v1158 = vpop.f32.mrf.mxu0
      %v1159 = vadd.f32 %v926, %v1158
      %v1160 = vpop.f32.mrf.mxu0
      %v1161 = vadd.f32 %v928, %v1160
      %1162 = vmatmul.bf16.gmra.mxu0 %v1038
      %v1163 = vpop.f32.mrf.mxu0
      %v1164 = vadd.f32 %v931, %v1163
      %v1165 = vpop.f32.mrf.mxu0
      %v1166 = vadd.f32 %v933, %v1165
      %1167 = vmatmul.bf16.gmra.mxu0 %v1039
      %v1168 = vpop.f32.mrf.mxu0
      %v1169 = vadd.f32 %v936, %v1168
      %v1170 = vpop.f32.mrf.mxu0
      %v1171 = vadd.f32 %v938, %v1170
      %1172 = vmatmul.bf16.gmra.mxu0 %v1040
      %v1173 = vpop.f32.mrf.mxu0
      %v1174 = vadd.f32 %v941, %v1173
      %v1175 = vpop.f32.mrf.mxu0
      %v1176 = vadd.f32 %v943, %v1175
      %1177 = vmatmul.bf16.gmra.mxu0 %v1041
      %v1178 = vpop.f32.mrf.mxu0
      %v1179 = vadd.f32 %v946, %v1178
      %v1180 = vpop.f32.mrf.mxu0
      %v1181 = vadd.f32 %v948, %v1180
      %1182 = vmatmul.bf16.gmra.mxu0 %v1042
      %v1183 = vpop.f32.mrf.mxu0
      %v1184 = vadd.f32 %v951, %v1183
      %v1185 = vpop.f32.mrf.mxu0
      %v1186 = vadd.f32 %v953, %v1185
      %1187 = vmatmul.bf16.gmra.mxu0 %v1043
      %v1188 = vpop.f32.mrf.mxu0
      %v1189 = vadd.f32 %v956, %v1188
      %v1190 = vpop.f32.mrf.mxu0
      %v1191 = vadd.f32 %v958, %v1190
      %1192 = vmatmul.bf16.gmra.mxu0 %v1044
      %v1193 = vpop.f32.mrf.mxu0
      %v1194 = vadd.f32 %v961, %v1193
      %v1195 = vpop.f32.mrf.mxu0
      %v1196 = vadd.f32 %v963, %v1195
      %1197 = vdwg.mxu0
      %vm1214 = vcmask 1042432
      %vm1215 = vcmask 1046532
      %vm1216 = vmor %vm1214, %vm1215
      %v1217 = vrot.slane %v290, 5
      %v1218 = vrot.slane %v1217, 4
      %v1219 = vrot.slane %v291, 5
      %v1220 = vsel %vm1216, %v1218, %v1219
      %v1221 = vrot.slane %v1219, 4
      %v1222 = vrot.slane %v292, 5
      %v1223 = vsel %vm1216, %v1221, %v1222
      %v1224 = vrot.slane %v293, 5
      %v1225 = vrot.slane %v1224, 4
      %v1226 = vrot.slane %v294, 5
      %v1227 = vsel %vm1216, %v1225, %v1226
      %v1228 = vrot.slane %v1226, 4
      %v1229 = vrot.slane %v295, 5
      %v1230 = vsel %vm1216, %v1228, %v1229
      %v1231 = vrot.slane %v296, 5
      %v1232 = vrot.slane %v1231, 4
      %v1233 = vrot.slane %v297, 5
      %v1234 = vsel %vm1216, %v1232, %v1233
      %v1235 = vrot.slane %v1233, 4
      %v1236 = vrot.slane %v298, 5
      %v1237 = vsel %vm1216, %v1235, %v1236
      %v1238 = vrot.slane %v299, 5
      %v1239 = vrot.slane %v1238, 4
      %v1240 = vrot.slane %v300, 5
      %v1241 = vsel %vm1216, %v1239, %v1240
      %v1242 = vrot.slane %v1240, 4
      %v1243 = vrot.slane %v301, 5
      %v1244 = vsel %vm1216, %v1242, %v1243
      %v1245 = vrot.slane %v302, 5
      %v1246 = vrot.slane %v1245, 4
      %v1247 = vrot.slane %v303, 5
      %v1248 = vsel %vm1216, %v1246, %v1247
      %v1249 = vrot.slane %v1247, 4
      %v1250 = vrot.slane %v304, 5
      %v1251 = vsel %vm1216, %v1249, %v1250
      %v1252 = vrot.slane %v305, 5
      %v1253 = vrot.slane %v1252, 4
      %v1254 = vrot.slane %v306, 5
      %v1255 = vsel %vm1216, %v1253, %v1254
      %v1256 = vrot.slane %v1254, 4
      %v1257 = vrot.slane %v307, 5
      %v1258 = vsel %vm1216, %v1256, %v1257
      %v1259 = vrot.slane %v308, 5
      %v1260 = vrot.slane %v1259, 4
      %v1261 = vrot.slane %v309, 5
      %v1262 = vsel %vm1216, %v1260, %v1261
      %v1263 = vrot.slane %v1261, 4
      %v1264 = vrot.slane %v310, 5
      %v1265 = vsel %vm1216, %v1263, %v1264
      %v1266 = vrot.slane %v311, 5
      %v1267 = vrot.slane %v1266, 4
      %v1268 = vrot.slane %v312, 5
      %v1269 = vsel %vm1216, %v1267, %v1268
      %v1270 = vrot.slane %v1268, 4
      %v1271 = vrot.slane %v313, 5
      %v1272 = vsel %vm1216, %v1270, %v1271
      %v1273 = vrot.slane %v314, 5
      %v1274 = vrot.slane %v1273, 4
      %v1275 = vrot.slane %v315, 5
      %v1276 = vsel %vm1216, %v1274, %v1275
      %v1277 = vrot.slane %v1275, 4
      %v1278 = vrot.slane %v316, 5
      %v1279 = vsel %vm1216, %v1277, %v1278
      %v1280 = vrot.slane %v317, 5
      %v1281 = vrot.slane %v1280, 4
      %v1282 = vrot.slane %v318, 5
      %v1283 = vsel %vm1216, %v1281, %v1282
      %v1284 = vrot.slane %v1282, 4
      %v1285 = vrot.slane %v319, 5
      %v1286 = vsel %vm1216, %v1284, %v1285
      %v1287 = vrot.slane %v320, 5
      %v1288 = vrot.slane %v1287, 4
      %v1289 = vrot.slane %v321, 5
      %v1290 = vsel %vm1216, %v1288, %v1289
      %v1291 = vrot.slane %v1289, 4
      %v1292 = vrot.slane %v322, 5
      %v1293 = vsel %vm1216, %v1291, %v1292
      %v1294 = vrot.slane %v323, 5
      %v1295 = vrot.slane %v1294, 4
      %v1296 = vrot.slane %v324, 5
      %v1297 = vsel %vm1216, %v1295, %v1296
      %v1298 = vrot.slane %v1296, 4
      %v1299 = vrot.slane %v325, 5
      %v1300 = vsel %vm1216, %v1298, %v1299
      %v1301 = vrot.slane %v326, 5
      %v1302 = vrot.slane %v1301, 4
      %v1303 = vrot.slane %v327, 5
      %v1304 = vsel %vm1216, %v1302, %v1303
      %v1305 = vrot.slane %v1303, 4
      %v1306 = vrot.slane %v328, 5
      %v1307 = vsel %vm1216, %v1305, %v1306
      %v1308 = vrot.slane %v329, 5
      %v1309 = vrot.slane %v1308, 4
      %v1310 = vrot.slane %v330, 5
      %v1311 = vsel %vm1216, %v1309, %v1310
      %v1312 = vrot.slane %v1310, 4
      %v1313 = vrot.slane %v331, 5
      %v1314 = vsel %vm1216, %v1312, %v1313
      %v1315 = vrot.slane %v332, 5
      %v1316 = vrot.slane %v1315, 4
      %v1317 = vrot.slane %v333, 5
      %v1318 = vsel %vm1216, %v1316, %v1317
      %v1319 = vrot.slane %v1317, 4
      %v1320 = vrot.slane %v334, 5
      %v1321 = vsel %vm1216, %v1319, %v1320
      %v1322 = vrot.slane %v335, 5
      %v1323 = vrot.slane %v1322, 4
      %v1324 = vrot.slane %v336, 5
      %v1325 = vsel %vm1216, %v1323, %v1324
      %v1326 = vrot.slane %v1324, 4
      %v1327 = vrot.slane %v337, 5
      %v1328 = vsel %vm1216, %v1326, %v1327
      %s1329 = scalar_lea.vmem %s269, 128
      %v1330 = vld [vmem:[%s1329] sm:$0xf]
      %v1331 = vld [vmem:[%s1329 + $0x4] sm:$0xf]
      %v1332 = vld [vmem:[%s1329 + $0x8] sm:$0xf]
      %v1333 = vld [vmem:[%s1329 + $0xc] sm:$0xf]
      %v1334 = vld [vmem:[%s1329 + $0x10] sm:$0xf]
      %v1335 = vld [vmem:[%s1329 + $0x14] sm:$0xf]
      %v1336 = vld [vmem:[%s1329 + $0x18] sm:$0xf]
      %v1337 = vld [vmem:[%s1329 + $0x1c] sm:$0xf]
      %v1338 = vld [vmem:[%s1329 + $0x20] sm:$0xf]
      %v1339 = vld [vmem:[%s1329 + $0x24] sm:$0xf]
      %v1340 = vld [vmem:[%s1329 + $0x28] sm:$0xf]
      %v1341 = vld [vmem:[%s1329 + $0x2c] sm:$0xf]
      %v1342 = vld [vmem:[%s1329 + $0x30] sm:$0xf]
      %v1343 = vld [vmem:[%s1329 + $0x34] sm:$0xf]
      %v1344 = vld [vmem:[%s1329 + $0x38] sm:$0xf]
      %v1345 = vld [vmem:[%s1329 + $0x3c] sm:$0xf]
      %v1346 = vunpack.c.l.b16 %v1220
      %v1347 = vunpack.c.l.b16 %v1223
      %v1348 = vunpack.c.l.b16 %v1227
      %v1349 = vunpack.c.l.b16 %v1230
      %v1350 = vunpack.c.l.b16 %v1234
      %v1351 = vunpack.c.l.b16 %v1237
      %v1352 = vunpack.c.l.b16 %v1241
      %v1353 = vunpack.c.l.b16 %v1244
      %v1354 = vunpack.c.l.b16 %v1248
      %v1355 = vunpack.c.l.b16 %v1251
      %v1356 = vunpack.c.l.b16 %v1255
      %v1357 = vunpack.c.l.b16 %v1258
      %v1358 = vunpack.c.l.b16 %v1262
      %v1359 = vunpack.c.l.b16 %v1265
      %v1360 = vunpack.c.l.b16 %v1269
      %v1361 = vunpack.c.l.b16 %v1272
      %v1362 = vunpack.c.l.b16 %v1276
      %v1363 = vunpack.c.l.b16 %v1279
      %v1364 = vunpack.c.l.b16 %v1283
      %v1365 = vunpack.c.l.b16 %v1286
      %v1366 = vunpack.c.l.b16 %v1290
      %v1367 = vunpack.c.l.b16 %v1293
      %v1368 = vunpack.c.l.b16 %v1297
      %v1369 = vunpack.c.l.b16 %v1300
      %v1370 = vunpack.c.l.b16 %v1304
      %v1371 = vunpack.c.l.b16 %v1307
      %v1372 = vunpack.c.l.b16 %v1311
      %v1373 = vunpack.c.l.b16 %v1314
      %v1374 = vunpack.c.l.b16 %v1318
      %v1375 = vunpack.c.l.b16 %v1321
      %v1376 = vunpack.c.l.b16 %v1325
      %v1377 = vunpack.c.l.b16 %v1328
      %v1378 = vpack.c.b16 %v1347, %v1346
      %v1379 = vpack.c.b16 %v1349, %v1348
      %v1380 = vpack.c.b16 %v1351, %v1350
      %v1381 = vpack.c.b16 %v1353, %v1352
      %v1382 = vpack.c.b16 %v1355, %v1354
      %v1383 = vpack.c.b16 %v1357, %v1356
      %v1384 = vpack.c.b16 %v1359, %v1358
      %v1385 = vpack.c.b16 %v1361, %v1360
      %v1386 = vpack.c.b16 %v1363, %v1362
      %v1387 = vpack.c.b16 %v1365, %v1364
      %v1388 = vpack.c.b16 %v1367, %v1366
      %v1389 = vpack.c.b16 %v1369, %v1368
      %v1390 = vpack.c.b16 %v1371, %v1370
      %v1391 = vpack.c.b16 %v1373, %v1372
      %v1392 = vpack.c.b16 %v1375, %v1374
      %v1393 = vpack.c.b16 %v1377, %v1376
      %v1426 = vunpack.c.l.b16 %v1330
      %v1427 = vunpack.c.l.b16 %v1331
      %v1428 = vunpack.c.l.b16 %v1332
      %v1429 = vunpack.c.l.b16 %v1333
      %v1430 = vunpack.c.l.b16 %v1334
      %v1431 = vunpack.c.l.b16 %v1335
      %v1432 = vunpack.c.l.b16 %v1336
      %v1433 = vunpack.c.l.b16 %v1337
      %v1434 = vunpack.c.l.b16 %v1338
      %v1435 = vunpack.c.l.b16 %v1339
      %v1436 = vunpack.c.l.b16 %v1340
      %v1437 = vunpack.c.l.b16 %v1341
      %v1438 = vunpack.c.l.b16 %v1342
      %v1439 = vunpack.c.l.b16 %v1343
      %v1440 = vunpack.c.l.b16 %v1344
      %v1441 = vunpack.c.l.b16 %v1345
      %v1442 = vpack.c.b16 %v1427, %v1426
      %v1443 = vpack.c.b16 %v1429, %v1428
      %v1444 = vpack.c.b16 %v1431, %v1430
      %v1445 = vpack.c.b16 %v1433, %v1432
      %v1446 = vpack.c.b16 %v1435, %v1434
      %v1447 = vpack.c.b16 %v1437, %v1436
      %v1448 = vpack.c.b16 %v1439, %v1438
      %v1449 = vpack.c.b16 %v1441, %v1440
      %1458 = vmatpush.bf16.msra.mxu0 %v1449
      %1459 = vmatpush.bf16.msra.mxu0 %v1448
      %1460 = vmatpush.bf16.msra.mxu0 %v1447
      %1461 = vmatpush.bf16.msra.mxu0 %v1446
      %1462 = vmatpush.bf16.msra.mxu0 %v1445
      %1463 = vmatpush.bf16.msra.mxu0 %v1444
      %1464 = vmatpush.bf16.msra.mxu0 %v1443
      %1465 = vmatpush.bf16.msra.mxu0 %v1442
      %1466 = vmatmul.bf16.gmra.mxu0 %v1378
      %v1467 = vpop.f32.mrf.mxu0
      %v1468 = vadd.f32 0.0, %v1467
      %v1469 = vpop.f32.mrf.mxu0
      %v1470 = vadd.f32 0.0, %v1469
      %1471 = vmatmul.bf16.gmra.mxu0 %v1379
      %v1472 = vpop.f32.mrf.mxu0
      %v1473 = vadd.f32 0.0, %v1472
      %v1474 = vpop.f32.mrf.mxu0
      %v1475 = vadd.f32 0.0, %v1474
      %1476 = vmatmul.bf16.gmra.mxu0 %v1380
      %v1477 = vpop.f32.mrf.mxu0
      %v1478 = vadd.f32 0.0, %v1477
      %v1479 = vpop.f32.mrf.mxu0
      %v1480 = vadd.f32 0.0, %v1479
      %1481 = vmatmul.bf16.gmra.mxu0 %v1381
      %v1482 = vpop.f32.mrf.mxu0
      %v1483 = vadd.f32 0.0, %v1482
      %v1484 = vpop.f32.mrf.mxu0
      %v1485 = vadd.f32 0.0, %v1484
      %1486 = vmatmul.bf16.gmra.mxu0 %v1382
      %v1487 = vpop.f32.mrf.mxu0
      %v1488 = vadd.f32 0.0, %v1487
      %v1489 = vpop.f32.mrf.mxu0
      %v1490 = vadd.f32 0.0, %v1489
      %1491 = vmatmul.bf16.gmra.mxu0 %v1383
      %v1492 = vpop.f32.mrf.mxu0
      %v1493 = vadd.f32 0.0, %v1492
      %v1494 = vpop.f32.mrf.mxu0
      %v1495 = vadd.f32 0.0, %v1494
      %1496 = vmatmul.bf16.gmra.mxu0 %v1384
      %v1497 = vpop.f32.mrf.mxu0
      %v1498 = vadd.f32 0.0, %v1497
      %v1499 = vpop.f32.mrf.mxu0
      %v1500 = vadd.f32 0.0, %v1499
      %1501 = vmatmul.bf16.gmra.mxu0 %v1385
      %v1502 = vpop.f32.mrf.mxu0
      %v1503 = vadd.f32 0.0, %v1502
      %v1504 = vpop.f32.mrf.mxu0
      %v1505 = vadd.f32 0.0, %v1504
      %1506 = vmatmul.bf16.gmra.mxu0 %v1386
      %v1507 = vpop.f32.mrf.mxu0
      %v1508 = vadd.f32 0.0, %v1507
      %v1509 = vpop.f32.mrf.mxu0
      %v1510 = vadd.f32 0.0, %v1509
      %1511 = vmatmul.bf16.gmra.mxu0 %v1387
      %v1512 = vpop.f32.mrf.mxu0
      %v1513 = vadd.f32 0.0, %v1512
      %v1514 = vpop.f32.mrf.mxu0
      %v1515 = vadd.f32 0.0, %v1514
      %1516 = vmatmul.bf16.gmra.mxu0 %v1388
      %v1517 = vpop.f32.mrf.mxu0
      %v1518 = vadd.f32 0.0, %v1517
      %v1519 = vpop.f32.mrf.mxu0
      %v1520 = vadd.f32 0.0, %v1519
      %1521 = vmatmul.bf16.gmra.mxu0 %v1389
      %v1522 = vpop.f32.mrf.mxu0
      %v1523 = vadd.f32 0.0, %v1522
      %v1524 = vpop.f32.mrf.mxu0
      %v1525 = vadd.f32 0.0, %v1524
      %1526 = vmatmul.bf16.gmra.mxu0 %v1390
      %v1527 = vpop.f32.mrf.mxu0
      %v1528 = vadd.f32 0.0, %v1527
      %v1529 = vpop.f32.mrf.mxu0
      %v1530 = vadd.f32 0.0, %v1529
      %1531 = vmatmul.bf16.gmra.mxu0 %v1391
      %v1532 = vpop.f32.mrf.mxu0
      %v1533 = vadd.f32 0.0, %v1532
      %v1534 = vpop.f32.mrf.mxu0
      %v1535 = vadd.f32 0.0, %v1534
      %1536 = vmatmul.bf16.gmra.mxu0 %v1392
      %v1537 = vpop.f32.mrf.mxu0
      %v1538 = vadd.f32 0.0, %v1537
      %v1539 = vpop.f32.mrf.mxu0
      %v1540 = vadd.f32 0.0, %v1539
      %1541 = vmatmul.bf16.gmra.mxu0 %v1393
      %v1542 = vpop.f32.mrf.mxu0
      %v1543 = vadd.f32 0.0, %v1542
      %v1544 = vpop.f32.mrf.mxu0
      %v1545 = vadd.f32 0.0, %v1544
      %1546 = vdwg.mxu0
      %v1547 = vadd.f32 %v1119, %v1468
      %v1548 = vadd.f32 %v1121, %v1470
      %v1549 = vadd.f32 %v1124, %v1473
      %v1550 = vadd.f32 %v1126, %v1475
      %v1551 = vadd.f32 %v1129, %v1478
      %v1552 = vadd.f32 %v1131, %v1480
      %v1553 = vadd.f32 %v1134, %v1483
      %v1554 = vadd.f32 %v1136, %v1485
      %v1555 = vadd.f32 %v1139, %v1488
      %v1556 = vadd.f32 %v1141, %v1490
      %v1557 = vadd.f32 %v1144, %v1493
      %v1558 = vadd.f32 %v1146, %v1495
      %v1559 = vadd.f32 %v1149, %v1498
      %v1560 = vadd.f32 %v1151, %v1500
      %v1561 = vadd.f32 %v1154, %v1503
      %v1562 = vadd.f32 %v1156, %v1505
      %v1563 = vadd.f32 %v1159, %v1508
      %v1564 = vadd.f32 %v1161, %v1510
      %v1565 = vadd.f32 %v1164, %v1513
      %v1566 = vadd.f32 %v1166, %v1515
      %v1567 = vadd.f32 %v1169, %v1518
      %v1568 = vadd.f32 %v1171, %v1520
      %v1569 = vadd.f32 %v1174, %v1523
      %v1570 = vadd.f32 %v1176, %v1525
      %v1571 = vadd.f32 %v1179, %v1528
      %v1572 = vadd.f32 %v1181, %v1530
      %v1573 = vadd.f32 %v1184, %v1533
      %v1574 = vadd.f32 %v1186, %v1535
      %v1575 = vadd.f32 %v1189, %v1538
      %v1576 = vadd.f32 %v1191, %v1540
      %v1577 = vadd.f32 %v1194, %v1543
      %v1578 = vadd.f32 %v1196, %v1545
      %s1579 = scalar_lea.vmem %s269, 192
      %v1580 = vld [vmem:[%s1579] sm:$0xf]
      %v1581 = vld [vmem:[%s1579 + $0x4] sm:$0xf]
      %v1582 = vld [vmem:[%s1579 + $0x8] sm:$0xf]
      %v1583 = vld [vmem:[%s1579 + $0xc] sm:$0xf]
      %v1584 = vld [vmem:[%s1579 + $0x10] sm:$0xf]
      %v1585 = vld [vmem:[%s1579 + $0x14] sm:$0xf]
      %v1586 = vld [vmem:[%s1579 + $0x18] sm:$0xf]
      %v1587 = vld [vmem:[%s1579 + $0x1c] sm:$0xf]
      %v1588 = vld [vmem:[%s1579 + $0x20] sm:$0xf]
      %v1589 = vld [vmem:[%s1579 + $0x24] sm:$0xf]
      %v1590 = vld [vmem:[%s1579 + $0x28] sm:$0xf]
      %v1591 = vld [vmem:[%s1579 + $0x2c] sm:$0xf]
      %v1592 = vld [vmem:[%s1579 + $0x30] sm:$0xf]
      %v1593 = vld [vmem:[%s1579 + $0x34] sm:$0xf]
      %v1594 = vld [vmem:[%s1579 + $0x38] sm:$0xf]
      %v1595 = vld [vmem:[%s1579 + $0x3c] sm:$0xf]
      %v1598 = vunpack.c.l.b16 %v338
      %v1599 = vunpack.c.l.b16 %v339
      %v1600 = vpack.c.b16 %v1599, %v1598
      %v1618 = vunpack.c.l.b16 %v1580
      %v1619 = vunpack.c.l.b16 %v1581
      %v1620 = vunpack.c.l.b16 %v1582
      %v1621 = vunpack.c.l.b16 %v1583
      %v1622 = vunpack.c.l.b16 %v1584
      %v1623 = vunpack.c.l.b16 %v1585
      %v1624 = vunpack.c.l.b16 %v1586
      %v1625 = vunpack.c.l.b16 %v1587
      %v1626 = vunpack.c.l.b16 %v1588
      %v1627 = vunpack.c.l.b16 %v1589
      %v1628 = vunpack.c.l.b16 %v1590
      %v1629 = vunpack.c.l.b16 %v1591
      %v1630 = vunpack.c.l.b16 %v1592
      %v1631 = vunpack.c.l.b16 %v1593
      %v1632 = vunpack.c.l.b16 %v1594
      %v1633 = vunpack.c.l.b16 %v1595
      %v1634 = vpack.c.b16 %v1619, %v1618
      %v1635 = vpack.c.b16 %v1621, %v1620
      %v1636 = vpack.c.b16 %v1623, %v1622
      %v1637 = vpack.c.b16 %v1625, %v1624
      %v1638 = vpack.c.b16 %v1627, %v1626
      %v1639 = vpack.c.b16 %v1629, %v1628
      %v1640 = vpack.c.b16 %v1631, %v1630
      %v1641 = vpack.c.b16 %v1633, %v1632
      %1650 = vmatpush.bf16.msra.mxu0 %v1641
      %1651 = vmatpush.bf16.msra.mxu0 %v1640
      %1652 = vmatpush.bf16.msra.mxu0 %v1639
      %1653 = vmatpush.bf16.msra.mxu0 %v1638
      %1654 = vmatpush.bf16.msra.mxu0 %v1637
      %1655 = vmatpush.bf16.msra.mxu0 %v1636
      %1656 = vmatpush.bf16.msra.mxu0 %v1635
      %1657 = vmatpush.bf16.msra.mxu0 %v1634
      %1658 = vmatmul.bf16.gmra.mxu0 %v1030
      %v1659 = vpop.f32.mrf.mxu0
      %v1660 = vadd.f32 0.0, %v1659
      %v1661 = vpop.f32.mrf.mxu0
      %v1662 = vadd.f32 0.0, %v1661
      %1663 = vmatmul.bf16.gmra.mxu0 %v1031
      %v1664 = vpop.f32.mrf.mxu0
      %v1665 = vadd.f32 0.0, %v1664
      %v1666 = vpop.f32.mrf.mxu0
      %v1667 = vadd.f32 0.0, %v1666
      %1668 = vmatmul.bf16.gmra.mxu0 %v1032
      %v1669 = vpop.f32.mrf.mxu0
      %v1670 = vadd.f32 0.0, %v1669
      %v1671 = vpop.f32.mrf.mxu0
      %v1672 = vadd.f32 0.0, %v1671
      %1673 = vmatmul.bf16.gmra.mxu0 %v1033
      %v1674 = vpop.f32.mrf.mxu0
      %v1675 = vadd.f32 0.0, %v1674
      %v1676 = vpop.f32.mrf.mxu0
      %v1677 = vadd.f32 0.0, %v1676
      %1678 = vmatmul.bf16.gmra.mxu0 %v1034
      %v1679 = vpop.f32.mrf.mxu0
      %v1680 = vadd.f32 0.0, %v1679
      %v1681 = vpop.f32.mrf.mxu0
      %v1682 = vadd.f32 0.0, %v1681
      %1683 = vmatmul.bf16.gmra.mxu0 %v1035
      %v1684 = vpop.f32.mrf.mxu0
      %v1685 = vadd.f32 0.0, %v1684
      %v1686 = vpop.f32.mrf.mxu0
      %v1687 = vadd.f32 0.0, %v1686
      %1688 = vmatmul.bf16.gmra.mxu0 %v1036
      %v1689 = vpop.f32.mrf.mxu0
      %v1690 = vadd.f32 0.0, %v1689
      %v1691 = vpop.f32.mrf.mxu0
      %v1692 = vadd.f32 0.0, %v1691
      %1693 = vmatmul.bf16.gmra.mxu0 %v1037
      %v1694 = vpop.f32.mrf.mxu0
      %v1695 = vadd.f32 0.0, %v1694
      %v1696 = vpop.f32.mrf.mxu0
      %v1697 = vadd.f32 0.0, %v1696
      %1698 = vmatmul.bf16.gmra.mxu0 %v1038
      %v1699 = vpop.f32.mrf.mxu0
      %v1700 = vadd.f32 0.0, %v1699
      %v1701 = vpop.f32.mrf.mxu0
      %v1702 = vadd.f32 0.0, %v1701
      %1703 = vmatmul.bf16.gmra.mxu0 %v1039
      %v1704 = vpop.f32.mrf.mxu0
      %v1705 = vadd.f32 0.0, %v1704
      %v1706 = vpop.f32.mrf.mxu0
      %v1707 = vadd.f32 0.0, %v1706
      %1708 = vmatmul.bf16.gmra.mxu0 %v1040
      %v1709 = vpop.f32.mrf.mxu0
      %v1710 = vadd.f32 0.0, %v1709
      %v1711 = vpop.f32.mrf.mxu0
      %v1712 = vadd.f32 0.0, %v1711
      %1713 = vmatmul.bf16.gmra.mxu0 %v1041
      %v1714 = vpop.f32.mrf.mxu0
      %v1715 = vadd.f32 0.0, %v1714
      %v1716 = vpop.f32.mrf.mxu0
      %v1717 = vadd.f32 0.0, %v1716
      %1718 = vmatmul.bf16.gmra.mxu0 %v1042
      %v1719 = vpop.f32.mrf.mxu0
      %v1720 = vadd.f32 0.0, %v1719
      %v1721 = vpop.f32.mrf.mxu0
      %v1722 = vadd.f32 0.0, %v1721
      %1723 = vmatmul.bf16.gmra.mxu0 %v1043
      %v1724 = vpop.f32.mrf.mxu0
      %v1725 = vadd.f32 0.0, %v1724
      %v1726 = vpop.f32.mrf.mxu0
      %v1727 = vadd.f32 0.0, %v1726
      %1728 = vmatmul.bf16.gmra.mxu0 %v1044
      %v1729 = vpop.f32.mrf.mxu0
      %v1730 = vadd.f32 0.0, %v1729
      %v1731 = vpop.f32.mrf.mxu0
      %v1732 = vadd.f32 0.0, %v1731
      %1733 = vmatmul.bf16.gmra.mxu0 %v1600
      %v1734 = vpop.f32.mrf.mxu0
      %v1735 = vadd.f32 0.0, %v1734
      %v1736 = vpop.f32.mrf.mxu0
      %v1737 = vadd.f32 0.0, %v1736
      %1738 = vdwg.mxu0
      %v1739 = vadd.f32 %v1547, %v1660
      %v1740 = vadd.f32 %v1548, %v1662
      %v1741 = vadd.f32 %v1549, %v1665
      %v1742 = vadd.f32 %v1550, %v1667
      %v1743 = vadd.f32 %v1551, %v1670
      %v1744 = vadd.f32 %v1552, %v1672
      %v1745 = vadd.f32 %v1553, %v1675
      %v1746 = vadd.f32 %v1554, %v1677
      %v1747 = vadd.f32 %v1555, %v1680
      %v1748 = vadd.f32 %v1556, %v1682
      %v1749 = vadd.f32 %v1557, %v1685
      %v1750 = vadd.f32 %v1558, %v1687
      %v1751 = vadd.f32 %v1559, %v1690
      %v1752 = vadd.f32 %v1560, %v1692
      %v1753 = vadd.f32 %v1561, %v1695
      %v1754 = vadd.f32 %v1562, %v1697
      %v1755 = vadd.f32 %v1563, %v1700
      %v1756 = vadd.f32 %v1564, %v1702
      %v1757 = vadd.f32 %v1565, %v1705
      %v1758 = vadd.f32 %v1566, %v1707
      %v1759 = vadd.f32 %v1567, %v1710
      %v1760 = vadd.f32 %v1568, %v1712
      %v1761 = vadd.f32 %v1569, %v1715
      %v1762 = vadd.f32 %v1570, %v1717
      %v1763 = vadd.f32 %v1571, %v1720
      %v1764 = vadd.f32 %v1572, %v1722
      %v1765 = vadd.f32 %v1573, %v1725
      %v1766 = vadd.f32 %v1574, %v1727
      %v1767 = vadd.f32 %v1575, %v1730
      %v1768 = vadd.f32 %v1576, %v1732
      %v1769 = vadd.f32 %v1577, %v1735
      %v1770 = vadd.f32 %v1578, %v1737
      %v1772 = vshrl.u32 %v338, 16
      %v1774 = vrot.slane %v1772, 4
      %v1775 = vshll.u32 %v338, 16
      %v1777 = vrot.slane %v1775, 5
      %v1778 = vor.u32 %v1774, %v1777
      %v1779 = vrot.slane %v1778, 4
      %v1781 = vshll.u32 %v339, 16
      %v1783 = vrot.slane %v1781, 5
      %v1784 = vsel %vm362, %v1779, %v1783
      %v1785 = vshrl.u32 %v339, 16
      %v1787 = vrot.slane %v1785, 4
      %v1788 = vor.u32 %v1787, %v1783
      %v1789 = vrot.slane %v1788, 4
      %v1791 = vshll.u32 %v340, 16
      %v1793 = vrot.slane %v1791, 5
      %v1794 = vsel %vm362, %v1789, %v1793
      %s1795 = scalar_lea.vmem %s269, 256
      %v1796 = vld [vmem:[%s1795] sm:$0xf]
      %v1797 = vld [vmem:[%s1795 + $0x4] sm:$0xf]
      %v1798 = vld [vmem:[%s1795 + $0x8] sm:$0xf]
      %v1799 = vld [vmem:[%s1795 + $0xc] sm:$0xf]
      %v1800 = vld [vmem:[%s1795 + $0x10] sm:$0xf]
      %v1801 = vld [vmem:[%s1795 + $0x14] sm:$0xf]
      %v1802 = vld [vmem:[%s1795 + $0x18] sm:$0xf]
      %v1803 = vld [vmem:[%s1795 + $0x1c] sm:$0xf]
      %v1804 = vld [vmem:[%s1795 + $0x20] sm:$0xf]
      %v1805 = vld [vmem:[%s1795 + $0x24] sm:$0xf]
      %v1806 = vld [vmem:[%s1795 + $0x28] sm:$0xf]
      %v1807 = vld [vmem:[%s1795 + $0x2c] sm:$0xf]
      %v1808 = vld [vmem:[%s1795 + $0x30] sm:$0xf]
      %v1809 = vld [vmem:[%s1795 + $0x34] sm:$0xf]
      %v1810 = vld [vmem:[%s1795 + $0x38] sm:$0xf]
      %v1811 = vld [vmem:[%s1795 + $0x3c] sm:$0xf]
      %v1812 = vunpack.c.l.b16 %v1784
      %v1813 = vunpack.c.l.b16 %v1794
      %v1814 = vpack.c.b16 %v1813, %v1812
      %v1832 = vunpack.c.l.b16 %v1796
      %v1833 = vunpack.c.l.b16 %v1797
      %v1834 = vunpack.c.l.b16 %v1798
      %v1835 = vunpack.c.l.b16 %v1799
      %v1836 = vunpack.c.l.b16 %v1800
      %v1837 = vunpack.c.l.b16 %v1801
      %v1838 = vunpack.c.l.b16 %v1802
      %v1839 = vunpack.c.l.b16 %v1803
      %v1840 = vunpack.c.l.b16 %v1804
      %v1841 = vunpack.c.l.b16 %v1805
      %v1842 = vunpack.c.l.b16 %v1806
      %v1843 = vunpack.c.l.b16 %v1807
      %v1844 = vunpack.c.l.b16 %v1808
      %v1845 = vunpack.c.l.b16 %v1809
      %v1846 = vunpack.c.l.b16 %v1810
      %v1847 = vunpack.c.l.b16 %v1811
      %v1848 = vpack.c.b16 %v1833, %v1832
      %v1849 = vpack.c.b16 %v1835, %v1834
      %v1850 = vpack.c.b16 %v1837, %v1836
      %v1851 = vpack.c.b16 %v1839, %v1838
      %v1852 = vpack.c.b16 %v1841, %v1840
      %v1853 = vpack.c.b16 %v1843, %v1842
      %v1854 = vpack.c.b16 %v1845, %v1844
      %v1855 = vpack.c.b16 %v1847, %v1846
      %1864 = vmatpush.bf16.msra.mxu0 %v1855
      %1865 = vmatpush.bf16.msra.mxu0 %v1854
      %1866 = vmatpush.bf16.msra.mxu0 %v1853
      %1867 = vmatpush.bf16.msra.mxu0 %v1852
      %1868 = vmatpush.bf16.msra.mxu0 %v1851
      %1869 = vmatpush.bf16.msra.mxu0 %v1850
      %1870 = vmatpush.bf16.msra.mxu0 %v1849
      %1871 = vmatpush.bf16.msra.mxu0 %v1848
      %1872 = vmatmul.bf16.gmra.mxu0 %v797
      %v1873 = vpop.f32.mrf.mxu0
      %v1874 = vadd.f32 0.0, %v1873
      %v1875 = vpop.f32.mrf.mxu0
      %v1876 = vadd.f32 0.0, %v1875
      %1877 = vmatmul.bf16.gmra.mxu0 %v798
      %v1878 = vpop.f32.mrf.mxu0
      %v1879 = vadd.f32 0.0, %v1878
      %v1880 = vpop.f32.mrf.mxu0
      %v1881 = vadd.f32 0.0, %v1880
      %1882 = vmatmul.bf16.gmra.mxu0 %v799
      %v1883 = vpop.f32.mrf.mxu0
      %v1884 = vadd.f32 0.0, %v1883
      %v1885 = vpop.f32.mrf.mxu0
      %v1886 = vadd.f32 0.0, %v1885
      %1887 = vmatmul.bf16.gmra.mxu0 %v800
      %v1888 = vpop.f32.mrf.mxu0
      %v1889 = vadd.f32 0.0, %v1888
      %v1890 = vpop.f32.mrf.mxu0
      %v1891 = vadd.f32 0.0, %v1890
      %1892 = vmatmul.bf16.gmra.mxu0 %v801
      %v1893 = vpop.f32.mrf.mxu0
      %v1894 = vadd.f32 0.0, %v1893
      %v1895 = vpop.f32.mrf.mxu0
      %v1896 = vadd.f32 0.0, %v1895
      %1897 = vmatmul.bf16.gmra.mxu0 %v802
      %v1898 = vpop.f32.mrf.mxu0
      %v1899 = vadd.f32 0.0, %v1898
      %v1900 = vpop.f32.mrf.mxu0
      %v1901 = vadd.f32 0.0, %v1900
      %1902 = vmatmul.bf16.gmra.mxu0 %v803
      %v1903 = vpop.f32.mrf.mxu0
      %v1904 = vadd.f32 0.0, %v1903
      %v1905 = vpop.f32.mrf.mxu0
      %v1906 = vadd.f32 0.0, %v1905
      %1907 = vmatmul.bf16.gmra.mxu0 %v804
      %v1908 = vpop.f32.mrf.mxu0
      %v1909 = vadd.f32 0.0, %v1908
      %v1910 = vpop.f32.mrf.mxu0
      %v1911 = vadd.f32 0.0, %v1910
      %1912 = vmatmul.bf16.gmra.mxu0 %v805
      %v1913 = vpop.f32.mrf.mxu0
      %v1914 = vadd.f32 0.0, %v1913
      %v1915 = vpop.f32.mrf.mxu0
      %v1916 = vadd.f32 0.0, %v1915
      %1917 = vmatmul.bf16.gmra.mxu0 %v806
      %v1918 = vpop.f32.mrf.mxu0
      %v1919 = vadd.f32 0.0, %v1918
      %v1920 = vpop.f32.mrf.mxu0
      %v1921 = vadd.f32 0.0, %v1920
      %1922 = vmatmul.bf16.gmra.mxu0 %v807
      %v1923 = vpop.f32.mrf.mxu0
      %v1924 = vadd.f32 0.0, %v1923
      %v1925 = vpop.f32.mrf.mxu0
      %v1926 = vadd.f32 0.0, %v1925
      %1927 = vmatmul.bf16.gmra.mxu0 %v808
      %v1928 = vpop.f32.mrf.mxu0
      %v1929 = vadd.f32 0.0, %v1928
      %v1930 = vpop.f32.mrf.mxu0
      %v1931 = vadd.f32 0.0, %v1930
      %1932 = vmatmul.bf16.gmra.mxu0 %v809
      %v1933 = vpop.f32.mrf.mxu0
      %v1934 = vadd.f32 0.0, %v1933
      %v1935 = vpop.f32.mrf.mxu0
      %v1936 = vadd.f32 0.0, %v1935
      %1937 = vmatmul.bf16.gmra.mxu0 %v810
      %v1938 = vpop.f32.mrf.mxu0
      %v1939 = vadd.f32 0.0, %v1938
      %v1940 = vpop.f32.mrf.mxu0
      %v1941 = vadd.f32 0.0, %v1940
      %1942 = vmatmul.bf16.gmra.mxu0 %v811
      %v1943 = vpop.f32.mrf.mxu0
      %v1944 = vadd.f32 0.0, %v1943
      %v1945 = vpop.f32.mrf.mxu0
      %v1946 = vadd.f32 0.0, %v1945
      %1947 = vmatmul.bf16.gmra.mxu0 %v1814
      %v1948 = vpop.f32.mrf.mxu0
      %v1949 = vadd.f32 0.0, %v1948
      %v1950 = vpop.f32.mrf.mxu0
      %v1951 = vadd.f32 0.0, %v1950
      %1952 = vdwg.mxu0
      %v1953 = vadd.f32 %v1739, %v1874
      %v1954 = vadd.f32 %v1740, %v1876
      %v1955 = vadd.f32 %v1741, %v1879
      %v1956 = vadd.f32 %v1742, %v1881
      %v1957 = vadd.f32 %v1743, %v1884
      %v1958 = vadd.f32 %v1744, %v1886
      %v1959 = vadd.f32 %v1745, %v1889
      %v1960 = vadd.f32 %v1746, %v1891
      %v1961 = vadd.f32 %v1747, %v1894
      %v1962 = vadd.f32 %v1748, %v1896
      %v1963 = vadd.f32 %v1749, %v1899
      %v1964 = vadd.f32 %v1750, %v1901
      %v1965 = vadd.f32 %v1751, %v1904
      %v1966 = vadd.f32 %v1752, %v1906
      %v1967 = vadd.f32 %v1753, %v1909
      %v1968 = vadd.f32 %v1754, %v1911
      %v1969 = vadd.f32 %v1755, %v1914
      %v1970 = vadd.f32 %v1756, %v1916
      %v1971 = vadd.f32 %v1757, %v1919
      %v1972 = vadd.f32 %v1758, %v1921
      %v1973 = vadd.f32 %v1759, %v1924
      %v1974 = vadd.f32 %v1760, %v1926
      %v1975 = vadd.f32 %v1761, %v1929
      %v1976 = vadd.f32 %v1762, %v1931
      %v1977 = vadd.f32 %v1763, %v1934
      %v1978 = vadd.f32 %v1764, %v1936
      %v1979 = vadd.f32 %v1765, %v1939
      %v1980 = vadd.f32 %v1766, %v1941
      %v1981 = vadd.f32 %v1767, %v1944
      %v1982 = vadd.f32 %v1768, %v1946
      %v1983 = vadd.f32 %v1769, %v1949
      %v1984 = vadd.f32 %v1770, %v1951
      %v1986 = vrot.slane %v338, 5
      %v1987 = vrot.slane %v1986, 4
      %v1988 = vrot.slane %v339, 5
      %v1989 = vsel %vm1216, %v1987, %v1988
      %v1990 = vrot.slane %v1988, 4
      %v1991 = vrot.slane %v340, 5
      %v1992 = vsel %vm1216, %v1990, %v1991
      %s1993 = scalar_lea.vmem %s269, 320
      %v1994 = vld [vmem:[%s1993] sm:$0xf]
      %v1995 = vld [vmem:[%s1993 + $0x4] sm:$0xf]
      %v1996 = vld [vmem:[%s1993 + $0x8] sm:$0xf]
      %v1997 = vld [vmem:[%s1993 + $0xc] sm:$0xf]
      %v1998 = vld [vmem:[%s1993 + $0x10] sm:$0xf]
      %v1999 = vld [vmem:[%s1993 + $0x14] sm:$0xf]
      %v2000 = vld [vmem:[%s1993 + $0x18] sm:$0xf]
      %v2001 = vld [vmem:[%s1993 + $0x1c] sm:$0xf]
      %v2002 = vld [vmem:[%s1993 + $0x20] sm:$0xf]
      %v2003 = vld [vmem:[%s1993 + $0x24] sm:$0xf]
      %v2004 = vld [vmem:[%s1993 + $0x28] sm:$0xf]
      %v2005 = vld [vmem:[%s1993 + $0x2c] sm:$0xf]
      %v2006 = vld [vmem:[%s1993 + $0x30] sm:$0xf]
      %v2007 = vld [vmem:[%s1993 + $0x34] sm:$0xf]
      %v2008 = vld [vmem:[%s1993 + $0x38] sm:$0xf]
      %v2009 = vld [vmem:[%s1993 + $0x3c] sm:$0xf]
      %v2010 = vunpack.c.l.b16 %v1989
      %v2011 = vunpack.c.l.b16 %v1992
      %v2012 = vpack.c.b16 %v2011, %v2010
      %v2030 = vunpack.c.l.b16 %v1994
      %v2031 = vunpack.c.l.b16 %v1995
      %v2032 = vunpack.c.l.b16 %v1996
      %v2033 = vunpack.c.l.b16 %v1997
      %v2034 = vunpack.c.l.b16 %v1998
      %v2035 = vunpack.c.l.b16 %v1999
      %v2036 = vunpack.c.l.b16 %v2000
      %v2037 = vunpack.c.l.b16 %v2001
      %v2038 = vunpack.c.l.b16 %v2002
      %v2039 = vunpack.c.l.b16 %v2003
      %v2040 = vunpack.c.l.b16 %v2004
      %v2041 = vunpack.c.l.b16 %v2005
      %v2042 = vunpack.c.l.b16 %v2006
      %v2043 = vunpack.c.l.b16 %v2007
      %v2044 = vunpack.c.l.b16 %v2008
      %v2045 = vunpack.c.l.b16 %v2009
      %v2046 = vpack.c.b16 %v2031, %v2030
      %v2047 = vpack.c.b16 %v2033, %v2032
      %v2048 = vpack.c.b16 %v2035, %v2034
      %v2049 = vpack.c.b16 %v2037, %v2036
      %v2050 = vpack.c.b16 %v2039, %v2038
      %v2051 = vpack.c.b16 %v2041, %v2040
      %v2052 = vpack.c.b16 %v2043, %v2042
      %v2053 = vpack.c.b16 %v2045, %v2044
      %2062 = vmatpush.bf16.msra.mxu0 %v2053
      %2063 = vmatpush.bf16.msra.mxu0 %v2052
      %2064 = vmatpush.bf16.msra.mxu0 %v2051
      %2065 = vmatpush.bf16.msra.mxu0 %v2050
      %2066 = vmatpush.bf16.msra.mxu0 %v2049
      %2067 = vmatpush.bf16.msra.mxu0 %v2048
      %2068 = vmatpush.bf16.msra.mxu0 %v2047
      %2069 = vmatpush.bf16.msra.mxu0 %v2046
      %2070 = vmatmul.bf16.gmra.mxu0 %v1379
      %v2071 = vpop.f32.mrf.mxu0
      %v2072 = vadd.f32 0.0, %v2071
      %v2073 = vpop.f32.mrf.mxu0
      %v2074 = vadd.f32 0.0, %v2073
      %2075 = vmatmul.bf16.gmra.mxu0 %v1380
      %v2076 = vpop.f32.mrf.mxu0
      %v2077 = vadd.f32 0.0, %v2076
      %v2078 = vpop.f32.mrf.mxu0
      %v2079 = vadd.f32 0.0, %v2078
      %2080 = vmatmul.bf16.gmra.mxu0 %v1381
      %v2081 = vpop.f32.mrf.mxu0
      %v2082 = vadd.f32 0.0, %v2081
      %v2083 = vpop.f32.mrf.mxu0
      %v2084 = vadd.f32 0.0, %v2083
      %2085 = vmatmul.bf16.gmra.mxu0 %v1382
      %v2086 = vpop.f32.mrf.mxu0
      %v2087 = vadd.f32 0.0, %v2086
      %v2088 = vpop.f32.mrf.mxu0
      %v2089 = vadd.f32 0.0, %v2088
      %2090 = vmatmul.bf16.gmra.mxu0 %v1383
      %v2091 = vpop.f32.mrf.mxu0
      %v2092 = vadd.f32 0.0, %v2091
      %v2093 = vpop.f32.mrf.mxu0
      %v2094 = vadd.f32 0.0, %v2093
      %2095 = vmatmul.bf16.gmra.mxu0 %v1384
      %v2096 = vpop.f32.mrf.mxu0
      %v2097 = vadd.f32 0.0, %v2096
      %v2098 = vpop.f32.mrf.mxu0
      %v2099 = vadd.f32 0.0, %v2098
      %2100 = vmatmul.bf16.gmra.mxu0 %v1385
      %v2101 = vpop.f32.mrf.mxu0
      %v2102 = vadd.f32 0.0, %v2101
      %v2103 = vpop.f32.mrf.mxu0
      %v2104 = vadd.f32 0.0, %v2103
      %2105 = vmatmul.bf16.gmra.mxu0 %v1386
      %v2106 = vpop.f32.mrf.mxu0
      %v2107 = vadd.f32 0.0, %v2106
      %v2108 = vpop.f32.mrf.mxu0
      %v2109 = vadd.f32 0.0, %v2108
      %2110 = vmatmul.bf16.gmra.mxu0 %v1387
      %v2111 = vpop.f32.mrf.mxu0
      %v2112 = vadd.f32 0.0, %v2111
      %v2113 = vpop.f32.mrf.mxu0
      %v2114 = vadd.f32 0.0, %v2113
      %2115 = vmatmul.bf16.gmra.mxu0 %v1388
      %v2116 = vpop.f32.mrf.mxu0
      %v2117 = vadd.f32 0.0, %v2116
      %v2118 = vpop.f32.mrf.mxu0
      %v2119 = vadd.f32 0.0, %v2118
      %2120 = vmatmul.bf16.gmra.mxu0 %v1389
      %v2121 = vpop.f32.mrf.mxu0
      %v2122 = vadd.f32 0.0, %v2121
      %v2123 = vpop.f32.mrf.mxu0
      %v2124 = vadd.f32 0.0, %v2123
      %2125 = vmatmul.bf16.gmra.mxu0 %v1390
      %v2126 = vpop.f32.mrf.mxu0
      %v2127 = vadd.f32 0.0, %v2126
      %v2128 = vpop.f32.mrf.mxu0
      %v2129 = vadd.f32 0.0, %v2128
      %2130 = vmatmul.bf16.gmra.mxu0 %v1391
      %v2131 = vpop.f32.mrf.mxu0
      %v2132 = vadd.f32 0.0, %v2131
      %v2133 = vpop.f32.mrf.mxu0
      %v2134 = vadd.f32 0.0, %v2133
      %2135 = vmatmul.bf16.gmra.mxu0 %v1392
      %v2136 = vpop.f32.mrf.mxu0
      %v2137 = vadd.f32 0.0, %v2136
      %v2138 = vpop.f32.mrf.mxu0
      %v2139 = vadd.f32 0.0, %v2138
      %2140 = vmatmul.bf16.gmra.mxu0 %v1393
      %v2141 = vpop.f32.mrf.mxu0
      %v2142 = vadd.f32 0.0, %v2141
      %v2143 = vpop.f32.mrf.mxu0
      %v2144 = vadd.f32 0.0, %v2143
      %2145 = vmatmul.bf16.gmra.mxu0 %v2012
      %v2146 = vpop.f32.mrf.mxu0
      %v2147 = vadd.f32 0.0, %v2146
      %v2148 = vpop.f32.mrf.mxu0
      %v2149 = vadd.f32 0.0, %v2148
      %2150 = vdwg.mxu0
      %v2151 = vadd.f32 %v1953, %v2072
      %v2152 = vadd.f32 %v1954, %v2074
      %v2153 = vadd.f32 %v1955, %v2077
      %v2154 = vadd.f32 %v1956, %v2079
      %v2155 = vadd.f32 %v1957, %v2082
      %v2156 = vadd.f32 %v1958, %v2084
      %v2157 = vadd.f32 %v1959, %v2087
      %v2158 = vadd.f32 %v1960, %v2089
      %v2159 = vadd.f32 %v1961, %v2092
      %v2160 = vadd.f32 %v1962, %v2094
      %v2161 = vadd.f32 %v1963, %v2097
      %v2162 = vadd.f32 %v1964, %v2099
      %v2163 = vadd.f32 %v1965, %v2102
      %v2164 = vadd.f32 %v1966, %v2104
      %v2165 = vadd.f32 %v1967, %v2107
      %v2166 = vadd.f32 %v1968, %v2109
      %v2167 = vadd.f32 %v1969, %v2112
      %v2168 = vadd.f32 %v1970, %v2114
      %v2169 = vadd.f32 %v1971, %v2117
      %v2170 = vadd.f32 %v1972, %v2119
      %v2171 = vadd.f32 %v1973, %v2122
      %v2172 = vadd.f32 %v1974, %v2124
      %v2173 = vadd.f32 %v1975, %v2127
      %v2174 = vadd.f32 %v1976, %v2129
      %v2175 = vadd.f32 %v1977, %v2132
      %v2176 = vadd.f32 %v1978, %v2134
      %v2177 = vadd.f32 %v1979, %v2137
      %v2178 = vadd.f32 %v1980, %v2139
      %v2179 = vadd.f32 %v1981, %v2142
      %v2180 = vadd.f32 %v1982, %v2144
      %v2181 = vadd.f32 %v1983, %v2147
      %v2182 = vadd.f32 %v1984, %v2149
      %s2183 = scalar_lea.vmem %s269, 384
      %v2184 = vld [vmem:[%s2183] sm:$0xf]
      %v2185 = vld [vmem:[%s2183 + $0x4] sm:$0xf]
      %v2186 = vld [vmem:[%s2183 + $0x8] sm:$0xf]
      %v2187 = vld [vmem:[%s2183 + $0xc] sm:$0xf]
      %v2188 = vld [vmem:[%s2183 + $0x10] sm:$0xf]
      %v2189 = vld [vmem:[%s2183 + $0x14] sm:$0xf]
      %v2190 = vld [vmem:[%s2183 + $0x18] sm:$0xf]
      %v2191 = vld [vmem:[%s2183 + $0x1c] sm:$0xf]
      %v2192 = vld [vmem:[%s2183 + $0x20] sm:$0xf]
      %v2193 = vld [vmem:[%s2183 + $0x24] sm:$0xf]
      %v2194 = vld [vmem:[%s2183 + $0x28] sm:$0xf]
      %v2195 = vld [vmem:[%s2183 + $0x2c] sm:$0xf]
      %v2196 = vld [vmem:[%s2183 + $0x30] sm:$0xf]
      %v2197 = vld [vmem:[%s2183 + $0x34] sm:$0xf]
      %v2198 = vld [vmem:[%s2183 + $0x38] sm:$0xf]
      %v2199 = vld [vmem:[%s2183 + $0x3c] sm:$0xf]
      %v2202 = vunpack.c.l.b16 %v341
      %v2203 = vunpack.c.l.b16 %v342
      %v2204 = vpack.c.b16 %v2203, %v2202
      %v2222 = vunpack.c.l.b16 %v2184
      %v2223 = vunpack.c.l.b16 %v2185
      %v2224 = vunpack.c.l.b16 %v2186
      %v2225 = vunpack.c.l.b16 %v2187
      %v2226 = vunpack.c.l.b16 %v2188
      %v2227 = vunpack.c.l.b16 %v2189
      %v2228 = vunpack.c.l.b16 %v2190
      %v2229 = vunpack.c.l.b16 %v2191
      %v2230 = vunpack.c.l.b16 %v2192
      %v2231 = vunpack.c.l.b16 %v2193
      %v2232 = vunpack.c.l.b16 %v2194
      %v2233 = vunpack.c.l.b16 %v2195
      %v2234 = vunpack.c.l.b16 %v2196
      %v2235 = vunpack.c.l.b16 %v2197
      %v2236 = vunpack.c.l.b16 %v2198
      %v2237 = vunpack.c.l.b16 %v2199
      %v2238 = vpack.c.b16 %v2223, %v2222
      %v2239 = vpack.c.b16 %v2225, %v2224
      %v2240 = vpack.c.b16 %v2227, %v2226
      %v2241 = vpack.c.b16 %v2229, %v2228
      %v2242 = vpack.c.b16 %v2231, %v2230
      %v2243 = vpack.c.b16 %v2233, %v2232
      %v2244 = vpack.c.b16 %v2235, %v2234
      %v2245 = vpack.c.b16 %v2237, %v2236
      %2254 = vmatpush.bf16.msra.mxu0 %v2245
      %2255 = vmatpush.bf16.msra.mxu0 %v2244
      %2256 = vmatpush.bf16.msra.mxu0 %v2243
      %2257 = vmatpush.bf16.msra.mxu0 %v2242
      %2258 = vmatpush.bf16.msra.mxu0 %v2241
      %2259 = vmatpush.bf16.msra.mxu0 %v2240
      %2260 = vmatpush.bf16.msra.mxu0 %v2239
      %2261 = vmatpush.bf16.msra.mxu0 %v2238
      %2262 = vmatmul.bf16.gmra.mxu0 %v1031
      %v2263 = vpop.f32.mrf.mxu0
      %v2264 = vadd.f32 0.0, %v2263
      %v2265 = vpop.f32.mrf.mxu0
      %v2266 = vadd.f32 0.0, %v2265
      %2267 = vmatmul.bf16.gmra.mxu0 %v1032
      %v2268 = vpop.f32.mrf.mxu0
      %v2269 = vadd.f32 0.0, %v2268
      %v2270 = vpop.f32.mrf.mxu0
      %v2271 = vadd.f32 0.0, %v2270
      %2272 = vmatmul.bf16.gmra.mxu0 %v1033
      %v2273 = vpop.f32.mrf.mxu0
      %v2274 = vadd.f32 0.0, %v2273
      %v2275 = vpop.f32.mrf.mxu0
      %v2276 = vadd.f32 0.0, %v2275
      %2277 = vmatmul.bf16.gmra.mxu0 %v1034
      %v2278 = vpop.f32.mrf.mxu0
      %v2279 = vadd.f32 0.0, %v2278
      %v2280 = vpop.f32.mrf.mxu0
      %v2281 = vadd.f32 0.0, %v2280
      %2282 = vmatmul.bf16.gmra.mxu0 %v1035
      %v2283 = vpop.f32.mrf.mxu0
      %v2284 = vadd.f32 0.0, %v2283
      %v2285 = vpop.f32.mrf.mxu0
      %v2286 = vadd.f32 0.0, %v2285
      %2287 = vmatmul.bf16.gmra.mxu0 %v1036
      %v2288 = vpop.f32.mrf.mxu0
      %v2289 = vadd.f32 0.0, %v2288
      %v2290 = vpop.f32.mrf.mxu0
      %v2291 = vadd.f32 0.0, %v2290
      %2292 = vmatmul.bf16.gmra.mxu0 %v1037
      %v2293 = vpop.f32.mrf.mxu0
      %v2294 = vadd.f32 0.0, %v2293
      %v2295 = vpop.f32.mrf.mxu0
      %v2296 = vadd.f32 0.0, %v2295
      %2297 = vmatmul.bf16.gmra.mxu0 %v1038
      %v2298 = vpop.f32.mrf.mxu0
      %v2299 = vadd.f32 0.0, %v2298
      %v2300 = vpop.f32.mrf.mxu0
      %v2301 = vadd.f32 0.0, %v2300
      %2302 = vmatmul.bf16.gmra.mxu0 %v1039
      %v2303 = vpop.f32.mrf.mxu0
      %v2304 = vadd.f32 0.0, %v2303
      %v2305 = vpop.f32.mrf.mxu0
      %v2306 = vadd.f32 0.0, %v2305
      %2307 = vmatmul.bf16.gmra.mxu0 %v1040
      %v2308 = vpop.f32.mrf.mxu0
      %v2309 = vadd.f32 0.0, %v2308
      %v2310 = vpop.f32.mrf.mxu0
      %v2311 = vadd.f32 0.0, %v2310
      %2312 = vmatmul.bf16.gmra.mxu0 %v1041
      %v2313 = vpop.f32.mrf.mxu0
      %v2314 = vadd.f32 0.0, %v2313
      %v2315 = vpop.f32.mrf.mxu0
      %v2316 = vadd.f32 0.0, %v2315
      %2317 = vmatmul.bf16.gmra.mxu0 %v1042
      %v2318 = vpop.f32.mrf.mxu0
      %v2319 = vadd.f32 0.0, %v2318
      %v2320 = vpop.f32.mrf.mxu0
      %v2321 = vadd.f32 0.0, %v2320
      %2322 = vmatmul.bf16.gmra.mxu0 %v1043
      %v2323 = vpop.f32.mrf.mxu0
      %v2324 = vadd.f32 0.0, %v2323
      %v2325 = vpop.f32.mrf.mxu0
      %v2326 = vadd.f32 0.0, %v2325
      %2327 = vmatmul.bf16.gmra.mxu0 %v1044
      %v2328 = vpop.f32.mrf.mxu0
      %v2329 = vadd.f32 0.0, %v2328
      %v2330 = vpop.f32.mrf.mxu0
      %v2331 = vadd.f32 0.0, %v2330
      %2332 = vmatmul.bf16.gmra.mxu0 %v1600
      %v2333 = vpop.f32.mrf.mxu0
      %v2334 = vadd.f32 0.0, %v2333
      %v2335 = vpop.f32.mrf.mxu0
      %v2336 = vadd.f32 0.0, %v2335
      %2337 = vmatmul.bf16.gmra.mxu0 %v2204
      %v2338 = vpop.f32.mrf.mxu0
      %v2339 = vadd.f32 0.0, %v2338
      %v2340 = vpop.f32.mrf.mxu0
      %v2341 = vadd.f32 0.0, %v2340
      %2342 = vdwg.mxu0
      %v2343 = vadd.f32 %v2151, %v2264
      %v2344 = vadd.f32 %v2152, %v2266
      %v2345 = vadd.f32 %v2153, %v2269
      %v2346 = vadd.f32 %v2154, %v2271
      %v2347 = vadd.f32 %v2155, %v2274
      %v2348 = vadd.f32 %v2156, %v2276
      %v2349 = vadd.f32 %v2157, %v2279
      %v2350 = vadd.f32 %v2158, %v2281
      %v2351 = vadd.f32 %v2159, %v2284
      %v2352 = vadd.f32 %v2160, %v2286
      %v2353 = vadd.f32 %v2161, %v2289
      %v2354 = vadd.f32 %v2162, %v2291
      %v2355 = vadd.f32 %v2163, %v2294
      %v2356 = vadd.f32 %v2164, %v2296
      %v2357 = vadd.f32 %v2165, %v2299
      %v2358 = vadd.f32 %v2166, %v2301
      %v2359 = vadd.f32 %v2167, %v2304
      %v2360 = vadd.f32 %v2168, %v2306
      %v2361 = vadd.f32 %v2169, %v2309
      %v2362 = vadd.f32 %v2170, %v2311
      %v2363 = vadd.f32 %v2171, %v2314
      %v2364 = vadd.f32 %v2172, %v2316
      %v2365 = vadd.f32 %v2173, %v2319
      %v2366 = vadd.f32 %v2174, %v2321
      %v2367 = vadd.f32 %v2175, %v2324
      %v2368 = vadd.f32 %v2176, %v2326
      %v2369 = vadd.f32 %v2177, %v2329
      %v2370 = vadd.f32 %v2178, %v2331
      %v2371 = vadd.f32 %v2179, %v2334
      %v2372 = vadd.f32 %v2180, %v2336
      %v2373 = vadd.f32 %v2181, %v2339
      %v2374 = vadd.f32 %v2182, %v2341
      %v2376 = vshrl.u32 %v341, 16
      %v2378 = vrot.slane %v2376, 4
      %v2379 = vshll.u32 %v341, 16
      %v2381 = vrot.slane %v2379, 5
      %v2382 = vor.u32 %v2378, %v2381
      %v2383 = vrot.slane %v2382, 4
      %v2385 = vshll.u32 %v342, 16
      %v2387 = vrot.slane %v2385, 5
      %v2388 = vsel %vm362, %v2383, %v2387
      %v2389 = vshrl.u32 %v342, 16
      %v2391 = vrot.slane %v2389, 4
      %v2392 = vor.u32 %v2391, %v2387
      %v2393 = vrot.slane %v2392, 4
      %v2395 = vshll.u32 %v343, 16
      %v2397 = vrot.slane %v2395, 5
      %v2398 = vsel %vm362, %v2393, %v2397
      %s2399 = scalar_lea.vmem %s269, 448
      %v2400 = vld [vmem:[%s2399] sm:$0xf]
      %v2401 = vld [vmem:[%s2399 + $0x4] sm:$0xf]
      %v2402 = vld [vmem:[%s2399 + $0x8] sm:$0xf]
      %v2403 = vld [vmem:[%s2399 + $0xc] sm:$0xf]
      %v2404 = vld [vmem:[%s2399 + $0x10] sm:$0xf]
      %v2405 = vld [vmem:[%s2399 + $0x14] sm:$0xf]
      %v2406 = vld [vmem:[%s2399 + $0x18] sm:$0xf]
      %v2407 = vld [vmem:[%s2399 + $0x1c] sm:$0xf]
      %v2408 = vld [vmem:[%s2399 + $0x20] sm:$0xf]
      %v2409 = vld [vmem:[%s2399 + $0x24] sm:$0xf]
      %v2410 = vld [vmem:[%s2399 + $0x28] sm:$0xf]
      %v2411 = vld [vmem:[%s2399 + $0x2c] sm:$0xf]
      %v2412 = vld [vmem:[%s2399 + $0x30] sm:$0xf]
      %v2413 = vld [vmem:[%s2399 + $0x34] sm:$0xf]
      %v2414 = vld [vmem:[%s2399 + $0x38] sm:$0xf]
      %v2415 = vld [vmem:[%s2399 + $0x3c] sm:$0xf]
      %v2416 = vunpack.c.l.b16 %v2388
      %v2417 = vunpack.c.l.b16 %v2398
      %v2418 = vpack.c.b16 %v2417, %v2416
      %v2436 = vunpack.c.l.b16 %v2400
      %v2437 = vunpack.c.l.b16 %v2401
      %v2438 = vunpack.c.l.b16 %v2402
      %v2439 = vunpack.c.l.b16 %v2403
      %v2440 = vunpack.c.l.b16 %v2404
      %v2441 = vunpack.c.l.b16 %v2405
      %v2442 = vunpack.c.l.b16 %v2406
      %v2443 = vunpack.c.l.b16 %v2407
      %v2444 = vunpack.c.l.b16 %v2408
      %v2445 = vunpack.c.l.b16 %v2409
      %v2446 = vunpack.c.l.b16 %v2410
      %v2447 = vunpack.c.l.b16 %v2411
      %v2448 = vunpack.c.l.b16 %v2412
      %v2449 = vunpack.c.l.b16 %v2413
      %v2450 = vunpack.c.l.b16 %v2414
      %v2451 = vunpack.c.l.b16 %v2415
      %v2452 = vpack.c.b16 %v2437, %v2436
      %v2453 = vpack.c.b16 %v2439, %v2438
      %v2454 = vpack.c.b16 %v2441, %v2440
      %v2455 = vpack.c.b16 %v2443, %v2442
      %v2456 = vpack.c.b16 %v2445, %v2444
      %v2457 = vpack.c.b16 %v2447, %v2446
      %v2458 = vpack.c.b16 %v2449, %v2448
      %v2459 = vpack.c.b16 %v2451, %v2450
      %2468 = vmatpush.bf16.msra.mxu0 %v2459
      %2469 = vmatpush.bf16.msra.mxu0 %v2458
      %2470 = vmatpush.bf16.msra.mxu0 %v2457
      %2471 = vmatpush.bf16.msra.mxu0 %v2456
      %2472 = vmatpush.bf16.msra.mxu0 %v2455
      %2473 = vmatpush.bf16.msra.mxu0 %v2454
      %2474 = vmatpush.bf16.msra.mxu0 %v2453
      %2475 = vmatpush.bf16.msra.mxu0 %v2452
      %2476 = vmatmul.bf16.gmra.mxu0 %v798
      %v2477 = vpop.f32.mrf.mxu0
      %v2478 = vadd.f32 0.0, %v2477
      %v2479 = vpop.f32.mrf.mxu0
      %v2480 = vadd.f32 0.0, %v2479
      %2481 = vmatmul.bf16.gmra.mxu0 %v799
      %v2482 = vpop.f32.mrf.mxu0
      %v2483 = vadd.f32 0.0, %v2482
      %v2484 = vpop.f32.mrf.mxu0
      %v2485 = vadd.f32 0.0, %v2484
      %2486 = vmatmul.bf16.gmra.mxu0 %v800
      %v2487 = vpop.f32.mrf.mxu0
      %v2488 = vadd.f32 0.0, %v2487
      %v2489 = vpop.f32.mrf.mxu0
      %v2490 = vadd.f32 0.0, %v2489
      %2491 = vmatmul.bf16.gmra.mxu0 %v801
      %v2492 = vpop.f32.mrf.mxu0
      %v2493 = vadd.f32 0.0, %v2492
      %v2494 = vpop.f32.mrf.mxu0
      %v2495 = vadd.f32 0.0, %v2494
      %2496 = vmatmul.bf16.gmra.mxu0 %v802
      %v2497 = vpop.f32.mrf.mxu0
      %v2498 = vadd.f32 0.0, %v2497
      %v2499 = vpop.f32.mrf.mxu0
      %v2500 = vadd.f32 0.0, %v2499
      %2501 = vmatmul.bf16.gmra.mxu0 %v803
      %v2502 = vpop.f32.mrf.mxu0
      %v2503 = vadd.f32 0.0, %v2502
      %v2504 = vpop.f32.mrf.mxu0
      %v2505 = vadd.f32 0.0, %v2504
      %2506 = vmatmul.bf16.gmra.mxu0 %v804
      %v2507 = vpop.f32.mrf.mxu0
      %v2508 = vadd.f32 0.0, %v2507
      %v2509 = vpop.f32.mrf.mxu0
      %v2510 = vadd.f32 0.0, %v2509
      %2511 = vmatmul.bf16.gmra.mxu0 %v805
      %v2512 = vpop.f32.mrf.mxu0
      %v2513 = vadd.f32 0.0, %v2512
      %v2514 = vpop.f32.mrf.mxu0
      %v2515 = vadd.f32 0.0, %v2514
      %2516 = vmatmul.bf16.gmra.mxu0 %v806
      %v2517 = vpop.f32.mrf.mxu0
      %v2518 = vadd.f32 0.0, %v2517
      %v2519 = vpop.f32.mrf.mxu0
      %v2520 = vadd.f32 0.0, %v2519
      %2521 = vmatmul.bf16.gmra.mxu0 %v807
      %v2522 = vpop.f32.mrf.mxu0
      %v2523 = vadd.f32 0.0, %v2522
      %v2524 = vpop.f32.mrf.mxu0
      %v2525 = vadd.f32 0.0, %v2524
      %2526 = vmatmul.bf16.gmra.mxu0 %v808
      %v2527 = vpop.f32.mrf.mxu0
      %v2528 = vadd.f32 0.0, %v2527
      %v2529 = vpop.f32.mrf.mxu0
      %v2530 = vadd.f32 0.0, %v2529
      %2531 = vmatmul.bf16.gmra.mxu0 %v809
      %v2532 = vpop.f32.mrf.mxu0
      %v2533 = vadd.f32 0.0, %v2532
      %v2534 = vpop.f32.mrf.mxu0
      %v2535 = vadd.f32 0.0, %v2534
      %2536 = vmatmul.bf16.gmra.mxu0 %v810
      %v2537 = vpop.f32.mrf.mxu0
      %v2538 = vadd.f32 0.0, %v2537
      %v2539 = vpop.f32.mrf.mxu0
      %v2540 = vadd.f32 0.0, %v2539
      %2541 = vmatmul.bf16.gmra.mxu0 %v811
      %v2542 = vpop.f32.mrf.mxu0
      %v2543 = vadd.f32 0.0, %v2542
      %v2544 = vpop.f32.mrf.mxu0
      %v2545 = vadd.f32 0.0, %v2544
      %2546 = vmatmul.bf16.gmra.mxu0 %v1814
      %v2547 = vpop.f32.mrf.mxu0
      %v2548 = vadd.f32 0.0, %v2547
      %v2549 = vpop.f32.mrf.mxu0
      %v2550 = vadd.f32 0.0, %v2549
      %2551 = vmatmul.bf16.gmra.mxu0 %v2418
      %v2552 = vpop.f32.mrf.mxu0
      %v2553 = vadd.f32 0.0, %v2552
      %v2554 = vpop.f32.mrf.mxu0
      %v2555 = vadd.f32 0.0, %v2554
      %2556 = vdwg.mxu0
      %v2557 = vadd.f32 %v2343, %v2478
      %v2558 = vadd.f32 %v2344, %v2480
      %v2559 = vadd.f32 %v2345, %v2483
      %v2560 = vadd.f32 %v2346, %v2485
      %v2561 = vadd.f32 %v2347, %v2488
      %v2562 = vadd.f32 %v2348, %v2490
      %v2563 = vadd.f32 %v2349, %v2493
      %v2564 = vadd.f32 %v2350, %v2495
      %v2565 = vadd.f32 %v2351, %v2498
      %v2566 = vadd.f32 %v2352, %v2500
      %v2567 = vadd.f32 %v2353, %v2503
      %v2568 = vadd.f32 %v2354, %v2505
      %v2569 = vadd.f32 %v2355, %v2508
      %v2570 = vadd.f32 %v2356, %v2510
      %v2571 = vadd.f32 %v2357, %v2513
      %v2572 = vadd.f32 %v2358, %v2515
      %v2573 = vadd.f32 %v2359, %v2518
      %v2574 = vadd.f32 %v2360, %v2520
      %v2575 = vadd.f32 %v2361, %v2523
      %v2576 = vadd.f32 %v2362, %v2525
      %v2577 = vadd.f32 %v2363, %v2528
      %v2578 = vadd.f32 %v2364, %v2530
      %v2579 = vadd.f32 %v2365, %v2533
      %v2580 = vadd.f32 %v2366, %v2535
      %v2581 = vadd.f32 %v2367, %v2538
      %v2582 = vadd.f32 %v2368, %v2540
      %v2583 = vadd.f32 %v2369, %v2543
      %v2584 = vadd.f32 %v2370, %v2545
      %v2585 = vadd.f32 %v2371, %v2548
      %v2586 = vadd.f32 %v2372, %v2550
      %v2587 = vadd.f32 %v2373, %v2553
      %v2588 = vadd.f32 %v2374, %v2555
      %v2590 = vrot.slane %v341, 5
      %v2591 = vrot.slane %v2590, 4
      %v2592 = vrot.slane %v342, 5
      %v2593 = vsel %vm1216, %v2591, %v2592
      %v2594 = vrot.slane %v2592, 4
      %v2595 = vrot.slane %v343, 5
      %v2596 = vsel %vm1216, %v2594, %v2595
      %s2597 = scalar_lea.vmem %s269, 512
      %v2598 = vld [vmem:[%s2597] sm:$0xf]
      %v2599 = vld [vmem:[%s2597 + $0x4] sm:$0xf]
      %v2600 = vld [vmem:[%s2597 + $0x8] sm:$0xf]
      %v2601 = vld [vmem:[%s2597 + $0xc] sm:$0xf]
      %v2602 = vld [vmem:[%s2597 + $0x10] sm:$0xf]
      %v2603 = vld [vmem:[%s2597 + $0x14] sm:$0xf]
      %v2604 = vld [vmem:[%s2597 + $0x18] sm:$0xf]
      %v2605 = vld [vmem:[%s2597 + $0x1c] sm:$0xf]
      %v2606 = vld [vmem:[%s2597 + $0x20] sm:$0xf]
      %v2607 = vld [vmem:[%s2597 + $0x24] sm:$0xf]
      %v2608 = vld [vmem:[%s2597 + $0x28] sm:$0xf]
      %v2609 = vld [vmem:[%s2597 + $0x2c] sm:$0xf]
      %v2610 = vld [vmem:[%s2597 + $0x30] sm:$0xf]
      %v2611 = vld [vmem:[%s2597 + $0x34] sm:$0xf]
      %v2612 = vld [vmem:[%s2597 + $0x38] sm:$0xf]
      %v2613 = vld [vmem:[%s2597 + $0x3c] sm:$0xf]
      %v2614 = vunpack.c.l.b16 %v2593
      %v2615 = vunpack.c.l.b16 %v2596
      %v2616 = vpack.c.b16 %v2615, %v2614
      %v2634 = vunpack.c.l.b16 %v2598
      %v2635 = vunpack.c.l.b16 %v2599
      %v2636 = vunpack.c.l.b16 %v2600
      %v2637 = vunpack.c.l.b16 %v2601
      %v2638 = vunpack.c.l.b16 %v2602
      %v2639 = vunpack.c.l.b16 %v2603
      %v2640 = vunpack.c.l.b16 %v2604
      %v2641 = vunpack.c.l.b16 %v2605
      %v2642 = vunpack.c.l.b16 %v2606
      %v2643 = vunpack.c.l.b16 %v2607
      %v2644 = vunpack.c.l.b16 %v2608
      %v2645 = vunpack.c.l.b16 %v2609
      %v2646 = vunpack.c.l.b16 %v2610
      %v2647 = vunpack.c.l.b16 %v2611
      %v2648 = vunpack.c.l.b16 %v2612
      %v2649 = vunpack.c.l.b16 %v2613
      %v2650 = vpack.c.b16 %v2635, %v2634
      %v2651 = vpack.c.b16 %v2637, %v2636
      %v2652 = vpack.c.b16 %v2639, %v2638
      %v2653 = vpack.c.b16 %v2641, %v2640
      %v2654 = vpack.c.b16 %v2643, %v2642
      %v2655 = vpack.c.b16 %v2645, %v2644
      %v2656 = vpack.c.b16 %v2647, %v2646
      %v2657 = vpack.c.b16 %v2649, %v2648
      %2666 = vmatpush.bf16.msra.mxu0 %v2657
      %2667 = vmatpush.bf16.msra.mxu0 %v2656
      %2668 = vmatpush.bf16.msra.mxu0 %v2655
      %2669 = vmatpush.bf16.msra.mxu0 %v2654
      %2670 = vmatpush.bf16.msra.mxu0 %v2653
      %2671 = vmatpush.bf16.msra.mxu0 %v2652
      %2672 = vmatpush.bf16.msra.mxu0 %v2651
      %2673 = vmatpush.bf16.msra.mxu0 %v2650
      %2674 = vmatmul.bf16.gmra.mxu0 %v1380
      %v2675 = vpop.f32.mrf.mxu0
      %v2676 = vadd.f32 0.0, %v2675
      %v2677 = vpop.f32.mrf.mxu0
      %v2678 = vadd.f32 0.0, %v2677
      %2679 = vmatmul.bf16.gmra.mxu0 %v1381
      %v2680 = vpop.f32.mrf.mxu0
      %v2681 = vadd.f32 0.0, %v2680
      %v2682 = vpop.f32.mrf.mxu0
      %v2683 = vadd.f32 0.0, %v2682
      %2684 = vmatmul.bf16.gmra.mxu0 %v1382
      %v2685 = vpop.f32.mrf.mxu0
      %v2686 = vadd.f32 0.0, %v2685
      %v2687 = vpop.f32.mrf.mxu0
      %v2688 = vadd.f32 0.0, %v2687
      %2689 = vmatmul.bf16.gmra.mxu0 %v1383
      %v2690 = vpop.f32.mrf.mxu0
      %v2691 = vadd.f32 0.0, %v2690
      %v2692 = vpop.f32.mrf.mxu0
      %v2693 = vadd.f32 0.0, %v2692
      %2694 = vmatmul.bf16.gmra.mxu0 %v1384
      %v2695 = vpop.f32.mrf.mxu0
      %v2696 = vadd.f32 0.0, %v2695
      %v2697 = vpop.f32.mrf.mxu0
      %v2698 = vadd.f32 0.0, %v2697
      %2699 = vmatmul.bf16.gmra.mxu0 %v1385
      %v2700 = vpop.f32.mrf.mxu0
      %v2701 = vadd.f32 0.0, %v2700
      %v2702 = vpop.f32.mrf.mxu0
      %v2703 = vadd.f32 0.0, %v2702
      %2704 = vmatmul.bf16.gmra.mxu0 %v1386
      %v2705 = vpop.f32.mrf.mxu0
      %v2706 = vadd.f32 0.0, %v2705
      %v2707 = vpop.f32.mrf.mxu0
      %v2708 = vadd.f32 0.0, %v2707
      %2709 = vmatmul.bf16.gmra.mxu0 %v1387
      %v2710 = vpop.f32.mrf.mxu0
      %v2711 = vadd.f32 0.0, %v2710
      %v2712 = vpop.f32.mrf.mxu0
      %v2713 = vadd.f32 0.0, %v2712
      %2714 = vmatmul.bf16.gmra.mxu0 %v1388
      %v2715 = vpop.f32.mrf.mxu0
      %v2716 = vadd.f32 0.0, %v2715
      %v2717 = vpop.f32.mrf.mxu0
      %v2718 = vadd.f32 0.0, %v2717
      %2719 = vmatmul.bf16.gmra.mxu0 %v1389
      %v2720 = vpop.f32.mrf.mxu0
      %v2721 = vadd.f32 0.0, %v2720
      %v2722 = vpop.f32.mrf.mxu0
      %v2723 = vadd.f32 0.0, %v2722
      %2724 = vmatmul.bf16.gmra.mxu0 %v1390
      %v2725 = vpop.f32.mrf.mxu0
      %v2726 = vadd.f32 0.0, %v2725
      %v2727 = vpop.f32.mrf.mxu0
      %v2728 = vadd.f32 0.0, %v2727
      %2729 = vmatmul.bf16.gmra.mxu0 %v1391
      %v2730 = vpop.f32.mrf.mxu0
      %v2731 = vadd.f32 0.0, %v2730
      %v2732 = vpop.f32.mrf.mxu0
      %v2733 = vadd.f32 0.0, %v2732
      %2734 = vmatmul.bf16.gmra.mxu0 %v1392
      %v2735 = vpop.f32.mrf.mxu0
      %v2736 = vadd.f32 0.0, %v2735
      %v2737 = vpop.f32.mrf.mxu0
      %v2738 = vadd.f32 0.0, %v2737
      %2739 = vmatmul.bf16.gmra.mxu0 %v1393
      %v2740 = vpop.f32.mrf.mxu0
      %v2741 = vadd.f32 0.0, %v2740
      %v2742 = vpop.f32.mrf.mxu0
      %v2743 = vadd.f32 0.0, %v2742
      %2744 = vmatmul.bf16.gmra.mxu0 %v2012
      %v2745 = vpop.f32.mrf.mxu0
      %v2746 = vadd.f32 0.0, %v2745
      %v2747 = vpop.f32.mrf.mxu0
      %v2748 = vadd.f32 0.0, %v2747
      %2749 = vmatmul.bf16.gmra.mxu0 %v2616
      %v2750 = vpop.f32.mrf.mxu0
      %v2751 = vadd.f32 0.0, %v2750
      %v2752 = vpop.f32.mrf.mxu0
      %v2753 = vadd.f32 0.0, %v2752
      %2754 = vdwg.mxu0
      %v2755 = vadd.f32 %v2557, %v2676
      %v2756 = vadd.f32 %v2558, %v2678
      %v2757 = vadd.f32 %v2559, %v2681
      %v2758 = vadd.f32 %v2560, %v2683
      %v2759 = vadd.f32 %v2561, %v2686
      %v2760 = vadd.f32 %v2562, %v2688
      %v2761 = vadd.f32 %v2563, %v2691
      %v2762 = vadd.f32 %v2564, %v2693
      %v2763 = vadd.f32 %v2565, %v2696
      %v2764 = vadd.f32 %v2566, %v2698
      %v2765 = vadd.f32 %v2567, %v2701
      %v2766 = vadd.f32 %v2568, %v2703
      %v2767 = vadd.f32 %v2569, %v2706
      %v2768 = vadd.f32 %v2570, %v2708
      %v2769 = vadd.f32 %v2571, %v2711
      %v2770 = vadd.f32 %v2572, %v2713
      %v2771 = vadd.f32 %v2573, %v2716
      %v2772 = vadd.f32 %v2574, %v2718
      %v2773 = vadd.f32 %v2575, %v2721
      %v2774 = vadd.f32 %v2576, %v2723
      %v2775 = vadd.f32 %v2577, %v2726
      %v2776 = vadd.f32 %v2578, %v2728
      %v2777 = vadd.f32 %v2579, %v2731
      %v2778 = vadd.f32 %v2580, %v2733
      %v2779 = vadd.f32 %v2581, %v2736
      %v2780 = vadd.f32 %v2582, %v2738
      %v2781 = vadd.f32 %v2583, %v2741
      %v2782 = vadd.f32 %v2584, %v2743
      %v2783 = vadd.f32 %v2585, %v2746
      %v2784 = vadd.f32 %v2586, %v2748
      %v2785 = vadd.f32 %v2587, %v2751
      %v2786 = vadd.f32 %v2588, %v2753
      %v2787 = vld [vmem:[%s272] sm:$0x1]
      %v2789 = vperm.slane %v2787, 0
      %v2791 = vmul.f32 %v2755, %v2789
      %v2792 = vmul.f32 %v2756, %v2789
      %v2793 = vmul.f32 %v2757, %v2789
      %v2794 = vmul.f32 %v2758, %v2789
      %v2795 = vmul.f32 %v2759, %v2789
      %v2796 = vmul.f32 %v2760, %v2789
      %v2797 = vmul.f32 %v2761, %v2789
      %v2798 = vmul.f32 %v2762, %v2789
      %v2799 = vmul.f32 %v2763, %v2789
      %v2800 = vmul.f32 %v2764, %v2789
      %v2801 = vmul.f32 %v2765, %v2789
      %v2802 = vmul.f32 %v2766, %v2789
      %v2803 = vmul.f32 %v2767, %v2789
      %v2804 = vmul.f32 %v2768, %v2789
      %v2805 = vmul.f32 %v2769, %v2789
      %v2806 = vmul.f32 %v2770, %v2789
      %v2807 = vmul.f32 %v2771, %v2789
      %v2808 = vmul.f32 %v2772, %v2789
      %v2809 = vmul.f32 %v2773, %v2789
      %v2810 = vmul.f32 %v2774, %v2789
      %v2811 = vmul.f32 %v2775, %v2789
      %v2812 = vmul.f32 %v2776, %v2789
      %v2813 = vmul.f32 %v2777, %v2789
      %v2814 = vmul.f32 %v2778, %v2789
      %v2815 = vmul.f32 %v2779, %v2789
      %v2816 = vmul.f32 %v2780, %v2789
      %v2817 = vmul.f32 %v2781, %v2789
      %v2818 = vmul.f32 %v2782, %v2789
      %v2819 = vmul.f32 %v2783, %v2789
      %v2820 = vmul.f32 %v2784, %v2789
      %v2821 = vmul.f32 %v2785, %v2789
      %v2822 = vmul.f32 %v2786, %v2789
      %v2823 = vld [vmem:[%s275] sm:$0x1]
      %v2825 = vperm.slane %v2823, 0
      %v2827 = vadd.f32 %v2791, %v2825
      %v2828 = vadd.f32 %v2792, %v2825
      %v2829 = vadd.f32 %v2793, %v2825
      %v2830 = vadd.f32 %v2794, %v2825
      %v2831 = vadd.f32 %v2795, %v2825
      %v2832 = vadd.f32 %v2796, %v2825
      %v2833 = vadd.f32 %v2797, %v2825
      %v2834 = vadd.f32 %v2798, %v2825
      %v2835 = vadd.f32 %v2799, %v2825
      %v2836 = vadd.f32 %v2800, %v2825
      %v2837 = vadd.f32 %v2801, %v2825
      %v2838 = vadd.f32 %v2802, %v2825
      %v2839 = vadd.f32 %v2803, %v2825
      %v2840 = vadd.f32 %v2804, %v2825
      %v2841 = vadd.f32 %v2805, %v2825
      %v2842 = vadd.f32 %v2806, %v2825
      %v2843 = vadd.f32 %v2807, %v2825
      %v2844 = vadd.f32 %v2808, %v2825
      %v2845 = vadd.f32 %v2809, %v2825
      %v2846 = vadd.f32 %v2810, %v2825
      %v2847 = vadd.f32 %v2811, %v2825
      %v2848 = vadd.f32 %v2812, %v2825
      %v2849 = vadd.f32 %v2813, %v2825
      %v2850 = vadd.f32 %v2814, %v2825
      %v2851 = vadd.f32 %v2815, %v2825
      %v2852 = vadd.f32 %v2816, %v2825
      %v2853 = vadd.f32 %v2817, %v2825
      %v2854 = vadd.f32 %v2818, %v2825
      %v2855 = vadd.f32 %v2819, %v2825
      %v2856 = vadd.f32 %v2820, %v2825
      %v2857 = vadd.f32 %v2821, %v2825
      %v2858 = vadd.f32 %v2822, %v2825
      %v2859 = vmax.f32 %v2827, 0.0
      %v2860 = vmax.f32 %v2828, 0.0
      %v2861 = vmax.f32 %v2829, 0.0
      %v2862 = vmax.f32 %v2830, 0.0
      %v2863 = vmax.f32 %v2831, 0.0
      %v2864 = vmax.f32 %v2832, 0.0
      %v2865 = vmax.f32 %v2833, 0.0
      %v2866 = vmax.f32 %v2834, 0.0
      %v2867 = vmax.f32 %v2835, 0.0
      %v2868 = vmax.f32 %v2836, 0.0
      %v2869 = vmax.f32 %v2837, 0.0
      %v2870 = vmax.f32 %v2838, 0.0
      %v2871 = vmax.f32 %v2839, 0.0
      %v2872 = vmax.f32 %v2840, 0.0
      %v2873 = vmax.f32 %v2841, 0.0
      %v2874 = vmax.f32 %v2842, 0.0
      %v2875 = vmax.f32 %v2843, 0.0
      %v2876 = vmax.f32 %v2844, 0.0
      %v2877 = vmax.f32 %v2845, 0.0
      %v2878 = vmax.f32 %v2846, 0.0
      %v2879 = vmax.f32 %v2847, 0.0
      %v2880 = vmax.f32 %v2848, 0.0
      %v2881 = vmax.f32 %v2849, 0.0
      %v2882 = vmax.f32 %v2850, 0.0
      %v2883 = vmax.f32 %v2851, 0.0
      %v2884 = vmax.f32 %v2852, 0.0
      %v2885 = vmax.f32 %v2853, 0.0
      %v2886 = vmax.f32 %v2854, 0.0
      %v2887 = vmax.f32 %v2855, 0.0
      %v2888 = vmax.f32 %v2856, 0.0
      %v2889 = vmax.f32 %v2857, 0.0
      %v2890 = vmax.f32 %v2858, 0.0
      %2891 = vst [vmem:[%s288] sm:$0xff] %v2859
      %2892 = vst [vmem:[%s288 + $0x8] sm:$0xff] %v2860
      %2893 = vst [vmem:[%s288 + $0x10] sm:$0xff] %v2861
      %2894 = vst [vmem:[%s288 + $0x18] sm:$0xff] %v2862
      %2895 = vst [vmem:[%s288 + $0x20] sm:$0xff] %v2863
      %2896 = vst [vmem:[%s288 + $0x28] sm:$0xff] %v2864
      %2897 = vst [vmem:[%s288 + $0x30] sm:$0xff] %v2865
      %2898 = vst [vmem:[%s288 + $0x38] sm:$0xff] %v2866
      %2899 = vst [vmem:[%s288 + $0x40] sm:$0xff] %v2867
      %2900 = vst [vmem:[%s288 + $0x48] sm:$0xff] %v2868
      %2901 = vst [vmem:[%s288 + $0x50] sm:$0xff] %v2869
      %2902 = vst [vmem:[%s288 + $0x58] sm:$0xff] %v2870
      %2903 = vst [vmem:[%s288 + $0x60] sm:$0xff] %v2871
      %2904 = vst [vmem:[%s288 + $0x68] sm:$0xff] %v2872
      %2905 = vst [vmem:[%s288 + $0x70] sm:$0xff] %v2873
      %2906 = vst [vmem:[%s288 + $0x78] sm:$0xff] %v2874
      %2907 = vst [vmem:[%s288 + $0x80] sm:$0xff] %v2875
      %2908 = vst [vmem:[%s288 + $0x88] sm:$0xff] %v2876
      %2909 = vst [vmem:[%s288 + $0x90] sm:$0xff] %v2877
      %2910 = vst [vmem:[%s288 + $0x98] sm:$0xff] %v2878
      %2911 = vst [vmem:[%s288 + $0xa0] sm:$0xff] %v2879
      %2912 = vst [vmem:[%s288 + $0xa8] sm:$0xff] %v2880
      %2913 = vst [vmem:[%s288 + $0xb0] sm:$0xff] %v2881
      %2914 = vst [vmem:[%s288 + $0xb8] sm:$0xff] %v2882
      %2915 = vst [vmem:[%s288 + $0xc0] sm:$0xff] %v2883
      %2916 = vst [vmem:[%s288 + $0xc8] sm:$0xff] %v2884
      %2917 = vst [vmem:[%s288 + $0xd0] sm:$0xff] %v2885
      %2918 = vst [vmem:[%s288 + $0xd8] sm:$0xff] %v2886
      %2919 = vst [vmem:[%s288 + $0xe0] sm:$0xff] %v2887
      %2920 = vst [vmem:[%s288 + $0xe8] sm:$0xff] %v2888
      %2921 = vst [vmem:[%s288 + $0xf0] sm:$0xff] %v2889
      %2922 = vst [vmem:[%s288 + $0xf8] sm:$0xff] %v2890
      %s2923 = smul.u32 16, %s21
      %p2924 = scmp.lt.s32.totalorder %s20, 1
      %s2925 = scalar_select %p2924, %s20, 1
      %p2926 = scmp.lt.s32.totalorder %s2923, 15
      %s2927 = scalar_select %p2926, %s2923, 15
      %p2928 = scmp.lt.s32.totalorder %s22, 0
      %s2929 = scalar_select %p2928, %s22, 0
      %s2930 = smul.addr %s2927, 2
      %s2931 = sadd.s32 %s2929, %s2930
      %s2932 = smul.addr %s2925, 32
      %s2933 = sadd.s32 %s2931, %s2932
      %s2934 = smul.addr %s2933, 8
      %s2935 = scalar_lea.vmem %s4, %s2934
      // Predicated region
      $region37: #{cam_forward.9} parent=35 // pred_check
        %p2936 = pneg %p162
      $region38: #{cam_forward.9} parent=35 // pred_check_branch
        %2938 = sbr.rel (%p2936) target = $region40
      $region39: #{cam_forward.9} parent=35 // pred_region
        %s2939 = smul.u32 16, %s21
      $region40: #{cam_forward.9} parent=35 // pred_fallthru
        _
    $region36: #{cam_forward.9} parent=5 // pred_fallthru
      _
    %p2940 = scmp.le.s32.totalorder 2, %s10
    // Predicated region
    $region41: #{cam_forward.9} parent=5 // pred_check
      %p2941 = pneg %p2940
    $region42: #{cam_forward.9} parent=5 // pred_check_branch
      %2943 = sbr.rel (%p2941) target = $region44
    $region43: #{cam_forward.9} parent=5 // pred_region
      %s2944 = ssub.s32 %s10, 2
      // Predicated region
      $region45: #{cam_forward.9} parent=43 // pred_check
        %p2945 = pneg %p168
      $region46: #{cam_forward.9} parent=43 // pred_check_branch
        %2947 = sbr.rel (%p2945) target = $region48
      $region47: #{cam_forward.9} parent=43 // pred_region
        %s2948 = smul.u32 16, %s24
        %p2949 = scmp.lt.s32.totalorder %s23, 1
        %s2950 = scalar_select %p2949, %s23, 1
        %p2951 = scmp.lt.s32.totalorder %s2948, 15
        %s2952 = scalar_select %p2951, %s2948, 15
        %p2953 = scmp.lt.s32.totalorder %s25, 0
        %s2954 = scalar_select %p2953, %s25, 0
        %s2955 = smul.addr %s2952, 2
        %s2956 = sadd.s32 %s2954, %s2955
        %s2957 = smul.addr %s2950, 32
        %s2958 = sadd.s32 %s2956, %s2957
        %s2959 = smul.addr %s2958, 8
        %s2960 = scalar_lea.vmem %s4, %s2959
      $region48: #{cam_forward.9} parent=43 // pred_fallthru
        _
    $region44: #{cam_forward.9} parent=5 // pred_fallthru
      _
  $region6: #{cam_forward.9} parent=0 // loop_footer
    %s14 = sadd.s32 1, %s10
  $region7: #{cam_forward.9} parent=0 // loop_footer_branch
    %9 = sbr.rel target = $region3
  $region8: #{cam_forward.9} parent=0 // loop_exit
    _

// kernel: cam_forward.8
$region0: #{cam_forward.8}
  #allocation0 [shape = 'u32[]', space=smem, size = 0x4, offset = 0x4, fixed_abs, tag = 'smem constant byte address 0x4 - core index']
  #allocation1 [shape = 'u32[72,128]{1,0:T(1,128)}', space=vmem, size = 0x9000, scoped, tag = 'internal scratch']
  %s0 = inlined_call_operand.vmem [shape: bf16[2,18,18,128], index: 0, kind: input, shape index: {}]
  %s1 = inlined_call_operand.vmem [shape: bf16[2,18,18,128], index: 1, kind: input, shape index: {}]
  %s2 = inlined_call_operand.vmem [shape: bf16[3,3,128,128], index: 2, kind: input, shape index: {}]
  %s3 = inlined_call_operand.vmem [shape: f32[1,128], index: 3, kind: input, shape index: {}]
  %s4 = inlined_call_operand.vmem [shape: f32[1,128], index: 4, kind: input, shape index: {}]
  %s5 = inlined_call_operand.vmem [shape: bf16[2,16,16,128], index: 5, kind: output, shape index: {}]
  %s6 = sld [smem:[#allocation0]]
  $region53: #{cam_forward.8} parent=0
    _
  %s8 = ssub.s32 1, %s6
  %s9 = scalar_select 0, %s8, %s6
  loop: start=0, step=1, limit=4
  $region2: #{cam_forward.8} parent=0 // loop_pre_header
    _
  $region3: #{cam_forward.8} parent=0 // loop_header
    %s11 = sphi 0, %s15
    %p12 = scmp.ge.s32.totalorder %s11, 4
    %s18 = sphi 0, %s37
    %s19 = sphi 0, %s33
    %s20 = sphi 0, %s29
    %s21 = sphi 0, %s18
    %s22 = sphi 0, %s19
    %s23 = sphi 0, %s20
    %s24 = sphi 0, %s21
    %s25 = sphi 0, %s22
    %s26 = sphi 0, %s23
    %s42 = sphi 0, %s44
    %s45 = sphi 0, %s42
    %s46 = sphi 0, %s45
    %s62 = sphi 0, %s46
    %s70 = sphi 0, %s72
    %s73 = sphi 0, %s70
    %s74 = sphi 0, %s73
    %s90 = sphi 0, %s74
    %s96 = sphi 0, %s98
    %s99 = sphi 0, %s96
    %s100 = sphi 0, %s99
    %s116 = sphi 0, %s100
    %s122 = sphi 0, %s124
    %s125 = sphi 0, %s122
    %s126 = sphi 0, %s125
    %s142 = sphi 0, %s126
    %s148 = sphi 0, %s150
    %s151 = sphi 0, %s148
    %s152 = sphi 0, %s151
    %s168 = sphi 0, %s152
    %s178 = sphi 0, %s180
    %s181 = sphi 0, %s178
    %s182 = sphi 0, %s181
    %s198 = sphi 0, %s182
  $region4: #{cam_forward.8} parent=0 // loop_header_branch
    %14 = sbr.rel (%p12) target = $region8
  $region5: #{cam_forward.8} parent=0 // loop_body
    %s16 = ssub.s32 %s11, 1
    %s17 = ssub.s32 %s11, 2
    %s27 = sadd.s32 1, %s20
    %p28 = scmp.ge.s32.totalorder %s27, 1
    %s29 = scalar_select %p28, 0, %s27
    %s30 = sadd.s32 1, %s19
    %s31 = scalar_select %p28, %s30, %s19
    %p32 = scmp.ge.s32.totalorder %s31, 1
    %s33 = scalar_select %p32, 0, %s31
    %s34 = sadd.s32 1, %s18
    %s35 = scalar_select %p32, %s34, %s18
    %p36 = scmp.ge.s32.totalorder %s35, 2
    %s37 = scalar_select %p36, 0, %s35
    %s38 = sadd.s32 %s18, %s19
    %s39 = sadd.s32 %s37, %s33
    %s40 = ssub.s32 %s38, %s39
    %p41 = scmp.eq.s32.totalorder %s40, 0
    %s43 = sadd.s32 %s42, 1
    %s44 = scalar_select %p41, %s42, %s43
    %p47 = pneg %p41
    %p48 = scmp.eq.s32.totalorder %s11, 1
    %p49 = por %p47, %p48
    %p50 = scmp.ne.s32.totalorder %s42, %s45
    %p51 = scmp.eq.s32.totalorder %s11, 0
    %p52 = por %p50, %p51
    %p53 = scmp.ne.s32.totalorder %s42, %s45
    %p54 = scmp.eq.s32.totalorder %s16, 1
    %p55 = por %p53, %p54
    %p56 = scmp.ne.s32.totalorder %s45, %s46
    %p57 = scmp.eq.s32.totalorder %s16, 0
    %p58 = por %p56, %p57
    %p59 = scmp.ne.s32.totalorder %s45, %s46
    %p60 = scmp.eq.s32.totalorder %s17, 1
    %p61 = por %p59, %p60
    %p63 = scmp.ne.s32.totalorder %s46, %s62
    %p64 = scmp.eq.s32.totalorder %s17, 0
    %p65 = por %p63, %p64
    %s66 = sadd.s32 %s18, %s19
    %s67 = sadd.s32 %s37, %s33
    %s68 = ssub.s32 %s66, %s67
    %p69 = scmp.eq.s32.totalorder %s68, 0
    %s71 = sadd.s32 %s70, 1
    %s72 = scalar_select %p69, %s70, %s71
    %p75 = pneg %p69
    %p76 = scmp.eq.s32.totalorder %s11, 1
    %p77 = por %p75, %p76
    %p78 = scmp.ne.s32.totalorder %s70, %s73
    %p79 = scmp.eq.s32.totalorder %s11, 0
    %p80 = por %p78, %p79
    %p81 = scmp.ne.s32.totalorder %s70, %s73
    %p82 = scmp.eq.s32.totalorder %s16, 1
    %p83 = por %p81, %p82
    %p84 = scmp.ne.s32.totalorder %s73, %s74
    %p85 = scmp.eq.s32.totalorder %s16, 0
    %p86 = por %p84, %p85
    %p87 = scmp.ne.s32.totalorder %s73, %s74
    %p88 = scmp.eq.s32.totalorder %s17, 1
    %p89 = por %p87, %p88
    %p91 = scmp.ne.s32.totalorder %s74, %s90
    %p92 = scmp.eq.s32.totalorder %s17, 0
    %p93 = por %p91, %p92
    %s94 = ssub.s32 %s20, %s29
    %p95 = scmp.eq.s32.totalorder %s94, 0
    %s97 = sadd.s32 %s96, 1
    %s98 = scalar_select %p95, %s96, %s97
    %p101 = pneg %p95
    %p102 = scmp.eq.s32.totalorder %s11, 1
    %p103 = por %p101, %p102
    %p104 = scmp.ne.s32.totalorder %s96, %s99
    %p105 = scmp.eq.s32.totalorder %s11, 0
    %p106 = por %p104, %p105
    %p107 = scmp.ne.s32.totalorder %s96, %s99
    %p108 = scmp.eq.s32.totalorder %s16, 1
    %p109 = por %p107, %p108
    %p110 = scmp.ne.s32.totalorder %s99, %s100
    %p111 = scmp.eq.s32.totalorder %s16, 0
    %p112 = por %p110, %p111
    %p113 = scmp.ne.s32.totalorder %s99, %s100
    %p114 = scmp.eq.s32.totalorder %s17, 1
    %p115 = por %p113, %p114
    %p117 = scmp.ne.s32.totalorder %s100, %s116
    %p118 = scmp.eq.s32.totalorder %s17, 0
    %p119 = por %p117, %p118
    %s120 = ssub.s32 %s20, %s29
    %p121 = scmp.eq.s32.totalorder %s120, 0
    %s123 = sadd.s32 %s122, 1
    %s124 = scalar_select %p121, %s122, %s123
    %p127 = pneg %p121
    %p128 = scmp.eq.s32.totalorder %s11, 1
    %p129 = por %p127, %p128
    %p130 = scmp.ne.s32.totalorder %s122, %s125
    %p131 = scmp.eq.s32.totalorder %s11, 0
    %p132 = por %p130, %p131
    %p133 = scmp.ne.s32.totalorder %s122, %s125
    %p134 = scmp.eq.s32.totalorder %s16, 1
    %p135 = por %p133, %p134
    %p136 = scmp.ne.s32.totalorder %s125, %s126
    %p137 = scmp.eq.s32.totalorder %s16, 0
    %p138 = por %p136, %p137
    %p139 = scmp.ne.s32.totalorder %s125, %s126
    %p140 = scmp.eq.s32.totalorder %s17, 1
    %p141 = por %p139, %p140
    %p143 = scmp.ne.s32.totalorder %s126, %s142
    %p144 = scmp.eq.s32.totalorder %s17, 0
    %p145 = por %p143, %p144
    %s146 = ssub.s32 %s20, %s29
    %p147 = scmp.eq.s32.totalorder %s146, 0
    %s149 = sadd.s32 %s148, 1
    %s150 = scalar_select %p147, %s148, %s149
    %p153 = pneg %p147
    %p154 = scmp.eq.s32.totalorder %s11, 1
    %p155 = por %p153, %p154
    %p156 = scmp.ne.s32.totalorder %s148, %s151
    %p157 = scmp.eq.s32.totalorder %s11, 0
    %p158 = por %p156, %p157
    %p159 = scmp.ne.s32.totalorder %s148, %s151
    %p160 = scmp.eq.s32.totalorder %s16, 1
    %p161 = por %p159, %p160
    %p162 = scmp.ne.s32.totalorder %s151, %s152
    %p163 = scmp.eq.s32.totalorder %s16, 0
    %p164 = por %p162, %p163
    %p165 = scmp.ne.s32.totalorder %s151, %s152
    %p166 = scmp.eq.s32.totalorder %s17, 1
    %p167 = por %p165, %p166
    %p169 = scmp.ne.s32.totalorder %s152, %s168
    %p170 = scmp.eq.s32.totalorder %s17, 0
    %p171 = por %p169, %p170
    %s172 = ssub.s32 %s18, %s37
    %s173 = ssub.s32 %s19, %s33
    %s174 = sor.u32 %s172, %s173
    %s175 = ssub.s32 %s20, %s29
    %s176 = sor.u32 %s174, %s175
    %p177 = scmp.eq.s32.totalorder %s176, 0
    %s179 = sadd.s32 %s178, 1
    %s180 = scalar_select %p177, %s178, %s179
    %p183 = pneg %p177
    %p184 = scmp.eq.s32.totalorder %s11, 1
    %p185 = por %p183, %p184
    %p186 = scmp.ne.s32.totalorder %s178, %s181
    %p187 = scmp.eq.s32.totalorder %s11, 0
    %p188 = por %p186, %p187
    %p189 = scmp.ne.s32.totalorder %s178, %s181
    %p190 = scmp.eq.s32.totalorder %s16, 1
    %p191 = por %p189, %p190
    %p192 = scmp.ne.s32.totalorder %s181, %s182
    %p193 = scmp.eq.s32.totalorder %s16, 0
    %p194 = por %p192, %p193
    %p195 = scmp.ne.s32.totalorder %s181, %s182
    %p196 = scmp.eq.s32.totalorder %s17, 1
    %p197 = por %p195, %p196
    %p199 = scmp.ne.s32.totalorder %s182, %s198
    %p200 = scmp.eq.s32.totalorder %s17, 0
    %p201 = por %p199, %p200
    %p202 = scmp.le.s32.totalorder 1, %s11
    %p203 = scmp.lt.s32.totalorder %s11, 3
    %p204 = pnand %p202, %p203
    %p205 = pneg %p204
    // Predicated region
    $region9: #{cam_forward.8} parent=5 // pred_check
      _
    $region10: #{cam_forward.8} parent=5 // pred_check_branch
      %207 = sbr.rel (%p204) target = $region12
    $region11: #{cam_forward.8} parent=5 // pred_region
      %s208 = ssub.s32 %s11, 1
      // Predicated region
      $region13: #{cam_forward.8} parent=11 // pred_check
        %p209 = pneg %p112
      $region14: #{cam_forward.8} parent=11 // pred_check_branch
        %211 = sbr.rel (%p209) target = $region16
      $region15: #{cam_forward.8} parent=11 // pred_region
        %p212 = scmp.lt.s32.totalorder %s23, 0
        %s213 = scalar_select %p212, %s23, 0
        %s214 = smul.addr %s213, 4
        %s215 = scalar_lea.vmem %s2, %s214
      $region16: #{cam_forward.8} parent=11 // pred_fallthru
        _
      // Predicated region
      $region17: #{cam_forward.8} parent=11 // pred_check
        %p216 = pneg %p138
      $region18: #{cam_forward.8} parent=11 // pred_check_branch
        %218 = sbr.rel (%p216) target = $region20
      $region19: #{cam_forward.8} parent=11 // pred_region
        %p219 = scmp.lt.s32.totalorder %s23, 0
        %s220 = scalar_select %p219, %s23, 0
        %s221 = scalar_lea.vmem %s3, %s220
      $region20: #{cam_forward.8} parent=11 // pred_fallthru
        _
      // Predicated region
      $region21: #{cam_forward.8} parent=11 // pred_check
        %p222 = pneg %p164
      $region22: #{cam_forward.8} parent=11 // pred_check_branch
        %224 = sbr.rel (%p222) target = $region24
      $region23: #{cam_forward.8} parent=11 // pred_region
        %p225 = scmp.lt.s32.totalorder %s23, 0
        %s226 = scalar_select %p225, %s23, 0
        %s227 = scalar_lea.vmem %s4, %s226
      $region24: #{cam_forward.8} parent=11 // pred_fallthru
        _
    $region12: #{cam_forward.8} parent=5 // pred_fallthru
      _
    %p228 = scmp.lt.s32.totalorder %s11, 2
    // Predicated region
    $region25: #{cam_forward.8} parent=5 // pred_check
      %p229 = pneg %p228
    $region26: #{cam_forward.8} parent=5 // pred_check_branch
      %231 = sbr.rel (%p229) target = $region28
    $region27: #{cam_forward.8} parent=5 // pred_region
      // Predicated region
      $region29: #{cam_forward.8} parent=27 // pred_check
        %p232 = pneg %p52
      $region30: #{cam_forward.8} parent=27 // pred_check_branch
        %234 = sbr.rel (%p232) target = $region32
      $region31: #{cam_forward.8} parent=27 // pred_region
        %s235 = sadd.s32 %s18, %s19
        %p236 = scmp.lt.s32.totalorder %s235, 1
        %s237 = scalar_select %p236, %s235, 1
        %s238 = smul.addr %s237, 54
        %s239 = smul.addr %s238, 4
        %s240 = scalar_lea.vmem %s0, %s239
        %s241 = sadd.s32 %s18, %s19
      $region32: #{cam_forward.8} parent=27 // pred_fallthru
        _
      // Predicated region
      $region33: #{cam_forward.8} parent=27 // pred_check
        %p242 = pneg %p80
      $region34: #{cam_forward.8} parent=27 // pred_check_branch
        %244 = sbr.rel (%p242) target = $region36
      $region35: #{cam_forward.8} parent=27 // pred_region
        %s245 = sadd.s32 %s18, %s19
        %p246 = scmp.lt.s32.totalorder %s245, 1
        %s247 = scalar_select %p246, %s245, 1
        %s248 = smul.addr %s247, 54
        %s249 = smul.addr %s248, 4
        %s250 = scalar_lea.vmem %s1, %s249
        %s251 = sadd.s32 %s18, %s19
      $region36: #{cam_forward.8} parent=27 // pred_fallthru
        _
    $region28: #{cam_forward.8} parent=5 // pred_fallthru
      _
    %p252 = scmp.le.s32.totalorder 1, %s11
    %p253 = scmp.lt.s32.totalorder %s11, 3
    %p254 = pnand %p252, %p253
    %p255 = pneg %p254
    // Predicated region
    $region37: #{cam_forward.8} parent=5 // pred_check
      _
    $region38: #{cam_forward.8} parent=5 // pred_check_branch
      %257 = sbr.rel (%p254) target = $region40
    $region39: #{cam_forward.8} parent=5 // pred_region
      %s258 = ssub.s32 %s11, 1
      %s259 = sadd.s32 %s21, %s22
      %p260 = scmp.lt.s32.totalorder %s259, 1
      %s261 = scalar_select %p260, %s259, 1
      %s262 = smul.addr %s261, 54
      %s263 = smul.addr %s262, 4
      %s264 = scalar_lea.vmem %s0, %s263
      %p265 = pneg %p58
      %p266 = pneg %p55
      %s267 = sadd.s32 %s21, %s22
      %p268 = scmp.lt.s32.totalorder %s267, 1
      %s269 = scalar_select %p268, %s267, 1
      %s270 = smul.addr %s269, 54
      %s271 = smul.addr %s270, 4
      %s272 = scalar_lea.vmem %s1, %s271
      %p273 = pneg %p86
      %p274 = pneg %p83
      %p275 = scmp.lt.s32.totalorder %s23, 0
      %s276 = scalar_select %p275, %s23, 0
      %s277 = smul.addr %s276, 4
      %s278 = scalar_lea.vmem %s2, %s277
      %p279 = pneg %p112
      %p280 = pneg %p109
      %p281 = scmp.lt.s32.totalorder %s23, 0
      %s282 = scalar_select %p281, %s23, 0
      %s283 = scalar_lea.vmem %s3, %s282
      %p284 = pneg %p138
      %p285 = pneg %p135
      %p286 = scmp.lt.s32.totalorder %s23, 0
      %s287 = scalar_select %p286, %s23, 0
      %s288 = scalar_lea.vmem %s4, %s287
      %p289 = pneg %p164
      %p290 = pneg %p161
      %p291 = pneg %p194
      %p292 = pneg %p191
      %s293 = smul.u32 16, %s22
      %p294 = scmp.lt.s32.totalorder %s21, 1
      %s295 = scalar_select %p294, %s21, 1
      %p296 = scmp.lt.s32.totalorder %s293, 15
      %s297 = scalar_select %p296, %s293, 15
      %p298 = scmp.lt.s32.totalorder %s23, 0
      %s299 = scalar_select %p298, %s23, 0
      %s300 = smul.addr %s297, 2
      %s301 = sadd.s32 %s299, %s300
      %s302 = smul.addr %s295, 32
      %s303 = sadd.s32 %s301, %s302
      %s304 = smul.addr %s303, 4
      %s305 = scalar_lea.vmem %s5, %s304
      %s306 = sadd.s32 %s21, %s22
      %p307 = scmp.lt.s32.totalorder %s306, 1
      %s308 = scalar_select %p307, %s306, 1
      %s309 = smul.addr %s308, 54
      %s310 = smul.addr %s309, 4
      %s311 = scalar_lea.vmem %s0, %s310
      %s312 = sadd.s32 %s21, %s22
      %s313 = sadd.s32 %s21, %s22
      %p314 = scmp.lt.s32.totalorder %s313, 1
      %s315 = scalar_select %p314, %s313, 1
      %s316 = smul.addr %s315, 54
      %s317 = smul.addr %s316, 4
      %s318 = scalar_lea.vmem %s1, %s317
      %s319 = sadd.s32 %s21, %s22
      %p320 = scmp.lt.s32.totalorder %s23, 0
      %s321 = scalar_select %p320, %s23, 0
      %s322 = smul.addr %s321, 4
      %s323 = scalar_lea.vmem %s2, %s322
      %p324 = scmp.lt.s32.totalorder %s23, 0
      %s325 = scalar_select %p324, %s23, 0
      %s326 = scalar_lea.vmem %s3, %s325
      %p327 = scmp.lt.s32.totalorder %s23, 0
      %s328 = scalar_select %p327, %s23, 0
      %s329 = scalar_lea.vmem %s4, %s328
      %s330 = smul.u32 16, %s22
      %p331 = scmp.lt.s32.totalorder %s21, 1
      %s332 = scalar_select %p331, %s21, 1
      %p333 = scmp.lt.s32.totalorder %s330, 15
      %s334 = scalar_select %p333, %s330, 15
      %p335 = scmp.lt.s32.totalorder %s23, 0
      %s336 = scalar_select %p335, %s23, 0
      %s337 = smul.addr %s334, 2
      %s338 = sadd.s32 %s336, %s337
      %s339 = smul.addr %s332, 32
      %s340 = sadd.s32 %s338, %s339
      %s341 = smul.addr %s340, 4
      %s342 = scalar_lea.vmem %s5, %s341
      %s343 = smul.u32 16, %s22
      %v344 = vld [vmem:[%s311] sm:$0xf]
      %v345 = vld [vmem:[%s311 + $0x4] sm:$0xf]
      %v346 = vld [vmem:[%s311 + $0x8] sm:$0x1]
      %v347 = vld [vmem:[%s311 + $0xc] sm:$0xf]
      %v348 = vld [vmem:[%s311 + $0x10] sm:$0xf]
      %v349 = vld [vmem:[%s311 + $0x14] sm:$0x1]
      %v350 = vld [vmem:[%s311 + $0x18] sm:$0xf]
      %v351 = vld [vmem:[%s311 + $0x1c] sm:$0xf]
      %v352 = vld [vmem:[%s311 + $0x20] sm:$0x1]
      %v353 = vld [vmem:[%s311 + $0x24] sm:$0xf]
      %v354 = vld [vmem:[%s311 + $0x28] sm:$0xf]
      %v355 = vld [vmem:[%s311 + $0x2c] sm:$0x1]
      %v356 = vld [vmem:[%s311 + $0x30] sm:$0xf]
      %v357 = vld [vmem:[%s311 + $0x34] sm:$0xf]
      %v358 = vld [vmem:[%s311 + $0x38] sm:$0x1]
      %v359 = vld [vmem:[%s311 + $0x3c] sm:$0xf]
      %v360 = vld [vmem:[%s311 + $0x40] sm:$0xf]
      %v361 = vld [vmem:[%s311 + $0x44] sm:$0x1]
      %v362 = vld [vmem:[%s311 + $0x48] sm:$0xf]
      %v363 = vld [vmem:[%s311 + $0x4c] sm:$0xf]
      %v364 = vld [vmem:[%s311 + $0x50] sm:$0x1]
      %v365 = vld [vmem:[%s311 + $0x54] sm:$0xf]
      %v366 = vld [vmem:[%s311 + $0x58] sm:$0xf]
      %v367 = vld [vmem:[%s311 + $0x5c] sm:$0x1]
      %v368 = vld [vmem:[%s311 + $0x60] sm:$0xf]
      %v369 = vld [vmem:[%s311 + $0x64] sm:$0xf]
      %v370 = vld [vmem:[%s311 + $0x68] sm:$0x1]
      %v371 = vld [vmem:[%s311 + $0x6c] sm:$0xf]
      %v372 = vld [vmem:[%s311 + $0x70] sm:$0xf]
      %v373 = vld [vmem:[%s311 + $0x74] sm:$0x1]
      %v374 = vld [vmem:[%s311 + $0x78] sm:$0xf]
      %v375 = vld [vmem:[%s311 + $0x7c] sm:$0xf]
      %v376 = vld [vmem:[%s311 + $0x80] sm:$0x1]
      %v377 = vld [vmem:[%s311 + $0x84] sm:$0xf]
      %v378 = vld [vmem:[%s311 + $0x88] sm:$0xf]
      %v379 = vld [vmem:[%s311 + $0x8c] sm:$0x1]
      %v380 = vld [vmem:[%s311 + $0x90] sm:$0xf]
      %v381 = vld [vmem:[%s311 + $0x94] sm:$0xf]
      %v382 = vld [vmem:[%s311 + $0x98] sm:$0x1]
      %v383 = vld [vmem:[%s311 + $0x9c] sm:$0xf]
      %v384 = vld [vmem:[%s311 + $0xa0] sm:$0xf]
      %v385 = vld [vmem:[%s311 + $0xa4] sm:$0x1]
      %v386 = vld [vmem:[%s311 + $0xa8] sm:$0xf]
      %v387 = vld [vmem:[%s311 + $0xac] sm:$0xf]
      %v388 = vld [vmem:[%s311 + $0xb0] sm:$0x1]
      %v389 = vld [vmem:[%s311 + $0xb4] sm:$0xf]
      %v390 = vld [vmem:[%s311 + $0xb8] sm:$0xf]
      %v391 = vld [vmem:[%s311 + $0xbc] sm:$0x1]
      %v392 = vld [vmem:[%s311 + $0xc0] sm:$0xf]
      %v393 = vld [vmem:[%s311 + $0xc4] sm:$0xf]
      %v394 = vld [vmem:[%s311 + $0xc8] sm:$0x1]
      %v395 = vld [vmem:[%s311 + $0xcc] sm:$0xf]
      %v396 = vld [vmem:[%s311 + $0xd0] sm:$0xf]
      %v397 = vld [vmem:[%s311 + $0xd4] sm:$0x1]
      %v398 = vunpack.c.l.bf16 %v344
      %v399 = vunpack.c.l.bf16 %v345
      %v400 = vunpack.c.l.bf16 %v346
      %v401 = vunpack.c.l.bf16 %v347
      %v402 = vunpack.c.l.bf16 %v348
      %v403 = vunpack.c.l.bf16 %v349
      %v404 = vunpack.c.l.bf16 %v350
      %v405 = vunpack.c.l.bf16 %v351
      %v406 = vunpack.c.l.bf16 %v352
      %v407 = vunpack.c.l.bf16 %v353
      %v408 = vunpack.c.l.bf16 %v354
      %v409 = vunpack.c.l.bf16 %v355
      %v410 = vunpack.c.l.bf16 %v356
      %v411 = vunpack.c.l.bf16 %v357
      %v412 = vunpack.c.l.bf16 %v358
      %v413 = vunpack.c.l.bf16 %v359
      %v414 = vunpack.c.l.bf16 %v360
      %v415 = vunpack.c.l.bf16 %v361
      %v416 = vunpack.c.l.bf16 %v362
      %v417 = vunpack.c.l.bf16 %v363
      %v418 = vunpack.c.l.bf16 %v364
      %v419 = vunpack.c.l.bf16 %v365
      %v420 = vunpack.c.l.bf16 %v366
      %v421 = vunpack.c.l.bf16 %v367
      %v422 = vunpack.c.l.bf16 %v368
      %v423 = vunpack.c.l.bf16 %v369
      %v424 = vunpack.c.l.bf16 %v370
      %v425 = vunpack.c.l.bf16 %v371
      %v426 = vunpack.c.l.bf16 %v372
      %v427 = vunpack.c.l.bf16 %v373
      %v428 = vunpack.c.l.bf16 %v374
      %v429 = vunpack.c.l.bf16 %v375
      %v430 = vunpack.c.l.bf16 %v376
      %v431 = vunpack.c.l.bf16 %v377
      %v432 = vunpack.c.l.bf16 %v378
      %v433 = vunpack.c.l.bf16 %v379
      %v434 = vunpack.c.l.bf16 %v380
      %v435 = vunpack.c.l.bf16 %v381
      %v436 = vunpack.c.l.bf16 %v382
      %v437 = vunpack.c.l.bf16 %v383
      %v438 = vunpack.c.l.bf16 %v384
      %v439 = vunpack.c.l.bf16 %v385
      %v440 = vunpack.c.l.bf16 %v386
      %v441 = vunpack.c.l.bf16 %v387
      %v442 = vunpack.c.l.bf16 %v388
      %v443 = vunpack.c.l.bf16 %v389
      %v444 = vunpack.c.l.bf16 %v390
      %v445 = vunpack.c.l.bf16 %v391
      %v446 = vunpack.c.l.bf16 %v392
      %v447 = vunpack.c.l.bf16 %v393
      %v448 = vunpack.c.l.bf16 %v394
      %v449 = vunpack.c.l.bf16 %v395
      %v450 = vunpack.c.l.bf16 %v396
      %v451 = vunpack.c.l.bf16 %v397
      %v452 = vld [vmem:[%s318] sm:$0xf]
      %v453 = vld [vmem:[%s318 + $0x4] sm:$0xf]
      %v454 = vld [vmem:[%s318 + $0x8] sm:$0x1]
      %v455 = vld [vmem:[%s318 + $0xc] sm:$0xf]
      %v456 = vld [vmem:[%s318 + $0x10] sm:$0xf]
      %v457 = vld [vmem:[%s318 + $0x14] sm:$0x1]
      %v458 = vld [vmem:[%s318 + $0x18] sm:$0xf]
      %v459 = vld [vmem:[%s318 + $0x1c] sm:$0xf]
      %v460 = vld [vmem:[%s318 + $0x20] sm:$0x1]
      %v461 = vld [vmem:[%s318 + $0x24] sm:$0xf]
      %v462 = vld [vmem:[%s318 + $0x28] sm:$0xf]
      %v463 = vld [vmem:[%s318 + $0x2c] sm:$0x1]
      %v464 = vld [vmem:[%s318 + $0x30] sm:$0xf]
      %v465 = vld [vmem:[%s318 + $0x34] sm:$0xf]
      %v466 = vld [vmem:[%s318 + $0x38] sm:$0x1]
      %v467 = vld [vmem:[%s318 + $0x3c] sm:$0xf]
      %v468 = vld [vmem:[%s318 + $0x40] sm:$0xf]
      %v469 = vld [vmem:[%s318 + $0x44] sm:$0x1]
      %v470 = vld [vmem:[%s318 + $0x48] sm:$0xf]
      %v471 = vld [vmem:[%s318 + $0x4c] sm:$0xf]
      %v472 = vld [vmem:[%s318 + $0x50] sm:$0x1]
      %v473 = vld [vmem:[%s318 + $0x54] sm:$0xf]
      %v474 = vld [vmem:[%s318 + $0x58] sm:$0xf]
      %v475 = vld [vmem:[%s318 + $0x5c] sm:$0x1]
      %v476 = vld [vmem:[%s318 + $0x60] sm:$0xf]
      %v477 = vld [vmem:[%s318 + $0x64] sm:$0xf]
      %v478 = vld [vmem:[%s318 + $0x68] sm:$0x1]
      %v479 = vld [vmem:[%s318 + $0x6c] sm:$0xf]
      %v480 = vld [vmem:[%s318 + $0x70] sm:$0xf]
      %v481 = vld [vmem:[%s318 + $0x74] sm:$0x1]
      %v482 = vld [vmem:[%s318 + $0x78] sm:$0xf]
      %v483 = vld [vmem:[%s318 + $0x7c] sm:$0xf]
      %v484 = vld [vmem:[%s318 + $0x80] sm:$0x1]
      %v485 = vld [vmem:[%s318 + $0x84] sm:$0xf]
      %v486 = vld [vmem:[%s318 + $0x88] sm:$0xf]
      %v487 = vld [vmem:[%s318 + $0x8c] sm:$0x1]
      %v488 = vld [vmem:[%s318 + $0x90] sm:$0xf]
      %v489 = vld [vmem:[%s318 + $0x94] sm:$0xf]
      %v490 = vld [vmem:[%s318 + $0x98] sm:$0x1]
      %v491 = vld [vmem:[%s318 + $0x9c] sm:$0xf]
      %v492 = vld [vmem:[%s318 + $0xa0] sm:$0xf]
      %v493 = vld [vmem:[%s318 + $0xa4] sm:$0x1]
      %v494 = vld [vmem:[%s318 + $0xa8] sm:$0xf]
      %v495 = vld [vmem:[%s318 + $0xac] sm:$0xf]
      %v496 = vld [vmem:[%s318 + $0xb0] sm:$0x1]
      %v497 = vld [vmem:[%s318 + $0xb4] sm:$0xf]
      %v498 = vld [vmem:[%s318 + $0xb8] sm:$0xf]
      %v499 = vld [vmem:[%s318 + $0xbc] sm:$0x1]
      %v500 = vld [vmem:[%s318 + $0xc0] sm:$0xf]
      %v501 = vld [vmem:[%s318 + $0xc4] sm:$0xf]
      %v502 = vld [vmem:[%s318 + $0xc8] sm:$0x1]
      %v503 = vld [vmem:[%s318 + $0xcc] sm:$0xf]
      %v504 = vld [vmem:[%s318 + $0xd0] sm:$0xf]
      %v505 = vld [vmem:[%s318 + $0xd4] sm:$0x1]
      %v506 = vunpack.c.l.bf16 %v452
      %v507 = vunpack.c.l.bf16 %v453
      %v508 = vunpack.c.l.bf16 %v454
      %v509 = vunpack.c.l.bf16 %v455
      %v510 = vunpack.c.l.bf16 %v456
      %v511 = vunpack.c.l.bf16 %v457
      %v512 = vunpack.c.l.bf16 %v458
      %v513 = vunpack.c.l.bf16 %v459
      %v514 = vunpack.c.l.bf16 %v460
      %v515 = vunpack.c.l.bf16 %v461
      %v516 = vunpack.c.l.bf16 %v462
      %v517 = vunpack.c.l.bf16 %v463
      %v518 = vunpack.c.l.bf16 %v464
      %v519 = vunpack.c.l.bf16 %v465
      %v520 = vunpack.c.l.bf16 %v466
      %v521 = vunpack.c.l.bf16 %v467
      %v522 = vunpack.c.l.bf16 %v468
      %v523 = vunpack.c.l.bf16 %v469
      %v524 = vunpack.c.l.bf16 %v470
      %v525 = vunpack.c.l.bf16 %v471
      %v526 = vunpack.c.l.bf16 %v472
      %v527 = vunpack.c.l.bf16 %v473
      %v528 = vunpack.c.l.bf16 %v474
      %v529 = vunpack.c.l.bf16 %v475
      %v530 = vunpack.c.l.bf16 %v476
      %v531 = vunpack.c.l.bf16 %v477
      %v532 = vunpack.c.l.bf16 %v478
      %v533 = vunpack.c.l.bf16 %v479
      %v534 = vunpack.c.l.bf16 %v480
      %v535 = vunpack.c.l.bf16 %v481
      %v536 = vunpack.c.l.bf16 %v482
      %v537 = vunpack.c.l.bf16 %v483
      %v538 = vunpack.c.l.bf16 %v484
      %v539 = vunpack.c.l.bf16 %v485
      %v540 = vunpack.c.l.bf16 %v486
      %v541 = vunpack.c.l.bf16 %v487
      %v542 = vunpack.c.l.bf16 %v488
      %v543 = vunpack.c.l.bf16 %v489
      %v544 = vunpack.c.l.bf16 %v490
      %v545 = vunpack.c.l.bf16 %v491
      %v546 = vunpack.c.l.bf16 %v492
      %v547 = vunpack.c.l.bf16 %v493
      %v548 = vunpack.c.l.bf16 %v494
      %v549 = vunpack.c.l.bf16 %v495
      %v550 = vunpack.c.l.bf16 %v496
      %v551 = vunpack.c.l.bf16 %v497
      %v552 = vunpack.c.l.bf16 %v498
      %v553 = vunpack.c.l.bf16 %v499
      %v554 = vunpack.c.l.bf16 %v500
      %v555 = vunpack.c.l.bf16 %v501
      %v556 = vunpack.c.l.bf16 %v502
      %v557 = vunpack.c.l.bf16 %v503
      %v558 = vunpack.c.l.bf16 %v504
      %v559 = vunpack.c.l.bf16 %v505
      %v560 = vmul.f32 %v398, %v506
      %v561 = vmul.f32 %v399, %v507
      %v562 = vmul.f32 %v400, %v508
      %v563 = vmul.f32 %v401, %v509
      %v564 = vmul.f32 %v402, %v510
      %v565 = vmul.f32 %v403, %v511
      %v566 = vmul.f32 %v404, %v512
      %v567 = vmul.f32 %v405, %v513
      %v568 = vmul.f32 %v406, %v514
      %v569 = vmul.f32 %v407, %v515
      %v570 = vmul.f32 %v408, %v516
      %v571 = vmul.f32 %v409, %v517
      %v572 = vmul.f32 %v410, %v518
      %v573 = vmul.f32 %v411, %v519
      %v574 = vmul.f32 %v412, %v520
      %v575 = vmul.f32 %v413, %v521
      %v576 = vmul.f32 %v414, %v522
      %v577 = vmul.f32 %v415, %v523
      %v578 = vmul.f32 %v416, %v524
      %v579 = vmul.f32 %v417, %v525
      %v580 = vmul.f32 %v418, %v526
      %v581 = vmul.f32 %v419, %v527
      %v582 = vmul.f32 %v420, %v528
      %v583 = vmul.f32 %v421, %v529
      %v584 = vmul.f32 %v422, %v530
      %v585 = vmul.f32 %v423, %v531
      %v586 = vmul.f32 %v424, %v532
      %v587 = vmul.f32 %v425, %v533
      %v588 = vmul.f32 %v426, %v534
      %v589 = vmul.f32 %v427, %v535
      %v590 = vmul.f32 %v428, %v536
      %v591 = vmul.f32 %v429, %v537
      %v592 = vmul.f32 %v430, %v538
      %v593 = vmul.f32 %v431, %v539
      %v594 = vmul.f32 %v432, %v540
      %v595 = vmul.f32 %v433, %v541
      %v596 = vmul.f32 %v434, %v542
      %v597 = vmul.f32 %v435, %v543
      %v598 = vmul.f32 %v436, %v544
      %v599 = vmul.f32 %v437, %v545
      %v600 = vmul.f32 %v438, %v546
      %v601 = vmul.f32 %v439, %v547
      %v602 = vmul.f32 %v440, %v548
      %v603 = vmul.f32 %v441, %v549
      %v604 = vmul.f32 %v442, %v550
      %v605 = vmul.f32 %v443, %v551
      %v606 = vmul.f32 %v444, %v552
      %v607 = vmul.f32 %v445, %v553
      %v608 = vmul.f32 %v446, %v554
      %v609 = vmul.f32 %v447, %v555
      %v610 = vmul.f32 %v448, %v556
      %v611 = vmul.f32 %v449, %v557
      %v612 = vmul.f32 %v450, %v558
      %v613 = vmul.f32 %v451, %v559
      %v614 = vpack.c.bf16 %v560, %v560
      %v615 = vpack.c.bf16 %v561, %v561
      %v616 = vpack.c.bf16 %v562, %v562
      %v617 = vpack.c.bf16 %v563, %v563
      %v618 = vpack.c.bf16 %v564, %v564
      %v619 = vpack.c.bf16 %v565, %v565
      %v620 = vpack.c.bf16 %v566, %v566
      %v621 = vpack.c.bf16 %v567, %v567
      %v622 = vpack.c.bf16 %v568, %v568
      %v623 = vpack.c.bf16 %v569, %v569
      %v624 = vpack.c.bf16 %v570, %v570
      %v625 = vpack.c.bf16 %v571, %v571
      %v626 = vpack.c.bf16 %v572, %v572
      %v627 = vpack.c.bf16 %v573, %v573
      %v628 = vpack.c.bf16 %v574, %v574
      %v629 = vpack.c.bf16 %v575, %v575
      %v630 = vpack.c.bf16 %v576, %v576
      %v631 = vpack.c.bf16 %v577, %v577
      %v632 = vpack.c.bf16 %v578, %v578
      %v633 = vpack.c.bf16 %v579, %v579
      %v634 = vpack.c.bf16 %v580, %v580
      %v635 = vpack.c.bf16 %v581, %v581
      %v636 = vpack.c.bf16 %v582, %v582
      %v637 = vpack.c.bf16 %v583, %v583
      %v638 = vpack.c.bf16 %v584, %v584
      %v639 = vpack.c.bf16 %v585, %v585
      %v640 = vpack.c.bf16 %v586, %v586
      %v641 = vpack.c.bf16 %v587, %v587
      %v642 = vpack.c.bf16 %v588, %v588
      %v643 = vpack.c.bf16 %v589, %v589
      %v644 = vpack.c.bf16 %v590, %v590
      %v645 = vpack.c.bf16 %v591, %v591
      %v646 = vpack.c.bf16 %v592, %v592
      %v647 = vpack.c.bf16 %v593, %v593
      %v648 = vpack.c.bf16 %v594, %v594
      %v649 = vpack.c.bf16 %v595, %v595
      %v650 = vpack.c.bf16 %v596, %v596
      %v651 = vpack.c.bf16 %v597, %v597
      %v652 = vpack.c.bf16 %v598, %v598
      %v653 = vpack.c.bf16 %v599, %v599
      %v654 = vpack.c.bf16 %v600, %v600
      %v655 = vpack.c.bf16 %v601, %v601
      %v656 = vpack.c.bf16 %v602, %v602
      %v657 = vpack.c.bf16 %v603, %v603
      %v658 = vpack.c.bf16 %v604, %v604
      %v659 = vpack.c.bf16 %v605, %v605
      %v660 = vpack.c.bf16 %v606, %v606
      %v661 = vpack.c.bf16 %v607, %v607
      %v662 = vpack.c.bf16 %v608, %v608
      %v663 = vpack.c.bf16 %v609, %v609
      %v664 = vpack.c.bf16 %v610, %v610
      %v665 = vpack.c.bf16 %v611, %v611
      %v666 = vpack.c.bf16 %v612, %v612
      %v667 = vpack.c.bf16 %v613, %v613
      %v668 = vld [vmem:[%s323] sm:$0xf]
      %v669 = vld [vmem:[%s323 + $0x4] sm:$0xf]
      %v670 = vld [vmem:[%s323 + $0x8] sm:$0xf]
      %v671 = vld [vmem:[%s323 + $0xc] sm:$0xf]
      %v672 = vld [vmem:[%s323 + $0x10] sm:$0xf]
      %v673 = vld [vmem:[%s323 + $0x14] sm:$0xf]
      %v674 = vld [vmem:[%s323 + $0x18] sm:$0xf]
      %v675 = vld [vmem:[%s323 + $0x1c] sm:$0xf]
      %v676 = vld [vmem:[%s323 + $0x20] sm:$0xf]
      %v677 = vld [vmem:[%s323 + $0x24] sm:$0xf]
      %v678 = vld [vmem:[%s323 + $0x28] sm:$0xf]
      %v679 = vld [vmem:[%s323 + $0x2c] sm:$0xf]
      %v680 = vld [vmem:[%s323 + $0x30] sm:$0xf]
      %v681 = vld [vmem:[%s323 + $0x34] sm:$0xf]
      %v682 = vld [vmem:[%s323 + $0x38] sm:$0xf]
      %v683 = vld [vmem:[%s323 + $0x3c] sm:$0xf]
      %vm684 = vsmask.f32 3328
      %vm685 = vsmask.f32 7440
      %vm686 = vmor %vm684, %vm685
      %v688 = vshrl.u32 %v614, 16
      %v690 = vrot.slane %v688, 4
      %v691 = vshll.u32 %v614, 16
      %v693 = vrot.slane %v691, 5
      %v694 = vor.u32 %v690, %v693
      %v695 = vrot.slane %v694, 4
      %v697 = vshll.u32 %v615, 16
      %v699 = vrot.slane %v697, 5
      %v700 = vsel %vm686, %v695, %v699
      %v701 = vshrl.u32 %v615, 16
      %v703 = vrot.slane %v701, 4
      %v704 = vor.u32 %v703, %v699
      %v705 = vrot.slane %v704, 4
      %v707 = vshll.u32 %v616, 16
      %v709 = vrot.slane %v707, 5
      %v710 = vsel %vm686, %v705, %v709
      %v712 = vshrl.u32 %v617, 16
      %v714 = vrot.slane %v712, 4
      %v715 = vshll.u32 %v617, 16
      %v717 = vrot.slane %v715, 5
      %v718 = vor.u32 %v714, %v717
      %v719 = vrot.slane %v718, 4
      %v721 = vshll.u32 %v618, 16
      %v723 = vrot.slane %v721, 5
      %v724 = vsel %vm686, %v719, %v723
      %v725 = vshrl.u32 %v618, 16
      %v727 = vrot.slane %v725, 4
      %v728 = vor.u32 %v727, %v723
      %v729 = vrot.slane %v728, 4
      %v731 = vshll.u32 %v619, 16
      %v733 = vrot.slane %v731, 5
      %v734 = vsel %vm686, %v729, %v733
      %v736 = vshrl.u32 %v620, 16
      %v738 = vrot.slane %v736, 4
      %v739 = vshll.u32 %v620, 16
      %v741 = vrot.slane %v739, 5
      %v742 = vor.u32 %v738, %v741
      %v743 = vrot.slane %v742, 4
      %v745 = vshll.u32 %v621, 16
      %v747 = vrot.slane %v745, 5
      %v748 = vsel %vm686, %v743, %v747
      %v749 = vshrl.u32 %v621, 16
      %v751 = vrot.slane %v749, 4
      %v752 = vor.u32 %v751, %v747
      %v753 = vrot.slane %v752, 4
      %v755 = vshll.u32 %v622, 16
      %v757 = vrot.slane %v755, 5
      %v758 = vsel %vm686, %v753, %v757
      %v760 = vshrl.u32 %v623, 16
      %v762 = vrot.slane %v760, 4
      %v763 = vshll.u32 %v623, 16
      %v765 = vrot.slane %v763, 5
      %v766 = vor.u32 %v762, %v765
      %v767 = vrot.slane %v766, 4
      %v769 = vshll.u32 %v624, 16
      %v771 = vrot.slane %v769, 5
      %v772 = vsel %vm686, %v767, %v771
      %v773 = vshrl.u32 %v624, 16
      %v775 = vrot.slane %v773, 4
      %v776 = vor.u32 %v775, %v771
      %v777 = vrot.slane %v776, 4
      %v779 = vshll.u32 %v625, 16
      %v781 = vrot.slane %v779, 5
      %v782 = vsel %vm686, %v777, %v781
      %v784 = vshrl.u32 %v626, 16
      %v786 = vrot.slane %v784, 4
      %v787 = vshll.u32 %v626, 16
      %v789 = vrot.slane %v787, 5
      %v790 = vor.u32 %v786, %v789
      %v791 = vrot.slane %v790, 4
      %v793 = vshll.u32 %v627, 16
      %v795 = vrot.slane %v793, 5
      %v796 = vsel %vm686, %v791, %v795
      %v797 = vshrl.u32 %v627, 16
      %v799 = vrot.slane %v797, 4
      %v800 = vor.u32 %v799, %v795
      %v801 = vrot.slane %v800, 4
      %v803 = vshll.u32 %v628, 16
      %v805 = vrot.slane %v803, 5
      %v806 = vsel %vm686, %v801, %v805
      %v808 = vshrl.u32 %v629, 16
      %v810 = vrot.slane %v808, 4
      %v811 = vshll.u32 %v629, 16
      %v813 = vrot.slane %v811, 5
      %v814 = vor.u32 %v810, %v813
      %v815 = vrot.slane %v814, 4
      %v817 = vshll.u32 %v630, 16
      %v819 = vrot.slane %v817, 5
      %v820 = vsel %vm686, %v815, %v819
      %v821 = vshrl.u32 %v630, 16
      %v823 = vrot.slane %v821, 4
      %v824 = vor.u32 %v823, %v819
      %v825 = vrot.slane %v824, 4
      %v827 = vshll.u32 %v631, 16
      %v829 = vrot.slane %v827, 5
      %v830 = vsel %vm686, %v825, %v829
      %v832 = vshrl.u32 %v632, 16
      %v834 = vrot.slane %v832, 4
      %v835 = vshll.u32 %v632, 16
      %v837 = vrot.slane %v835, 5
      %v838 = vor.u32 %v834, %v837
      %v839 = vrot.slane %v838, 4
      %v841 = vshll.u32 %v633, 16
      %v843 = vrot.slane %v841, 5
      %v844 = vsel %vm686, %v839, %v843
      %v845 = vshrl.u32 %v633, 16
      %v847 = vrot.slane %v845, 4
      %v848 = vor.u32 %v847, %v843
      %v849 = vrot.slane %v848, 4
      %v851 = vshll.u32 %v634, 16
      %v853 = vrot.slane %v851, 5
      %v854 = vsel %vm686, %v849, %v853
      %v856 = vshrl.u32 %v635, 16
      %v858 = vrot.slane %v856, 4
      %v859 = vshll.u32 %v635, 16
      %v861 = vrot.slane %v859, 5
      %v862 = vor.u32 %v858, %v861
      %v863 = vrot.slane %v862, 4
      %v865 = vshll.u32 %v636, 16
      %v867 = vrot.slane %v865, 5
      %v868 = vsel %vm686, %v863, %v867
      %v869 = vshrl.u32 %v636, 16
      %v871 = vrot.slane %v869, 4
      %v872 = vor.u32 %v871, %v867
      %v873 = vrot.slane %v872, 4
      %v875 = vshll.u32 %v637, 16
      %v877 = vrot.slane %v875, 5
      %v878 = vsel %vm686, %v873, %v877
      %v880 = vshrl.u32 %v638, 16
      %v882 = vrot.slane %v880, 4
      %v883 = vshll.u32 %v638, 16
      %v885 = vrot.slane %v883, 5
      %v886 = vor.u32 %v882, %v885
      %v887 = vrot.slane %v886, 4
      %v889 = vshll.u32 %v639, 16
      %v891 = vrot.slane %v889, 5
      %v892 = vsel %vm686, %v887, %v891
      %v893 = vshrl.u32 %v639, 16
      %v895 = vrot.slane %v893, 4
      %v896 = vor.u32 %v895, %v891
      %v897 = vrot.slane %v896, 4
      %v899 = vshll.u32 %v640, 16
      %v901 = vrot.slane %v899, 5
      %v902 = vsel %vm686, %v897, %v901
      %v904 = vshrl.u32 %v641, 16
      %v906 = vrot.slane %v904, 4
      %v907 = vshll.u32 %v641, 16
      %v909 = vrot.slane %v907, 5
      %v910 = vor.u32 %v906, %v909
      %v911 = vrot.slane %v910, 4
      %v913 = vshll.u32 %v642, 16
      %v915 = vrot.slane %v913, 5
      %v916 = vsel %vm686, %v911, %v915
      %v917 = vshrl.u32 %v642, 16
      %v919 = vrot.slane %v917, 4
      %v920 = vor.u32 %v919, %v915
      %v921 = vrot.slane %v920, 4
      %v923 = vshll.u32 %v643, 16
      %v925 = vrot.slane %v923, 5
      %v926 = vsel %vm686, %v921, %v925
      %v928 = vshrl.u32 %v644, 16
      %v930 = vrot.slane %v928, 4
      %v931 = vshll.u32 %v644, 16
      %v933 = vrot.slane %v931, 5
      %v934 = vor.u32 %v930, %v933
      %v935 = vrot.slane %v934, 4
      %v937 = vshll.u32 %v645, 16
      %v939 = vrot.slane %v937, 5
      %v940 = vsel %vm686, %v935, %v939
      %v941 = vshrl.u32 %v645, 16
      %v943 = vrot.slane %v941, 4
      %v944 = vor.u32 %v943, %v939
      %v945 = vrot.slane %v944, 4
      %v947 = vshll.u32 %v646, 16
      %v949 = vrot.slane %v947, 5
      %v950 = vsel %vm686, %v945, %v949
      %v952 = vshrl.u32 %v647, 16
      %v954 = vrot.slane %v952, 4
      %v955 = vshll.u32 %v647, 16
      %v957 = vrot.slane %v955, 5
      %v958 = vor.u32 %v954, %v957
      %v959 = vrot.slane %v958, 4
      %v961 = vshll.u32 %v648, 16
      %v963 = vrot.slane %v961, 5
      %v964 = vsel %vm686, %v959, %v963
      %v965 = vshrl.u32 %v648, 16
      %v967 = vrot.slane %v965, 4
      %v968 = vor.u32 %v967, %v963
      %v969 = vrot.slane %v968, 4
      %v971 = vshll.u32 %v649, 16
      %v973 = vrot.slane %v971, 5
      %v974 = vsel %vm686, %v969, %v973
      %v976 = vshrl.u32 %v650, 16
      %v978 = vrot.slane %v976, 4
      %v979 = vshll.u32 %v650, 16
      %v981 = vrot.slane %v979, 5
      %v982 = vor.u32 %v978, %v981
      %v983 = vrot.slane %v982, 4
      %v985 = vshll.u32 %v651, 16
      %v987 = vrot.slane %v985, 5
      %v988 = vsel %vm686, %v983, %v987
      %v989 = vshrl.u32 %v651, 16
      %v991 = vrot.slane %v989, 4
      %v992 = vor.u32 %v991, %v987
      %v993 = vrot.slane %v992, 4
      %v995 = vshll.u32 %v652, 16
      %v997 = vrot.slane %v995, 5
      %v998 = vsel %vm686, %v993, %v997
      %v1000 = vshrl.u32 %v653, 16
      %v1002 = vrot.slane %v1000, 4
      %v1003 = vshll.u32 %v653, 16
      %v1005 = vrot.slane %v1003, 5
      %v1006 = vor.u32 %v1002, %v1005
      %v1007 = vrot.slane %v1006, 4
      %v1009 = vshll.u32 %v654, 16
      %v1011 = vrot.slane %v1009, 5
      %v1012 = vsel %vm686, %v1007, %v1011
      %v1013 = vshrl.u32 %v654, 16
      %v1015 = vrot.slane %v1013, 4
      %v1016 = vor.u32 %v1015, %v1011
      %v1017 = vrot.slane %v1016, 4
      %v1019 = vshll.u32 %v655, 16
      %v1021 = vrot.slane %v1019, 5
      %v1022 = vsel %vm686, %v1017, %v1021
      %v1024 = vshrl.u32 %v656, 16
      %v1026 = vrot.slane %v1024, 4
      %v1027 = vshll.u32 %v656, 16
      %v1029 = vrot.slane %v1027, 5
      %v1030 = vor.u32 %v1026, %v1029
      %v1031 = vrot.slane %v1030, 4
      %v1033 = vshll.u32 %v657, 16
      %v1035 = vrot.slane %v1033, 5
      %v1036 = vsel %vm686, %v1031, %v1035
      %v1037 = vshrl.u32 %v657, 16
      %v1039 = vrot.slane %v1037, 4
      %v1040 = vor.u32 %v1039, %v1035
      %v1041 = vrot.slane %v1040, 4
      %v1043 = vshll.u32 %v658, 16
      %v1045 = vrot.slane %v1043, 5
      %v1046 = vsel %vm686, %v1041, %v1045
      %v1048 = vshrl.u32 %v659, 16
      %v1050 = vrot.slane %v1048, 4
      %v1051 = vshll.u32 %v659, 16
      %v1053 = vrot.slane %v1051, 5
      %v1054 = vor.u32 %v1050, %v1053
      %v1055 = vrot.slane %v1054, 4
      %v1057 = vshll.u32 %v660, 16
      %v1059 = vrot.slane %v1057, 5
      %v1060 = vsel %vm686, %v1055, %v1059
      %v1061 = vshrl.u32 %v660, 16
      %v1063 = vrot.slane %v1061, 4
      %v1064 = vor.u32 %v1063, %v1059
      %v1065 = vrot.slane %v1064, 4
      %v1067 = vshll.u32 %v661, 16
      %v1069 = vrot.slane %v1067, 5
      %v1070 = vsel %vm686, %v1065, %v1069
      %s1071 = scalar_lea.vmem %s323, 64
      %v1072 = vld [vmem:[%s1071] sm:$0xf]
      %v1073 = vld [vmem:[%s1071 + $0x4] sm:$0xf]
      %v1074 = vld [vmem:[%s1071 + $0x8] sm:$0xf]
      %v1075 = vld [vmem:[%s1071 + $0xc] sm:$0xf]
      %v1076 = vld [vmem:[%s1071 + $0x10] sm:$0xf]
      %v1077 = vld [vmem:[%s1071 + $0x14] sm:$0xf]
      %v1078 = vld [vmem:[%s1071 + $0x18] sm:$0xf]
      %v1079 = vld [vmem:[%s1071 + $0x1c] sm:$0xf]
      %v1080 = vld [vmem:[%s1071 + $0x20] sm:$0xf]
      %v1081 = vld [vmem:[%s1071 + $0x24] sm:$0xf]
      %v1082 = vld [vmem:[%s1071 + $0x28] sm:$0xf]
      %v1083 = vld [vmem:[%s1071 + $0x2c] sm:$0xf]
      %v1084 = vld [vmem:[%s1071 + $0x30] sm:$0xf]
      %v1085 = vld [vmem:[%s1071 + $0x34] sm:$0xf]
      %v1086 = vld [vmem:[%s1071 + $0x38] sm:$0xf]
      %v1087 = vld [vmem:[%s1071 + $0x3c] sm:$0xf]
      %v1088 = vunpack.c.l.b16 %v700
      %v1089 = vunpack.c.l.b16 %v710
      %v1090 = vunpack.c.l.b16 %v724
      %v1091 = vunpack.c.l.b16 %v734
      %v1092 = vunpack.c.l.b16 %v748
      %v1093 = vunpack.c.l.b16 %v758
      %v1094 = vunpack.c.l.b16 %v772
      %v1095 = vunpack.c.l.b16 %v782
      %v1096 = vunpack.c.l.b16 %v796
      %v1097 = vunpack.c.l.b16 %v806
      %v1098 = vunpack.c.l.b16 %v820
      %v1099 = vunpack.c.l.b16 %v830
      %v1100 = vunpack.c.l.b16 %v844
      %v1101 = vunpack.c.l.b16 %v854
      %v1102 = vunpack.c.l.b16 %v868
      %v1103 = vunpack.c.l.b16 %v878
      %v1104 = vunpack.c.l.b16 %v892
      %v1105 = vunpack.c.l.b16 %v902
      %v1106 = vunpack.c.l.b16 %v916
      %v1107 = vunpack.c.l.b16 %v926
      %v1108 = vunpack.c.l.b16 %v940
      %v1109 = vunpack.c.l.b16 %v950
      %v1110 = vunpack.c.l.b16 %v964
      %v1111 = vunpack.c.l.b16 %v974
      %v1112 = vunpack.c.l.b16 %v988
      %v1113 = vunpack.c.l.b16 %v998
      %v1114 = vunpack.c.l.b16 %v1012
      %v1115 = vunpack.c.l.b16 %v1022
      %v1116 = vunpack.c.l.b16 %v1036
      %v1117 = vunpack.c.l.b16 %v1046
      %v1118 = vunpack.c.l.b16 %v1060
      %v1119 = vunpack.c.l.b16 %v1070
      %v1120 = vpack.c.b16 %v1089, %v1088
      %v1121 = vpack.c.b16 %v1091, %v1090
      %v1122 = vpack.c.b16 %v1093, %v1092
      %v1123 = vpack.c.b16 %v1095, %v1094
      %v1124 = vpack.c.b16 %v1097, %v1096
      %v1125 = vpack.c.b16 %v1099, %v1098
      %v1126 = vpack.c.b16 %v1101, %v1100
      %v1127 = vpack.c.b16 %v1103, %v1102
      %v1128 = vpack.c.b16 %v1105, %v1104
      %v1129 = vpack.c.b16 %v1107, %v1106
      %v1130 = vpack.c.b16 %v1109, %v1108
      %v1131 = vpack.c.b16 %v1111, %v1110
      %v1132 = vpack.c.b16 %v1113, %v1112
      %v1133 = vpack.c.b16 %v1115, %v1114
      %v1134 = vpack.c.b16 %v1117, %v1116
      %v1135 = vpack.c.b16 %v1119, %v1118
      %v1168 = vunpack.c.l.b16 %v1072
      %v1169 = vunpack.c.l.b16 %v1073
      %v1170 = vunpack.c.l.b16 %v1074
      %v1171 = vunpack.c.l.b16 %v1075
      %v1172 = vunpack.c.l.b16 %v1076
      %v1173 = vunpack.c.l.b16 %v1077
      %v1174 = vunpack.c.l.b16 %v1078
      %v1175 = vunpack.c.l.b16 %v1079
      %v1176 = vunpack.c.l.b16 %v1080
      %v1177 = vunpack.c.l.b16 %v1081
      %v1178 = vunpack.c.l.b16 %v1082
      %v1179 = vunpack.c.l.b16 %v1083
      %v1180 = vunpack.c.l.b16 %v1084
      %v1181 = vunpack.c.l.b16 %v1085
      %v1182 = vunpack.c.l.b16 %v1086
      %v1183 = vunpack.c.l.b16 %v1087
      %v1184 = vpack.c.b16 %v1169, %v1168
      %v1185 = vpack.c.b16 %v1171, %v1170
      %v1186 = vpack.c.b16 %v1173, %v1172
      %v1187 = vpack.c.b16 %v1175, %v1174
      %v1188 = vpack.c.b16 %v1177, %v1176
      %v1189 = vpack.c.b16 %v1179, %v1178
      %v1190 = vpack.c.b16 %v1181, %v1180
      %v1191 = vpack.c.b16 %v1183, %v1182
      %1200 = vmatpush.bf16.msra.mxu0 %v1191
      %1201 = vmatpush.bf16.msra.mxu0 %v1190
      %1202 = vmatpush.bf16.msra.mxu0 %v1189
      %1203 = vmatpush.bf16.msra.mxu0 %v1188
      %1204 = vmatpush.bf16.msra.mxu0 %v1187
      %1205 = vmatpush.bf16.msra.mxu0 %v1186
      %1206 = vmatpush.bf16.msra.mxu0 %v1185
      %1207 = vmatpush.bf16.msra.mxu0 %v1184
      %1208 = vmatmul.bf16.gmra.mxu0 %v1120
      %v1209 = vpop.f32.mrf.mxu0
      %v1210 = vadd.f32 0.0, %v1209
      %v1211 = vpop.f32.mrf.mxu0
      %v1212 = vadd.f32 0.0, %v1211
      %1213 = vmatmul.bf16.gmra.mxu0 %v1121
      %v1214 = vpop.f32.mrf.mxu0
      %v1215 = vadd.f32 0.0, %v1214
      %v1216 = vpop.f32.mrf.mxu0
      %v1217 = vadd.f32 0.0, %v1216
      %1218 = vmatmul.bf16.gmra.mxu0 %v1122
      %v1219 = vpop.f32.mrf.mxu0
      %v1220 = vadd.f32 0.0, %v1219
      %v1221 = vpop.f32.mrf.mxu0
      %v1222 = vadd.f32 0.0, %v1221
      %1223 = vmatmul.bf16.gmra.mxu0 %v1123
      %v1224 = vpop.f32.mrf.mxu0
      %v1225 = vadd.f32 0.0, %v1224
      %v1226 = vpop.f32.mrf.mxu0
      %v1227 = vadd.f32 0.0, %v1226
      %1228 = vmatmul.bf16.gmra.mxu0 %v1124
      %v1229 = vpop.f32.mrf.mxu0
      %v1230 = vadd.f32 0.0, %v1229
      %v1231 = vpop.f32.mrf.mxu0
      %v1232 = vadd.f32 0.0, %v1231
      %1233 = vmatmul.bf16.gmra.mxu0 %v1125
      %v1234 = vpop.f32.mrf.mxu0
      %v1235 = vadd.f32 0.0, %v1234
      %v1236 = vpop.f32.mrf.mxu0
      %v1237 = vadd.f32 0.0, %v1236
      %1238 = vmatmul.bf16.gmra.mxu0 %v1126
      %v1239 = vpop.f32.mrf.mxu0
      %v1240 = vadd.f32 0.0, %v1239
      %v1241 = vpop.f32.mrf.mxu0
      %v1242 = vadd.f32 0.0, %v1241
      %1243 = vmatmul.bf16.gmra.mxu0 %v1127
      %v1244 = vpop.f32.mrf.mxu0
      %v1245 = vadd.f32 0.0, %v1244
      %v1246 = vpop.f32.mrf.mxu0
      %v1247 = vadd.f32 0.0, %v1246
      %1248 = vmatmul.bf16.gmra.mxu0 %v1128
      %v1249 = vpop.f32.mrf.mxu0
      %v1250 = vadd.f32 0.0, %v1249
      %v1251 = vpop.f32.mrf.mxu0
      %v1252 = vadd.f32 0.0, %v1251
      %1253 = vmatmul.bf16.gmra.mxu0 %v1129
      %v1254 = vpop.f32.mrf.mxu0
      %v1255 = vadd.f32 0.0, %v1254
      %v1256 = vpop.f32.mrf.mxu0
      %v1257 = vadd.f32 0.0, %v1256
      %1258 = vmatmul.bf16.gmra.mxu0 %v1130
      %v1259 = vpop.f32.mrf.mxu0
      %v1260 = vadd.f32 0.0, %v1259
      %v1261 = vpop.f32.mrf.mxu0
      %v1262 = vadd.f32 0.0, %v1261
      %1263 = vmatmul.bf16.gmra.mxu0 %v1131
      %v1264 = vpop.f32.mrf.mxu0
      %v1265 = vadd.f32 0.0, %v1264
      %v1266 = vpop.f32.mrf.mxu0
      %v1267 = vadd.f32 0.0, %v1266
      %1268 = vmatmul.bf16.gmra.mxu0 %v1132
      %v1269 = vpop.f32.mrf.mxu0
      %v1270 = vadd.f32 0.0, %v1269
      %v1271 = vpop.f32.mrf.mxu0
      %v1272 = vadd.f32 0.0, %v1271
      %1273 = vmatmul.bf16.gmra.mxu0 %v1133
      %v1274 = vpop.f32.mrf.mxu0
      %v1275 = vadd.f32 0.0, %v1274
      %v1276 = vpop.f32.mrf.mxu0
      %v1277 = vadd.f32 0.0, %v1276
      %1278 = vmatmul.bf16.gmra.mxu0 %v1134
      %v1279 = vpop.f32.mrf.mxu0
      %v1280 = vadd.f32 0.0, %v1279
      %v1281 = vpop.f32.mrf.mxu0
      %v1282 = vadd.f32 0.0, %v1281
      %1283 = vmatmul.bf16.gmra.mxu0 %v1135
      %v1284 = vpop.f32.mrf.mxu0
      %v1285 = vadd.f32 0.0, %v1284
      %v1286 = vpop.f32.mrf.mxu0
      %v1287 = vadd.f32 0.0, %v1286
      %1288 = vdwg.mxu0
      %v1321 = vunpack.c.l.b16 %v614
      %v1322 = vunpack.c.l.b16 %v615
      %v1323 = vunpack.c.l.b16 %v617
      %v1324 = vunpack.c.l.b16 %v618
      %v1325 = vunpack.c.l.b16 %v620
      %v1326 = vunpack.c.l.b16 %v621
      %v1327 = vunpack.c.l.b16 %v623
      %v1328 = vunpack.c.l.b16 %v624
      %v1329 = vunpack.c.l.b16 %v626
      %v1330 = vunpack.c.l.b16 %v627
      %v1331 = vunpack.c.l.b16 %v629
      %v1332 = vunpack.c.l.b16 %v630
      %v1333 = vunpack.c.l.b16 %v632
      %v1334 = vunpack.c.l.b16 %v633
      %v1335 = vunpack.c.l.b16 %v635
      %v1336 = vunpack.c.l.b16 %v636
      %v1337 = vunpack.c.l.b16 %v638
      %v1338 = vunpack.c.l.b16 %v639
      %v1339 = vunpack.c.l.b16 %v641
      %v1340 = vunpack.c.l.b16 %v642
      %v1341 = vunpack.c.l.b16 %v644
      %v1342 = vunpack.c.l.b16 %v645
      %v1343 = vunpack.c.l.b16 %v647
      %v1344 = vunpack.c.l.b16 %v648
      %v1345 = vunpack.c.l.b16 %v650
      %v1346 = vunpack.c.l.b16 %v651
      %v1347 = vunpack.c.l.b16 %v653
      %v1348 = vunpack.c.l.b16 %v654
      %v1349 = vunpack.c.l.b16 %v656
      %v1350 = vunpack.c.l.b16 %v657
      %v1351 = vunpack.c.l.b16 %v659
      %v1352 = vunpack.c.l.b16 %v660
      %v1353 = vpack.c.b16 %v1322, %v1321
      %v1354 = vpack.c.b16 %v1324, %v1323
      %v1355 = vpack.c.b16 %v1326, %v1325
      %v1356 = vpack.c.b16 %v1328, %v1327
      %v1357 = vpack.c.b16 %v1330, %v1329
      %v1358 = vpack.c.b16 %v1332, %v1331
      %v1359 = vpack.c.b16 %v1334, %v1333
      %v1360 = vpack.c.b16 %v1336, %v1335
      %v1361 = vpack.c.b16 %v1338, %v1337
      %v1362 = vpack.c.b16 %v1340, %v1339
      %v1363 = vpack.c.b16 %v1342, %v1341
      %v1364 = vpack.c.b16 %v1344, %v1343
      %v1365 = vpack.c.b16 %v1346, %v1345
      %v1366 = vpack.c.b16 %v1348, %v1347
      %v1367 = vpack.c.b16 %v1350, %v1349
      %v1368 = vpack.c.b16 %v1352, %v1351
      %v1401 = vunpack.c.l.b16 %v668
      %v1402 = vunpack.c.l.b16 %v669
      %v1403 = vunpack.c.l.b16 %v670
      %v1404 = vunpack.c.l.b16 %v671
      %v1405 = vunpack.c.l.b16 %v672
      %v1406 = vunpack.c.l.b16 %v673
      %v1407 = vunpack.c.l.b16 %v674
      %v1408 = vunpack.c.l.b16 %v675
      %v1409 = vunpack.c.l.b16 %v676
      %v1410 = vunpack.c.l.b16 %v677
      %v1411 = vunpack.c.l.b16 %v678
      %v1412 = vunpack.c.l.b16 %v679
      %v1413 = vunpack.c.l.b16 %v680
      %v1414 = vunpack.c.l.b16 %v681
      %v1415 = vunpack.c.l.b16 %v682
      %v1416 = vunpack.c.l.b16 %v683
      %v1417 = vpack.c.b16 %v1402, %v1401
      %v1418 = vpack.c.b16 %v1404, %v1403
      %v1419 = vpack.c.b16 %v1406, %v1405
      %v1420 = vpack.c.b16 %v1408, %v1407
      %v1421 = vpack.c.b16 %v1410, %v1409
      %v1422 = vpack.c.b16 %v1412, %v1411
      %v1423 = vpack.c.b16 %v1414, %v1413
      %v1424 = vpack.c.b16 %v1416, %v1415
      %1433 = vmatpush.bf16.msra.mxu0 %v1424
      %1434 = vmatpush.bf16.msra.mxu0 %v1423
      %1435 = vmatpush.bf16.msra.mxu0 %v1422
      %1436 = vmatpush.bf16.msra.mxu0 %v1421
      %1437 = vmatpush.bf16.msra.mxu0 %v1420
      %1438 = vmatpush.bf16.msra.mxu0 %v1419
      %1439 = vmatpush.bf16.msra.mxu0 %v1418
      %1440 = vmatpush.bf16.msra.mxu0 %v1417
      %1441 = vmatmul.bf16.gmra.mxu0 %v1353
      %v1442 = vpop.f32.mrf.mxu0
      %v1443 = vadd.f32 %v1210, %v1442
      %v1444 = vpop.f32.mrf.mxu0
      %v1445 = vadd.f32 %v1212, %v1444
      %1446 = vmatmul.bf16.gmra.mxu0 %v1354
      %v1447 = vpop.f32.mrf.mxu0
      %v1448 = vadd.f32 %v1215, %v1447
      %v1449 = vpop.f32.mrf.mxu0
      %v1450 = vadd.f32 %v1217, %v1449
      %1451 = vmatmul.bf16.gmra.mxu0 %v1355
      %v1452 = vpop.f32.mrf.mxu0
      %v1453 = vadd.f32 %v1220, %v1452
      %v1454 = vpop.f32.mrf.mxu0
      %v1455 = vadd.f32 %v1222, %v1454
      %1456 = vmatmul.bf16.gmra.mxu0 %v1356
      %v1457 = vpop.f32.mrf.mxu0
      %v1458 = vadd.f32 %v1225, %v1457
      %v1459 = vpop.f32.mrf.mxu0
      %v1460 = vadd.f32 %v1227, %v1459
      %1461 = vmatmul.bf16.gmra.mxu0 %v1357
      %v1462 = vpop.f32.mrf.mxu0
      %v1463 = vadd.f32 %v1230, %v1462
      %v1464 = vpop.f32.mrf.mxu0
      %v1465 = vadd.f32 %v1232, %v1464
      %1466 = vmatmul.bf16.gmra.mxu0 %v1358
      %v1467 = vpop.f32.mrf.mxu0
      %v1468 = vadd.f32 %v1235, %v1467
      %v1469 = vpop.f32.mrf.mxu0
      %v1470 = vadd.f32 %v1237, %v1469
      %1471 = vmatmul.bf16.gmra.mxu0 %v1359
      %v1472 = vpop.f32.mrf.mxu0
      %v1473 = vadd.f32 %v1240, %v1472
      %v1474 = vpop.f32.mrf.mxu0
      %v1475 = vadd.f32 %v1242, %v1474
      %1476 = vmatmul.bf16.gmra.mxu0 %v1360
      %v1477 = vpop.f32.mrf.mxu0
      %v1478 = vadd.f32 %v1245, %v1477
      %v1479 = vpop.f32.mrf.mxu0
      %v1480 = vadd.f32 %v1247, %v1479
      %1481 = vmatmul.bf16.gmra.mxu0 %v1361
      %v1482 = vpop.f32.mrf.mxu0
      %v1483 = vadd.f32 %v1250, %v1482
      %v1484 = vpop.f32.mrf.mxu0
      %v1485 = vadd.f32 %v1252, %v1484
      %1486 = vmatmul.bf16.gmra.mxu0 %v1362
      %v1487 = vpop.f32.mrf.mxu0
      %v1488 = vadd.f32 %v1255, %v1487
      %v1489 = vpop.f32.mrf.mxu0
      %v1490 = vadd.f32 %v1257, %v1489
      %1491 = vmatmul.bf16.gmra.mxu0 %v1363
      %v1492 = vpop.f32.mrf.mxu0
      %v1493 = vadd.f32 %v1260, %v1492
      %v1494 = vpop.f32.mrf.mxu0
      %v1495 = vadd.f32 %v1262, %v1494
      %1496 = vmatmul.bf16.gmra.mxu0 %v1364
      %v1497 = vpop.f32.mrf.mxu0
      %v1498 = vadd.f32 %v1265, %v1497
      %v1499 = vpop.f32.mrf.mxu0
      %v1500 = vadd.f32 %v1267, %v1499
      %1501 = vmatmul.bf16.gmra.mxu0 %v1365
      %v1502 = vpop.f32.mrf.mxu0
      %v1503 = vadd.f32 %v1270, %v1502
      %v1504 = vpop.f32.mrf.mxu0
      %v1505 = vadd.f32 %v1272, %v1504
      %1506 = vmatmul.bf16.gmra.mxu0 %v1366
      %v1507 = vpop.f32.mrf.mxu0
      %v1508 = vadd.f32 %v1275, %v1507
      %v1509 = vpop.f32.mrf.mxu0
      %v1510 = vadd.f32 %v1277, %v1509
      %1511 = vmatmul.bf16.gmra.mxu0 %v1367
      %v1512 = vpop.f32.mrf.mxu0
      %v1513 = vadd.f32 %v1280, %v1512
      %v1514 = vpop.f32.mrf.mxu0
      %v1515 = vadd.f32 %v1282, %v1514
      %1516 = vmatmul.bf16.gmra.mxu0 %v1368
      %v1517 = vpop.f32.mrf.mxu0
      %v1518 = vadd.f32 %v1285, %v1517
      %v1519 = vpop.f32.mrf.mxu0
      %v1520 = vadd.f32 %v1287, %v1519
      %1521 = vdwg.mxu0
      %vm1538 = vcmask 1042432
      %vm1539 = vcmask 1046532
      %vm1540 = vmor %vm1538, %vm1539
      %v1541 = vrot.slane %v614, 5
      %v1542 = vrot.slane %v1541, 4
      %v1543 = vrot.slane %v615, 5
      %v1544 = vsel %vm1540, %v1542, %v1543
      %v1545 = vrot.slane %v1543, 4
      %v1546 = vrot.slane %v616, 5
      %v1547 = vsel %vm1540, %v1545, %v1546
      %v1548 = vrot.slane %v617, 5
      %v1549 = vrot.slane %v1548, 4
      %v1550 = vrot.slane %v618, 5
      %v1551 = vsel %vm1540, %v1549, %v1550
      %v1552 = vrot.slane %v1550, 4
      %v1553 = vrot.slane %v619, 5
      %v1554 = vsel %vm1540, %v1552, %v1553
      %v1555 = vrot.slane %v620, 5
      %v1556 = vrot.slane %v1555, 4
      %v1557 = vrot.slane %v621, 5
      %v1558 = vsel %vm1540, %v1556, %v1557
      %v1559 = vrot.slane %v1557, 4
      %v1560 = vrot.slane %v622, 5
      %v1561 = vsel %vm1540, %v1559, %v1560
      %v1562 = vrot.slane %v623, 5
      %v1563 = vrot.slane %v1562, 4
      %v1564 = vrot.slane %v624, 5
      %v1565 = vsel %vm1540, %v1563, %v1564
      %v1566 = vrot.slane %v1564, 4
      %v1567 = vrot.slane %v625, 5
      %v1568 = vsel %vm1540, %v1566, %v1567
      %v1569 = vrot.slane %v626, 5
      %v1570 = vrot.slane %v1569, 4
      %v1571 = vrot.slane %v627, 5
      %v1572 = vsel %vm1540, %v1570, %v1571
      %v1573 = vrot.slane %v1571, 4
      %v1574 = vrot.slane %v628, 5
      %v1575 = vsel %vm1540, %v1573, %v1574
      %v1576 = vrot.slane %v629, 5
      %v1577 = vrot.slane %v1576, 4
      %v1578 = vrot.slane %v630, 5
      %v1579 = vsel %vm1540, %v1577, %v1578
      %v1580 = vrot.slane %v1578, 4
      %v1581 = vrot.slane %v631, 5
      %v1582 = vsel %vm1540, %v1580, %v1581
      %v1583 = vrot.slane %v632, 5
      %v1584 = vrot.slane %v1583, 4
      %v1585 = vrot.slane %v633, 5
      %v1586 = vsel %vm1540, %v1584, %v1585
      %v1587 = vrot.slane %v1585, 4
      %v1588 = vrot.slane %v634, 5
      %v1589 = vsel %vm1540, %v1587, %v1588
      %v1590 = vrot.slane %v635, 5
      %v1591 = vrot.slane %v1590, 4
      %v1592 = vrot.slane %v636, 5
      %v1593 = vsel %vm1540, %v1591, %v1592
      %v1594 = vrot.slane %v1592, 4
      %v1595 = vrot.slane %v637, 5
      %v1596 = vsel %vm1540, %v1594, %v1595
      %v1597 = vrot.slane %v638, 5
      %v1598 = vrot.slane %v1597, 4
      %v1599 = vrot.slane %v639, 5
      %v1600 = vsel %vm1540, %v1598, %v1599
      %v1601 = vrot.slane %v1599, 4
      %v1602 = vrot.slane %v640, 5
      %v1603 = vsel %vm1540, %v1601, %v1602
      %v1604 = vrot.slane %v641, 5
      %v1605 = vrot.slane %v1604, 4
      %v1606 = vrot.slane %v642, 5
      %v1607 = vsel %vm1540, %v1605, %v1606
      %v1608 = vrot.slane %v1606, 4
      %v1609 = vrot.slane %v643, 5
      %v1610 = vsel %vm1540, %v1608, %v1609
      %v1611 = vrot.slane %v644, 5
      %v1612 = vrot.slane %v1611, 4
      %v1613 = vrot.slane %v645, 5
      %v1614 = vsel %vm1540, %v1612, %v1613
      %v1615 = vrot.slane %v1613, 4
      %v1616 = vrot.slane %v646, 5
      %v1617 = vsel %vm1540, %v1615, %v1616
      %v1618 = vrot.slane %v647, 5
      %v1619 = vrot.slane %v1618, 4
      %v1620 = vrot.slane %v648, 5
      %v1621 = vsel %vm1540, %v1619, %v1620
      %v1622 = vrot.slane %v1620, 4
      %v1623 = vrot.slane %v649, 5
      %v1624 = vsel %vm1540, %v1622, %v1623
      %v1625 = vrot.slane %v650, 5
      %v1626 = vrot.slane %v1625, 4
      %v1627 = vrot.slane %v651, 5
      %v1628 = vsel %vm1540, %v1626, %v1627
      %v1629 = vrot.slane %v1627, 4
      %v1630 = vrot.slane %v652, 5
      %v1631 = vsel %vm1540, %v1629, %v1630
      %v1632 = vrot.slane %v653, 5
      %v1633 = vrot.slane %v1632, 4
      %v1634 = vrot.slane %v654, 5
      %v1635 = vsel %vm1540, %v1633, %v1634
      %v1636 = vrot.slane %v1634, 4
      %v1637 = vrot.slane %v655, 5
      %v1638 = vsel %vm1540, %v1636, %v1637
      %v1639 = vrot.slane %v656, 5
      %v1640 = vrot.slane %v1639, 4
      %v1641 = vrot.slane %v657, 5
      %v1642 = vsel %vm1540, %v1640, %v1641
      %v1643 = vrot.slane %v1641, 4
      %v1644 = vrot.slane %v658, 5
      %v1645 = vsel %vm1540, %v1643, %v1644
      %v1646 = vrot.slane %v659, 5
      %v1647 = vrot.slane %v1646, 4
      %v1648 = vrot.slane %v660, 5
      %v1649 = vsel %vm1540, %v1647, %v1648
      %v1650 = vrot.slane %v1648, 4
      %v1651 = vrot.slane %v661, 5
      %v1652 = vsel %vm1540, %v1650, %v1651
      %s1653 = scalar_lea.vmem %s323, 128
      %v1654 = vld [vmem:[%s1653] sm:$0xf]
      %v1655 = vld [vmem:[%s1653 + $0x4] sm:$0xf]
      %v1656 = vld [vmem:[%s1653 + $0x8] sm:$0xf]
      %v1657 = vld [vmem:[%s1653 + $0xc] sm:$0xf]
      %v1658 = vld [vmem:[%s1653 + $0x10] sm:$0xf]
      %v1659 = vld [vmem:[%s1653 + $0x14] sm:$0xf]
      %v1660 = vld [vmem:[%s1653 + $0x18] sm:$0xf]
      %v1661 = vld [vmem:[%s1653 + $0x1c] sm:$0xf]
      %v1662 = vld [vmem:[%s1653 + $0x20] sm:$0xf]
      %v1663 = vld [vmem:[%s1653 + $0x24] sm:$0xf]
      %v1664 = vld [vmem:[%s1653 + $0x28] sm:$0xf]
      %v1665 = vld [vmem:[%s1653 + $0x2c] sm:$0xf]
      %v1666 = vld [vmem:[%s1653 + $0x30] sm:$0xf]
      %v1667 = vld [vmem:[%s1653 + $0x34] sm:$0xf]
      %v1668 = vld [vmem:[%s1653 + $0x38] sm:$0xf]
      %v1669 = vld [vmem:[%s1653 + $0x3c] sm:$0xf]
      %v1670 = vunpack.c.l.b16 %v1544
      %v1671 = vunpack.c.l.b16 %v1547
      %v1672 = vunpack.c.l.b16 %v1551
      %v1673 = vunpack.c.l.b16 %v1554
      %v1674 = vunpack.c.l.b16 %v1558
      %v1675 = vunpack.c.l.b16 %v1561
      %v1676 = vunpack.c.l.b16 %v1565
      %v1677 = vunpack.c.l.b16 %v1568
      %v1678 = vunpack.c.l.b16 %v1572
      %v1679 = vunpack.c.l.b16 %v1575
      %v1680 = vunpack.c.l.b16 %v1579
      %v1681 = vunpack.c.l.b16 %v1582
      %v1682 = vunpack.c.l.b16 %v1586
      %v1683 = vunpack.c.l.b16 %v1589
      %v1684 = vunpack.c.l.b16 %v1593
      %v1685 = vunpack.c.l.b16 %v1596
      %v1686 = vunpack.c.l.b16 %v1600
      %v1687 = vunpack.c.l.b16 %v1603
      %v1688 = vunpack.c.l.b16 %v1607
      %v1689 = vunpack.c.l.b16 %v1610
      %v1690 = vunpack.c.l.b16 %v1614
      %v1691 = vunpack.c.l.b16 %v1617
      %v1692 = vunpack.c.l.b16 %v1621
      %v1693 = vunpack.c.l.b16 %v1624
      %v1694 = vunpack.c.l.b16 %v1628
      %v1695 = vunpack.c.l.b16 %v1631
      %v1696 = vunpack.c.l.b16 %v1635
      %v1697 = vunpack.c.l.b16 %v1638
      %v1698 = vunpack.c.l.b16 %v1642
      %v1699 = vunpack.c.l.b16 %v1645
      %v1700 = vunpack.c.l.b16 %v1649
      %v1701 = vunpack.c.l.b16 %v1652
      %v1702 = vpack.c.b16 %v1671, %v1670
      %v1703 = vpack.c.b16 %v1673, %v1672
      %v1704 = vpack.c.b16 %v1675, %v1674
      %v1705 = vpack.c.b16 %v1677, %v1676
      %v1706 = vpack.c.b16 %v1679, %v1678
      %v1707 = vpack.c.b16 %v1681, %v1680
      %v1708 = vpack.c.b16 %v1683, %v1682
      %v1709 = vpack.c.b16 %v1685, %v1684
      %v1710 = vpack.c.b16 %v1687, %v1686
      %v1711 = vpack.c.b16 %v1689, %v1688
      %v1712 = vpack.c.b16 %v1691, %v1690
      %v1713 = vpack.c.b16 %v1693, %v1692
      %v1714 = vpack.c.b16 %v1695, %v1694
      %v1715 = vpack.c.b16 %v1697, %v1696
      %v1716 = vpack.c.b16 %v1699, %v1698
      %v1717 = vpack.c.b16 %v1701, %v1700
      %v1750 = vunpack.c.l.b16 %v1654
      %v1751 = vunpack.c.l.b16 %v1655
      %v1752 = vunpack.c.l.b16 %v1656
      %v1753 = vunpack.c.l.b16 %v1657
      %v1754 = vunpack.c.l.b16 %v1658
      %v1755 = vunpack.c.l.b16 %v1659
      %v1756 = vunpack.c.l.b16 %v1660
      %v1757 = vunpack.c.l.b16 %v1661
      %v1758 = vunpack.c.l.b16 %v1662
      %v1759 = vunpack.c.l.b16 %v1663
      %v1760 = vunpack.c.l.b16 %v1664
      %v1761 = vunpack.c.l.b16 %v1665
      %v1762 = vunpack.c.l.b16 %v1666
      %v1763 = vunpack.c.l.b16 %v1667
      %v1764 = vunpack.c.l.b16 %v1668
      %v1765 = vunpack.c.l.b16 %v1669
      %v1766 = vpack.c.b16 %v1751, %v1750
      %v1767 = vpack.c.b16 %v1753, %v1752
      %v1768 = vpack.c.b16 %v1755, %v1754
      %v1769 = vpack.c.b16 %v1757, %v1756
      %v1770 = vpack.c.b16 %v1759, %v1758
      %v1771 = vpack.c.b16 %v1761, %v1760
      %v1772 = vpack.c.b16 %v1763, %v1762
      %v1773 = vpack.c.b16 %v1765, %v1764
      %1782 = vmatpush.bf16.msra.mxu0 %v1773
      %1783 = vmatpush.bf16.msra.mxu0 %v1772
      %1784 = vmatpush.bf16.msra.mxu0 %v1771
      %1785 = vmatpush.bf16.msra.mxu0 %v1770
      %1786 = vmatpush.bf16.msra.mxu0 %v1769
      %1787 = vmatpush.bf16.msra.mxu0 %v1768
      %1788 = vmatpush.bf16.msra.mxu0 %v1767
      %1789 = vmatpush.bf16.msra.mxu0 %v1766
      %1790 = vmatmul.bf16.gmra.mxu0 %v1702
      %v1791 = vpop.f32.mrf.mxu0
      %v1792 = vadd.f32 0.0, %v1791
      %v1793 = vpop.f32.mrf.mxu0
      %v1794 = vadd.f32 0.0, %v1793
      %1795 = vmatmul.bf16.gmra.mxu0 %v1703
      %v1796 = vpop.f32.mrf.mxu0
      %v1797 = vadd.f32 0.0, %v1796
      %v1798 = vpop.f32.mrf.mxu0
      %v1799 = vadd.f32 0.0, %v1798
      %1800 = vmatmul.bf16.gmra.mxu0 %v1704
      %v1801 = vpop.f32.mrf.mxu0
      %v1802 = vadd.f32 0.0, %v1801
      %v1803 = vpop.f32.mrf.mxu0
      %v1804 = vadd.f32 0.0, %v1803
      %1805 = vmatmul.bf16.gmra.mxu0 %v1705
      %v1806 = vpop.f32.mrf.mxu0
      %v1807 = vadd.f32 0.0, %v1806
      %v1808 = vpop.f32.mrf.mxu0
      %v1809 = vadd.f32 0.0, %v1808
      %1810 = vmatmul.bf16.gmra.mxu0 %v1706
      %v1811 = vpop.f32.mrf.mxu0
      %v1812 = vadd.f32 0.0, %v1811
      %v1813 = vpop.f32.mrf.mxu0
      %v1814 = vadd.f32 0.0, %v1813
      %1815 = vmatmul.bf16.gmra.mxu0 %v1707
      %v1816 = vpop.f32.mrf.mxu0
      %v1817 = vadd.f32 0.0, %v1816
      %v1818 = vpop.f32.mrf.mxu0
      %v1819 = vadd.f32 0.0, %v1818
      %1820 = vmatmul.bf16.gmra.mxu0 %v1708
      %v1821 = vpop.f32.mrf.mxu0
      %v1822 = vadd.f32 0.0, %v1821
      %v1823 = vpop.f32.mrf.mxu0
      %v1824 = vadd.f32 0.0, %v1823
      %1825 = vmatmul.bf16.gmra.mxu0 %v1709
      %v1826 = vpop.f32.mrf.mxu0
      %v1827 = vadd.f32 0.0, %v1826
      %v1828 = vpop.f32.mrf.mxu0
      %v1829 = vadd.f32 0.0, %v1828
      %1830 = vmatmul.bf16.gmra.mxu0 %v1710
      %v1831 = vpop.f32.mrf.mxu0
      %v1832 = vadd.f32 0.0, %v1831
      %v1833 = vpop.f32.mrf.mxu0
      %v1834 = vadd.f32 0.0, %v1833
      %1835 = vmatmul.bf16.gmra.mxu0 %v1711
      %v1836 = vpop.f32.mrf.mxu0
      %v1837 = vadd.f32 0.0, %v1836
      %v1838 = vpop.f32.mrf.mxu0
      %v1839 = vadd.f32 0.0, %v1838
      %1840 = vmatmul.bf16.gmra.mxu0 %v1712
      %v1841 = vpop.f32.mrf.mxu0
      %v1842 = vadd.f32 0.0, %v1841
      %v1843 = vpop.f32.mrf.mxu0
      %v1844 = vadd.f32 0.0, %v1843
      %1845 = vmatmul.bf16.gmra.mxu0 %v1713
      %v1846 = vpop.f32.mrf.mxu0
      %v1847 = vadd.f32 0.0, %v1846
      %v1848 = vpop.f32.mrf.mxu0
      %v1849 = vadd.f32 0.0, %v1848
      %1850 = vmatmul.bf16.gmra.mxu0 %v1714
      %v1851 = vpop.f32.mrf.mxu0
      %v1852 = vadd.f32 0.0, %v1851
      %v1853 = vpop.f32.mrf.mxu0
      %v1854 = vadd.f32 0.0, %v1853
      %1855 = vmatmul.bf16.gmra.mxu0 %v1715
      %v1856 = vpop.f32.mrf.mxu0
      %v1857 = vadd.f32 0.0, %v1856
      %v1858 = vpop.f32.mrf.mxu0
      %v1859 = vadd.f32 0.0, %v1858
      %1860 = vmatmul.bf16.gmra.mxu0 %v1716
      %v1861 = vpop.f32.mrf.mxu0
      %v1862 = vadd.f32 0.0, %v1861
      %v1863 = vpop.f32.mrf.mxu0
      %v1864 = vadd.f32 0.0, %v1863
      %1865 = vmatmul.bf16.gmra.mxu0 %v1717
      %v1866 = vpop.f32.mrf.mxu0
      %v1867 = vadd.f32 0.0, %v1866
      %v1868 = vpop.f32.mrf.mxu0
      %v1869 = vadd.f32 0.0, %v1868
      %1870 = vdwg.mxu0
      %v1871 = vadd.f32 %v1443, %v1792
      %v1872 = vadd.f32 %v1445, %v1794
      %v1873 = vadd.f32 %v1448, %v1797
      %v1874 = vadd.f32 %v1450, %v1799
      %v1875 = vadd.f32 %v1453, %v1802
      %v1876 = vadd.f32 %v1455, %v1804
      %v1877 = vadd.f32 %v1458, %v1807
      %v1878 = vadd.f32 %v1460, %v1809
      %v1879 = vadd.f32 %v1463, %v1812
      %v1880 = vadd.f32 %v1465, %v1814
      %v1881 = vadd.f32 %v1468, %v1817
      %v1882 = vadd.f32 %v1470, %v1819
      %v1883 = vadd.f32 %v1473, %v1822
      %v1884 = vadd.f32 %v1475, %v1824
      %v1885 = vadd.f32 %v1478, %v1827
      %v1886 = vadd.f32 %v1480, %v1829
      %v1887 = vadd.f32 %v1483, %v1832
      %v1888 = vadd.f32 %v1485, %v1834
      %v1889 = vadd.f32 %v1488, %v1837
      %v1890 = vadd.f32 %v1490, %v1839
      %v1891 = vadd.f32 %v1493, %v1842
      %v1892 = vadd.f32 %v1495, %v1844
      %v1893 = vadd.f32 %v1498, %v1847
      %v1894 = vadd.f32 %v1500, %v1849
      %v1895 = vadd.f32 %v1503, %v1852
      %v1896 = vadd.f32 %v1505, %v1854
      %v1897 = vadd.f32 %v1508, %v1857
      %v1898 = vadd.f32 %v1510, %v1859
      %v1899 = vadd.f32 %v1513, %v1862
      %v1900 = vadd.f32 %v1515, %v1864
      %v1901 = vadd.f32 %v1518, %v1867
      %v1902 = vadd.f32 %v1520, %v1869
      %s1903 = scalar_lea.vmem %s323, 192
      %v1904 = vld [vmem:[%s1903] sm:$0xf]
      %v1905 = vld [vmem:[%s1903 + $0x4] sm:$0xf]
      %v1906 = vld [vmem:[%s1903 + $0x8] sm:$0xf]
      %v1907 = vld [vmem:[%s1903 + $0xc] sm:$0xf]
      %v1908 = vld [vmem:[%s1903 + $0x10] sm:$0xf]
      %v1909 = vld [vmem:[%s1903 + $0x14] sm:$0xf]
      %v1910 = vld [vmem:[%s1903 + $0x18] sm:$0xf]
      %v1911 = vld [vmem:[%s1903 + $0x1c] sm:$0xf]
      %v1912 = vld [vmem:[%s1903 + $0x20] sm:$0xf]
      %v1913 = vld [vmem:[%s1903 + $0x24] sm:$0xf]
      %v1914 = vld [vmem:[%s1903 + $0x28] sm:$0xf]
      %v1915 = vld [vmem:[%s1903 + $0x2c] sm:$0xf]
      %v1916 = vld [vmem:[%s1903 + $0x30] sm:$0xf]
      %v1917 = vld [vmem:[%s1903 + $0x34] sm:$0xf]
      %v1918 = vld [vmem:[%s1903 + $0x38] sm:$0xf]
      %v1919 = vld [vmem:[%s1903 + $0x3c] sm:$0xf]
      %v1922 = vunpack.c.l.b16 %v662
      %v1923 = vunpack.c.l.b16 %v663
      %v1924 = vpack.c.b16 %v1923, %v1922
      %v1942 = vunpack.c.l.b16 %v1904
      %v1943 = vunpack.c.l.b16 %v1905
      %v1944 = vunpack.c.l.b16 %v1906
      %v1945 = vunpack.c.l.b16 %v1907
      %v1946 = vunpack.c.l.b16 %v1908
      %v1947 = vunpack.c.l.b16 %v1909
      %v1948 = vunpack.c.l.b16 %v1910
      %v1949 = vunpack.c.l.b16 %v1911
      %v1950 = vunpack.c.l.b16 %v1912
      %v1951 = vunpack.c.l.b16 %v1913
      %v1952 = vunpack.c.l.b16 %v1914
      %v1953 = vunpack.c.l.b16 %v1915
      %v1954 = vunpack.c.l.b16 %v1916
      %v1955 = vunpack.c.l.b16 %v1917
      %v1956 = vunpack.c.l.b16 %v1918
      %v1957 = vunpack.c.l.b16 %v1919
      %v1958 = vpack.c.b16 %v1943, %v1942
      %v1959 = vpack.c.b16 %v1945, %v1944
      %v1960 = vpack.c.b16 %v1947, %v1946
      %v1961 = vpack.c.b16 %v1949, %v1948
      %v1962 = vpack.c.b16 %v1951, %v1950
      %v1963 = vpack.c.b16 %v1953, %v1952
      %v1964 = vpack.c.b16 %v1955, %v1954
      %v1965 = vpack.c.b16 %v1957, %v1956
      %1974 = vmatpush.bf16.msra.mxu0 %v1965
      %1975 = vmatpush.bf16.msra.mxu0 %v1964
      %1976 = vmatpush.bf16.msra.mxu0 %v1963
      %1977 = vmatpush.bf16.msra.mxu0 %v1962
      %1978 = vmatpush.bf16.msra.mxu0 %v1961
      %1979 = vmatpush.bf16.msra.mxu0 %v1960
      %1980 = vmatpush.bf16.msra.mxu0 %v1959
      %1981 = vmatpush.bf16.msra.mxu0 %v1958
      %1982 = vmatmul.bf16.gmra.mxu0 %v1354
      %v1983 = vpop.f32.mrf.mxu0
      %v1984 = vadd.f32 0.0, %v1983
      %v1985 = vpop.f32.mrf.mxu0
      %v1986 = vadd.f32 0.0, %v1985
      %1987 = vmatmul.bf16.gmra.mxu0 %v1355
      %v1988 = vpop.f32.mrf.mxu0
      %v1989 = vadd.f32 0.0, %v1988
      %v1990 = vpop.f32.mrf.mxu0
      %v1991 = vadd.f32 0.0, %v1990
      %1992 = vmatmul.bf16.gmra.mxu0 %v1356
      %v1993 = vpop.f32.mrf.mxu0
      %v1994 = vadd.f32 0.0, %v1993
      %v1995 = vpop.f32.mrf.mxu0
      %v1996 = vadd.f32 0.0, %v1995
      %1997 = vmatmul.bf16.gmra.mxu0 %v1357
      %v1998 = vpop.f32.mrf.mxu0
      %v1999 = vadd.f32 0.0, %v1998
      %v2000 = vpop.f32.mrf.mxu0
      %v2001 = vadd.f32 0.0, %v2000
      %2002 = vmatmul.bf16.gmra.mxu0 %v1358
      %v2003 = vpop.f32.mrf.mxu0
      %v2004 = vadd.f32 0.0, %v2003
      %v2005 = vpop.f32.mrf.mxu0
      %v2006 = vadd.f32 0.0, %v2005
      %2007 = vmatmul.bf16.gmra.mxu0 %v1359
      %v2008 = vpop.f32.mrf.mxu0
      %v2009 = vadd.f32 0.0, %v2008
      %v2010 = vpop.f32.mrf.mxu0
      %v2011 = vadd.f32 0.0, %v2010
      %2012 = vmatmul.bf16.gmra.mxu0 %v1360
      %v2013 = vpop.f32.mrf.mxu0
      %v2014 = vadd.f32 0.0, %v2013
      %v2015 = vpop.f32.mrf.mxu0
      %v2016 = vadd.f32 0.0, %v2015
      %2017 = vmatmul.bf16.gmra.mxu0 %v1361
      %v2018 = vpop.f32.mrf.mxu0
      %v2019 = vadd.f32 0.0, %v2018
      %v2020 = vpop.f32.mrf.mxu0
      %v2021 = vadd.f32 0.0, %v2020
      %2022 = vmatmul.bf16.gmra.mxu0 %v1362
      %v2023 = vpop.f32.mrf.mxu0
      %v2024 = vadd.f32 0.0, %v2023
      %v2025 = vpop.f32.mrf.mxu0
      %v2026 = vadd.f32 0.0, %v2025
      %2027 = vmatmul.bf16.gmra.mxu0 %v1363
      %v2028 = vpop.f32.mrf.mxu0
      %v2029 = vadd.f32 0.0, %v2028
      %v2030 = vpop.f32.mrf.mxu0
      %v2031 = vadd.f32 0.0, %v2030
      %2032 = vmatmul.bf16.gmra.mxu0 %v1364
      %v2033 = vpop.f32.mrf.mxu0
      %v2034 = vadd.f32 0.0, %v2033
      %v2035 = vpop.f32.mrf.mxu0
      %v2036 = vadd.f32 0.0, %v2035
      %2037 = vmatmul.bf16.gmra.mxu0 %v1365
      %v2038 = vpop.f32.mrf.mxu0
      %v2039 = vadd.f32 0.0, %v2038
      %v2040 = vpop.f32.mrf.mxu0
      %v2041 = vadd.f32 0.0, %v2040
      %2042 = vmatmul.bf16.gmra.mxu0 %v1366
      %v2043 = vpop.f32.mrf.mxu0
      %v2044 = vadd.f32 0.0, %v2043
      %v2045 = vpop.f32.mrf.mxu0
      %v2046 = vadd.f32 0.0, %v2045
      %2047 = vmatmul.bf16.gmra.mxu0 %v1367
      %v2048 = vpop.f32.mrf.mxu0
      %v2049 = vadd.f32 0.0, %v2048
      %v2050 = vpop.f32.mrf.mxu0
      %v2051 = vadd.f32 0.0, %v2050
      %2052 = vmatmul.bf16.gmra.mxu0 %v1368
      %v2053 = vpop.f32.mrf.mxu0
      %v2054 = vadd.f32 0.0, %v2053
      %v2055 = vpop.f32.mrf.mxu0
      %v2056 = vadd.f32 0.0, %v2055
      %2057 = vmatmul.bf16.gmra.mxu0 %v1924
      %v2058 = vpop.f32.mrf.mxu0
      %v2059 = vadd.f32 0.0, %v2058
      %v2060 = vpop.f32.mrf.mxu0
      %v2061 = vadd.f32 0.0, %v2060
      %2062 = vdwg.mxu0
      %v2063 = vadd.f32 %v1871, %v1984
      %v2064 = vadd.f32 %v1872, %v1986
      %v2065 = vadd.f32 %v1873, %v1989
      %v2066 = vadd.f32 %v1874, %v1991
      %v2067 = vadd.f32 %v1875, %v1994
      %v2068 = vadd.f32 %v1876, %v1996
      %v2069 = vadd.f32 %v1877, %v1999
      %v2070 = vadd.f32 %v1878, %v2001
      %v2071 = vadd.f32 %v1879, %v2004
      %v2072 = vadd.f32 %v1880, %v2006
      %v2073 = vadd.f32 %v1881, %v2009
      %v2074 = vadd.f32 %v1882, %v2011
      %v2075 = vadd.f32 %v1883, %v2014
      %v2076 = vadd.f32 %v1884, %v2016
      %v2077 = vadd.f32 %v1885, %v2019
      %v2078 = vadd.f32 %v1886, %v2021
      %v2079 = vadd.f32 %v1887, %v2024
      %v2080 = vadd.f32 %v1888, %v2026
      %v2081 = vadd.f32 %v1889, %v2029
      %v2082 = vadd.f32 %v1890, %v2031
      %v2083 = vadd.f32 %v1891, %v2034
      %v2084 = vadd.f32 %v1892, %v2036
      %v2085 = vadd.f32 %v1893, %v2039
      %v2086 = vadd.f32 %v1894, %v2041
      %v2087 = vadd.f32 %v1895, %v2044
      %v2088 = vadd.f32 %v1896, %v2046
      %v2089 = vadd.f32 %v1897, %v2049
      %v2090 = vadd.f32 %v1898, %v2051
      %v2091 = vadd.f32 %v1899, %v2054
      %v2092 = vadd.f32 %v1900, %v2056
      %v2093 = vadd.f32 %v1901, %v2059
      %v2094 = vadd.f32 %v1902, %v2061
      %v2096 = vshrl.u32 %v662, 16
      %v2098 = vrot.slane %v2096, 4
      %v2099 = vshll.u32 %v662, 16
      %v2101 = vrot.slane %v2099, 5
      %v2102 = vor.u32 %v2098, %v2101
      %v2103 = vrot.slane %v2102, 4
      %v2105 = vshll.u32 %v663, 16
      %v2107 = vrot.slane %v2105, 5
      %v2108 = vsel %vm686, %v2103, %v2107
      %v2109 = vshrl.u32 %v663, 16
      %v2111 = vrot.slane %v2109, 4
      %v2112 = vor.u32 %v2111, %v2107
      %v2113 = vrot.slane %v2112, 4
      %v2115 = vshll.u32 %v664, 16
      %v2117 = vrot.slane %v2115, 5
      %v2118 = vsel %vm686, %v2113, %v2117
      %s2119 = scalar_lea.vmem %s323, 256
      %v2120 = vld [vmem:[%s2119] sm:$0xf]
      %v2121 = vld [vmem:[%s2119 + $0x4] sm:$0xf]
      %v2122 = vld [vmem:[%s2119 + $0x8] sm:$0xf]
      %v2123 = vld [vmem:[%s2119 + $0xc] sm:$0xf]
      %v2124 = vld [vmem:[%s2119 + $0x10] sm:$0xf]
      %v2125 = vld [vmem:[%s2119 + $0x14] sm:$0xf]
      %v2126 = vld [vmem:[%s2119 + $0x18] sm:$0xf]
      %v2127 = vld [vmem:[%s2119 + $0x1c] sm:$0xf]
      %v2128 = vld [vmem:[%s2119 + $0x20] sm:$0xf]
      %v2129 = vld [vmem:[%s2119 + $0x24] sm:$0xf]
      %v2130 = vld [vmem:[%s2119 + $0x28] sm:$0xf]
      %v2131 = vld [vmem:[%s2119 + $0x2c] sm:$0xf]
      %v2132 = vld [vmem:[%s2119 + $0x30] sm:$0xf]
      %v2133 = vld [vmem:[%s2119 + $0x34] sm:$0xf]
      %v2134 = vld [vmem:[%s2119 + $0x38] sm:$0xf]
      %v2135 = vld [vmem:[%s2119 + $0x3c] sm:$0xf]
      %v2136 = vunpack.c.l.b16 %v2108
      %v2137 = vunpack.c.l.b16 %v2118
      %v2138 = vpack.c.b16 %v2137, %v2136
      %v2156 = vunpack.c.l.b16 %v2120
      %v2157 = vunpack.c.l.b16 %v2121
      %v2158 = vunpack.c.l.b16 %v2122
      %v2159 = vunpack.c.l.b16 %v2123
      %v2160 = vunpack.c.l.b16 %v2124
      %v2161 = vunpack.c.l.b16 %v2125
      %v2162 = vunpack.c.l.b16 %v2126
      %v2163 = vunpack.c.l.b16 %v2127
      %v2164 = vunpack.c.l.b16 %v2128
      %v2165 = vunpack.c.l.b16 %v2129
      %v2166 = vunpack.c.l.b16 %v2130
      %v2167 = vunpack.c.l.b16 %v2131
      %v2168 = vunpack.c.l.b16 %v2132
      %v2169 = vunpack.c.l.b16 %v2133
      %v2170 = vunpack.c.l.b16 %v2134
      %v2171 = vunpack.c.l.b16 %v2135
      %v2172 = vpack.c.b16 %v2157, %v2156
      %v2173 = vpack.c.b16 %v2159, %v2158
      %v2174 = vpack.c.b16 %v2161, %v2160
      %v2175 = vpack.c.b16 %v2163, %v2162
      %v2176 = vpack.c.b16 %v2165, %v2164
      %v2177 = vpack.c.b16 %v2167, %v2166
      %v2178 = vpack.c.b16 %v2169, %v2168
      %v2179 = vpack.c.b16 %v2171, %v2170
      %2188 = vmatpush.bf16.msra.mxu0 %v2179
      %2189 = vmatpush.bf16.msra.mxu0 %v2178
      %2190 = vmatpush.bf16.msra.mxu0 %v2177
      %2191 = vmatpush.bf16.msra.mxu0 %v2176
      %2192 = vmatpush.bf16.msra.mxu0 %v2175
      %2193 = vmatpush.bf16.msra.mxu0 %v2174
      %2194 = vmatpush.bf16.msra.mxu0 %v2173
      %2195 = vmatpush.bf16.msra.mxu0 %v2172
      %2196 = vmatmul.bf16.gmra.mxu0 %v1121
      %v2197 = vpop.f32.mrf.mxu0
      %v2198 = vadd.f32 0.0, %v2197
      %v2199 = vpop.f32.mrf.mxu0
      %v2200 = vadd.f32 0.0, %v2199
      %2201 = vmatmul.bf16.gmra.mxu0 %v1122
      %v2202 = vpop.f32.mrf.mxu0
      %v2203 = vadd.f32 0.0, %v2202
      %v2204 = vpop.f32.mrf.mxu0
      %v2205 = vadd.f32 0.0, %v2204
      %2206 = vmatmul.bf16.gmra.mxu0 %v1123
      %v2207 = vpop.f32.mrf.mxu0
      %v2208 = vadd.f32 0.0, %v2207
      %v2209 = vpop.f32.mrf.mxu0
      %v2210 = vadd.f32 0.0, %v2209
      %2211 = vmatmul.bf16.gmra.mxu0 %v1124
      %v2212 = vpop.f32.mrf.mxu0
      %v2213 = vadd.f32 0.0, %v2212
      %v2214 = vpop.f32.mrf.mxu0
      %v2215 = vadd.f32 0.0, %v2214
      %2216 = vmatmul.bf16.gmra.mxu0 %v1125
      %v2217 = vpop.f32.mrf.mxu0
      %v2218 = vadd.f32 0.0, %v2217
      %v2219 = vpop.f32.mrf.mxu0
      %v2220 = vadd.f32 0.0, %v2219
      %2221 = vmatmul.bf16.gmra.mxu0 %v1126
      %v2222 = vpop.f32.mrf.mxu0
      %v2223 = vadd.f32 0.0, %v2222
      %v2224 = vpop.f32.mrf.mxu0
      %v2225 = vadd.f32 0.0, %v2224
      %2226 = vmatmul.bf16.gmra.mxu0 %v1127
      %v2227 = vpop.f32.mrf.mxu0
      %v2228 = vadd.f32 0.0, %v2227
      %v2229 = vpop.f32.mrf.mxu0
      %v2230 = vadd.f32 0.0, %v2229
      %2231 = vmatmul.bf16.gmra.mxu0 %v1128
      %v2232 = vpop.f32.mrf.mxu0
      %v2233 = vadd.f32 0.0, %v2232
      %v2234 = vpop.f32.mrf.mxu0
      %v2235 = vadd.f32 0.0, %v2234
      %2236 = vmatmul.bf16.gmra.mxu0 %v1129
      %v2237 = vpop.f32.mrf.mxu0
      %v2238 = vadd.f32 0.0, %v2237
      %v2239 = vpop.f32.mrf.mxu0
      %v2240 = vadd.f32 0.0, %v2239
      %2241 = vmatmul.bf16.gmra.mxu0 %v1130
      %v2242 = vpop.f32.mrf.mxu0
      %v2243 = vadd.f32 0.0, %v2242
      %v2244 = vpop.f32.mrf.mxu0
      %v2245 = vadd.f32 0.0, %v2244
      %2246 = vmatmul.bf16.gmra.mxu0 %v1131
      %v2247 = vpop.f32.mrf.mxu0
      %v2248 = vadd.f32 0.0, %v2247
      %v2249 = vpop.f32.mrf.mxu0
      %v2250 = vadd.f32 0.0, %v2249
      %2251 = vmatmul.bf16.gmra.mxu0 %v1132
      %v2252 = vpop.f32.mrf.mxu0
      %v2253 = vadd.f32 0.0, %v2252
      %v2254 = vpop.f32.mrf.mxu0
      %v2255 = vadd.f32 0.0, %v2254
      %2256 = vmatmul.bf16.gmra.mxu0 %v1133
      %v2257 = vpop.f32.mrf.mxu0
      %v2258 = vadd.f32 0.0, %v2257
      %v2259 = vpop.f32.mrf.mxu0
      %v2260 = vadd.f32 0.0, %v2259
      %2261 = vmatmul.bf16.gmra.mxu0 %v1134
      %v2262 = vpop.f32.mrf.mxu0
      %v2263 = vadd.f32 0.0, %v2262
      %v2264 = vpop.f32.mrf.mxu0
      %v2265 = vadd.f32 0.0, %v2264
      %2266 = vmatmul.bf16.gmra.mxu0 %v1135
      %v2267 = vpop.f32.mrf.mxu0
      %v2268 = vadd.f32 0.0, %v2267
      %v2269 = vpop.f32.mrf.mxu0
      %v2270 = vadd.f32 0.0, %v2269
      %2271 = vmatmul.bf16.gmra.mxu0 %v2138
      %v2272 = vpop.f32.mrf.mxu0
      %v2273 = vadd.f32 0.0, %v2272
      %v2274 = vpop.f32.mrf.mxu0
      %v2275 = vadd.f32 0.0, %v2274
      %2276 = vdwg.mxu0
      %v2277 = vadd.f32 %v2063, %v2198
      %v2278 = vadd.f32 %v2064, %v2200
      %v2279 = vadd.f32 %v2065, %v2203
      %v2280 = vadd.f32 %v2066, %v2205
      %v2281 = vadd.f32 %v2067, %v2208
      %v2282 = vadd.f32 %v2068, %v2210
      %v2283 = vadd.f32 %v2069, %v2213
      %v2284 = vadd.f32 %v2070, %v2215
      %v2285 = vadd.f32 %v2071, %v2218
      %v2286 = vadd.f32 %v2072, %v2220
      %v2287 = vadd.f32 %v2073, %v2223
      %v2288 = vadd.f32 %v2074, %v2225
      %v2289 = vadd.f32 %v2075, %v2228
      %v2290 = vadd.f32 %v2076, %v2230
      %v2291 = vadd.f32 %v2077, %v2233
      %v2292 = vadd.f32 %v2078, %v2235
      %v2293 = vadd.f32 %v2079, %v2238
      %v2294 = vadd.f32 %v2080, %v2240
      %v2295 = vadd.f32 %v2081, %v2243
      %v2296 = vadd.f32 %v2082, %v2245
      %v2297 = vadd.f32 %v2083, %v2248
      %v2298 = vadd.f32 %v2084, %v2250
      %v2299 = vadd.f32 %v2085, %v2253
      %v2300 = vadd.f32 %v2086, %v2255
      %v2301 = vadd.f32 %v2087, %v2258
      %v2302 = vadd.f32 %v2088, %v2260
      %v2303 = vadd.f32 %v2089, %v2263
      %v2304 = vadd.f32 %v2090, %v2265
      %v2305 = vadd.f32 %v2091, %v2268
      %v2306 = vadd.f32 %v2092, %v2270
      %v2307 = vadd.f32 %v2093, %v2273
      %v2308 = vadd.f32 %v2094, %v2275
      %v2310 = vrot.slane %v662, 5
      %v2311 = vrot.slane %v2310, 4
      %v2312 = vrot.slane %v663, 5
      %v2313 = vsel %vm1540, %v2311, %v2312
      %v2314 = vrot.slane %v2312, 4
      %v2315 = vrot.slane %v664, 5
      %v2316 = vsel %vm1540, %v2314, %v2315
      %s2317 = scalar_lea.vmem %s323, 320
      %v2318 = vld [vmem:[%s2317] sm:$0xf]
      %v2319 = vld [vmem:[%s2317 + $0x4] sm:$0xf]
      %v2320 = vld [vmem:[%s2317 + $0x8] sm:$0xf]
      %v2321 = vld [vmem:[%s2317 + $0xc] sm:$0xf]
      %v2322 = vld [vmem:[%s2317 + $0x10] sm:$0xf]
      %v2323 = vld [vmem:[%s2317 + $0x14] sm:$0xf]
      %v2324 = vld [vmem:[%s2317 + $0x18] sm:$0xf]
      %v2325 = vld [vmem:[%s2317 + $0x1c] sm:$0xf]
      %v2326 = vld [vmem:[%s2317 + $0x20] sm:$0xf]
      %v2327 = vld [vmem:[%s2317 + $0x24] sm:$0xf]
      %v2328 = vld [vmem:[%s2317 + $0x28] sm:$0xf]
      %v2329 = vld [vmem:[%s2317 + $0x2c] sm:$0xf]
      %v2330 = vld [vmem:[%s2317 + $0x30] sm:$0xf]
      %v2331 = vld [vmem:[%s2317 + $0x34] sm:$0xf]
      %v2332 = vld [vmem:[%s2317 + $0x38] sm:$0xf]
      %v2333 = vld [vmem:[%s2317 + $0x3c] sm:$0xf]
      %v2334 = vunpack.c.l.b16 %v2313
      %v2335 = vunpack.c.l.b16 %v2316
      %v2336 = vpack.c.b16 %v2335, %v2334
      %v2354 = vunpack.c.l.b16 %v2318
      %v2355 = vunpack.c.l.b16 %v2319
      %v2356 = vunpack.c.l.b16 %v2320
      %v2357 = vunpack.c.l.b16 %v2321
      %v2358 = vunpack.c.l.b16 %v2322
      %v2359 = vunpack.c.l.b16 %v2323
      %v2360 = vunpack.c.l.b16 %v2324
      %v2361 = vunpack.c.l.b16 %v2325
      %v2362 = vunpack.c.l.b16 %v2326
      %v2363 = vunpack.c.l.b16 %v2327
      %v2364 = vunpack.c.l.b16 %v2328
      %v2365 = vunpack.c.l.b16 %v2329
      %v2366 = vunpack.c.l.b16 %v2330
      %v2367 = vunpack.c.l.b16 %v2331
      %v2368 = vunpack.c.l.b16 %v2332
      %v2369 = vunpack.c.l.b16 %v2333
      %v2370 = vpack.c.b16 %v2355, %v2354
      %v2371 = vpack.c.b16 %v2357, %v2356
      %v2372 = vpack.c.b16 %v2359, %v2358
      %v2373 = vpack.c.b16 %v2361, %v2360
      %v2374 = vpack.c.b16 %v2363, %v2362
      %v2375 = vpack.c.b16 %v2365, %v2364
      %v2376 = vpack.c.b16 %v2367, %v2366
      %v2377 = vpack.c.b16 %v2369, %v2368
      %2386 = vmatpush.bf16.msra.mxu0 %v2377
      %2387 = vmatpush.bf16.msra.mxu0 %v2376
      %2388 = vmatpush.bf16.msra.mxu0 %v2375
      %2389 = vmatpush.bf16.msra.mxu0 %v2374
      %2390 = vmatpush.bf16.msra.mxu0 %v2373
      %2391 = vmatpush.bf16.msra.mxu0 %v2372
      %2392 = vmatpush.bf16.msra.mxu0 %v2371
      %2393 = vmatpush.bf16.msra.mxu0 %v2370
      %2394 = vmatmul.bf16.gmra.mxu0 %v1703
      %v2395 = vpop.f32.mrf.mxu0
      %v2396 = vadd.f32 0.0, %v2395
      %v2397 = vpop.f32.mrf.mxu0
      %v2398 = vadd.f32 0.0, %v2397
      %2399 = vmatmul.bf16.gmra.mxu0 %v1704
      %v2400 = vpop.f32.mrf.mxu0
      %v2401 = vadd.f32 0.0, %v2400
      %v2402 = vpop.f32.mrf.mxu0
      %v2403 = vadd.f32 0.0, %v2402
      %2404 = vmatmul.bf16.gmra.mxu0 %v1705
      %v2405 = vpop.f32.mrf.mxu0
      %v2406 = vadd.f32 0.0, %v2405
      %v2407 = vpop.f32.mrf.mxu0
      %v2408 = vadd.f32 0.0, %v2407
      %2409 = vmatmul.bf16.gmra.mxu0 %v1706
      %v2410 = vpop.f32.mrf.mxu0
      %v2411 = vadd.f32 0.0, %v2410
      %v2412 = vpop.f32.mrf.mxu0
      %v2413 = vadd.f32 0.0, %v2412
      %2414 = vmatmul.bf16.gmra.mxu0 %v1707
      %v2415 = vpop.f32.mrf.mxu0
      %v2416 = vadd.f32 0.0, %v2415
      %v2417 = vpop.f32.mrf.mxu0
      %v2418 = vadd.f32 0.0, %v2417
      %2419 = vmatmul.bf16.gmra.mxu0 %v1708
      %v2420 = vpop.f32.mrf.mxu0
      %v2421 = vadd.f32 0.0, %v2420
      %v2422 = vpop.f32.mrf.mxu0
      %v2423 = vadd.f32 0.0, %v2422
      %2424 = vmatmul.bf16.gmra.mxu0 %v1709
      %v2425 = vpop.f32.mrf.mxu0
      %v2426 = vadd.f32 0.0, %v2425
      %v2427 = vpop.f32.mrf.mxu0
      %v2428 = vadd.f32 0.0, %v2427
      %2429 = vmatmul.bf16.gmra.mxu0 %v1710
      %v2430 = vpop.f32.mrf.mxu0
      %v2431 = vadd.f32 0.0, %v2430
      %v2432 = vpop.f32.mrf.mxu0
      %v2433 = vadd.f32 0.0, %v2432
      %2434 = vmatmul.bf16.gmra.mxu0 %v1711
      %v2435 = vpop.f32.mrf.mxu0
      %v2436 = vadd.f32 0.0, %v2435
      %v2437 = vpop.f32.mrf.mxu0
      %v2438 = vadd.f32 0.0, %v2437
      %2439 = vmatmul.bf16.gmra.mxu0 %v1712
      %v2440 = vpop.f32.mrf.mxu0
      %v2441 = vadd.f32 0.0, %v2440
      %v2442 = vpop.f32.mrf.mxu0
      %v2443 = vadd.f32 0.0, %v2442
      %2444 = vmatmul.bf16.gmra.mxu0 %v1713
      %v2445 = vpop.f32.mrf.mxu0
      %v2446 = vadd.f32 0.0, %v2445
      %v2447 = vpop.f32.mrf.mxu0
      %v2448 = vadd.f32 0.0, %v2447
      %2449 = vmatmul.bf16.gmra.mxu0 %v1714
      %v2450 = vpop.f32.mrf.mxu0
      %v2451 = vadd.f32 0.0, %v2450
      %v2452 = vpop.f32.mrf.mxu0
      %v2453 = vadd.f32 0.0, %v2452
      %2454 = vmatmul.bf16.gmra.mxu0 %v1715
      %v2455 = vpop.f32.mrf.mxu0
      %v2456 = vadd.f32 0.0, %v2455
      %v2457 = vpop.f32.mrf.mxu0
      %v2458 = vadd.f32 0.0, %v2457
      %2459 = vmatmul.bf16.gmra.mxu0 %v1716
      %v2460 = vpop.f32.mrf.mxu0
      %v2461 = vadd.f32 0.0, %v2460
      %v2462 = vpop.f32.mrf.mxu0
      %v2463 = vadd.f32 0.0, %v2462
      %2464 = vmatmul.bf16.gmra.mxu0 %v1717
      %v2465 = vpop.f32.mrf.mxu0
      %v2466 = vadd.f32 0.0, %v2465
      %v2467 = vpop.f32.mrf.mxu0
      %v2468 = vadd.f32 0.0, %v2467
      %2469 = vmatmul.bf16.gmra.mxu0 %v2336
      %v2470 = vpop.f32.mrf.mxu0
      %v2471 = vadd.f32 0.0, %v2470
      %v2472 = vpop.f32.mrf.mxu0
      %v2473 = vadd.f32 0.0, %v2472
      %2474 = vdwg.mxu0
      %v2475 = vadd.f32 %v2277, %v2396
      %v2476 = vadd.f32 %v2278, %v2398
      %v2477 = vadd.f32 %v2279, %v2401
      %v2478 = vadd.f32 %v2280, %v2403
      %v2479 = vadd.f32 %v2281, %v2406
      %v2480 = vadd.f32 %v2282, %v2408
      %v2481 = vadd.f32 %v2283, %v2411
      %v2482 = vadd.f32 %v2284, %v2413
      %v2483 = vadd.f32 %v2285, %v2416
      %v2484 = vadd.f32 %v2286, %v2418
      %v2485 = vadd.f32 %v2287, %v2421
      %v2486 = vadd.f32 %v2288, %v2423
      %v2487 = vadd.f32 %v2289, %v2426
      %v2488 = vadd.f32 %v2290, %v2428
      %v2489 = vadd.f32 %v2291, %v2431
      %v2490 = vadd.f32 %v2292, %v2433
      %v2491 = vadd.f32 %v2293, %v2436
      %v2492 = vadd.f32 %v2294, %v2438
      %v2493 = vadd.f32 %v2295, %v2441
      %v2494 = vadd.f32 %v2296, %v2443
      %v2495 = vadd.f32 %v2297, %v2446
      %v2496 = vadd.f32 %v2298, %v2448
      %v2497 = vadd.f32 %v2299, %v2451
      %v2498 = vadd.f32 %v2300, %v2453
      %v2499 = vadd.f32 %v2301, %v2456
      %v2500 = vadd.f32 %v2302, %v2458
      %v2501 = vadd.f32 %v2303, %v2461
      %v2502 = vadd.f32 %v2304, %v2463
      %v2503 = vadd.f32 %v2305, %v2466
      %v2504 = vadd.f32 %v2306, %v2468
      %v2505 = vadd.f32 %v2307, %v2471
      %v2506 = vadd.f32 %v2308, %v2473
      %s2507 = scalar_lea.vmem %s323, 384
      %v2508 = vld [vmem:[%s2507] sm:$0xf]
      %v2509 = vld [vmem:[%s2507 + $0x4] sm:$0xf]
      %v2510 = vld [vmem:[%s2507 + $0x8] sm:$0xf]
      %v2511 = vld [vmem:[%s2507 + $0xc] sm:$0xf]
      %v2512 = vld [vmem:[%s2507 + $0x10] sm:$0xf]
      %v2513 = vld [vmem:[%s2507 + $0x14] sm:$0xf]
      %v2514 = vld [vmem:[%s2507 + $0x18] sm:$0xf]
      %v2515 = vld [vmem:[%s2507 + $0x1c] sm:$0xf]
      %v2516 = vld [vmem:[%s2507 + $0x20] sm:$0xf]
      %v2517 = vld [vmem:[%s2507 + $0x24] sm:$0xf]
      %v2518 = vld [vmem:[%s2507 + $0x28] sm:$0xf]
      %v2519 = vld [vmem:[%s2507 + $0x2c] sm:$0xf]
      %v2520 = vld [vmem:[%s2507 + $0x30] sm:$0xf]
      %v2521 = vld [vmem:[%s2507 + $0x34] sm:$0xf]
      %v2522 = vld [vmem:[%s2507 + $0x38] sm:$0xf]
      %v2523 = vld [vmem:[%s2507 + $0x3c] sm:$0xf]
      %v2526 = vunpack.c.l.b16 %v665
      %v2527 = vunpack.c.l.b16 %v666
      %v2528 = vpack.c.b16 %v2527, %v2526
      %v2546 = vunpack.c.l.b16 %v2508
      %v2547 = vunpack.c.l.b16 %v2509
      %v2548 = vunpack.c.l.b16 %v2510
      %v2549 = vunpack.c.l.b16 %v2511
      %v2550 = vunpack.c.l.b16 %v2512
      %v2551 = vunpack.c.l.b16 %v2513
      %v2552 = vunpack.c.l.b16 %v2514
      %v2553 = vunpack.c.l.b16 %v2515
      %v2554 = vunpack.c.l.b16 %v2516
      %v2555 = vunpack.c.l.b16 %v2517
      %v2556 = vunpack.c.l.b16 %v2518
      %v2557 = vunpack.c.l.b16 %v2519
      %v2558 = vunpack.c.l.b16 %v2520
      %v2559 = vunpack.c.l.b16 %v2521
      %v2560 = vunpack.c.l.b16 %v2522
      %v2561 = vunpack.c.l.b16 %v2523
      %v2562 = vpack.c.b16 %v2547, %v2546
      %v2563 = vpack.c.b16 %v2549, %v2548
      %v2564 = vpack.c.b16 %v2551, %v2550
      %v2565 = vpack.c.b16 %v2553, %v2552
      %v2566 = vpack.c.b16 %v2555, %v2554
      %v2567 = vpack.c.b16 %v2557, %v2556
      %v2568 = vpack.c.b16 %v2559, %v2558
      %v2569 = vpack.c.b16 %v2561, %v2560
      %2578 = vmatpush.bf16.msra.mxu0 %v2569
      %2579 = vmatpush.bf16.msra.mxu0 %v2568
      %2580 = vmatpush.bf16.msra.mxu0 %v2567
      %2581 = vmatpush.bf16.msra.mxu0 %v2566
      %2582 = vmatpush.bf16.msra.mxu0 %v2565
      %2583 = vmatpush.bf16.msra.mxu0 %v2564
      %2584 = vmatpush.bf16.msra.mxu0 %v2563
      %2585 = vmatpush.bf16.msra.mxu0 %v2562
      %2586 = vmatmul.bf16.gmra.mxu0 %v1355
      %v2587 = vpop.f32.mrf.mxu0
      %v2588 = vadd.f32 0.0, %v2587
      %v2589 = vpop.f32.mrf.mxu0
      %v2590 = vadd.f32 0.0, %v2589
      %2591 = vmatmul.bf16.gmra.mxu0 %v1356
      %v2592 = vpop.f32.mrf.mxu0
      %v2593 = vadd.f32 0.0, %v2592
      %v2594 = vpop.f32.mrf.mxu0
      %v2595 = vadd.f32 0.0, %v2594
      %2596 = vmatmul.bf16.gmra.mxu0 %v1357
      %v2597 = vpop.f32.mrf.mxu0
      %v2598 = vadd.f32 0.0, %v2597
      %v2599 = vpop.f32.mrf.mxu0
      %v2600 = vadd.f32 0.0, %v2599
      %2601 = vmatmul.bf16.gmra.mxu0 %v1358
      %v2602 = vpop.f32.mrf.mxu0
      %v2603 = vadd.f32 0.0, %v2602
      %v2604 = vpop.f32.mrf.mxu0
      %v2605 = vadd.f32 0.0, %v2604
      %2606 = vmatmul.bf16.gmra.mxu0 %v1359
      %v2607 = vpop.f32.mrf.mxu0
      %v2608 = vadd.f32 0.0, %v2607
      %v2609 = vpop.f32.mrf.mxu0
      %v2610 = vadd.f32 0.0, %v2609
      %2611 = vmatmul.bf16.gmra.mxu0 %v1360
      %v2612 = vpop.f32.mrf.mxu0
      %v2613 = vadd.f32 0.0, %v2612
      %v2614 = vpop.f32.mrf.mxu0
      %v2615 = vadd.f32 0.0, %v2614
      %2616 = vmatmul.bf16.gmra.mxu0 %v1361
      %v2617 = vpop.f32.mrf.mxu0
      %v2618 = vadd.f32 0.0, %v2617
      %v2619 = vpop.f32.mrf.mxu0
      %v2620 = vadd.f32 0.0, %v2619
      %2621 = vmatmul.bf16.gmra.mxu0 %v1362
      %v2622 = vpop.f32.mrf.mxu0
      %v2623 = vadd.f32 0.0, %v2622
      %v2624 = vpop.f32.mrf.mxu0
      %v2625 = vadd.f32 0.0, %v2624
      %2626 = vmatmul.bf16.gmra.mxu0 %v1363
      %v2627 = vpop.f32.mrf.mxu0
      %v2628 = vadd.f32 0.0, %v2627
      %v2629 = vpop.f32.mrf.mxu0
      %v2630 = vadd.f32 0.0, %v2629
      %2631 = vmatmul.bf16.gmra.mxu0 %v1364
      %v2632 = vpop.f32.mrf.mxu0
      %v2633 = vadd.f32 0.0, %v2632
      %v2634 = vpop.f32.mrf.mxu0
      %v2635 = vadd.f32 0.0, %v2634
      %2636 = vmatmul.bf16.gmra.mxu0 %v1365
      %v2637 = vpop.f32.mrf.mxu0
      %v2638 = vadd.f32 0.0, %v2637
      %v2639 = vpop.f32.mrf.mxu0
      %v2640 = vadd.f32 0.0, %v2639
      %2641 = vmatmul.bf16.gmra.mxu0 %v1366
      %v2642 = vpop.f32.mrf.mxu0
      %v2643 = vadd.f32 0.0, %v2642
      %v2644 = vpop.f32.mrf.mxu0
      %v2645 = vadd.f32 0.0, %v2644
      %2646 = vmatmul.bf16.gmra.mxu0 %v1367
      %v2647 = vpop.f32.mrf.mxu0
      %v2648 = vadd.f32 0.0, %v2647
      %v2649 = vpop.f32.mrf.mxu0
      %v2650 = vadd.f32 0.0, %v2649
      %2651 = vmatmul.bf16.gmra.mxu0 %v1368
      %v2652 = vpop.f32.mrf.mxu0
      %v2653 = vadd.f32 0.0, %v2652
      %v2654 = vpop.f32.mrf.mxu0
      %v2655 = vadd.f32 0.0, %v2654
      %2656 = vmatmul.bf16.gmra.mxu0 %v1924
      %v2657 = vpop.f32.mrf.mxu0
      %v2658 = vadd.f32 0.0, %v2657
      %v2659 = vpop.f32.mrf.mxu0
      %v2660 = vadd.f32 0.0, %v2659
      %2661 = vmatmul.bf16.gmra.mxu0 %v2528
      %v2662 = vpop.f32.mrf.mxu0
      %v2663 = vadd.f32 0.0, %v2662
      %v2664 = vpop.f32.mrf.mxu0
      %v2665 = vadd.f32 0.0, %v2664
      %2666 = vdwg.mxu0
      %v2667 = vadd.f32 %v2475, %v2588
      %v2668 = vadd.f32 %v2476, %v2590
      %v2669 = vadd.f32 %v2477, %v2593
      %v2670 = vadd.f32 %v2478, %v2595
      %v2671 = vadd.f32 %v2479, %v2598
      %v2672 = vadd.f32 %v2480, %v2600
      %v2673 = vadd.f32 %v2481, %v2603
      %v2674 = vadd.f32 %v2482, %v2605
      %v2675 = vadd.f32 %v2483, %v2608
      %v2676 = vadd.f32 %v2484, %v2610
      %v2677 = vadd.f32 %v2485, %v2613
      %v2678 = vadd.f32 %v2486, %v2615
      %v2679 = vadd.f32 %v2487, %v2618
      %v2680 = vadd.f32 %v2488, %v2620
      %v2681 = vadd.f32 %v2489, %v2623
      %v2682 = vadd.f32 %v2490, %v2625
      %v2683 = vadd.f32 %v2491, %v2628
      %v2684 = vadd.f32 %v2492, %v2630
      %v2685 = vadd.f32 %v2493, %v2633
      %v2686 = vadd.f32 %v2494, %v2635
      %v2687 = vadd.f32 %v2495, %v2638
      %v2688 = vadd.f32 %v2496, %v2640
      %v2689 = vadd.f32 %v2497, %v2643
      %v2690 = vadd.f32 %v2498, %v2645
      %v2691 = vadd.f32 %v2499, %v2648
      %v2692 = vadd.f32 %v2500, %v2650
      %v2693 = vadd.f32 %v2501, %v2653
      %v2694 = vadd.f32 %v2502, %v2655
      %v2695 = vadd.f32 %v2503, %v2658
      %v2696 = vadd.f32 %v2504, %v2660
      %v2697 = vadd.f32 %v2505, %v2663
      %v2698 = vadd.f32 %v2506, %v2665
      %v2700 = vshrl.u32 %v665, 16
      %v2702 = vrot.slane %v2700, 4
      %v2703 = vshll.u32 %v665, 16
      %v2705 = vrot.slane %v2703, 5
      %v2706 = vor.u32 %v2702, %v2705
      %v2707 = vrot.slane %v2706, 4
      %v2709 = vshll.u32 %v666, 16
      %v2711 = vrot.slane %v2709, 5
      %v2712 = vsel %vm686, %v2707, %v2711
      %v2713 = vshrl.u32 %v666, 16
      %v2715 = vrot.slane %v2713, 4
      %v2716 = vor.u32 %v2715, %v2711
      %v2717 = vrot.slane %v2716, 4
      %v2719 = vshll.u32 %v667, 16
      %v2721 = vrot.slane %v2719, 5
      %v2722 = vsel %vm686, %v2717, %v2721
      %s2723 = scalar_lea.vmem %s323, 448
      %v2724 = vld [vmem:[%s2723] sm:$0xf]
      %v2725 = vld [vmem:[%s2723 + $0x4] sm:$0xf]
      %v2726 = vld [vmem:[%s2723 + $0x8] sm:$0xf]
      %v2727 = vld [vmem:[%s2723 + $0xc] sm:$0xf]
      %v2728 = vld [vmem:[%s2723 + $0x10] sm:$0xf]
      %v2729 = vld [vmem:[%s2723 + $0x14] sm:$0xf]
      %v2730 = vld [vmem:[%s2723 + $0x18] sm:$0xf]
      %v2731 = vld [vmem:[%s2723 + $0x1c] sm:$0xf]
      %v2732 = vld [vmem:[%s2723 + $0x20] sm:$0xf]
      %v2733 = vld [vmem:[%s2723 + $0x24] sm:$0xf]
      %v2734 = vld [vmem:[%s2723 + $0x28] sm:$0xf]
      %v2735 = vld [vmem:[%s2723 + $0x2c] sm:$0xf]
      %v2736 = vld [vmem:[%s2723 + $0x30] sm:$0xf]
      %v2737 = vld [vmem:[%s2723 + $0x34] sm:$0xf]
      %v2738 = vld [vmem:[%s2723 + $0x38] sm:$0xf]
      %v2739 = vld [vmem:[%s2723 + $0x3c] sm:$0xf]
      %v2740 = vunpack.c.l.b16 %v2712
      %v2741 = vunpack.c.l.b16 %v2722
      %v2742 = vpack.c.b16 %v2741, %v2740
      %v2760 = vunpack.c.l.b16 %v2724
      %v2761 = vunpack.c.l.b16 %v2725
      %v2762 = vunpack.c.l.b16 %v2726
      %v2763 = vunpack.c.l.b16 %v2727
      %v2764 = vunpack.c.l.b16 %v2728
      %v2765 = vunpack.c.l.b16 %v2729
      %v2766 = vunpack.c.l.b16 %v2730
      %v2767 = vunpack.c.l.b16 %v2731
      %v2768 = vunpack.c.l.b16 %v2732
      %v2769 = vunpack.c.l.b16 %v2733
      %v2770 = vunpack.c.l.b16 %v2734
      %v2771 = vunpack.c.l.b16 %v2735
      %v2772 = vunpack.c.l.b16 %v2736
      %v2773 = vunpack.c.l.b16 %v2737
      %v2774 = vunpack.c.l.b16 %v2738
      %v2775 = vunpack.c.l.b16 %v2739
      %v2776 = vpack.c.b16 %v2761, %v2760
      %v2777 = vpack.c.b16 %v2763, %v2762
      %v2778 = vpack.c.b16 %v2765, %v2764
      %v2779 = vpack.c.b16 %v2767, %v2766
      %v2780 = vpack.c.b16 %v2769, %v2768
      %v2781 = vpack.c.b16 %v2771, %v2770
      %v2782 = vpack.c.b16 %v2773, %v2772
      %v2783 = vpack.c.b16 %v2775, %v2774
      %2792 = vmatpush.bf16.msra.mxu0 %v2783
      %2793 = vmatpush.bf16.msra.mxu0 %v2782
      %2794 = vmatpush.bf16.msra.mxu0 %v2781
      %2795 = vmatpush.bf16.msra.mxu0 %v2780
      %2796 = vmatpush.bf16.msra.mxu0 %v2779
      %2797 = vmatpush.bf16.msra.mxu0 %v2778
      %2798 = vmatpush.bf16.msra.mxu0 %v2777
      %2799 = vmatpush.bf16.msra.mxu0 %v2776
      %2800 = vmatmul.bf16.gmra.mxu0 %v1122
      %v2801 = vpop.f32.mrf.mxu0
      %v2802 = vadd.f32 0.0, %v2801
      %v2803 = vpop.f32.mrf.mxu0
      %v2804 = vadd.f32 0.0, %v2803
      %2805 = vmatmul.bf16.gmra.mxu0 %v1123
      %v2806 = vpop.f32.mrf.mxu0
      %v2807 = vadd.f32 0.0, %v2806
      %v2808 = vpop.f32.mrf.mxu0
      %v2809 = vadd.f32 0.0, %v2808
      %2810 = vmatmul.bf16.gmra.mxu0 %v1124
      %v2811 = vpop.f32.mrf.mxu0
      %v2812 = vadd.f32 0.0, %v2811
      %v2813 = vpop.f32.mrf.mxu0
      %v2814 = vadd.f32 0.0, %v2813
      %2815 = vmatmul.bf16.gmra.mxu0 %v1125
      %v2816 = vpop.f32.mrf.mxu0
      %v2817 = vadd.f32 0.0, %v2816
      %v2818 = vpop.f32.mrf.mxu0
      %v2819 = vadd.f32 0.0, %v2818
      %2820 = vmatmul.bf16.gmra.mxu0 %v1126
      %v2821 = vpop.f32.mrf.mxu0
      %v2822 = vadd.f32 0.0, %v2821
      %v2823 = vpop.f32.mrf.mxu0
      %v2824 = vadd.f32 0.0, %v2823
      %2825 = vmatmul.bf16.gmra.mxu0 %v1127
      %v2826 = vpop.f32.mrf.mxu0
      %v2827 = vadd.f32 0.0, %v2826
      %v2828 = vpop.f32.mrf.mxu0
      %v2829 = vadd.f32 0.0, %v2828
      %2830 = vmatmul.bf16.gmra.mxu0 %v1128
      %v2831 = vpop.f32.mrf.mxu0
      %v2832 = vadd.f32 0.0, %v2831
      %v2833 = vpop.f32.mrf.mxu0
      %v2834 = vadd.f32 0.0, %v2833
      %2835 = vmatmul.bf16.gmra.mxu0 %v1129
      %v2836 = vpop.f32.mrf.mxu0
      %v2837 = vadd.f32 0.0, %v2836
      %v2838 = vpop.f32.mrf.mxu0
      %v2839 = vadd.f32 0.0, %v2838
      %2840 = vmatmul.bf16.gmra.mxu0 %v1130
      %v2841 = vpop.f32.mrf.mxu0
      %v2842 = vadd.f32 0.0, %v2841
      %v2843 = vpop.f32.mrf.mxu0
      %v2844 = vadd.f32 0.0, %v2843
      %2845 = vmatmul.bf16.gmra.mxu0 %v1131
      %v2846 = vpop.f32.mrf.mxu0
      %v2847 = vadd.f32 0.0, %v2846
      %v2848 = vpop.f32.mrf.mxu0
      %v2849 = vadd.f32 0.0, %v2848
      %2850 = vmatmul.bf16.gmra.mxu0 %v1132
      %v2851 = vpop.f32.mrf.mxu0
      %v2852 = vadd.f32 0.0, %v2851
      %v2853 = vpop.f32.mrf.mxu0
      %v2854 = vadd.f32 0.0, %v2853
      %2855 = vmatmul.bf16.gmra.mxu0 %v1133
      %v2856 = vpop.f32.mrf.mxu0
      %v2857 = vadd.f32 0.0, %v2856
      %v2858 = vpop.f32.mrf.mxu0
      %v2859 = vadd.f32 0.0, %v2858
      %2860 = vmatmul.bf16.gmra.mxu0 %v1134
      %v2861 = vpop.f32.mrf.mxu0
      %v2862 = vadd.f32 0.0, %v2861
      %v2863 = vpop.f32.mrf.mxu0
      %v2864 = vadd.f32 0.0, %v2863
      %2865 = vmatmul.bf16.gmra.mxu0 %v1135
      %v2866 = vpop.f32.mrf.mxu0
      %v2867 = vadd.f32 0.0, %v2866
      %v2868 = vpop.f32.mrf.mxu0
      %v2869 = vadd.f32 0.0, %v2868
      %2870 = vmatmul.bf16.gmra.mxu0 %v2138
      %v2871 = vpop.f32.mrf.mxu0
      %v2872 = vadd.f32 0.0, %v2871
      %v2873 = vpop.f32.mrf.mxu0
      %v2874 = vadd.f32 0.0, %v2873
      %2875 = vmatmul.bf16.gmra.mxu0 %v2742
      %v2876 = vpop.f32.mrf.mxu0
      %v2877 = vadd.f32 0.0, %v2876
      %v2878 = vpop.f32.mrf.mxu0
      %v2879 = vadd.f32 0.0, %v2878
      %2880 = vdwg.mxu0
      %v2881 = vadd.f32 %v2667, %v2802
      %v2882 = vadd.f32 %v2668, %v2804
      %v2883 = vadd.f32 %v2669, %v2807
      %v2884 = vadd.f32 %v2670, %v2809
      %v2885 = vadd.f32 %v2671, %v2812
      %v2886 = vadd.f32 %v2672, %v2814
      %v2887 = vadd.f32 %v2673, %v2817
      %v2888 = vadd.f32 %v2674, %v2819
      %v2889 = vadd.f32 %v2675, %v2822
      %v2890 = vadd.f32 %v2676, %v2824
      %v2891 = vadd.f32 %v2677, %v2827
      %v2892 = vadd.f32 %v2678, %v2829
      %v2893 = vadd.f32 %v2679, %v2832
      %v2894 = vadd.f32 %v2680, %v2834
      %v2895 = vadd.f32 %v2681, %v2837
      %v2896 = vadd.f32 %v2682, %v2839
      %v2897 = vadd.f32 %v2683, %v2842
      %v2898 = vadd.f32 %v2684, %v2844
      %v2899 = vadd.f32 %v2685, %v2847
      %v2900 = vadd.f32 %v2686, %v2849
      %v2901 = vadd.f32 %v2687, %v2852
      %v2902 = vadd.f32 %v2688, %v2854
      %v2903 = vadd.f32 %v2689, %v2857
      %v2904 = vadd.f32 %v2690, %v2859
      %v2905 = vadd.f32 %v2691, %v2862
      %v2906 = vadd.f32 %v2692, %v2864
      %v2907 = vadd.f32 %v2693, %v2867
      %v2908 = vadd.f32 %v2694, %v2869
      %v2909 = vadd.f32 %v2695, %v2872
      %v2910 = vadd.f32 %v2696, %v2874
      %v2911 = vadd.f32 %v2697, %v2877
      %v2912 = vadd.f32 %v2698, %v2879
      %v2914 = vrot.slane %v665, 5
      %v2915 = vrot.slane %v2914, 4
      %v2916 = vrot.slane %v666, 5
      %v2917 = vsel %vm1540, %v2915, %v2916
      %v2918 = vrot.slane %v2916, 4
      %v2919 = vrot.slane %v667, 5
      %v2920 = vsel %vm1540, %v2918, %v2919
      %s2921 = scalar_lea.vmem %s323, 512
      %v2922 = vld [vmem:[%s2921] sm:$0xf]
      %v2923 = vld [vmem:[%s2921 + $0x4] sm:$0xf]
      %v2924 = vld [vmem:[%s2921 + $0x8] sm:$0xf]
      %v2925 = vld [vmem:[%s2921 + $0xc] sm:$0xf]
      %v2926 = vld [vmem:[%s2921 + $0x10] sm:$0xf]
      %v2927 = vld [vmem:[%s2921 + $0x14] sm:$0xf]
      %v2928 = vld [vmem:[%s2921 + $0x18] sm:$0xf]
      %v2929 = vld [vmem:[%s2921 + $0x1c] sm:$0xf]
      %v2930 = vld [vmem:[%s2921 + $0x20] sm:$0xf]
      %v2931 = vld [vmem:[%s2921 + $0x24] sm:$0xf]
      %v2932 = vld [vmem:[%s2921 + $0x28] sm:$0xf]
      %v2933 = vld [vmem:[%s2921 + $0x2c] sm:$0xf]
      %v2934 = vld [vmem:[%s2921 + $0x30] sm:$0xf]
      %v2935 = vld [vmem:[%s2921 + $0x34] sm:$0xf]
      %v2936 = vld [vmem:[%s2921 + $0x38] sm:$0xf]
      %v2937 = vld [vmem:[%s2921 + $0x3c] sm:$0xf]
      %v2938 = vunpack.c.l.b16 %v2917
      %v2939 = vunpack.c.l.b16 %v2920
      %v2940 = vpack.c.b16 %v2939, %v2938
      %v2958 = vunpack.c.l.b16 %v2922
      %v2959 = vunpack.c.l.b16 %v2923
      %v2960 = vunpack.c.l.b16 %v2924
      %v2961 = vunpack.c.l.b16 %v2925
      %v2962 = vunpack.c.l.b16 %v2926
      %v2963 = vunpack.c.l.b16 %v2927
      %v2964 = vunpack.c.l.b16 %v2928
      %v2965 = vunpack.c.l.b16 %v2929
      %v2966 = vunpack.c.l.b16 %v2930
      %v2967 = vunpack.c.l.b16 %v2931
      %v2968 = vunpack.c.l.b16 %v2932
      %v2969 = vunpack.c.l.b16 %v2933
      %v2970 = vunpack.c.l.b16 %v2934
      %v2971 = vunpack.c.l.b16 %v2935
      %v2972 = vunpack.c.l.b16 %v2936
      %v2973 = vunpack.c.l.b16 %v2937
      %v2974 = vpack.c.b16 %v2959, %v2958
      %v2975 = vpack.c.b16 %v2961, %v2960
      %v2976 = vpack.c.b16 %v2963, %v2962
      %v2977 = vpack.c.b16 %v2965, %v2964
      %v2978 = vpack.c.b16 %v2967, %v2966
      %v2979 = vpack.c.b16 %v2969, %v2968
      %v2980 = vpack.c.b16 %v2971, %v2970
      %v2981 = vpack.c.b16 %v2973, %v2972
      %2990 = vmatpush.bf16.msra.mxu0 %v2981
      %2991 = vmatpush.bf16.msra.mxu0 %v2980
      %2992 = vmatpush.bf16.msra.mxu0 %v2979
      %2993 = vmatpush.bf16.msra.mxu0 %v2978
      %2994 = vmatpush.bf16.msra.mxu0 %v2977
      %2995 = vmatpush.bf16.msra.mxu0 %v2976
      %2996 = vmatpush.bf16.msra.mxu0 %v2975
      %2997 = vmatpush.bf16.msra.mxu0 %v2974
      %2998 = vmatmul.bf16.gmra.mxu0 %v1704
      %v2999 = vpop.f32.mrf.mxu0
      %v3000 = vadd.f32 0.0, %v2999
      %v3001 = vpop.f32.mrf.mxu0
      %v3002 = vadd.f32 0.0, %v3001
      %3003 = vmatmul.bf16.gmra.mxu0 %v1705
      %v3004 = vpop.f32.mrf.mxu0
      %v3005 = vadd.f32 0.0, %v3004
      %v3006 = vpop.f32.mrf.mxu0
      %v3007 = vadd.f32 0.0, %v3006
      %3008 = vmatmul.bf16.gmra.mxu0 %v1706
      %v3009 = vpop.f32.mrf.mxu0
      %v3010 = vadd.f32 0.0, %v3009
      %v3011 = vpop.f32.mrf.mxu0
      %v3012 = vadd.f32 0.0, %v3011
      %3013 = vmatmul.bf16.gmra.mxu0 %v1707
      %v3014 = vpop.f32.mrf.mxu0
      %v3015 = vadd.f32 0.0, %v3014
      %v3016 = vpop.f32.mrf.mxu0
      %v3017 = vadd.f32 0.0, %v3016
      %3018 = vmatmul.bf16.gmra.mxu0 %v1708
      %v3019 = vpop.f32.mrf.mxu0
      %v3020 = vadd.f32 0.0, %v3019
      %v3021 = vpop.f32.mrf.mxu0
      %v3022 = vadd.f32 0.0, %v3021
      %3023 = vmatmul.bf16.gmra.mxu0 %v1709
      %v3024 = vpop.f32.mrf.mxu0
      %v3025 = vadd.f32 0.0, %v3024
      %v3026 = vpop.f32.mrf.mxu0
      %v3027 = vadd.f32 0.0, %v3026
      %3028 = vmatmul.bf16.gmra.mxu0 %v1710
      %v3029 = vpop.f32.mrf.mxu0
      %v3030 = vadd.f32 0.0, %v3029
      %v3031 = vpop.f32.mrf.mxu0
      %v3032 = vadd.f32 0.0, %v3031
      %3033 = vmatmul.bf16.gmra.mxu0 %v1711
      %v3034 = vpop.f32.mrf.mxu0
      %v3035 = vadd.f32 0.0, %v3034
      %v3036 = vpop.f32.mrf.mxu0
      %v3037 = vadd.f32 0.0, %v3036
      %3038 = vmatmul.bf16.gmra.mxu0 %v1712
      %v3039 = vpop.f32.mrf.mxu0
      %v3040 = vadd.f32 0.0, %v3039
      %v3041 = vpop.f32.mrf.mxu0
      %v3042 = vadd.f32 0.0, %v3041
      %3043 = vmatmul.bf16.gmra.mxu0 %v1713
      %v3044 = vpop.f32.mrf.mxu0
      %v3045 = vadd.f32 0.0, %v3044
      %v3046 = vpop.f32.mrf.mxu0
      %v3047 = vadd.f32 0.0, %v3046
      %3048 = vmatmul.bf16.gmra.mxu0 %v1714
      %v3049 = vpop.f32.mrf.mxu0
      %v3050 = vadd.f32 0.0, %v3049
      %v3051 = vpop.f32.mrf.mxu0
      %v3052 = vadd.f32 0.0, %v3051
      %3053 = vmatmul.bf16.gmra.mxu0 %v1715
      %v3054 = vpop.f32.mrf.mxu0
      %v3055 = vadd.f32 0.0, %v3054
      %v3056 = vpop.f32.mrf.mxu0
      %v3057 = vadd.f32 0.0, %v3056
      %3058 = vmatmul.bf16.gmra.mxu0 %v1716
      %v3059 = vpop.f32.mrf.mxu0
      %v3060 = vadd.f32 0.0, %v3059
      %v3061 = vpop.f32.mrf.mxu0
      %v3062 = vadd.f32 0.0, %v3061
      %3063 = vmatmul.bf16.gmra.mxu0 %v1717
      %v3064 = vpop.f32.mrf.mxu0
      %v3065 = vadd.f32 0.0, %v3064
      %v3066 = vpop.f32.mrf.mxu0
      %v3067 = vadd.f32 0.0, %v3066
      %3068 = vmatmul.bf16.gmra.mxu0 %v2336
      %v3069 = vpop.f32.mrf.mxu0
      %v3070 = vadd.f32 0.0, %v3069
      %v3071 = vpop.f32.mrf.mxu0
      %v3072 = vadd.f32 0.0, %v3071
      %3073 = vmatmul.bf16.gmra.mxu0 %v2940
      %v3074 = vpop.f32.mrf.mxu0
      %v3075 = vadd.f32 0.0, %v3074
      %v3076 = vpop.f32.mrf.mxu0
      %v3077 = vadd.f32 0.0, %v3076
      %3078 = vdwg.mxu0
      %v3079 = vadd.f32 %v2881, %v3000
      %v3080 = vadd.f32 %v2882, %v3002
      %v3081 = vadd.f32 %v2883, %v3005
      %v3082 = vadd.f32 %v2884, %v3007
      %v3083 = vadd.f32 %v2885, %v3010
      %v3084 = vadd.f32 %v2886, %v3012
      %v3085 = vadd.f32 %v2887, %v3015
      %v3086 = vadd.f32 %v2888, %v3017
      %v3087 = vadd.f32 %v2889, %v3020
      %v3088 = vadd.f32 %v2890, %v3022
      %v3089 = vadd.f32 %v2891, %v3025
      %v3090 = vadd.f32 %v2892, %v3027
      %v3091 = vadd.f32 %v2893, %v3030
      %v3092 = vadd.f32 %v2894, %v3032
      %v3093 = vadd.f32 %v2895, %v3035
      %v3094 = vadd.f32 %v2896, %v3037
      %v3095 = vadd.f32 %v2897, %v3040
      %v3096 = vadd.f32 %v2898, %v3042
      %v3097 = vadd.f32 %v2899, %v3045
      %v3098 = vadd.f32 %v2900, %v3047
      %v3099 = vadd.f32 %v2901, %v3050
      %v3100 = vadd.f32 %v2902, %v3052
      %v3101 = vadd.f32 %v2903, %v3055
      %v3102 = vadd.f32 %v2904, %v3057
      %v3103 = vadd.f32 %v2905, %v3060
      %v3104 = vadd.f32 %v2906, %v3062
      %v3105 = vadd.f32 %v2907, %v3065
      %v3106 = vadd.f32 %v2908, %v3067
      %v3107 = vadd.f32 %v2909, %v3070
      %v3108 = vadd.f32 %v2910, %v3072
      %v3109 = vadd.f32 %v2911, %v3075
      %v3110 = vadd.f32 %v2912, %v3077
      %v3111 = vld [vmem:[%s326] sm:$0x1]
      %v3113 = vperm.slane %v3111, 0
      %v3115 = vmul.f32 %v3079, %v3113
      %v3116 = vmul.f32 %v3080, %v3113
      %v3117 = vmul.f32 %v3081, %v3113
      %v3118 = vmul.f32 %v3082, %v3113
      %v3119 = vmul.f32 %v3083, %v3113
      %v3120 = vmul.f32 %v3084, %v3113
      %v3121 = vmul.f32 %v3085, %v3113
      %v3122 = vmul.f32 %v3086, %v3113
      %v3123 = vmul.f32 %v3087, %v3113
      %v3124 = vmul.f32 %v3088, %v3113
      %v3125 = vmul.f32 %v3089, %v3113
      %v3126 = vmul.f32 %v3090, %v3113
      %v3127 = vmul.f32 %v3091, %v3113
      %v3128 = vmul.f32 %v3092, %v3113
      %v3129 = vmul.f32 %v3093, %v3113
      %v3130 = vmul.f32 %v3094, %v3113
      %v3131 = vmul.f32 %v3095, %v3113
      %v3132 = vmul.f32 %v3096, %v3113
      %v3133 = vmul.f32 %v3097, %v3113
      %v3134 = vmul.f32 %v3098, %v3113
      %v3135 = vmul.f32 %v3099, %v3113
      %v3136 = vmul.f32 %v3100, %v3113
      %v3137 = vmul.f32 %v3101, %v3113
      %v3138 = vmul.f32 %v3102, %v3113
      %v3139 = vmul.f32 %v3103, %v3113
      %v3140 = vmul.f32 %v3104, %v3113
      %v3141 = vmul.f32 %v3105, %v3113
      %v3142 = vmul.f32 %v3106, %v3113
      %v3143 = vmul.f32 %v3107, %v3113
      %v3144 = vmul.f32 %v3108, %v3113
      %v3145 = vmul.f32 %v3109, %v3113
      %v3146 = vmul.f32 %v3110, %v3113
      %v3147 = vld [vmem:[%s329] sm:$0x1]
      %v3149 = vperm.slane %v3147, 0
      %v3151 = vadd.f32 %v3115, %v3149
      %v3152 = vadd.f32 %v3116, %v3149
      %v3153 = vadd.f32 %v3117, %v3149
      %v3154 = vadd.f32 %v3118, %v3149
      %v3155 = vadd.f32 %v3119, %v3149
      %v3156 = vadd.f32 %v3120, %v3149
      %v3157 = vadd.f32 %v3121, %v3149
      %v3158 = vadd.f32 %v3122, %v3149
      %v3159 = vadd.f32 %v3123, %v3149
      %v3160 = vadd.f32 %v3124, %v3149
      %v3161 = vadd.f32 %v3125, %v3149
      %v3162 = vadd.f32 %v3126, %v3149
      %v3163 = vadd.f32 %v3127, %v3149
      %v3164 = vadd.f32 %v3128, %v3149
      %v3165 = vadd.f32 %v3129, %v3149
      %v3166 = vadd.f32 %v3130, %v3149
      %v3167 = vadd.f32 %v3131, %v3149
      %v3168 = vadd.f32 %v3132, %v3149
      %v3169 = vadd.f32 %v3133, %v3149
      %v3170 = vadd.f32 %v3134, %v3149
      %v3171 = vadd.f32 %v3135, %v3149
      %v3172 = vadd.f32 %v3136, %v3149
      %v3173 = vadd.f32 %v3137, %v3149
      %v3174 = vadd.f32 %v3138, %v3149
      %v3175 = vadd.f32 %v3139, %v3149
      %v3176 = vadd.f32 %v3140, %v3149
      %v3177 = vadd.f32 %v3141, %v3149
      %v3178 = vadd.f32 %v3142, %v3149
      %v3179 = vadd.f32 %v3143, %v3149
      %v3180 = vadd.f32 %v3144, %v3149
      %v3181 = vadd.f32 %v3145, %v3149
      %v3182 = vadd.f32 %v3146, %v3149
      %v3183 = vmax.f32 %v3151, 0.0
      %v3184 = vmax.f32 %v3152, 0.0
      %v3185 = vmax.f32 %v3153, 0.0
      %v3186 = vmax.f32 %v3154, 0.0
      %v3187 = vmax.f32 %v3155, 0.0
      %v3188 = vmax.f32 %v3156, 0.0
      %v3189 = vmax.f32 %v3157, 0.0
      %v3190 = vmax.f32 %v3158, 0.0
      %v3191 = vmax.f32 %v3159, 0.0
      %v3192 = vmax.f32 %v3160, 0.0
      %v3193 = vmax.f32 %v3161, 0.0
      %v3194 = vmax.f32 %v3162, 0.0
      %v3195 = vmax.f32 %v3163, 0.0
      %v3196 = vmax.f32 %v3164, 0.0
      %v3197 = vmax.f32 %v3165, 0.0
      %v3198 = vmax.f32 %v3166, 0.0
      %v3199 = vmax.f32 %v3167, 0.0
      %v3200 = vmax.f32 %v3168, 0.0
      %v3201 = vmax.f32 %v3169, 0.0
      %v3202 = vmax.f32 %v3170, 0.0
      %v3203 = vmax.f32 %v3171, 0.0
      %v3204 = vmax.f32 %v3172, 0.0
      %v3205 = vmax.f32 %v3173, 0.0
      %v3206 = vmax.f32 %v3174, 0.0
      %v3207 = vmax.f32 %v3175, 0.0
      %v3208 = vmax.f32 %v3176, 0.0
      %v3209 = vmax.f32 %v3177, 0.0
      %v3210 = vmax.f32 %v3178, 0.0
      %v3211 = vmax.f32 %v3179, 0.0
      %v3212 = vmax.f32 %v3180, 0.0
      %v3213 = vmax.f32 %v3181, 0.0
      %v3214 = vmax.f32 %v3182, 0.0
      %v3215 = vpack.c.bf16 %v3183, %v3183
      %v3216 = vpack.c.bf16 %v3184, %v3184
      %v3217 = vpack.c.bf16 %v3185, %v3185
      %v3218 = vpack.c.bf16 %v3186, %v3186
      %v3219 = vpack.c.bf16 %v3187, %v3187
      %v3220 = vpack.c.bf16 %v3188, %v3188
      %v3221 = vpack.c.bf16 %v3189, %v3189
      %v3222 = vpack.c.bf16 %v3190, %v3190
      %v3223 = vpack.c.bf16 %v3191, %v3191
      %v3224 = vpack.c.bf16 %v3192, %v3192
      %v3225 = vpack.c.bf16 %v3193, %v3193
      %v3226 = vpack.c.bf16 %v3194, %v3194
      %v3227 = vpack.c.bf16 %v3195, %v3195
      %v3228 = vpack.c.bf16 %v3196, %v3196
      %v3229 = vpack.c.bf16 %v3197, %v3197
      %v3230 = vpack.c.bf16 %v3198, %v3198
      %v3231 = vpack.c.bf16 %v3199, %v3199
      %v3232 = vpack.c.bf16 %v3200, %v3200
      %v3233 = vpack.c.bf16 %v3201, %v3201
      %v3234 = vpack.c.bf16 %v3202, %v3202
      %v3235 = vpack.c.bf16 %v3203, %v3203
      %v3236 = vpack.c.bf16 %v3204, %v3204
      %v3237 = vpack.c.bf16 %v3205, %v3205
      %v3238 = vpack.c.bf16 %v3206, %v3206
      %v3239 = vpack.c.bf16 %v3207, %v3207
      %v3240 = vpack.c.bf16 %v3208, %v3208
      %v3241 = vpack.c.bf16 %v3209, %v3209
      %v3242 = vpack.c.bf16 %v3210, %v3210
      %v3243 = vpack.c.bf16 %v3211, %v3211
      %v3244 = vpack.c.bf16 %v3212, %v3212
      %v3245 = vpack.c.bf16 %v3213, %v3213
      %v3246 = vpack.c.bf16 %v3214, %v3214
      %3247 = vst [vmem:[%s342] sm:$0xf] %v3215
      %3248 = vst [vmem:[%s342 + $0x4] sm:$0xf] %v3216
      %3249 = vst [vmem:[%s342 + $0x8] sm:$0xf] %v3217
      %3250 = vst [vmem:[%s342 + $0xc] sm:$0xf] %v3218
      %3251 = vst [vmem:[%s342 + $0x10] sm:$0xf] %v3219
      %3252 = vst [vmem:[%s342 + $0x14] sm:$0xf] %v3220
      %3253 = vst [vmem:[%s342 + $0x18] sm:$0xf] %v3221
      %3254 = vst [vmem:[%s342 + $0x1c] sm:$0xf] %v3222
      %3255 = vst [vmem:[%s342 + $0x20] sm:$0xf] %v3223
      %3256 = vst [vmem:[%s342 + $0x24] sm:$0xf] %v3224
      %3257 = vst [vmem:[%s342 + $0x28] sm:$0xf] %v3225
      %3258 = vst [vmem:[%s342 + $0x2c] sm:$0xf] %v3226
      %3259 = vst [vmem:[%s342 + $0x30] sm:$0xf] %v3227
      %3260 = vst [vmem:[%s342 + $0x34] sm:$0xf] %v3228
      %3261 = vst [vmem:[%s342 + $0x38] sm:$0xf] %v3229
      %3262 = vst [vmem:[%s342 + $0x3c] sm:$0xf] %v3230
      %3263 = vst [vmem:[%s342 + $0x40] sm:$0xf] %v3231
      %3264 = vst [vmem:[%s342 + $0x44] sm:$0xf] %v3232
      %3265 = vst [vmem:[%s342 + $0x48] sm:$0xf] %v3233
      %3266 = vst [vmem:[%s342 + $0x4c] sm:$0xf] %v3234
      %3267 = vst [vmem:[%s342 + $0x50] sm:$0xf] %v3235
      %3268 = vst [vmem:[%s342 + $0x54] sm:$0xf] %v3236
      %3269 = vst [vmem:[%s342 + $0x58] sm:$0xf] %v3237
      %3270 = vst [vmem:[%s342 + $0x5c] sm:$0xf] %v3238
      %3271 = vst [vmem:[%s342 + $0x60] sm:$0xf] %v3239
      %3272 = vst [vmem:[%s342 + $0x64] sm:$0xf] %v3240
      %3273 = vst [vmem:[%s342 + $0x68] sm:$0xf] %v3241
      %3274 = vst [vmem:[%s342 + $0x6c] sm:$0xf] %v3242
      %3275 = vst [vmem:[%s342 + $0x70] sm:$0xf] %v3243
      %3276 = vst [vmem:[%s342 + $0x74] sm:$0xf] %v3244
      %3277 = vst [vmem:[%s342 + $0x78] sm:$0xf] %v3245
      %3278 = vst [vmem:[%s342 + $0x7c] sm:$0xf] %v3246
      %s3279 = smul.u32 16, %s22
      %p3280 = scmp.lt.s32.totalorder %s21, 1
      %s3281 = scalar_select %p3280, %s21, 1
      %p3282 = scmp.lt.s32.totalorder %s3279, 15
      %s3283 = scalar_select %p3282, %s3279, 15
      %p3284 = scmp.lt.s32.totalorder %s23, 0
      %s3285 = scalar_select %p3284, %s23, 0
      %s3286 = smul.addr %s3283, 2
      %s3287 = sadd.s32 %s3285, %s3286
      %s3288 = smul.addr %s3281, 32
      %s3289 = sadd.s32 %s3287, %s3288
      %s3290 = smul.addr %s3289, 4
      %s3291 = scalar_lea.vmem %s5, %s3290
      // Predicated region
      $region41: #{cam_forward.8} parent=39 // pred_check
        %p3292 = pneg %p191
      $region42: #{cam_forward.8} parent=39 // pred_check_branch
        %3294 = sbr.rel (%p3292) target = $region44
      $region43: #{cam_forward.8} parent=39 // pred_region
        %s3295 = smul.u32 16, %s22
      $region44: #{cam_forward.8} parent=39 // pred_fallthru
        _
    $region40: #{cam_forward.8} parent=5 // pred_fallthru
      _
    %p3296 = scmp.le.s32.totalorder 2, %s11
    // Predicated region
    $region45: #{cam_forward.8} parent=5 // pred_check
      %p3297 = pneg %p3296
    $region46: #{cam_forward.8} parent=5 // pred_check_branch
      %3299 = sbr.rel (%p3297) target = $region48
    $region47: #{cam_forward.8} parent=5 // pred_region
      %s3300 = ssub.s32 %s11, 2
      // Predicated region
      $region49: #{cam_forward.8} parent=47 // pred_check
        %p3301 = pneg %p197
      $region50: #{cam_forward.8} parent=47 // pred_check_branch
        %3303 = sbr.rel (%p3301) target = $region52
      $region51: #{cam_forward.8} parent=47 // pred_region
        %s3304 = smul.u32 16, %s25
        %p3305 = scmp.lt.s32.totalorder %s24, 1
        %s3306 = scalar_select %p3305, %s24, 1
        %p3307 = scmp.lt.s32.totalorder %s3304, 15
        %s3308 = scalar_select %p3307, %s3304, 15
        %p3309 = scmp.lt.s32.totalorder %s26, 0
        %s3310 = scalar_select %p3309, %s26, 0
        %s3311 = smul.addr %s3308, 2
        %s3312 = sadd.s32 %s3310, %s3311
        %s3313 = smul.addr %s3306, 32
        %s3314 = sadd.s32 %s3312, %s3313
        %s3315 = smul.addr %s3314, 4
        %s3316 = scalar_lea.vmem %s5, %s3315
      $region52: #{cam_forward.8} parent=47 // pred_fallthru
        _
    $region48: #{cam_forward.8} parent=5 // pred_fallthru
      _
  $region6: #{cam_forward.8} parent=0 // loop_footer
    %s15 = sadd.s32 1, %s11
  $region7: #{cam_forward.8} parent=0 // loop_footer_branch
    %10 = sbr.rel target = $region3
  $region8: #{cam_forward.8} parent=0 // loop_exit
    _

</llo_original>
